<compile_context>
chip_gen: v7x
topology: tpu7x:2x2x1
jax: 0.10.0
libtpu: 0.0.40
codegen_flags: <defaults>
</compile_context>

<pallas_src>
import jax
import jax.numpy as jnp
from jax.experimental import pallas as pl
from jax.experimental.pallas import tpu as pltpu

BN_EPS = 1e-5
_LANE = 128


def _round_up(x, m):
    return -(-x // m) * m


def _pad_channels(c):
    """Lane padding policy: multiple of 128 only above 128, else multiple of 8."""
    return _round_up(c, _LANE) if c > _LANE else _round_up(c, 8)


def _conv3x3_flat(a, w_ref, height, width):
    """'Same' 3x3 conv on one image whose pixels are flattened to (H*W, Cin).

    `a` is bf16; 9 shifted (H*W, Cin) @ (Cin, Cout) MXU matmuls accumulate in
    f32.  Row (H) borders are handled by the zero fill of the flat shift; the
    column (W) borders by two pre-masked copies of `a` (each shared by the
    three dw=+1 / dw=-1 taps) instead of a per-tap select.
    """
    rows, cin = a.shape
    cout = w_ref.shape[-1]
    col = jax.lax.broadcasted_iota(jnp.int32, (rows, 1), 0) % width
    zero = jnp.zeros_like(a)
    src = {
        -1: jnp.where(col < width - 1, a, zero),  # dw=-1 taps never read source col W-1
        0: a,
        1: jnp.where(col > 0, a, zero),           # dw=+1 taps never read source col 0
    }
    acc = jnp.zeros((rows, cout), jnp.float32)
    for dh in (-1, 0, 1):
        for dw in (-1, 0, 1):
            shift = dh * width + dw               # flattened source offset
            s = src[dw]
            if shift > 0:
                shifted = jnp.concatenate(
                    [s[shift:, :], jnp.zeros((shift, cin), s.dtype)], axis=0)
            elif shift < 0:
                shifted = jnp.concatenate(
                    [jnp.zeros((-shift, cin), s.dtype), s[:shift, :]], axis=0)
            else:
                shifted = s
            k = (dh + 1) * 3 + (dw + 1)           # matches (3,3,Cin,Cout).reshape(9,...)
            acc = acc + jnp.dot(shifted, w_ref[k],
                                preferred_element_type=jnp.float32)
    return acc


def _make_conv_stats_kernel(apply_bn_relu, height, width):
    """3x3 conv over one flat image tile (+ optional fused per-channel affine +
    ReLU prologue).  Emits per-step partial per-channel sum / sum-of-squares
    (training-mode BatchNorm statistics); the reduction over the grid happens
    in the wrapper, keeping the grid axis fully parallel."""
    def kernel(*refs):
        if apply_bn_relu:
            x_ref, scale_ref, shift_ref, w_ref, y_ref, stats_ref = refs
        else:
            x_ref, w_ref, y_ref, stats_ref = refs

        a = x_ref[0].astype(jnp.float32)                        # (H*W, Cin)
        if apply_bn_relu:
            a = jnp.maximum(a * scale_ref[...] + shift_ref[...], 0.0)
        a = a.astype(jnp.bfloat16)                              # bf16 MXU operand

        acc = _conv3x3_flat(a, w_ref, height, width)            # (H*W, Cout) f32
        y_ref[0] = acc.astype(y_ref.dtype)

        ssum = jnp.sum(acc, axis=0, keepdims=True)              # (1, Cout)
        ssq = jnp.sum(acc * acc, axis=0, keepdims=True)         # (1, Cout)
        stats_ref[0] = jnp.concatenate([ssum, ssq], axis=0)     # per-step partial

    return kernel


def _bn_add_relu_kernel(y_ref, scale_ref, shift_ref, res_ref, out_ref):
    y = y_ref[...].astype(jnp.float32)
    out_ref[...] = jnp.maximum(
        y * scale_ref[...] + shift_ref[...] + res_ref[...], 0.0)


def basic_block_forward(x_nchw, w1, g1, b1, w2, g2, b2):
    """x_nchw: (N, C, H, W) f32; w*: (3, 3, Cin, Cout) (= torch weight.permute(2,3,1,0));
    g*/b*: (Cout,). Returns (N, Cout, H, W) f32."""
    n, c, h, w = x_nchw.shape
    cout = w1.shape[-1]
    assert w1.shape == (3, 3, c, cout), "conv1 weight/input channel mismatch"
    assert w2.shape == (3, 3, cout, cout), "conv2 weight shape mismatch"
    assert c == cout, "project=None, stride=1 residual requires inplanes == planes"

    cp = _pad_channels(c)
    rows_img = h * w
    rows = n * rows_img

    # NHWC, channel-padded and flattened to (N, H*W, Cp) once in the wrapper so
    # the kernels never reshape across the (8,128) tiling.  Padded channels
    # stay exactly zero through the whole block.
    x_nhwc = jnp.transpose(x_nchw, (0, 2, 3, 1))
    x_flat = jnp.pad(x_nhwc, ((0, 0), (0, 0), (0, 0), (0, cp - c))
                     ).reshape(n, rows_img, cp)

    def pad_w(wk):
        wk = jnp.pad(wk, ((0, 0), (0, 0),
                          (0, cp - wk.shape[2]), (0, cp - wk.shape[3])))
        return wk.reshape(9, cp, cp).astype(jnp.bfloat16)       # bf16 resident weights

    w1p, w2p = pad_w(w1), pad_w(w2)
    g1p = jnp.pad(g1, (0, cp - cout)).reshape(1, cp)
    b1p = jnp.pad(b1, (0, cp - cout)).reshape(1, cp)
    g2p = jnp.pad(g2, (0, cp - cout)).reshape(1, cp)
    b2p = jnp.pad(b2, (0, cp - cout)).reshape(1, cp)

    img_spec = pl.BlockSpec((1, rows_img, cp), lambda i: (i, 0, 0))
    w_spec = pl.BlockSpec((9, cp, cp), lambda i: (0, 0, 0))
    vec_spec = pl.BlockSpec((1, cp), lambda i: (0, 0))
    stats_spec = pl.BlockSpec((1, 2, cp), lambda i: (i, 0, 0))  # per-step partial stats
    conv_params = pltpu.CompilerParams(dimension_semantics=("parallel",))

    # ---- pass 1: conv1 (per-image tiles, bf16 matmul) + partial BN1 stats ----
    y1, stats1 = pl.pallas_call(
        _make_conv_stats_kernel(False, h, w),
        grid=(n,),
        in_specs=[img_spec, w_spec],
        out_specs=(img_spec, stats_spec),
        out_shape=(jax.ShapeDtypeStruct((n, rows_img, cp), jnp.bfloat16),
                   jax.ShapeDtypeStruct((n, 2, cp), jnp.float32)),
        compiler_params=conv_params,
    )(x_flat, w1p)

    count = jnp.float32(rows)

    def bn_affine(stats, gamma_p, beta_p):
        s = jnp.sum(stats, axis=0)                              # reduce grid partials
        mean = s[0:1] / count
        var = jnp.maximum(s[1:2] / count - mean * mean, 0.0)    # biased var (training BN)
        scale = gamma_p * jax.lax.rsqrt(var + BN_EPS)
        return scale, beta_p - mean * scale

    scale1, shift1 = bn_affine(stats1, g1p, b1p)

    # ---- pass 2: fused bn1-apply + relu + conv2 + partial BN2 stats ----------
    y2, stats2 = pl.pallas_call(
        _make_conv_stats_kernel(True, h, w),
        grid=(n,),
        in_specs=[img_spec, vec_spec, vec_spec, w_spec],
        out_specs=(img_spec, stats_spec),
        out_shape=(jax.ShapeDtypeStruct((n, rows_img, cp), jnp.bfloat16),
                   jax.ShapeDtypeStruct((n, 2, cp), jnp.float32)),
        compiler_params=conv_params,
    )(y1, scale1, shift1, w2p)

    scale2, shift2 = bn_affine(stats2, g2p, b2p)

    # ---- pass 3: bn2-apply + residual add + relu (fixed lane-dense row tiles)
    if rows >= 4096:
        tr = 1024
    elif rows >= 512:
        tr = 512
    else:
        tr = _round_up(rows, 8)
    rows_p = _round_up(rows, tr)                                # never whole-tensor

    y2f = y2.reshape(rows, cp)
    xf = x_flat.reshape(rows, cp)
    if rows_p != rows:
        y2f = jnp.pad(y2f, ((0, rows_p - rows), (0, 0)))
        xf = jnp.pad(xf, ((0, rows_p - rows), (0, 0)))

    row_spec = pl.BlockSpec((tr, cp), lambda i: (i, 0))
    out_flat = pl.pallas_call(
        _bn_add_relu_kernel,
        grid=(rows_p // tr,),
        in_specs=[row_spec, vec_spec, vec_spec, row_spec],
        out_specs=row_spec,
        out_shape=jax.ShapeDtypeStruct((rows_p, cp), jnp.float32),
        compiler_params=pltpu.CompilerParams(dimension_semantics=("parallel",)),
    )(y2f, scale2, shift2, xf)

    out = out_flat[:rows].reshape(n, h, w, cp)[..., :cout]
    return jnp.transpose(out, (0, 3, 1, 2))                     # back to NCHW


def _reference_forward(x_nchw, w1, g1, b1, w2, g2, b2):
    """Pure-JAX/XLA reference of the PyTorch BasicBlock forward (training-mode BN)."""
    xt = jnp.transpose(x_nchw, (0, 2, 3, 1))

    def conv(a, wk):
        return jax.lax.conv_general_dilated(
            a, wk, window_strides=(1, 1), padding="SAME",
            dimension_numbers=("NHWC", "HWIO", "NHWC"))

    def bn(a, g, b):
        mean = jnp.mean(a, axis=(0, 1, 2))
        var = jnp.mean(jnp.square(a - mean), axis=(0, 1, 2))
        return (a - mean) * jax.lax.rsqrt(var + BN_EPS) * g + b

    o = jnp.maximum(bn(conv(xt, w1), g1, b1), 0.0)
    o = jnp.maximum(bn(conv(o, w2), g2, b2) + xt, 0.0)
    return jnp.transpose(o, (0, 3, 1, 2))


if __name__ == "__main__":
    # Small deterministic setup consistent with BasicBlock(inplanes=planes, stride=1).
    N, C, H, W = 2, 8, 16, 16
    inplanes = planes = C

    key = jax.random.PRNGKey(0)
    kx, kw1, kw2 = jax.random.split(key, 3)

    x = jax.random.normal(kx, (N, C, H, W), dtype=jnp.float32)

    # Deterministic parameter init (kaiming-like scale); BN: gamma=1, beta=0.
    w1 = jax.random.normal(kw1, (3, 3, inplanes, planes), dtype=jnp.float32) * (
        2.0 / (9 * inplanes)) ** 0.5
    w2 = jax.random.normal(kw2, (3, 3, planes, planes), dtype=jnp.float32) * (
        2.0 / (9 * planes)) ** 0.5
    g1 = jnp.ones((planes,), jnp.float32)
    b1 = jnp.zeros((planes,), jnp.float32)
    g2 = jnp.ones((planes,), jnp.float32)
    b2 = jnp.zeros((planes,), jnp.float32)

    out = jax.jit(basic_block_forward)(x, w1, g1, b1, w2, g2, b2)
    jax.block_until_ready(out)
    assert out.shape == (N, planes, H, W)

    ref = _reference_forward(x, w1, g1, b1, w2, g2, b2)
    max_err = float(jnp.max(jnp.abs(out - ref)))
    # bf16 MXU operands + bf16 intermediates -> loosened vs the pure-f32 kernel.
    assert max_err < 6e-2, f"max abs error vs reference: {max_err}"

    print("KERNEL_OK")
</pallas_src>

<mosaic_0001>
module attributes {stable_mosaic.version = 11 : i64} {
  func.func @kernel(%arg0: i32, %arg1: memref<1x256x8xf32, #tpu.memory_space<vmem>>, %arg2: memref<9x8x8xbf16, #tpu.memory_space<vmem>>, %arg3: memref<1x256x8xbf16, #tpu.memory_space<vmem>>, %arg4: memref<1x2x8xf32, #tpu.memory_space<vmem>>) attributes {dimension_semantics = [#tpu.dimension_semantics<parallel>], iteration_bounds = array<i64: 2>, scalar_prefetch = 0 : i64, scratch_operands = 0 : i64, tpu.core_type = #tpu.core_type<tc>, window_params = [{transform_indices = @transform_0, window_bounds = array<i64: 1, 256, 8>}, {pipeline_mode = #tpu.pipeline_mode<synchronous>, transform_indices = @transform_1, window_bounds = array<i64: 9, 8, 8>}, {transform_indices = @transform_2, window_bounds = array<i64: 1, 256, 8>}, {transform_indices = @transform_3, window_bounds = array<i64: 1, 2, 8>}]} {
    %c0 = arith.constant 0 : index
    %c0_0 = arith.constant 0 : index
    %c0_1 = arith.constant 0 : index
    %0 = vector.load %arg1[%c0, %c0_0, %c0_1] : memref<1x256x8xf32, #tpu.memory_space<vmem>>, vector<1x256x8xf32>
    %1 = vector.shape_cast %0 : vector<1x256x8xf32> to vector<256x8xf32>
    %2 = arith.truncf %1 : vector<256x8xf32> to vector<256x8xbf16>
    %3 = tpu.iota {dimensions = array<i32: 0>} : vector<256x1xi32>
    %c16_i32 = arith.constant 16 : i32
    %c0_i32 = arith.constant 0 : i32
    %4 = arith.cmpi eq, %c16_i32, %c0_i32 : i32
    %c1_i32 = arith.constant 1 : i32
    %5 = arith.select %4, %c1_i32, %c16_i32 : i32
    %6 = vector.broadcast %5 : i32 to vector<256x1xi32>
    %7 = arith.remsi %3, %6 : vector<256x1xi32>
    %c0_i32_2 = arith.constant 0 : i32
    %8 = vector.broadcast %c0_i32_2 : i32 to vector<256x1xi32>
    %9 = arith.cmpi ne, %7, %8 : vector<256x1xi32>
    %c0_i32_3 = arith.constant 0 : i32
    %10 = vector.broadcast %c0_i32_3 : i32 to vector<256x1xi32>
    %11 = arith.cmpi slt, %7, %10 : vector<256x1xi32>
    %c0_i32_4 = arith.constant 0 : i32
    %12 = arith.cmpi slt, %5, %c0_i32_4 : i32
    %13 = vector.broadcast %12 : i1 to vector<256x1xi1>
    %14 = vector.broadcast %13 : vector<256x1xi1> to vector<256x1xi1>
    %15 = arith.xori %11, %14 : vector<256x1xi1>
    %16 = arith.andi %15, %9 : vector<256x1xi1>
    %17 = vector.broadcast %5 : i32 to vector<256x1xi32>
    %18 = arith.addi %7, %17 : vector<256x1xi32>
    %19 = arith.select %16, %18, %7 : vector<256x1xi1>, vector<256x1xi32>
    %cst = arith.constant 0.000000e+00 : bf16
    %20 = vector.broadcast %cst : bf16 to vector<256x8xbf16>
    %c15_i32 = arith.constant 15 : i32
    %21 = vector.broadcast %c15_i32 : i32 to vector<256x1xi32>
    %22 = arith.cmpi slt, %19, %21 : vector<256x1xi32>
    %23 = vector.shape_cast %22 : vector<256x1xi1> to vector<256x1xi1>
    %24 = vector.broadcast %23 : vector<256x1xi1> to vector<256x8xi1>
    %25 = arith.select %24, %2, %20 : vector<256x8xi1>, vector<256x8xbf16>
    %c0_i32_5 = arith.constant 0 : i32
    %26 = vector.broadcast %c0_i32_5 : i32 to vector<256x1xi32>
    %27 = arith.cmpi sgt, %19, %26 : vector<256x1xi32>
    %28 = vector.shape_cast %27 : vector<256x1xi1> to vector<256x1xi1>
    %29 = vector.broadcast %28 : vector<256x1xi1> to vector<256x8xi1>
    %30 = arith.select %29, %2, %20 : vector<256x8xi1>, vector<256x8xbf16>
    %cst_6 = arith.constant 0.000000e+00 : f32
    %31 = vector.broadcast %cst_6 : f32 to vector<256x8xf32>
    %cst_7 = arith.constant 0.000000e+00 : bf16
    %32 = vector.broadcast %cst_7 : bf16 to vector<17x8xbf16>
    %33 = vector.extract_strided_slice %25 {offsets = [0, 0], sizes = [239, 8], strides = [1, 1]} : vector<256x8xbf16> to vector<239x8xbf16>
    %34 = tpu.concatenate %32, %33 in 0 : vector<17x8xbf16>, vector<239x8xbf16> -> vector<256x8xbf16>
    %c0_8 = arith.constant 0 : index
    %c0_9 = arith.constant 0 : index
    %c0_10 = arith.constant 0 : index
    %35 = vector.load %arg2[%c0_8, %c0_9, %c0_10] : memref<9x8x8xbf16, #tpu.memory_space<vmem>>, vector<1x8x8xbf16>
    %36 = vector.shape_cast %35 : vector<1x8x8xbf16> to vector<8x8xbf16>
    %cst_11 = arith.constant dense<0.000000e+00> : vector<256x8xf32>
    %37 = tpu.matmul %34, %36, %cst_11 {dimension_numbers = #tpu.dot_dimension_numbers<[1], [0], [0], [1], [0, 0, 1, 1], [], []>} : vector<256x8xbf16>, vector<8x8xbf16>, vector<256x8xf32> -> vector<256x8xf32>
    %38 = arith.addf %31, %37 : vector<256x8xf32>
    %cst_12 = arith.constant 0.000000e+00 : bf16
    %39 = vector.broadcast %cst_12 : bf16 to vector<16x8xbf16>
    %40 = vector.extract_strided_slice %2 {offsets = [0, 0], sizes = [240, 8], strides = [1, 1]} : vector<256x8xbf16> to vector<240x8xbf16>
    %41 = tpu.concatenate %39, %40 in 0 : vector<16x8xbf16>, vector<240x8xbf16> -> vector<256x8xbf16>
    %c1 = arith.constant 1 : index
    %c0_13 = arith.constant 0 : index
    %c0_14 = arith.constant 0 : index
    %42 = vector.load %arg2[%c1, %c0_13, %c0_14] : memref<9x8x8xbf16, #tpu.memory_space<vmem>>, vector<1x8x8xbf16>
    %43 = vector.shape_cast %42 : vector<1x8x8xbf16> to vector<8x8xbf16>
    %cst_15 = arith.constant dense<0.000000e+00> : vector<256x8xf32>
    %44 = tpu.matmul %41, %43, %cst_15 {dimension_numbers = #tpu.dot_dimension_numbers<[1], [0], [0], [1], [0, 0, 1, 1], [], []>} : vector<256x8xbf16>, vector<8x8xbf16>, vector<256x8xf32> -> vector<256x8xf32>
    %45 = arith.addf %38, %44 : vector<256x8xf32>
    %cst_16 = arith.constant 0.000000e+00 : bf16
    %46 = vector.broadcast %cst_16 : bf16 to vector<15x8xbf16>
    %47 = vector.extract_strided_slice %30 {offsets = [0, 0], sizes = [241, 8], strides = [1, 1]} : vector<256x8xbf16> to vector<241x8xbf16>
    %48 = tpu.concatenate %46, %47 in 0 : vector<15x8xbf16>, vector<241x8xbf16> -> vector<256x8xbf16>
    %c2 = arith.constant 2 : index
    %c0_17 = arith.constant 0 : index
    %c0_18 = arith.constant 0 : index
    %49 = vector.load %arg2[%c2, %c0_17, %c0_18] : memref<9x8x8xbf16, #tpu.memory_space<vmem>>, vector<1x8x8xbf16>
    %50 = vector.shape_cast %49 : vector<1x8x8xbf16> to vector<8x8xbf16>
    %cst_19 = arith.constant dense<0.000000e+00> : vector<256x8xf32>
    %51 = tpu.matmul %48, %50, %cst_19 {dimension_numbers = #tpu.dot_dimension_numbers<[1], [0], [0], [1], [0, 0, 1, 1], [], []>} : vector<256x8xbf16>, vector<8x8xbf16>, vector<256x8xf32> -> vector<256x8xf32>
    %52 = arith.addf %45, %51 : vector<256x8xf32>
    %cst_20 = arith.constant 0.000000e+00 : bf16
    %53 = vector.broadcast %cst_20 : bf16 to vector<1x8xbf16>
    %54 = vector.extract_strided_slice %25 {offsets = [0, 0], sizes = [255, 8], strides = [1, 1]} : vector<256x8xbf16> to vector<255x8xbf16>
    %55 = tpu.concatenate %53, %54 in 0 : vector<1x8xbf16>, vector<255x8xbf16> -> vector<256x8xbf16>
    %c3 = arith.constant 3 : index
    %c0_21 = arith.constant 0 : index
    %c0_22 = arith.constant 0 : index
    %56 = vector.load %arg2[%c3, %c0_21, %c0_22] : memref<9x8x8xbf16, #tpu.memory_space<vmem>>, vector<1x8x8xbf16>
    %57 = vector.shape_cast %56 : vector<1x8x8xbf16> to vector<8x8xbf16>
    %cst_23 = arith.constant dense<0.000000e+00> : vector<256x8xf32>
    %58 = tpu.matmul %55, %57, %cst_23 {dimension_numbers = #tpu.dot_dimension_numbers<[1], [0], [0], [1], [0, 0, 1, 1], [], []>} : vector<256x8xbf16>, vector<8x8xbf16>, vector<256x8xf32> -> vector<256x8xf32>
    %59 = arith.addf %52, %58 : vector<256x8xf32>
    %c4 = arith.constant 4 : index
    %c0_24 = arith.constant 0 : index
    %c0_25 = arith.constant 0 : index
    %60 = vector.load %arg2[%c4, %c0_24, %c0_25] : memref<9x8x8xbf16, #tpu.memory_space<vmem>>, vector<1x8x8xbf16>
    %61 = vector.shape_cast %60 : vector<1x8x8xbf16> to vector<8x8xbf16>
    %cst_26 = arith.constant dense<0.000000e+00> : vector<256x8xf32>
    %62 = tpu.matmul %2, %61, %cst_26 {dimension_numbers = #tpu.dot_dimension_numbers<[1], [0], [0], [1], [0, 0, 1, 1], [], []>} : vector<256x8xbf16>, vector<8x8xbf16>, vector<256x8xf32> -> vector<256x8xf32>
    %63 = arith.addf %59, %62 : vector<256x8xf32>
    %64 = vector.extract_strided_slice %30 {offsets = [1, 0], sizes = [255, 8], strides = [1, 1]} : vector<256x8xbf16> to vector<255x8xbf16>
    %cst_27 = arith.constant 0.000000e+00 : bf16
    %65 = vector.broadcast %cst_27 : bf16 to vector<1x8xbf16>
    %66 = tpu.concatenate %64, %65 in 0 : vector<255x8xbf16>, vector<1x8xbf16> -> vector<256x8xbf16>
    %c5 = arith.constant 5 : index
    %c0_28 = arith.constant 0 : index
    %c0_29 = arith.constant 0 : index
    %67 = vector.load %arg2[%c5, %c0_28, %c0_29] : memref<9x8x8xbf16, #tpu.memory_space<vmem>>, vector<1x8x8xbf16>
    %68 = vector.shape_cast %67 : vector<1x8x8xbf16> to vector<8x8xbf16>
    %cst_30 = arith.constant dense<0.000000e+00> : vector<256x8xf32>
    %69 = tpu.matmul %66, %68, %cst_30 {dimension_numbers = #tpu.dot_dimension_numbers<[1], [0], [0], [1], [0, 0, 1, 1], [], []>} : vector<256x8xbf16>, vector<8x8xbf16>, vector<256x8xf32> -> vector<256x8xf32>
    %70 = arith.addf %63, %69 : vector<256x8xf32>
    %71 = vector.extract_strided_slice %25 {offsets = [15, 0], sizes = [241, 8], strides = [1, 1]} : vector<256x8xbf16> to vector<241x8xbf16>
    %cst_31 = arith.constant 0.000000e+00 : bf16
    %72 = vector.broadcast %cst_31 : bf16 to vector<15x8xbf16>
    %73 = tpu.concatenate %71, %72 in 0 : vector<241x8xbf16>, vector<15x8xbf16> -> vector<256x8xbf16>
    %c6 = arith.constant 6 : index
    %c0_32 = arith.constant 0 : index
    %c0_33 = arith.constant 0 : index
    %74 = vector.load %arg2[%c6, %c0_32, %c0_33] : memref<9x8x8xbf16, #tpu.memory_space<vmem>>, vector<1x8x8xbf16>
    %75 = vector.shape_cast %74 : vector<1x8x8xbf16> to vector<8x8xbf16>
    %cst_34 = arith.constant dense<0.000000e+00> : vector<256x8xf32>
    %76 = tpu.matmul %73, %75, %cst_34 {dimension_numbers = #tpu.dot_dimension_numbers<[1], [0], [0], [1], [0, 0, 1, 1], [], []>} : vector<256x8xbf16>, vector<8x8xbf16>, vector<256x8xf32> -> vector<256x8xf32>
    %77 = arith.addf %70, %76 : vector<256x8xf32>
    %78 = vector.extract_strided_slice %2 {offsets = [16, 0], sizes = [240, 8], strides = [1, 1]} : vector<256x8xbf16> to vector<240x8xbf16>
    %cst_35 = arith.constant 0.000000e+00 : bf16
    %79 = vector.broadcast %cst_35 : bf16 to vector<16x8xbf16>
    %80 = tpu.concatenate %78, %79 in 0 : vector<240x8xbf16>, vector<16x8xbf16> -> vector<256x8xbf16>
    %c7 = arith.constant 7 : index
    %c0_36 = arith.constant 0 : index
    %c0_37 = arith.constant 0 : index
    %81 = vector.load %arg2[%c7, %c0_36, %c0_37] : memref<9x8x8xbf16, #tpu.memory_space<vmem>>, vector<1x8x8xbf16>
    %82 = vector.shape_cast %81 : vector<1x8x8xbf16> to vector<8x8xbf16>
    %cst_38 = arith.constant dense<0.000000e+00> : vector<256x8xf32>
    %83 = tpu.matmul %80, %82, %cst_38 {dimension_numbers = #tpu.dot_dimension_numbers<[1], [0], [0], [1], [0, 0, 1, 1], [], []>} : vector<256x8xbf16>, vector<8x8xbf16>, vector<256x8xf32> -> vector<256x8xf32>
    %84 = arith.addf %77, %83 : vector<256x8xf32>
    %85 = vector.extract_strided_slice %30 {offsets = [17, 0], sizes = [239, 8], strides = [1, 1]} : vector<256x8xbf16> to vector<239x8xbf16>
    %cst_39 = arith.constant 0.000000e+00 : bf16
    %86 = vector.broadcast %cst_39 : bf16 to vector<17x8xbf16>
    %87 = tpu.concatenate %85, %86 in 0 : vector<239x8xbf16>, vector<17x8xbf16> -> vector<256x8xbf16>
    %c8 = arith.constant 8 : index
    %c0_40 = arith.constant 0 : index
    %c0_41 = arith.constant 0 : index
    %88 = vector.load %arg2[%c8, %c0_40, %c0_41] : memref<9x8x8xbf16, #tpu.memory_space<vmem>>, vector<1x8x8xbf16>
    %89 = vector.shape_cast %88 : vector<1x8x8xbf16> to vector<8x8xbf16>
    %cst_42 = arith.constant dense<0.000000e+00> : vector<256x8xf32>
    %90 = tpu.matmul %87, %89, %cst_42 {dimension_numbers = #tpu.dot_dimension_numbers<[1], [0], [0], [1], [0, 0, 1, 1], [], []>} : vector<256x8xbf16>, vector<8x8xbf16>, vector<256x8xf32> -> vector<256x8xf32>
    %91 = arith.addf %84, %90 : vector<256x8xf32>
    %92 = arith.truncf %91 : vector<256x8xf32> to vector<256x8xbf16>
    %c0_43 = arith.constant 0 : index
    %c0_44 = arith.constant 0 : index
    %c0_45 = arith.constant 0 : index
    %93 = vector.load %arg3[%c0_43, %c0_44, %c0_45] : memref<1x256x8xbf16, #tpu.memory_space<vmem>>, vector<1x256x8xbf16>
    %94 = vector.shape_cast %93 : vector<1x256x8xbf16> to vector<256x8xbf16>
    %95 = vector.shape_cast %92 : vector<256x8xbf16> to vector<1x256x8xbf16>
    tpu.vector_store %arg3[%c0_43, %c0_44, %c0_45], %95 {strides = array<i32>} : memref<1x256x8xbf16, #tpu.memory_space<vmem>>, vector<1x256x8xbf16>,
    %cst_46 = arith.constant dense<0.000000e+00> : vector<8xf32>
    %96 = vector.multi_reduction <add>, %91, %cst_46 [0] : vector<256x8xf32> to vector<8xf32>
    %97 = vector.shape_cast %96 : vector<8xf32> to vector<1x8xf32>
    %98 = arith.mulf %91, %91 : vector<256x8xf32>
    %cst_47 = arith.constant dense<0.000000e+00> : vector<8xf32>
    %99 = vector.multi_reduction <add>, %98, %cst_47 [0] : vector<256x8xf32> to vector<8xf32>
    %100 = vector.shape_cast %99 : vector<8xf32> to vector<1x8xf32>
    %101 = tpu.concatenate %97, %100 in 0 : vector<1x8xf32>, vector<1x8xf32> -> vector<2x8xf32>
    %c0_48 = arith.constant 0 : index
    %c0_49 = arith.constant 0 : index
    %c0_50 = arith.constant 0 : index
    %102 = vector.load %arg4[%c0_48, %c0_49, %c0_50] : memref<1x2x8xf32, #tpu.memory_space<vmem>>, vector<1x2x8xf32>
    %103 = vector.shape_cast %102 : vector<1x2x8xf32> to vector<2x8xf32>
    %104 = vector.shape_cast %101 : vector<2x8xf32> to vector<1x2x8xf32>
    tpu.vector_store %arg4[%c0_48, %c0_49, %c0_50], %104 {strides = array<i32>} : memref<1x2x8xf32, #tpu.memory_space<vmem>>, vector<1x2x8xf32>,
    return
  }
  func.func @transform_0(%arg0: i32) -> (i32, i32, i32) {
    %c0_i32 = arith.constant 0 : i32
    %c0_i32_0 = arith.constant 0 : i32
    %c0_i32_1 = arith.constant 0 : i32
    return %arg0, %c0_i32, %c0_i32_0 : i32, i32, i32
  }
  func.func @transform_1(%arg0: i32) -> (i32, i32, i32) {
    %c0_i32 = arith.constant 0 : i32
    %c0_i32_0 = arith.constant 0 : i32
    %c0_i32_1 = arith.constant 0 : i32
    %c0_i32_2 = arith.constant 0 : i32
    return %c0_i32, %c0_i32_0, %c0_i32_1 : i32, i32, i32
  }
  func.func @transform_2(%arg0: i32) -> (i32, i32, i32) {
    %c0_i32 = arith.constant 0 : i32
    %c0_i32_0 = arith.constant 0 : i32
    %c0_i32_1 = arith.constant 0 : i32
    return %arg0, %c0_i32, %c0_i32_0 : i32, i32, i32
  }
  func.func @transform_3(%arg0: i32) -> (i32, i32, i32) {
    %c0_i32 = arith.constant 0 : i32
    %c0_i32_0 = arith.constant 0 : i32
    %c0_i32_1 = arith.constant 0 : i32
    return %arg0, %c0_i32, %c0_i32_0 : i32, i32, i32
  }
}

module attributes {stable_mosaic.version = 11 : i64} {
  func.func @_bn_add_relu_kernel(%arg0: i32, %arg1: memref<512x8xbf16, #tpu.memory_space<vmem>>, %arg2: memref<1x8xf32, #tpu.memory_space<vmem>>, %arg3: memref<1x8xf32, #tpu.memory_space<vmem>>, %arg4: memref<512x8xf32, #tpu.memory_space<vmem>>, %arg5: memref<512x8xf32, #tpu.memory_space<vmem>>) attributes {dimension_semantics = [#tpu.dimension_semantics<parallel>], iteration_bounds = array<i64: 1>, scalar_prefetch = 0 : i64, scratch_operands = 0 : i64, tpu.core_type = #tpu.core_type<tc>, window_params = [{transform_indices = @transform_0, window_bounds = array<i64: 512, 8>}, {pipeline_mode = #tpu.pipeline_mode<synchronous>, transform_indices = @transform_1, window_bounds = array<i64: 1, 8>}, {pipeline_mode = #tpu.pipeline_mode<synchronous>, transform_indices = @transform_2, window_bounds = array<i64: 1, 8>}, {transform_indices = @transform_3, window_bounds = array<i64: 512, 8>}, {transform_indices = @transform_4, window_bounds = array<i64: 512, 8>}]} {
    %c0 = arith.constant 0 : index
    %c0_0 = arith.constant 0 : index
    %0 = vector.load %arg1[%c0, %c0_0] : memref<512x8xbf16, #tpu.memory_space<vmem>>, vector<512x8xbf16>
    %1 = arith.extf %0 : vector<512x8xbf16> to vector<512x8xf32>
    %c0_1 = arith.constant 0 : index
    %c0_2 = arith.constant 0 : index
    %2 = vector.load %arg2[%c0_1, %c0_2] : memref<1x8xf32, #tpu.memory_space<vmem>>, vector<1x8xf32>
    %3 = vector.broadcast %2 : vector<1x8xf32> to vector<512x8xf32>
    %4 = arith.mulf %1, %3 : vector<512x8xf32>
    %c0_3 = arith.constant 0 : index
    %c0_4 = arith.constant 0 : index
    %5 = vector.load %arg3[%c0_3, %c0_4] : memref<1x8xf32, #tpu.memory_space<vmem>>, vector<1x8xf32>
    %6 = vector.broadcast %5 : vector<1x8xf32> to vector<512x8xf32>
    %7 = arith.addf %4, %6 : vector<512x8xf32>
    %c0_5 = arith.constant 0 : index
    %c0_6 = arith.constant 0 : index
    %8 = vector.load %arg4[%c0_5, %c0_6] : memref<512x8xf32, #tpu.memory_space<vmem>>, vector<512x8xf32>
    %9 = arith.addf %7, %8 : vector<512x8xf32>
    %cst = arith.constant 0.000000e+00 : f32
    %10 = vector.broadcast %cst : f32 to vector<512x8xf32>
    %11 = arith.maximumf %9, %10 : vector<512x8xf32>
    %c0_7 = arith.constant 0 : index
    %c0_8 = arith.constant 0 : index
    %12 = vector.load %arg5[%c0_7, %c0_8] : memref<512x8xf32, #tpu.memory_space<vmem>>, vector<512x8xf32>
    tpu.vector_store %arg5[%c0_7, %c0_8], %11 {strides = array<i32>} : memref<512x8xf32, #tpu.memory_space<vmem>>, vector<512x8xf32>,
    return
  }
  func.func @transform_0(%arg0: i32) -> (i32, i32) {
    %c0_i32 = arith.constant 0 : i32
    %c0_i32_0 = arith.constant 0 : i32
    return %arg0, %c0_i32 : i32, i32
  }
  func.func @transform_1(%arg0: i32) -> (i32, i32) {
    %c0_i32 = arith.constant 0 : i32
    %c0_i32_0 = arith.constant 0 : i32
    %c0_i32_1 = arith.constant 0 : i32
    return %c0_i32, %c0_i32_0 : i32, i32
  }
  func.func @transform_2(%arg0: i32) -> (i32, i32) {
    %c0_i32 = arith.constant 0 : i32
    %c0_i32_0 = arith.constant 0 : i32
    %c0_i32_1 = arith.constant 0 : i32
    return %c0_i32, %c0_i32_0 : i32, i32
  }
  func.func @transform_3(%arg0: i32) -> (i32, i32) {
    %c0_i32 = arith.constant 0 : i32
    %c0_i32_0 = arith.constant 0 : i32
    return %arg0, %c0_i32 : i32, i32
  }
  func.func @transform_4(%arg0: i32) -> (i32, i32) {
    %c0_i32 = arith.constant 0 : i32
    %c0_i32_0 = arith.constant 0 : i32
    return %arg0, %c0_i32 : i32, i32
  }
}

module attributes {stable_mosaic.version = 11 : i64} {
  func.func @kernel(%arg0: i32, %arg1: memref<1x256x8xbf16, #tpu.memory_space<vmem>>, %arg2: memref<1x8xf32, #tpu.memory_space<vmem>>, %arg3: memref<1x8xf32, #tpu.memory_space<vmem>>, %arg4: memref<9x8x8xbf16, #tpu.memory_space<vmem>>, %arg5: memref<1x256x8xbf16, #tpu.memory_space<vmem>>, %arg6: memref<1x2x8xf32, #tpu.memory_space<vmem>>) attributes {dimension_semantics = [#tpu.dimension_semantics<parallel>], iteration_bounds = array<i64: 2>, scalar_prefetch = 0 : i64, scratch_operands = 0 : i64, tpu.core_type = #tpu.core_type<tc>, window_params = [{transform_indices = @transform_0, window_bounds = array<i64: 1, 256, 8>}, {pipeline_mode = #tpu.pipeline_mode<synchronous>, transform_indices = @transform_1, window_bounds = array<i64: 1, 8>}, {pipeline_mode = #tpu.pipeline_mode<synchronous>, transform_indices = @transform_2, window_bounds = array<i64: 1, 8>}, {pipeline_mode = #tpu.pipeline_mode<synchronous>, transform_indices = @transform_3, window_bounds = array<i64: 9, 8, 8>}, {transform_indices = @transform_4, window_bounds = array<i64: 1, 256, 8>}, {transform_indices = @transform_5, window_bounds = array<i64: 1, 2, 8>}]} {
    %c0 = arith.constant 0 : index
    %c0_0 = arith.constant 0 : index
    %c0_1 = arith.constant 0 : index
    %0 = vector.load %arg1[%c0, %c0_0, %c0_1] : memref<1x256x8xbf16, #tpu.memory_space<vmem>>, vector<1x256x8xbf16>
    %1 = vector.shape_cast %0 : vector<1x256x8xbf16> to vector<256x8xbf16>
    %2 = arith.extf %1 : vector<256x8xbf16> to vector<256x8xf32>
    %c0_2 = arith.constant 0 : index
    %c0_3 = arith.constant 0 : index
    %3 = vector.load %arg2[%c0_2, %c0_3] : memref<1x8xf32, #tpu.memory_space<vmem>>, vector<1x8xf32>
    %4 = vector.broadcast %3 : vector<1x8xf32> to vector<256x8xf32>
    %5 = arith.mulf %2, %4 : vector<256x8xf32>
    %c0_4 = arith.constant 0 : index
    %c0_5 = arith.constant 0 : index
    %6 = vector.load %arg3[%c0_4, %c0_5] : memref<1x8xf32, #tpu.memory_space<vmem>>, vector<1x8xf32>
    %7 = vector.broadcast %6 : vector<1x8xf32> to vector<256x8xf32>
    %8 = arith.addf %5, %7 : vector<256x8xf32>
    %cst = arith.constant 0.000000e+00 : f32
    %9 = vector.broadcast %cst : f32 to vector<256x8xf32>
    %10 = arith.maximumf %8, %9 : vector<256x8xf32>
    %11 = arith.truncf %10 : vector<256x8xf32> to vector<256x8xbf16>
    %12 = tpu.iota {dimensions = array<i32: 0>} : vector<256x1xi32>
    %c16_i32 = arith.constant 16 : i32
    %c0_i32 = arith.constant 0 : i32
    %13 = arith.cmpi eq, %c16_i32, %c0_i32 : i32
    %c1_i32 = arith.constant 1 : i32
    %14 = arith.select %13, %c1_i32, %c16_i32 : i32
    %15 = vector.broadcast %14 : i32 to vector<256x1xi32>
    %16 = arith.remsi %12, %15 : vector<256x1xi32>
    %c0_i32_6 = arith.constant 0 : i32
    %17 = vector.broadcast %c0_i32_6 : i32 to vector<256x1xi32>
    %18 = arith.cmpi ne, %16, %17 : vector<256x1xi32>
    %c0_i32_7 = arith.constant 0 : i32
    %19 = vector.broadcast %c0_i32_7 : i32 to vector<256x1xi32>
    %20 = arith.cmpi slt, %16, %19 : vector<256x1xi32>
    %c0_i32_8 = arith.constant 0 : i32
    %21 = arith.cmpi slt, %14, %c0_i32_8 : i32
    %22 = vector.broadcast %21 : i1 to vector<256x1xi1>
    %23 = vector.broadcast %22 : vector<256x1xi1> to vector<256x1xi1>
    %24 = arith.xori %20, %23 : vector<256x1xi1>
    %25 = arith.andi %24, %18 : vector<256x1xi1>
    %26 = vector.broadcast %14 : i32 to vector<256x1xi32>
    %27 = arith.addi %16, %26 : vector<256x1xi32>
    %28 = arith.select %25, %27, %16 : vector<256x1xi1>, vector<256x1xi32>
    %cst_9 = arith.constant 0.000000e+00 : bf16
    %29 = vector.broadcast %cst_9 : bf16 to vector<256x8xbf16>
    %c15_i32 = arith.constant 15 : i32
    %30 = vector.broadcast %c15_i32 : i32 to vector<256x1xi32>
    %31 = arith.cmpi slt, %28, %30 : vector<256x1xi32>
    %32 = vector.shape_cast %31 : vector<256x1xi1> to vector<256x1xi1>
    %33 = vector.broadcast %32 : vector<256x1xi1> to vector<256x8xi1>
    %34 = arith.select %33, %11, %29 : vector<256x8xi1>, vector<256x8xbf16>
    %c0_i32_10 = arith.constant 0 : i32
    %35 = vector.broadcast %c0_i32_10 : i32 to vector<256x1xi32>
    %36 = arith.cmpi sgt, %28, %35 : vector<256x1xi32>
    %37 = vector.shape_cast %36 : vector<256x1xi1> to vector<256x1xi1>
    %38 = vector.broadcast %37 : vector<256x1xi1> to vector<256x8xi1>
    %39 = arith.select %38, %11, %29 : vector<256x8xi1>, vector<256x8xbf16>
    %cst_11 = arith.constant 0.000000e+00 : f32
    %40 = vector.broadcast %cst_11 : f32 to vector<256x8xf32>
    %cst_12 = arith.constant 0.000000e+00 : bf16
    %41 = vector.broadcast %cst_12 : bf16 to vector<17x8xbf16>
    %42 = vector.extract_strided_slice %34 {offsets = [0, 0], sizes = [239, 8], strides = [1, 1]} : vector<256x8xbf16> to vector<239x8xbf16>
    %43 = tpu.concatenate %41, %42 in 0 : vector<17x8xbf16>, vector<239x8xbf16> -> vector<256x8xbf16>
    %c0_13 = arith.constant 0 : index
    %c0_14 = arith.constant 0 : index
    %c0_15 = arith.constant 0 : index
    %44 = vector.load %arg4[%c0_13, %c0_14, %c0_15] : memref<9x8x8xbf16, #tpu.memory_space<vmem>>, vector<1x8x8xbf16>
    %45 = vector.shape_cast %44 : vector<1x8x8xbf16> to vector<8x8xbf16>
    %cst_16 = arith.constant dense<0.000000e+00> : vector<256x8xf32>
    %46 = tpu.matmul %43, %45, %cst_16 {dimension_numbers = #tpu.dot_dimension_numbers<[1], [0], [0], [1], [0, 0, 1, 1], [], []>} : vector<256x8xbf16>, vector<8x8xbf16>, vector<256x8xf32> -> vector<256x8xf32>
    %47 = arith.addf %40, %46 : vector<256x8xf32>
    %cst_17 = arith.constant 0.000000e+00 : bf16
    %48 = vector.broadcast %cst_17 : bf16 to vector<16x8xbf16>
    %49 = vector.extract_strided_slice %11 {offsets = [0, 0], sizes = [240, 8], strides = [1, 1]} : vector<256x8xbf16> to vector<240x8xbf16>
    %50 = tpu.concatenate %48, %49 in 0 : vector<16x8xbf16>, vector<240x8xbf16> -> vector<256x8xbf16>
    %c1 = arith.constant 1 : index
    %c0_18 = arith.constant 0 : index
    %c0_19 = arith.constant 0 : index
    %51 = vector.load %arg4[%c1, %c0_18, %c0_19] : memref<9x8x8xbf16, #tpu.memory_space<vmem>>, vector<1x8x8xbf16>
    %52 = vector.shape_cast %51 : vector<1x8x8xbf16> to vector<8x8xbf16>
    %cst_20 = arith.constant dense<0.000000e+00> : vector<256x8xf32>
    %53 = tpu.matmul %50, %52, %cst_20 {dimension_numbers = #tpu.dot_dimension_numbers<[1], [0], [0], [1], [0, 0, 1, 1], [], []>} : vector<256x8xbf16>, vector<8x8xbf16>, vector<256x8xf32> -> vector<256x8xf32>
    %54 = arith.addf %47, %53 : vector<256x8xf32>
    %cst_21 = arith.constant 0.000000e+00 : bf16
    %55 = vector.broadcast %cst_21 : bf16 to vector<15x8xbf16>
    %56 = vector.extract_strided_slice %39 {offsets = [0, 0], sizes = [241, 8], strides = [1, 1]} : vector<256x8xbf16> to vector<241x8xbf16>
    %57 = tpu.concatenate %55, %56 in 0 : vector<15x8xbf16>, vector<241x8xbf16> -> vector<256x8xbf16>
    %c2 = arith.constant 2 : index
    %c0_22 = arith.constant 0 : index
    %c0_23 = arith.constant 0 : index
    %58 = vector.load %arg4[%c2, %c0_22, %c0_23] : memref<9x8x8xbf16, #tpu.memory_space<vmem>>, vector<1x8x8xbf16>
    %59 = vector.shape_cast %58 : vector<1x8x8xbf16> to vector<8x8xbf16>
    %cst_24 = arith.constant dense<0.000000e+00> : vector<256x8xf32>
    %60 = tpu.matmul %57, %59, %cst_24 {dimension_numbers = #tpu.dot_dimension_numbers<[1], [0], [0], [1], [0, 0, 1, 1], [], []>} : vector<256x8xbf16>, vector<8x8xbf16>, vector<256x8xf32> -> vector<256x8xf32>
    %61 = arith.addf %54, %60 : vector<256x8xf32>
    %cst_25 = arith.constant 0.000000e+00 : bf16
    %62 = vector.broadcast %cst_25 : bf16 to vector<1x8xbf16>
    %63 = vector.extract_strided_slice %34 {offsets = [0, 0], sizes = [255, 8], strides = [1, 1]} : vector<256x8xbf16> to vector<255x8xbf16>
    %64 = tpu.concatenate %62, %63 in 0 : vector<1x8xbf16>, vector<255x8xbf16> -> vector<256x8xbf16>
    %c3 = arith.constant 3 : index
    %c0_26 = arith.constant 0 : index
    %c0_27 = arith.constant 0 : index
    %65 = vector.load %arg4[%c3, %c0_26, %c0_27] : memref<9x8x8xbf16, #tpu.memory_space<vmem>>, vector<1x8x8xbf16>
    %66 = vector.shape_cast %65 : vector<1x8x8xbf16> to vector<8x8xbf16>
    %cst_28 = arith.constant dense<0.000000e+00> : vector<256x8xf32>
    %67 = tpu.matmul %64, %66, %cst_28 {dimension_numbers = #tpu.dot_dimension_numbers<[1], [0], [0], [1], [0, 0, 1, 1], [], []>} : vector<256x8xbf16>, vector<8x8xbf16>, vector<256x8xf32> -> vector<256x8xf32>
    %68 = arith.addf %61, %67 : vector<256x8xf32>
    %c4 = arith.constant 4 : index
    %c0_29 = arith.constant 0 : index
    %c0_30 = arith.constant 0 : index
    %69 = vector.load %arg4[%c4, %c0_29, %c0_30] : memref<9x8x8xbf16, #tpu.memory_space<vmem>>, vector<1x8x8xbf16>
    %70 = vector.shape_cast %69 : vector<1x8x8xbf16> to vector<8x8xbf16>
    %cst_31 = arith.constant dense<0.000000e+00> : vector<256x8xf32>
    %71 = tpu.matmul %11, %70, %cst_31 {dimension_numbers = #tpu.dot_dimension_numbers<[1], [0], [0], [1], [0, 0, 1, 1], [], []>} : vector<256x8xbf16>, vector<8x8xbf16>, vector<256x8xf32> -> vector<256x8xf32>
    %72 = arith.addf %68, %71 : vector<256x8xf32>
    %73 = vector.extract_strided_slice %39 {offsets = [1, 0], sizes = [255, 8], strides = [1, 1]} : vector<256x8xbf16> to vector<255x8xbf16>
    %cst_32 = arith.constant 0.000000e+00 : bf16
    %74 = vector.broadcast %cst_32 : bf16 to vector<1x8xbf16>
    %75 = tpu.concatenate %73, %74 in 0 : vector<255x8xbf16>, vector<1x8xbf16> -> vector<256x8xbf16>
    %c5 = arith.constant 5 : index
    %c0_33 = arith.constant 0 : index
    %c0_34 = arith.constant 0 : index
    %76 = vector.load %arg4[%c5, %c0_33, %c0_34] : memref<9x8x8xbf16, #tpu.memory_space<vmem>>, vector<1x8x8xbf16>
    %77 = vector.shape_cast %76 : vector<1x8x8xbf16> to vector<8x8xbf16>
    %cst_35 = arith.constant dense<0.000000e+00> : vector<256x8xf32>
    %78 = tpu.matmul %75, %77, %cst_35 {dimension_numbers = #tpu.dot_dimension_numbers<[1], [0], [0], [1], [0, 0, 1, 1], [], []>} : vector<256x8xbf16>, vector<8x8xbf16>, vector<256x8xf32> -> vector<256x8xf32>
    %79 = arith.addf %72, %78 : vector<256x8xf32>
    %80 = vector.extract_strided_slice %34 {offsets = [15, 0], sizes = [241, 8], strides = [1, 1]} : vector<256x8xbf16> to vector<241x8xbf16>
    %cst_36 = arith.constant 0.000000e+00 : bf16
    %81 = vector.broadcast %cst_36 : bf16 to vector<15x8xbf16>
    %82 = tpu.concatenate %80, %81 in 0 : vector<241x8xbf16>, vector<15x8xbf16> -> vector<256x8xbf16>
    %c6 = arith.constant 6 : index
    %c0_37 = arith.constant 0 : index
    %c0_38 = arith.constant 0 : index
    %83 = vector.load %arg4[%c6, %c0_37, %c0_38] : memref<9x8x8xbf16, #tpu.memory_space<vmem>>, vector<1x8x8xbf16>
    %84 = vector.shape_cast %83 : vector<1x8x8xbf16> to vector<8x8xbf16>
    %cst_39 = arith.constant dense<0.000000e+00> : vector<256x8xf32>
    %85 = tpu.matmul %82, %84, %cst_39 {dimension_numbers = #tpu.dot_dimension_numbers<[1], [0], [0], [1], [0, 0, 1, 1], [], []>} : vector<256x8xbf16>, vector<8x8xbf16>, vector<256x8xf32> -> vector<256x8xf32>
    %86 = arith.addf %79, %85 : vector<256x8xf32>
    %87 = vector.extract_strided_slice %11 {offsets = [16, 0], sizes = [240, 8], strides = [1, 1]} : vector<256x8xbf16> to vector<240x8xbf16>
    %cst_40 = arith.constant 0.000000e+00 : bf16
    %88 = vector.broadcast %cst_40 : bf16 to vector<16x8xbf16>
    %89 = tpu.concatenate %87, %88 in 0 : vector<240x8xbf16>, vector<16x8xbf16> -> vector<256x8xbf16>
    %c7 = arith.constant 7 : index
    %c0_41 = arith.constant 0 : index
    %c0_42 = arith.constant 0 : index
    %90 = vector.load %arg4[%c7, %c0_41, %c0_42] : memref<9x8x8xbf16, #tpu.memory_space<vmem>>, vector<1x8x8xbf16>
    %91 = vector.shape_cast %90 : vector<1x8x8xbf16> to vector<8x8xbf16>
    %cst_43 = arith.constant dense<0.000000e+00> : vector<256x8xf32>
    %92 = tpu.matmul %89, %91, %cst_43 {dimension_numbers = #tpu.dot_dimension_numbers<[1], [0], [0], [1], [0, 0, 1, 1], [], []>} : vector<256x8xbf16>, vector<8x8xbf16>, vector<256x8xf32> -> vector<256x8xf32>
    %93 = arith.addf %86, %92 : vector<256x8xf32>
    %94 = vector.extract_strided_slice %39 {offsets = [17, 0], sizes = [239, 8], strides = [1, 1]} : vector<256x8xbf16> to vector<239x8xbf16>
    %cst_44 = arith.constant 0.000000e+00 : bf16
    %95 = vector.broadcast %cst_44 : bf16 to vector<17x8xbf16>
    %96 = tpu.concatenate %94, %95 in 0 : vector<239x8xbf16>, vector<17x8xbf16> -> vector<256x8xbf16>
    %c8 = arith.constant 8 : index
    %c0_45 = arith.constant 0 : index
    %c0_46 = arith.constant 0 : index
    %97 = vector.load %arg4[%c8, %c0_45, %c0_46] : memref<9x8x8xbf16, #tpu.memory_space<vmem>>, vector<1x8x8xbf16>
    %98 = vector.shape_cast %97 : vector<1x8x8xbf16> to vector<8x8xbf16>
    %cst_47 = arith.constant dense<0.000000e+00> : vector<256x8xf32>
    %99 = tpu.matmul %96, %98, %cst_47 {dimension_numbers = #tpu.dot_dimension_numbers<[1], [0], [0], [1], [0, 0, 1, 1], [], []>} : vector<256x8xbf16>, vector<8x8xbf16>, vector<256x8xf32> -> vector<256x8xf32>
    %100 = arith.addf %93, %99 : vector<256x8xf32>
    %101 = arith.truncf %100 : vector<256x8xf32> to vector<256x8xbf16>
    %c0_48 = arith.constant 0 : index
    %c0_49 = arith.constant 0 : index
    %c0_50 = arith.constant 0 : index
    %102 = vector.load %arg5[%c0_48, %c0_49, %c0_50] : memref<1x256x8xbf16, #tpu.memory_space<vmem>>, vector<1x256x8xbf16>
    %103 = vector.shape_cast %102 : vector<1x256x8xbf16> to vector<256x8xbf16>
    %104 = vector.shape_cast %101 : vector<256x8xbf16> to vector<1x256x8xbf16>
    tpu.vector_store %arg5[%c0_48, %c0_49, %c0_50], %104 {strides = array<i32>} : memref<1x256x8xbf16, #tpu.memory_space<vmem>>, vector<1x256x8xbf16>,
    %cst_51 = arith.constant dense<0.000000e+00> : vector<8xf32>
    %105 = vector.multi_reduction <add>, %100, %cst_51 [0] : vector<256x8xf32> to vector<8xf32>
    %106 = vector.shape_cast %105 : vector<8xf32> to vector<1x8xf32>
    %107 = arith.mulf %100, %100 : vector<256x8xf32>
    %cst_52 = arith.constant dense<0.000000e+00> : vector<8xf32>
    %108 = vector.multi_reduction <add>, %107, %cst_52 [0] : vector<256x8xf32> to vector<8xf32>
    %109 = vector.shape_cast %108 : vector<8xf32> to vector<1x8xf32>
    %110 = tpu.concatenate %106, %109 in 0 : vector<1x8xf32>, vector<1x8xf32> -> vector<2x8xf32>
    %c0_53 = arith.constant 0 : index
    %c0_54 = arith.constant 0 : index
    %c0_55 = arith.constant 0 : index
    %111 = vector.load %arg6[%c0_53, %c0_54, %c0_55] : memref<1x2x8xf32, #tpu.memory_space<vmem>>, vector<1x2x8xf32>
    %112 = vector.shape_cast %111 : vector<1x2x8xf32> to vector<2x8xf32>
    %113 = vector.shape_cast %110 : vector<2x8xf32> to vector<1x2x8xf32>
    tpu.vector_store %arg6[%c0_53, %c0_54, %c0_55], %113 {strides = array<i32>} : memref<1x2x8xf32, #tpu.memory_space<vmem>>, vector<1x2x8xf32>,
    return
  }
  func.func @transform_0(%arg0: i32) -> (i32, i32, i32) {
    %c0_i32 = arith.constant 0 : i32
    %c0_i32_0 = arith.constant 0 : i32
    %c0_i32_1 = arith.constant 0 : i32
    return %arg0, %c0_i32, %c0_i32_0 : i32, i32, i32
  }
  func.func @transform_1(%arg0: i32) -> (i32, i32) {
    %c0_i32 = arith.constant 0 : i32
    %c0_i32_0 = arith.constant 0 : i32
    %c0_i32_1 = arith.constant 0 : i32
    return %c0_i32, %c0_i32_0 : i32, i32
  }
  func.func @transform_2(%arg0: i32) -> (i32, i32) {
    %c0_i32 = arith.constant 0 : i32
    %c0_i32_0 = arith.constant 0 : i32
    %c0_i32_1 = arith.constant 0 : i32
    return %c0_i32, %c0_i32_0 : i32, i32
  }
  func.func @transform_3(%arg0: i32) -> (i32, i32, i32) {
    %c0_i32 = arith.constant 0 : i32
    %c0_i32_0 = arith.constant 0 : i32
    %c0_i32_1 = arith.constant 0 : i32
    %c0_i32_2 = arith.constant 0 : i32
    return %c0_i32, %c0_i32_0, %c0_i32_1 : i32, i32, i32
  }
  func.func @transform_4(%arg0: i32) -> (i32, i32, i32) {
    %c0_i32 = arith.constant 0 : i32
    %c0_i32_0 = arith.constant 0 : i32
    %c0_i32_1 = arith.constant 0 : i32
    return %arg0, %c0_i32, %c0_i32_0 : i32, i32, i32
  }
  func.func @transform_5(%arg0: i32) -> (i32, i32, i32) {
    %c0_i32 = arith.constant 0 : i32
    %c0_i32_0 = arith.constant 0 : i32
    %c0_i32_1 = arith.constant 0 : i32
    return %arg0, %c0_i32, %c0_i32_0 : i32, i32, i32
  }
}

</mosaic_0001>

<llo_original>
// kernel: basic_block_forward.5
$region0: #{basic_block_forward.5}
  #allocation0 [shape = 'u32[]', space=smem, size = 0x4, offset = 0x4, fixed_abs, tag = 'smem constant byte address 0x4 - core index']
  #allocation1 [shape = 'u32[144,128]{1,0:T(1,128)}', space=vmem, size = 0x12000, scoped, tag = 'internal scratch']
  %s0 = inlined_call_operand.vmem [shape: bf16[512,8], index: 0, kind: input, shape index: {}]
  %s1 = inlined_call_operand.vmem [shape: f32[1,8], index: 1, kind: input, shape index: {}]
  %s2 = inlined_call_operand.vmem [shape: f32[1,8], index: 2, kind: input, shape index: {}]
  %s3 = inlined_call_operand.vmem [shape: f32[512,8], index: 3, kind: input, shape index: {}]
  %s4 = inlined_call_operand.vmem [shape: f32[512,8], index: 4, kind: output, shape index: {}]
  %s5 = sld [smem:[#allocation0]]
  $region26: #{basic_block_forward.5} parent=0
    _
  %s7 = ssub.s32 1, %s5
  %s8 = scalar_select 0, %s7, %s5
  // Predicated region
  $region2: #{basic_block_forward.5} parent=0 // pred_check
    _
  $region3: #{basic_block_forward.5} parent=0 // pred_check_branch
    %10 = sbr.rel (0) target = $region5
  $region4: #{basic_block_forward.5} parent=0 // pred_region
    _
  $region5: #{basic_block_forward.5} parent=0 // pred_fallthru
    _
  // Predicated region
  $region6: #{basic_block_forward.5} parent=0 // pred_check
    _
  $region7: #{basic_block_forward.5} parent=0 // pred_check_branch
    %12 = sbr.rel (0) target = $region9
  $region8: #{basic_block_forward.5} parent=0 // pred_region
    _
  $region9: #{basic_block_forward.5} parent=0 // pred_fallthru
    _
  // Predicated region
  $region10: #{basic_block_forward.5} parent=0 // pred_check
    _
  $region11: #{basic_block_forward.5} parent=0 // pred_check_branch
    %14 = sbr.rel (0) target = $region13
  $region12: #{basic_block_forward.5} parent=0 // pred_region
    _
  $region13: #{basic_block_forward.5} parent=0 // pred_fallthru
    _
  // Predicated region
  $region14: #{basic_block_forward.5} parent=0 // pred_check
    _
  $region15: #{basic_block_forward.5} parent=0 // pred_check_branch
    %16 = sbr.rel (0) target = $region17
  $region16: #{basic_block_forward.5} parent=0 // pred_region
    _
  $region17: #{basic_block_forward.5} parent=0 // pred_fallthru
    _
  %v17 = vld [vmem:[%s0] sm:$0xf]
  %v18 = vld [vmem:[%s0 + $0x4] sm:$0xf]
  %v19 = vld [vmem:[%s0 + $0x8] sm:$0xf]
  %v20 = vld [vmem:[%s0 + $0xc] sm:$0xf]
  %v21 = vld [vmem:[%s0 + $0x10] sm:$0xf]
  %v22 = vld [vmem:[%s0 + $0x14] sm:$0xf]
  %v23 = vld [vmem:[%s0 + $0x18] sm:$0xf]
  %v24 = vld [vmem:[%s0 + $0x1c] sm:$0xf]
  %v25 = vld [vmem:[%s0 + $0x20] sm:$0xf]
  %v26 = vld [vmem:[%s0 + $0x24] sm:$0xf]
  %v27 = vld [vmem:[%s0 + $0x28] sm:$0xf]
  %v28 = vld [vmem:[%s0 + $0x2c] sm:$0xf]
  %v29 = vld [vmem:[%s0 + $0x30] sm:$0xf]
  %v30 = vld [vmem:[%s0 + $0x34] sm:$0xf]
  %v31 = vld [vmem:[%s0 + $0x38] sm:$0xf]
  %v32 = vld [vmem:[%s0 + $0x3c] sm:$0xf]
  %v33 = vld [vmem:[%s0 + $0x40] sm:$0xf]
  %v34 = vld [vmem:[%s0 + $0x44] sm:$0xf]
  %v35 = vld [vmem:[%s0 + $0x48] sm:$0xf]
  %v36 = vld [vmem:[%s0 + $0x4c] sm:$0xf]
  %v37 = vld [vmem:[%s0 + $0x50] sm:$0xf]
  %v38 = vld [vmem:[%s0 + $0x54] sm:$0xf]
  %v39 = vld [vmem:[%s0 + $0x58] sm:$0xf]
  %v40 = vld [vmem:[%s0 + $0x5c] sm:$0xf]
  %v41 = vld [vmem:[%s0 + $0x60] sm:$0xf]
  %v42 = vld [vmem:[%s0 + $0x64] sm:$0xf]
  %v43 = vld [vmem:[%s0 + $0x68] sm:$0xf]
  %v44 = vld [vmem:[%s0 + $0x6c] sm:$0xf]
  %v45 = vld [vmem:[%s0 + $0x70] sm:$0xf]
  %v46 = vld [vmem:[%s0 + $0x74] sm:$0xf]
  %v47 = vld [vmem:[%s0 + $0x78] sm:$0xf]
  %v48 = vld [vmem:[%s0 + $0x7c] sm:$0xf]
  %v49 = vld [vmem:[%s0 + $0x80] sm:$0xf]
  %v50 = vld [vmem:[%s0 + $0x84] sm:$0xf]
  %v51 = vld [vmem:[%s0 + $0x88] sm:$0xf]
  %v52 = vld [vmem:[%s0 + $0x8c] sm:$0xf]
  %v53 = vld [vmem:[%s0 + $0x90] sm:$0xf]
  %v54 = vld [vmem:[%s0 + $0x94] sm:$0xf]
  %v55 = vld [vmem:[%s0 + $0x98] sm:$0xf]
  %v56 = vld [vmem:[%s0 + $0x9c] sm:$0xf]
  %v57 = vld [vmem:[%s0 + $0xa0] sm:$0xf]
  %v58 = vld [vmem:[%s0 + $0xa4] sm:$0xf]
  %v59 = vld [vmem:[%s0 + $0xa8] sm:$0xf]
  %v60 = vld [vmem:[%s0 + $0xac] sm:$0xf]
  %v61 = vld [vmem:[%s0 + $0xb0] sm:$0xf]
  %v62 = vld [vmem:[%s0 + $0xb4] sm:$0xf]
  %v63 = vld [vmem:[%s0 + $0xb8] sm:$0xf]
  %v64 = vld [vmem:[%s0 + $0xbc] sm:$0xf]
  %v65 = vld [vmem:[%s0 + $0xc0] sm:$0xf]
  %v66 = vld [vmem:[%s0 + $0xc4] sm:$0xf]
  %v67 = vld [vmem:[%s0 + $0xc8] sm:$0xf]
  %v68 = vld [vmem:[%s0 + $0xcc] sm:$0xf]
  %v69 = vld [vmem:[%s0 + $0xd0] sm:$0xf]
  %v70 = vld [vmem:[%s0 + $0xd4] sm:$0xf]
  %v71 = vld [vmem:[%s0 + $0xd8] sm:$0xf]
  %v72 = vld [vmem:[%s0 + $0xdc] sm:$0xf]
  %v73 = vld [vmem:[%s0 + $0xe0] sm:$0xf]
  %v74 = vld [vmem:[%s0 + $0xe4] sm:$0xf]
  %v75 = vld [vmem:[%s0 + $0xe8] sm:$0xf]
  %v76 = vld [vmem:[%s0 + $0xec] sm:$0xf]
  %v77 = vld [vmem:[%s0 + $0xf0] sm:$0xf]
  %v78 = vld [vmem:[%s0 + $0xf4] sm:$0xf]
  %v79 = vld [vmem:[%s0 + $0xf8] sm:$0xf]
  %v80 = vld [vmem:[%s0 + $0xfc] sm:$0xf]
  %v81 = vunpack.c.l.bf16 %v17
  %v82 = vunpack.c.l.bf16 %v18
  %v83 = vunpack.c.l.bf16 %v19
  %v84 = vunpack.c.l.bf16 %v20
  %v85 = vunpack.c.l.bf16 %v21
  %v86 = vunpack.c.l.bf16 %v22
  %v87 = vunpack.c.l.bf16 %v23
  %v88 = vunpack.c.l.bf16 %v24
  %v89 = vunpack.c.l.bf16 %v25
  %v90 = vunpack.c.l.bf16 %v26
  %v91 = vunpack.c.l.bf16 %v27
  %v92 = vunpack.c.l.bf16 %v28
  %v93 = vunpack.c.l.bf16 %v29
  %v94 = vunpack.c.l.bf16 %v30
  %v95 = vunpack.c.l.bf16 %v31
  %v96 = vunpack.c.l.bf16 %v32
  %v97 = vunpack.c.l.bf16 %v33
  %v98 = vunpack.c.l.bf16 %v34
  %v99 = vunpack.c.l.bf16 %v35
  %v100 = vunpack.c.l.bf16 %v36
  %v101 = vunpack.c.l.bf16 %v37
  %v102 = vunpack.c.l.bf16 %v38
  %v103 = vunpack.c.l.bf16 %v39
  %v104 = vunpack.c.l.bf16 %v40
  %v105 = vunpack.c.l.bf16 %v41
  %v106 = vunpack.c.l.bf16 %v42
  %v107 = vunpack.c.l.bf16 %v43
  %v108 = vunpack.c.l.bf16 %v44
  %v109 = vunpack.c.l.bf16 %v45
  %v110 = vunpack.c.l.bf16 %v46
  %v111 = vunpack.c.l.bf16 %v47
  %v112 = vunpack.c.l.bf16 %v48
  %v113 = vunpack.c.l.bf16 %v49
  %v114 = vunpack.c.l.bf16 %v50
  %v115 = vunpack.c.l.bf16 %v51
  %v116 = vunpack.c.l.bf16 %v52
  %v117 = vunpack.c.l.bf16 %v53
  %v118 = vunpack.c.l.bf16 %v54
  %v119 = vunpack.c.l.bf16 %v55
  %v120 = vunpack.c.l.bf16 %v56
  %v121 = vunpack.c.l.bf16 %v57
  %v122 = vunpack.c.l.bf16 %v58
  %v123 = vunpack.c.l.bf16 %v59
  %v124 = vunpack.c.l.bf16 %v60
  %v125 = vunpack.c.l.bf16 %v61
  %v126 = vunpack.c.l.bf16 %v62
  %v127 = vunpack.c.l.bf16 %v63
  %v128 = vunpack.c.l.bf16 %v64
  %v129 = vunpack.c.l.bf16 %v65
  %v130 = vunpack.c.l.bf16 %v66
  %v131 = vunpack.c.l.bf16 %v67
  %v132 = vunpack.c.l.bf16 %v68
  %v133 = vunpack.c.l.bf16 %v69
  %v134 = vunpack.c.l.bf16 %v70
  %v135 = vunpack.c.l.bf16 %v71
  %v136 = vunpack.c.l.bf16 %v72
  %v137 = vunpack.c.l.bf16 %v73
  %v138 = vunpack.c.l.bf16 %v74
  %v139 = vunpack.c.l.bf16 %v75
  %v140 = vunpack.c.l.bf16 %v76
  %v141 = vunpack.c.l.bf16 %v77
  %v142 = vunpack.c.l.bf16 %v78
  %v143 = vunpack.c.l.bf16 %v79
  %v144 = vunpack.c.l.bf16 %v80
  %v145 = vld [vmem:[%s1] sm:$0x1]
  %v147 = vlaneseq
  %v148 = vshrl.u32 %v147, 7
  %v149 = vsub.s32 0, %v148
  %v150 = vrot.slane %v145, %v149
  %v152 = vmul.f32 %v81, %v150
  %v153 = vmul.f32 %v82, %v150
  %v154 = vmul.f32 %v83, %v150
  %v155 = vmul.f32 %v84, %v150
  %v156 = vmul.f32 %v85, %v150
  %v157 = vmul.f32 %v86, %v150
  %v158 = vmul.f32 %v87, %v150
  %v159 = vmul.f32 %v88, %v150
  %v160 = vmul.f32 %v89, %v150
  %v161 = vmul.f32 %v90, %v150
  %v162 = vmul.f32 %v91, %v150
  %v163 = vmul.f32 %v92, %v150
  %v164 = vmul.f32 %v93, %v150
  %v165 = vmul.f32 %v94, %v150
  %v166 = vmul.f32 %v95, %v150
  %v167 = vmul.f32 %v96, %v150
  %v168 = vmul.f32 %v97, %v150
  %v169 = vmul.f32 %v98, %v150
  %v170 = vmul.f32 %v99, %v150
  %v171 = vmul.f32 %v100, %v150
  %v172 = vmul.f32 %v101, %v150
  %v173 = vmul.f32 %v102, %v150
  %v174 = vmul.f32 %v103, %v150
  %v175 = vmul.f32 %v104, %v150
  %v176 = vmul.f32 %v105, %v150
  %v177 = vmul.f32 %v106, %v150
  %v178 = vmul.f32 %v107, %v150
  %v179 = vmul.f32 %v108, %v150
  %v180 = vmul.f32 %v109, %v150
  %v181 = vmul.f32 %v110, %v150
  %v182 = vmul.f32 %v111, %v150
  %v183 = vmul.f32 %v112, %v150
  %v184 = vmul.f32 %v113, %v150
  %v185 = vmul.f32 %v114, %v150
  %v186 = vmul.f32 %v115, %v150
  %v187 = vmul.f32 %v116, %v150
  %v188 = vmul.f32 %v117, %v150
  %v189 = vmul.f32 %v118, %v150
  %v190 = vmul.f32 %v119, %v150
  %v191 = vmul.f32 %v120, %v150
  %v192 = vmul.f32 %v121, %v150
  %v193 = vmul.f32 %v122, %v150
  %v194 = vmul.f32 %v123, %v150
  %v195 = vmul.f32 %v124, %v150
  %v196 = vmul.f32 %v125, %v150
  %v197 = vmul.f32 %v126, %v150
  %v198 = vmul.f32 %v127, %v150
  %v199 = vmul.f32 %v128, %v150
  %v200 = vmul.f32 %v129, %v150
  %v201 = vmul.f32 %v130, %v150
  %v202 = vmul.f32 %v131, %v150
  %v203 = vmul.f32 %v132, %v150
  %v204 = vmul.f32 %v133, %v150
  %v205 = vmul.f32 %v134, %v150
  %v206 = vmul.f32 %v135, %v150
  %v207 = vmul.f32 %v136, %v150
  %v208 = vmul.f32 %v137, %v150
  %v209 = vmul.f32 %v138, %v150
  %v210 = vmul.f32 %v139, %v150
  %v211 = vmul.f32 %v140, %v150
  %v212 = vmul.f32 %v141, %v150
  %v213 = vmul.f32 %v142, %v150
  %v214 = vmul.f32 %v143, %v150
  %v215 = vmul.f32 %v144, %v150
  %v216 = vld [vmem:[%s2] sm:$0x1]
  %v218 = vlaneseq
  %v219 = vshrl.u32 %v218, 7
  %v220 = vsub.s32 0, %v219
  %v221 = vrot.slane %v216, %v220
  %v223 = vadd.f32 %v152, %v221
  %v224 = vadd.f32 %v153, %v221
  %v225 = vadd.f32 %v154, %v221
  %v226 = vadd.f32 %v155, %v221
  %v227 = vadd.f32 %v156, %v221
  %v228 = vadd.f32 %v157, %v221
  %v229 = vadd.f32 %v158, %v221
  %v230 = vadd.f32 %v159, %v221
  %v231 = vadd.f32 %v160, %v221
  %v232 = vadd.f32 %v161, %v221
  %v233 = vadd.f32 %v162, %v221
  %v234 = vadd.f32 %v163, %v221
  %v235 = vadd.f32 %v164, %v221
  %v236 = vadd.f32 %v165, %v221
  %v237 = vadd.f32 %v166, %v221
  %v238 = vadd.f32 %v167, %v221
  %v239 = vadd.f32 %v168, %v221
  %v240 = vadd.f32 %v169, %v221
  %v241 = vadd.f32 %v170, %v221
  %v242 = vadd.f32 %v171, %v221
  %v243 = vadd.f32 %v172, %v221
  %v244 = vadd.f32 %v173, %v221
  %v245 = vadd.f32 %v174, %v221
  %v246 = vadd.f32 %v175, %v221
  %v247 = vadd.f32 %v176, %v221
  %v248 = vadd.f32 %v177, %v221
  %v249 = vadd.f32 %v178, %v221
  %v250 = vadd.f32 %v179, %v221
  %v251 = vadd.f32 %v180, %v221
  %v252 = vadd.f32 %v181, %v221
  %v253 = vadd.f32 %v182, %v221
  %v254 = vadd.f32 %v183, %v221
  %v255 = vadd.f32 %v184, %v221
  %v256 = vadd.f32 %v185, %v221
  %v257 = vadd.f32 %v186, %v221
  %v258 = vadd.f32 %v187, %v221
  %v259 = vadd.f32 %v188, %v221
  %v260 = vadd.f32 %v189, %v221
  %v261 = vadd.f32 %v190, %v221
  %v262 = vadd.f32 %v191, %v221
  %v263 = vadd.f32 %v192, %v221
  %v264 = vadd.f32 %v193, %v221
  %v265 = vadd.f32 %v194, %v221
  %v266 = vadd.f32 %v195, %v221
  %v267 = vadd.f32 %v196, %v221
  %v268 = vadd.f32 %v197, %v221
  %v269 = vadd.f32 %v198, %v221
  %v270 = vadd.f32 %v199, %v221
  %v271 = vadd.f32 %v200, %v221
  %v272 = vadd.f32 %v201, %v221
  %v273 = vadd.f32 %v202, %v221
  %v274 = vadd.f32 %v203, %v221
  %v275 = vadd.f32 %v204, %v221
  %v276 = vadd.f32 %v205, %v221
  %v277 = vadd.f32 %v206, %v221
  %v278 = vadd.f32 %v207, %v221
  %v279 = vadd.f32 %v208, %v221
  %v280 = vadd.f32 %v209, %v221
  %v281 = vadd.f32 %v210, %v221
  %v282 = vadd.f32 %v211, %v221
  %v283 = vadd.f32 %v212, %v221
  %v284 = vadd.f32 %v213, %v221
  %v285 = vadd.f32 %v214, %v221
  %v286 = vadd.f32 %v215, %v221
  %v287 = vld [vmem:[%s3] sm:$0xff]
  %v288 = vld [vmem:[%s3 + $0x8] sm:$0xff]
  %v289 = vld [vmem:[%s3 + $0x10] sm:$0xff]
  %v290 = vld [vmem:[%s3 + $0x18] sm:$0xff]
  %v291 = vld [vmem:[%s3 + $0x20] sm:$0xff]
  %v292 = vld [vmem:[%s3 + $0x28] sm:$0xff]
  %v293 = vld [vmem:[%s3 + $0x30] sm:$0xff]
  %v294 = vld [vmem:[%s3 + $0x38] sm:$0xff]
  %v295 = vld [vmem:[%s3 + $0x40] sm:$0xff]
  %v296 = vld [vmem:[%s3 + $0x48] sm:$0xff]
  %v297 = vld [vmem:[%s3 + $0x50] sm:$0xff]
  %v298 = vld [vmem:[%s3 + $0x58] sm:$0xff]
  %v299 = vld [vmem:[%s3 + $0x60] sm:$0xff]
  %v300 = vld [vmem:[%s3 + $0x68] sm:$0xff]
  %v301 = vld [vmem:[%s3 + $0x70] sm:$0xff]
  %v302 = vld [vmem:[%s3 + $0x78] sm:$0xff]
  %v303 = vld [vmem:[%s3 + $0x80] sm:$0xff]
  %v304 = vld [vmem:[%s3 + $0x88] sm:$0xff]
  %v305 = vld [vmem:[%s3 + $0x90] sm:$0xff]
  %v306 = vld [vmem:[%s3 + $0x98] sm:$0xff]
  %v307 = vld [vmem:[%s3 + $0xa0] sm:$0xff]
  %v308 = vld [vmem:[%s3 + $0xa8] sm:$0xff]
  %v309 = vld [vmem:[%s3 + $0xb0] sm:$0xff]
  %v310 = vld [vmem:[%s3 + $0xb8] sm:$0xff]
  %v311 = vld [vmem:[%s3 + $0xc0] sm:$0xff]
  %v312 = vld [vmem:[%s3 + $0xc8] sm:$0xff]
  %v313 = vld [vmem:[%s3 + $0xd0] sm:$0xff]
  %v314 = vld [vmem:[%s3 + $0xd8] sm:$0xff]
  %v315 = vld [vmem:[%s3 + $0xe0] sm:$0xff]
  %v316 = vld [vmem:[%s3 + $0xe8] sm:$0xff]
  %v317 = vld [vmem:[%s3 + $0xf0] sm:$0xff]
  %v318 = vld [vmem:[%s3 + $0xf8] sm:$0xff]
  %v319 = vld [vmem:[%s3 + $0x100] sm:$0xff]
  %v320 = vld [vmem:[%s3 + $0x108] sm:$0xff]
  %v321 = vld [vmem:[%s3 + $0x110] sm:$0xff]
  %v322 = vld [vmem:[%s3 + $0x118] sm:$0xff]
  %v323 = vld [vmem:[%s3 + $0x120] sm:$0xff]
  %v324 = vld [vmem:[%s3 + $0x128] sm:$0xff]
  %v325 = vld [vmem:[%s3 + $0x130] sm:$0xff]
  %v326 = vld [vmem:[%s3 + $0x138] sm:$0xff]
  %v327 = vld [vmem:[%s3 + $0x140] sm:$0xff]
  %v328 = vld [vmem:[%s3 + $0x148] sm:$0xff]
  %v329 = vld [vmem:[%s3 + $0x150] sm:$0xff]
  %v330 = vld [vmem:[%s3 + $0x158] sm:$0xff]
  %v331 = vld [vmem:[%s3 + $0x160] sm:$0xff]
  %v332 = vld [vmem:[%s3 + $0x168] sm:$0xff]
  %v333 = vld [vmem:[%s3 + $0x170] sm:$0xff]
  %v334 = vld [vmem:[%s3 + $0x178] sm:$0xff]
  %v335 = vld [vmem:[%s3 + $0x180] sm:$0xff]
  %v336 = vld [vmem:[%s3 + $0x188] sm:$0xff]
  %v337 = vld [vmem:[%s3 + $0x190] sm:$0xff]
  %v338 = vld [vmem:[%s3 + $0x198] sm:$0xff]
  %v339 = vld [vmem:[%s3 + $0x1a0] sm:$0xff]
  %v340 = vld [vmem:[%s3 + $0x1a8] sm:$0xff]
  %v341 = vld [vmem:[%s3 + $0x1b0] sm:$0xff]
  %v342 = vld [vmem:[%s3 + $0x1b8] sm:$0xff]
  %v343 = vld [vmem:[%s3 + $0x1c0] sm:$0xff]
  %v344 = vld [vmem:[%s3 + $0x1c8] sm:$0xff]
  %v345 = vld [vmem:[%s3 + $0x1d0] sm:$0xff]
  %v346 = vld [vmem:[%s3 + $0x1d8] sm:$0xff]
  %v347 = vld [vmem:[%s3 + $0x1e0] sm:$0xff]
  %v348 = vld [vmem:[%s3 + $0x1e8] sm:$0xff]
  %v349 = vld [vmem:[%s3 + $0x1f0] sm:$0xff]
  %v350 = vld [vmem:[%s3 + $0x1f8] sm:$0xff]
  %v351 = vadd.f32 %v223, %v287
  %v352 = vadd.f32 %v224, %v288
  %v353 = vadd.f32 %v225, %v289
  %v354 = vadd.f32 %v226, %v290
  %v355 = vadd.f32 %v227, %v291
  %v356 = vadd.f32 %v228, %v292
  %v357 = vadd.f32 %v229, %v293
  %v358 = vadd.f32 %v230, %v294
  %v359 = vadd.f32 %v231, %v295
  %v360 = vadd.f32 %v232, %v296
  %v361 = vadd.f32 %v233, %v297
  %v362 = vadd.f32 %v234, %v298
  %v363 = vadd.f32 %v235, %v299
  %v364 = vadd.f32 %v236, %v300
  %v365 = vadd.f32 %v237, %v301
  %v366 = vadd.f32 %v238, %v302
  %v367 = vadd.f32 %v239, %v303
  %v368 = vadd.f32 %v240, %v304
  %v369 = vadd.f32 %v241, %v305
  %v370 = vadd.f32 %v242, %v306
  %v371 = vadd.f32 %v243, %v307
  %v372 = vadd.f32 %v244, %v308
  %v373 = vadd.f32 %v245, %v309
  %v374 = vadd.f32 %v246, %v310
  %v375 = vadd.f32 %v247, %v311
  %v376 = vadd.f32 %v248, %v312
  %v377 = vadd.f32 %v249, %v313
  %v378 = vadd.f32 %v250, %v314
  %v379 = vadd.f32 %v251, %v315
  %v380 = vadd.f32 %v252, %v316
  %v381 = vadd.f32 %v253, %v317
  %v382 = vadd.f32 %v254, %v318
  %v383 = vadd.f32 %v255, %v319
  %v384 = vadd.f32 %v256, %v320
  %v385 = vadd.f32 %v257, %v321
  %v386 = vadd.f32 %v258, %v322
  %v387 = vadd.f32 %v259, %v323
  %v388 = vadd.f32 %v260, %v324
  %v389 = vadd.f32 %v261, %v325
  %v390 = vadd.f32 %v262, %v326
  %v391 = vadd.f32 %v263, %v327
  %v392 = vadd.f32 %v264, %v328
  %v393 = vadd.f32 %v265, %v329
  %v394 = vadd.f32 %v266, %v330
  %v395 = vadd.f32 %v267, %v331
  %v396 = vadd.f32 %v268, %v332
  %v397 = vadd.f32 %v269, %v333
  %v398 = vadd.f32 %v270, %v334
  %v399 = vadd.f32 %v271, %v335
  %v400 = vadd.f32 %v272, %v336
  %v401 = vadd.f32 %v273, %v337
  %v402 = vadd.f32 %v274, %v338
  %v403 = vadd.f32 %v275, %v339
  %v404 = vadd.f32 %v276, %v340
  %v405 = vadd.f32 %v277, %v341
  %v406 = vadd.f32 %v278, %v342
  %v407 = vadd.f32 %v279, %v343
  %v408 = vadd.f32 %v280, %v344
  %v409 = vadd.f32 %v281, %v345
  %v410 = vadd.f32 %v282, %v346
  %v411 = vadd.f32 %v283, %v347
  %v412 = vadd.f32 %v284, %v348
  %v413 = vadd.f32 %v285, %v349
  %v414 = vadd.f32 %v286, %v350
  %v415 = vmax.f32 %v351, 0.0
  %v416 = vmax.f32 %v352, 0.0
  %v417 = vmax.f32 %v353, 0.0
  %v418 = vmax.f32 %v354, 0.0
  %v419 = vmax.f32 %v355, 0.0
  %v420 = vmax.f32 %v356, 0.0
  %v421 = vmax.f32 %v357, 0.0
  %v422 = vmax.f32 %v358, 0.0
  %v423 = vmax.f32 %v359, 0.0
  %v424 = vmax.f32 %v360, 0.0
  %v425 = vmax.f32 %v361, 0.0
  %v426 = vmax.f32 %v362, 0.0
  %v427 = vmax.f32 %v363, 0.0
  %v428 = vmax.f32 %v364, 0.0
  %v429 = vmax.f32 %v365, 0.0
  %v430 = vmax.f32 %v366, 0.0
  %v431 = vmax.f32 %v367, 0.0
  %v432 = vmax.f32 %v368, 0.0
  %v433 = vmax.f32 %v369, 0.0
  %v434 = vmax.f32 %v370, 0.0
  %v435 = vmax.f32 %v371, 0.0
  %v436 = vmax.f32 %v372, 0.0
  %v437 = vmax.f32 %v373, 0.0
  %v438 = vmax.f32 %v374, 0.0
  %v439 = vmax.f32 %v375, 0.0
  %v440 = vmax.f32 %v376, 0.0
  %v441 = vmax.f32 %v377, 0.0
  %v442 = vmax.f32 %v378, 0.0
  %v443 = vmax.f32 %v379, 0.0
  %v444 = vmax.f32 %v380, 0.0
  %v445 = vmax.f32 %v381, 0.0
  %v446 = vmax.f32 %v382, 0.0
  %v447 = vmax.f32 %v383, 0.0
  %v448 = vmax.f32 %v384, 0.0
  %v449 = vmax.f32 %v385, 0.0
  %v450 = vmax.f32 %v386, 0.0
  %v451 = vmax.f32 %v387, 0.0
  %v452 = vmax.f32 %v388, 0.0
  %v453 = vmax.f32 %v389, 0.0
  %v454 = vmax.f32 %v390, 0.0
  %v455 = vmax.f32 %v391, 0.0
  %v456 = vmax.f32 %v392, 0.0
  %v457 = vmax.f32 %v393, 0.0
  %v458 = vmax.f32 %v394, 0.0
  %v459 = vmax.f32 %v395, 0.0
  %v460 = vmax.f32 %v396, 0.0
  %v461 = vmax.f32 %v397, 0.0
  %v462 = vmax.f32 %v398, 0.0
  %v463 = vmax.f32 %v399, 0.0
  %v464 = vmax.f32 %v400, 0.0
  %v465 = vmax.f32 %v401, 0.0
  %v466 = vmax.f32 %v402, 0.0
  %v467 = vmax.f32 %v403, 0.0
  %v468 = vmax.f32 %v404, 0.0
  %v469 = vmax.f32 %v405, 0.0
  %v470 = vmax.f32 %v406, 0.0
  %v471 = vmax.f32 %v407, 0.0
  %v472 = vmax.f32 %v408, 0.0
  %v473 = vmax.f32 %v409, 0.0
  %v474 = vmax.f32 %v410, 0.0
  %v475 = vmax.f32 %v411, 0.0
  %v476 = vmax.f32 %v412, 0.0
  %v477 = vmax.f32 %v413, 0.0
  %v478 = vmax.f32 %v414, 0.0
  %vm479 = vcmask 64512
  %480 = vst.msk [vmem:[%s4] sm:$0xff] %vm479, %v415
  %481 = vst.msk [vmem:[%s4 + $0x8] sm:$0xff] %vm479, %v416
  %482 = vst.msk [vmem:[%s4 + $0x10] sm:$0xff] %vm479, %v417
  %483 = vst.msk [vmem:[%s4 + $0x18] sm:$0xff] %vm479, %v418
  %484 = vst.msk [vmem:[%s4 + $0x20] sm:$0xff] %vm479, %v419
  %485 = vst.msk [vmem:[%s4 + $0x28] sm:$0xff] %vm479, %v420
  %486 = vst.msk [vmem:[%s4 + $0x30] sm:$0xff] %vm479, %v421
  %487 = vst.msk [vmem:[%s4 + $0x38] sm:$0xff] %vm479, %v422
  %488 = vst.msk [vmem:[%s4 + $0x40] sm:$0xff] %vm479, %v423
  %489 = vst.msk [vmem:[%s4 + $0x48] sm:$0xff] %vm479, %v424
  %490 = vst.msk [vmem:[%s4 + $0x50] sm:$0xff] %vm479, %v425
  %491 = vst.msk [vmem:[%s4 + $0x58] sm:$0xff] %vm479, %v426
  %492 = vst.msk [vmem:[%s4 + $0x60] sm:$0xff] %vm479, %v427
  %493 = vst.msk [vmem:[%s4 + $0x68] sm:$0xff] %vm479, %v428
  %494 = vst.msk [vmem:[%s4 + $0x70] sm:$0xff] %vm479, %v429
  %495 = vst.msk [vmem:[%s4 + $0x78] sm:$0xff] %vm479, %v430
  %496 = vst.msk [vmem:[%s4 + $0x80] sm:$0xff] %vm479, %v431
  %497 = vst.msk [vmem:[%s4 + $0x88] sm:$0xff] %vm479, %v432
  %498 = vst.msk [vmem:[%s4 + $0x90] sm:$0xff] %vm479, %v433
  %499 = vst.msk [vmem:[%s4 + $0x98] sm:$0xff] %vm479, %v434
  %500 = vst.msk [vmem:[%s4 + $0xa0] sm:$0xff] %vm479, %v435
  %501 = vst.msk [vmem:[%s4 + $0xa8] sm:$0xff] %vm479, %v436
  %502 = vst.msk [vmem:[%s4 + $0xb0] sm:$0xff] %vm479, %v437
  %503 = vst.msk [vmem:[%s4 + $0xb8] sm:$0xff] %vm479, %v438
  %504 = vst.msk [vmem:[%s4 + $0xc0] sm:$0xff] %vm479, %v439
  %505 = vst.msk [vmem:[%s4 + $0xc8] sm:$0xff] %vm479, %v440
  %506 = vst.msk [vmem:[%s4 + $0xd0] sm:$0xff] %vm479, %v441
  %507 = vst.msk [vmem:[%s4 + $0xd8] sm:$0xff] %vm479, %v442
  %508 = vst.msk [vmem:[%s4 + $0xe0] sm:$0xff] %vm479, %v443
  %509 = vst.msk [vmem:[%s4 + $0xe8] sm:$0xff] %vm479, %v444
  %510 = vst.msk [vmem:[%s4 + $0xf0] sm:$0xff] %vm479, %v445
  %511 = vst.msk [vmem:[%s4 + $0xf8] sm:$0xff] %vm479, %v446
  %512 = vst.msk [vmem:[%s4 + $0x100] sm:$0xff] %vm479, %v447
  %513 = vst.msk [vmem:[%s4 + $0x108] sm:$0xff] %vm479, %v448
  %514 = vst.msk [vmem:[%s4 + $0x110] sm:$0xff] %vm479, %v449
  %515 = vst.msk [vmem:[%s4 + $0x118] sm:$0xff] %vm479, %v450
  %516 = vst.msk [vmem:[%s4 + $0x120] sm:$0xff] %vm479, %v451
  %517 = vst.msk [vmem:[%s4 + $0x128] sm:$0xff] %vm479, %v452
  %518 = vst.msk [vmem:[%s4 + $0x130] sm:$0xff] %vm479, %v453
  %519 = vst.msk [vmem:[%s4 + $0x138] sm:$0xff] %vm479, %v454
  %520 = vst.msk [vmem:[%s4 + $0x140] sm:$0xff] %vm479, %v455
  %521 = vst.msk [vmem:[%s4 + $0x148] sm:$0xff] %vm479, %v456
  %522 = vst.msk [vmem:[%s4 + $0x150] sm:$0xff] %vm479, %v457
  %523 = vst.msk [vmem:[%s4 + $0x158] sm:$0xff] %vm479, %v458
  %524 = vst.msk [vmem:[%s4 + $0x160] sm:$0xff] %vm479, %v459
  %525 = vst.msk [vmem:[%s4 + $0x168] sm:$0xff] %vm479, %v460
  %526 = vst.msk [vmem:[%s4 + $0x170] sm:$0xff] %vm479, %v461
  %527 = vst.msk [vmem:[%s4 + $0x178] sm:$0xff] %vm479, %v462
  %528 = vst.msk [vmem:[%s4 + $0x180] sm:$0xff] %vm479, %v463
  %529 = vst.msk [vmem:[%s4 + $0x188] sm:$0xff] %vm479, %v464
  %530 = vst.msk [vmem:[%s4 + $0x190] sm:$0xff] %vm479, %v465
  %531 = vst.msk [vmem:[%s4 + $0x198] sm:$0xff] %vm479, %v466
  %532 = vst.msk [vmem:[%s4 + $0x1a0] sm:$0xff] %vm479, %v467
  %533 = vst.msk [vmem:[%s4 + $0x1a8] sm:$0xff] %vm479, %v468
  %534 = vst.msk [vmem:[%s4 + $0x1b0] sm:$0xff] %vm479, %v469
  %535 = vst.msk [vmem:[%s4 + $0x1b8] sm:$0xff] %vm479, %v470
  %536 = vst.msk [vmem:[%s4 + $0x1c0] sm:$0xff] %vm479, %v471
  %537 = vst.msk [vmem:[%s4 + $0x1c8] sm:$0xff] %vm479, %v472
  %538 = vst.msk [vmem:[%s4 + $0x1d0] sm:$0xff] %vm479, %v473
  %539 = vst.msk [vmem:[%s4 + $0x1d8] sm:$0xff] %vm479, %v474
  %540 = vst.msk [vmem:[%s4 + $0x1e0] sm:$0xff] %vm479, %v475
  %541 = vst.msk [vmem:[%s4 + $0x1e8] sm:$0xff] %vm479, %v476
  %542 = vst.msk [vmem:[%s4 + $0x1f0] sm:$0xff] %vm479, %v477
  %543 = vst.msk [vmem:[%s4 + $0x1f8] sm:$0xff] %vm479, %v478
  // Predicated region
  $region18: #{basic_block_forward.5} parent=0 // pred_check
    _
  $region19: #{basic_block_forward.5} parent=0 // pred_check_branch
    %545 = sbr.rel (0) target = $region21
  $region20: #{basic_block_forward.5} parent=0 // pred_region
    _
  $region21: #{basic_block_forward.5} parent=0 // pred_fallthru
    _
  // Predicated region
  $region22: #{basic_block_forward.5} parent=0 // pred_check
    _
  $region23: #{basic_block_forward.5} parent=0 // pred_check_branch
    %547 = sbr.rel (0) target = $region25
  $region24: #{basic_block_forward.5} parent=0 // pred_region
    _
  $region25: #{basic_block_forward.5} parent=0 // pred_fallthru
    _

// kernel: basic_block_forward.3
$region0: #{basic_block_forward.3}
  #allocation0 [shape = 'u32[]', space=smem, size = 0x4, offset = 0x4, fixed_abs, tag = 'smem constant byte address 0x4 - core index']
  #allocation1 [shape = 'u32[144,128]{1,0:T(1,128)}', space=vmem, size = 0x12000, scoped, tag = 'internal scratch']
  %s0 = inlined_call_operand.vmem [shape: f32[2,256,8], index: 0, kind: input, shape index: {}]
  %s1 = inlined_call_operand.vmem [shape: bf16[9,8,8], index: 1, kind: input, shape index: {}]
  %s2 = inlined_call_operand.vmem [shape: bf16[2,256,8], index: 2, kind: output, shape index: {0}]
  %s3 = inlined_call_operand.vmem [shape: f32[2,2,8], index: 3, kind: output, shape index: {1}]
  %4 = xla_tuple %s2, %s3
  %s5 = sld [smem:[#allocation0]]
  $region49: #{basic_block_forward.3} parent=0
    _
  %s7 = ssub.s32 1, %s5
  %s8 = scalar_select 0, %s7, %s5
  loop: start=0, step=1, limit=4
  $region2: #{basic_block_forward.3} parent=0 // loop_pre_header
    _
  $region3: #{basic_block_forward.3} parent=0 // loop_header
    %s10 = sphi 0, %s14
    %p11 = scmp.ge.s32.totalorder %s10, 4
    %s20 = sphi 0, %s22
    %s23 = sphi 0, %s20
    %s24 = sphi 0, %s23
    %s40 = sphi 0, %s24
    %s44 = sphi 0, %s44
    %s46 = sphi 0, %s44
    %s47 = sphi 0, %s46
    %s61 = sphi 0, %s47
    %s67 = sphi 0, %s69
    %s70 = sphi 0, %s67
    %s71 = sphi 0, %s70
    %s87 = sphi 0, %s71
    %s93 = sphi 0, %s95
    %s96 = sphi 0, %s93
    %s97 = sphi 0, %s96
    %s113 = sphi 0, %s97
  $region4: #{basic_block_forward.3} parent=0 // loop_header_branch
    %13 = sbr.rel (%p11) target = $region8
  $region5: #{basic_block_forward.3} parent=0 // loop_body
    %s15 = ssub.s32 %s10, 1
    %s16 = ssub.s32 %s10, 2
    %s17 = sadd.s32 %s10, 1
    %s18 = ssub.s32 %s10, %s17
    %p19 = scmp.eq.s32.totalorder %s18, 0
    %s21 = sadd.s32 %s20, 1
    %s22 = scalar_select %p19, %s20, %s21
    %p25 = pneg %p19
    %p26 = scmp.eq.s32.totalorder %s10, 1
    %p27 = por %p25, %p26
    %p28 = scmp.ne.s32.totalorder %s20, %s23
    %p29 = scmp.eq.s32.totalorder %s10, 0
    %p30 = por %p28, %p29
    %p31 = scmp.ne.s32.totalorder %s20, %s23
    %p32 = scmp.eq.s32.totalorder %s15, 1
    %p33 = por %p31, %p32
    %p34 = scmp.ne.s32.totalorder %s23, %s24
    %p35 = scmp.eq.s32.totalorder %s15, 0
    %p36 = por %p34, %p35
    %p37 = scmp.ne.s32.totalorder %s23, %s24
    %p38 = scmp.eq.s32.totalorder %s16, 1
    %p39 = por %p37, %p38
    %p41 = scmp.ne.s32.totalorder %s24, %s40
    %p42 = scmp.eq.s32.totalorder %s16, 0
    %p43 = por %p41, %p42
    %s45 = sadd.s32 %s44, 1
    %p48 = scmp.eq.s32.totalorder %s10, 1
    %p49 = scmp.ne.s32.totalorder %s44, %s46
    %p50 = scmp.eq.s32.totalorder %s10, 0
    %p51 = por %p49, %p50
    %p52 = scmp.ne.s32.totalorder %s44, %s46
    %p53 = scmp.eq.s32.totalorder %s15, 1
    %p54 = por %p52, %p53
    %p55 = scmp.ne.s32.totalorder %s46, %s47
    %p56 = scmp.eq.s32.totalorder %s15, 0
    %p57 = por %p55, %p56
    %p58 = scmp.ne.s32.totalorder %s46, %s47
    %p59 = scmp.eq.s32.totalorder %s16, 1
    %p60 = por %p58, %p59
    %p62 = scmp.ne.s32.totalorder %s47, %s61
    %p63 = scmp.eq.s32.totalorder %s16, 0
    %p64 = por %p62, %p63
    %s65 = ssub.s32 %s10, %s17
    %p66 = scmp.eq.s32.totalorder %s65, 0
    %s68 = sadd.s32 %s67, 1
    %s69 = scalar_select %p66, %s67, %s68
    %p72 = pneg %p66
    %p73 = scmp.eq.s32.totalorder %s10, 1
    %p74 = por %p72, %p73
    %p75 = scmp.ne.s32.totalorder %s67, %s70
    %p76 = scmp.eq.s32.totalorder %s10, 0
    %p77 = por %p75, %p76
    %p78 = scmp.ne.s32.totalorder %s67, %s70
    %p79 = scmp.eq.s32.totalorder %s15, 1
    %p80 = por %p78, %p79
    %p81 = scmp.ne.s32.totalorder %s70, %s71
    %p82 = scmp.eq.s32.totalorder %s15, 0
    %p83 = por %p81, %p82
    %p84 = scmp.ne.s32.totalorder %s70, %s71
    %p85 = scmp.eq.s32.totalorder %s16, 1
    %p86 = por %p84, %p85
    %p88 = scmp.ne.s32.totalorder %s71, %s87
    %p89 = scmp.eq.s32.totalorder %s16, 0
    %p90 = por %p88, %p89
    %s91 = ssub.s32 %s10, %s17
    %p92 = scmp.eq.s32.totalorder %s91, 0
    %s94 = sadd.s32 %s93, 1
    %s95 = scalar_select %p92, %s93, %s94
    %p98 = pneg %p92
    %p99 = scmp.eq.s32.totalorder %s10, 1
    %p100 = por %p98, %p99
    %p101 = scmp.ne.s32.totalorder %s93, %s96
    %p102 = scmp.eq.s32.totalorder %s10, 0
    %p103 = por %p101, %p102
    %p104 = scmp.ne.s32.totalorder %s93, %s96
    %p105 = scmp.eq.s32.totalorder %s15, 1
    %p106 = por %p104, %p105
    %p107 = scmp.ne.s32.totalorder %s96, %s97
    %p108 = scmp.eq.s32.totalorder %s15, 0
    %p109 = por %p107, %p108
    %p110 = scmp.ne.s32.totalorder %s96, %s97
    %p111 = scmp.eq.s32.totalorder %s16, 1
    %p112 = por %p110, %p111
    %p114 = scmp.ne.s32.totalorder %s97, %s113
    %p115 = scmp.eq.s32.totalorder %s16, 0
    %p116 = por %p114, %p115
    %p117 = scmp.le.s32.totalorder 1, %s10
    %p118 = scmp.lt.s32.totalorder %s10, 3
    %p119 = pnand %p117, %p118
    %p120 = pneg %p119
    // Predicated region
    $region9: #{basic_block_forward.3} parent=5 // pred_check
      _
    $region10: #{basic_block_forward.3} parent=5 // pred_check_branch
      %122 = sbr.rel (%p119) target = $region12
    $region11: #{basic_block_forward.3} parent=5 // pred_region
      %s123 = ssub.s32 %s10, 1
      // Predicated region
      $region13: #{basic_block_forward.3} parent=11 // pred_check
        %p124 = pneg %p57
      $region14: #{basic_block_forward.3} parent=11 // pred_check_branch
        %126 = sbr.rel (%p124) target = $region16
      $region15: #{basic_block_forward.3} parent=11 // pred_region
        _
      $region16: #{basic_block_forward.3} parent=11 // pred_fallthru
        _
    $region12: #{basic_block_forward.3} parent=5 // pred_fallthru
      _
    %p127 = scmp.lt.s32.totalorder %s10, 2
    // Predicated region
    $region17: #{basic_block_forward.3} parent=5 // pred_check
      %p128 = pneg %p127
    $region18: #{basic_block_forward.3} parent=5 // pred_check_branch
      %130 = sbr.rel (%p128) target = $region20
    $region19: #{basic_block_forward.3} parent=5 // pred_region
      // Predicated region
      $region21: #{basic_block_forward.3} parent=19 // pred_check
        %p131 = pneg %p30
      $region22: #{basic_block_forward.3} parent=19 // pred_check_branch
        %133 = sbr.rel (%p131) target = $region24
      $region23: #{basic_block_forward.3} parent=19 // pred_region
        %p134 = scmp.lt.s32.totalorder %s10, 1
        %s135 = scalar_select %p134, %s10, 1
        %s136 = smul.addr %s135, 32
        %s137 = smul.addr %s136, 8
        %s138 = scalar_lea.vmem %s0, %s137
      $region24: #{basic_block_forward.3} parent=19 // pred_fallthru
        _
    $region20: #{basic_block_forward.3} parent=5 // pred_fallthru
      _
    %p139 = scmp.le.s32.totalorder 1, %s10
    %p140 = scmp.lt.s32.totalorder %s10, 3
    %p141 = pnand %p139, %p140
    %p142 = pneg %p141
    // Predicated region
    $region25: #{basic_block_forward.3} parent=5 // pred_check
      _
    $region26: #{basic_block_forward.3} parent=5 // pred_check_branch
      %144 = sbr.rel (%p141) target = $region28
    $region27: #{basic_block_forward.3} parent=5 // pred_region
      %s145 = ssub.s32 %s10, 1
      %p146 = scmp.lt.s32.totalorder %s15, 1
      %s147 = scalar_select %p146, %s15, 1
      %s148 = smul.addr %s147, 32
      %s149 = smul.addr %s148, 8
      %s150 = scalar_lea.vmem %s0, %s149
      %p151 = pneg %p36
      %p152 = pneg %p33
      %p153 = pneg %p57
      %p154 = pneg %p54
      %p155 = pneg %p83
      %p156 = pneg %p80
      %p157 = scmp.lt.s32.totalorder %s15, 1
      %s158 = scalar_select %p157, %s15, 1
      %s159 = smul.addr %s158, 32
      %s160 = smul.addr %s159, 4
      %s161 = scalar_lea.vmem %s2, %s160
      %p162 = pneg %p109
      %p163 = pneg %p106
      %p164 = scmp.lt.s32.totalorder %s15, 1
      %s165 = scalar_select %p164, %s15, 1
      %s166 = smul.addr %s165, 2
      %s167 = scalar_lea.vmem %s3, %s166
      %p168 = scmp.lt.s32.totalorder %s15, 1
      %s169 = scalar_select %p168, %s15, 1
      %s170 = smul.addr %s169, 32
      %s171 = smul.addr %s170, 8
      %s172 = scalar_lea.vmem %s0, %s171
      %p173 = scmp.lt.s32.totalorder %s15, 1
      %s174 = scalar_select %p173, %s15, 1
      %s175 = smul.addr %s174, 32
      %s176 = smul.addr %s175, 4
      %s177 = scalar_lea.vmem %s2, %s176
      %p178 = scmp.lt.s32.totalorder %s15, 1
      %s179 = scalar_select %p178, %s15, 1
      %s180 = smul.addr %s179, 2
      %s181 = scalar_lea.vmem %s3, %s180
      %v185 = vld [vmem:[%s172] sm:$0xff]
      %v186 = vld [vmem:[%s172 + $0x8] sm:$0xff]
      %v187 = vld [vmem:[%s172 + $0x10] sm:$0xff]
      %v188 = vld [vmem:[%s172 + $0x18] sm:$0xff]
      %v189 = vld [vmem:[%s172 + $0x20] sm:$0xff]
      %v190 = vld [vmem:[%s172 + $0x28] sm:$0xff]
      %v191 = vld [vmem:[%s172 + $0x30] sm:$0xff]
      %v192 = vld [vmem:[%s172 + $0x38] sm:$0xff]
      %v193 = vld [vmem:[%s172 + $0x40] sm:$0xff]
      %v194 = vld [vmem:[%s172 + $0x48] sm:$0xff]
      %v195 = vld [vmem:[%s172 + $0x50] sm:$0xff]
      %v196 = vld [vmem:[%s172 + $0x58] sm:$0xff]
      %v197 = vld [vmem:[%s172 + $0x60] sm:$0xff]
      %v198 = vld [vmem:[%s172 + $0x68] sm:$0xff]
      %v199 = vld [vmem:[%s172 + $0x70] sm:$0xff]
      %v200 = vld [vmem:[%s172 + $0x78] sm:$0xff]
      %v201 = vld [vmem:[%s172 + $0x80] sm:$0xff]
      %v202 = vld [vmem:[%s172 + $0x88] sm:$0xff]
      %v203 = vld [vmem:[%s172 + $0x90] sm:$0xff]
      %v204 = vld [vmem:[%s172 + $0x98] sm:$0xff]
      %v205 = vld [vmem:[%s172 + $0xa0] sm:$0xff]
      %v206 = vld [vmem:[%s172 + $0xa8] sm:$0xff]
      %v207 = vld [vmem:[%s172 + $0xb0] sm:$0xff]
      %v208 = vld [vmem:[%s172 + $0xb8] sm:$0xff]
      %v209 = vld [vmem:[%s172 + $0xc0] sm:$0xff]
      %v210 = vld [vmem:[%s172 + $0xc8] sm:$0xff]
      %v211 = vld [vmem:[%s172 + $0xd0] sm:$0xff]
      %v212 = vld [vmem:[%s172 + $0xd8] sm:$0xff]
      %v213 = vld [vmem:[%s172 + $0xe0] sm:$0xff]
      %v214 = vld [vmem:[%s172 + $0xe8] sm:$0xff]
      %v215 = vld [vmem:[%s172 + $0xf0] sm:$0xff]
      %v216 = vld [vmem:[%s172 + $0xf8] sm:$0xff]
      %v217 = vpack.c.bf16 %v186, %v185
      %v218 = vpack.c.bf16 %v188, %v187
      %v219 = vpack.c.bf16 %v190, %v189
      %v220 = vpack.c.bf16 %v192, %v191
      %v221 = vpack.c.bf16 %v194, %v193
      %v222 = vpack.c.bf16 %v196, %v195
      %v223 = vpack.c.bf16 %v198, %v197
      %v224 = vpack.c.bf16 %v200, %v199
      %v225 = vpack.c.bf16 %v202, %v201
      %v226 = vpack.c.bf16 %v204, %v203
      %v227 = vpack.c.bf16 %v206, %v205
      %v228 = vpack.c.bf16 %v208, %v207
      %v229 = vpack.c.bf16 %v210, %v209
      %v230 = vpack.c.bf16 %v212, %v211
      %v231 = vpack.c.bf16 %v214, %v213
      %v232 = vpack.c.bf16 %v216, %v215
      %v233 = vlaneseq
      %v234 = vshrl.u32 %v233, 7
      %v235 = vadd.s32 %v234, 8
      %v236 = vadd.s32 %v234, 16
      %v237 = vadd.s32 %v234, 24
      %v238 = vadd.s32 %v234, 32
      %v239 = vadd.s32 %v234, 40
      %v240 = vadd.s32 %v234, 48
      %v241 = vadd.s32 %v234, 56
      %v242 = vadd.s32 %v234, 64
      %v243 = vadd.s32 %v234, 72
      %v244 = vadd.s32 %v234, 80
      %v245 = vadd.s32 %v234, 88
      %v246 = vadd.s32 %v234, 96
      %v247 = vadd.s32 %v234, 104
      %v248 = vadd.s32 %v234, 112
      %v249 = vadd.s32 %v234, 120
      %v250 = vadd.s32 %v234, 128
      %v251 = vadd.s32 %v234, 136
      %v252 = vadd.s32 %v234, 144
      %v253 = vadd.s32 %v234, 152
      %v254 = vadd.s32 %v234, 160
      %v255 = vadd.s32 %v234, 168
      %v256 = vadd.s32 %v234, 176
      %v257 = vadd.s32 %v234, 184
      %v258 = vadd.s32 %v234, 192
      %v259 = vadd.s32 %v234, 200
      %v260 = vadd.s32 %v234, 208
      %v261 = vadd.s32 %v234, 216
      %v262 = vadd.s32 %v234, 224
      %v263 = vadd.s32 %v234, 232
      %v264 = vadd.s32 %v234, 240
      %v265 = vadd.s32 %v234, 248
      %vm266 = vcmp.lt.s32.totalorder %v234, 0
      %v267 = vsub.s32 0, %v234
      %v268 = vsel %vm266, %v267, %v234
      %v269 = vshrl.u32 %v268, 4
      %v270 = vand.u32 %v268, 15
      %v271 = vsub.s32 0, %v270
      %v272 = vsel %vm266, %v271, %v270
      %vm273 = vcmp.lt.s32.totalorder %v235, 0
      %v274 = vsub.s32 0, %v235
      %v275 = vsel %vm273, %v274, %v235
      %v276 = vshrl.u32 %v275, 4
      %v277 = vand.u32 %v275, 15
      %v278 = vsub.s32 0, %v277
      %v279 = vsel %vm273, %v278, %v277
      %vm280 = vcmp.lt.s32.totalorder %v236, 0
      %v281 = vsub.s32 0, %v236
      %v282 = vsel %vm280, %v281, %v236
      %v283 = vshrl.u32 %v282, 4
      %v284 = vand.u32 %v282, 15
      %v285 = vsub.s32 0, %v284
      %v286 = vsel %vm280, %v285, %v284
      %vm287 = vcmp.lt.s32.totalorder %v237, 0
      %v288 = vsub.s32 0, %v237
      %v289 = vsel %vm287, %v288, %v237
      %v290 = vshrl.u32 %v289, 4
      %v291 = vand.u32 %v289, 15
      %v292 = vsub.s32 0, %v291
      %v293 = vsel %vm287, %v292, %v291
      %vm294 = vcmp.lt.s32.totalorder %v238, 0
      %v295 = vsub.s32 0, %v238
      %v296 = vsel %vm294, %v295, %v238
      %v297 = vshrl.u32 %v296, 4
      %v298 = vand.u32 %v296, 15
      %v299 = vsub.s32 0, %v298
      %v300 = vsel %vm294, %v299, %v298
      %vm301 = vcmp.lt.s32.totalorder %v239, 0
      %v302 = vsub.s32 0, %v239
      %v303 = vsel %vm301, %v302, %v239
      %v304 = vshrl.u32 %v303, 4
      %v305 = vand.u32 %v303, 15
      %v306 = vsub.s32 0, %v305
      %v307 = vsel %vm301, %v306, %v305
      %vm308 = vcmp.lt.s32.totalorder %v240, 0
      %v309 = vsub.s32 0, %v240
      %v310 = vsel %vm308, %v309, %v240
      %v311 = vshrl.u32 %v310, 4
      %v312 = vand.u32 %v310, 15
      %v313 = vsub.s32 0, %v312
      %v314 = vsel %vm308, %v313, %v312
      %vm315 = vcmp.lt.s32.totalorder %v241, 0
      %v316 = vsub.s32 0, %v241
      %v317 = vsel %vm315, %v316, %v241
      %v318 = vshrl.u32 %v317, 4
      %v319 = vand.u32 %v317, 15
      %v320 = vsub.s32 0, %v319
      %v321 = vsel %vm315, %v320, %v319
      %vm322 = vcmp.lt.s32.totalorder %v242, 0
      %v323 = vsub.s32 0, %v242
      %v324 = vsel %vm322, %v323, %v242
      %v325 = vshrl.u32 %v324, 4
      %v326 = vand.u32 %v324, 15
      %v327 = vsub.s32 0, %v326
      %v328 = vsel %vm322, %v327, %v326
      %vm329 = vcmp.lt.s32.totalorder %v243, 0
      %v330 = vsub.s32 0, %v243
      %v331 = vsel %vm329, %v330, %v243
      %v332 = vshrl.u32 %v331, 4
      %v333 = vand.u32 %v331, 15
      %v334 = vsub.s32 0, %v333
      %v335 = vsel %vm329, %v334, %v333
      %vm336 = vcmp.lt.s32.totalorder %v244, 0
      %v337 = vsub.s32 0, %v244
      %v338 = vsel %vm336, %v337, %v244
      %v339 = vshrl.u32 %v338, 4
      %v340 = vand.u32 %v338, 15
      %v341 = vsub.s32 0, %v340
      %v342 = vsel %vm336, %v341, %v340
      %vm343 = vcmp.lt.s32.totalorder %v245, 0
      %v344 = vsub.s32 0, %v245
      %v345 = vsel %vm343, %v344, %v245
      %v346 = vshrl.u32 %v345, 4
      %v347 = vand.u32 %v345, 15
      %v348 = vsub.s32 0, %v347
      %v349 = vsel %vm343, %v348, %v347
      %vm350 = vcmp.lt.s32.totalorder %v246, 0
      %v351 = vsub.s32 0, %v246
      %v352 = vsel %vm350, %v351, %v246
      %v353 = vshrl.u32 %v352, 4
      %v354 = vand.u32 %v352, 15
      %v355 = vsub.s32 0, %v354
      %v356 = vsel %vm350, %v355, %v354
      %vm357 = vcmp.lt.s32.totalorder %v247, 0
      %v358 = vsub.s32 0, %v247
      %v359 = vsel %vm357, %v358, %v247
      %v360 = vshrl.u32 %v359, 4
      %v361 = vand.u32 %v359, 15
      %v362 = vsub.s32 0, %v361
      %v363 = vsel %vm357, %v362, %v361
      %vm364 = vcmp.lt.s32.totalorder %v248, 0
      %v365 = vsub.s32 0, %v248
      %v366 = vsel %vm364, %v365, %v248
      %v367 = vshrl.u32 %v366, 4
      %v368 = vand.u32 %v366, 15
      %v369 = vsub.s32 0, %v368
      %v370 = vsel %vm364, %v369, %v368
      %vm371 = vcmp.lt.s32.totalorder %v249, 0
      %v372 = vsub.s32 0, %v249
      %v373 = vsel %vm371, %v372, %v249
      %v374 = vshrl.u32 %v373, 4
      %v375 = vand.u32 %v373, 15
      %v376 = vsub.s32 0, %v375
      %v377 = vsel %vm371, %v376, %v375
      %vm378 = vcmp.lt.s32.totalorder %v250, 0
      %v379 = vsub.s32 0, %v250
      %v380 = vsel %vm378, %v379, %v250
      %v381 = vshrl.u32 %v380, 4
      %v382 = vand.u32 %v380, 15
      %v383 = vsub.s32 0, %v382
      %v384 = vsel %vm378, %v383, %v382
      %vm385 = vcmp.lt.s32.totalorder %v251, 0
      %v386 = vsub.s32 0, %v251
      %v387 = vsel %vm385, %v386, %v251
      %v388 = vshrl.u32 %v387, 4
      %v389 = vand.u32 %v387, 15
      %v390 = vsub.s32 0, %v389
      %v391 = vsel %vm385, %v390, %v389
      %vm392 = vcmp.lt.s32.totalorder %v252, 0
      %v393 = vsub.s32 0, %v252
      %v394 = vsel %vm392, %v393, %v252
      %v395 = vshrl.u32 %v394, 4
      %v396 = vand.u32 %v394, 15
      %v397 = vsub.s32 0, %v396
      %v398 = vsel %vm392, %v397, %v396
      %vm399 = vcmp.lt.s32.totalorder %v253, 0
      %v400 = vsub.s32 0, %v253
      %v401 = vsel %vm399, %v400, %v253
      %v402 = vshrl.u32 %v401, 4
      %v403 = vand.u32 %v401, 15
      %v404 = vsub.s32 0, %v403
      %v405 = vsel %vm399, %v404, %v403
      %vm406 = vcmp.lt.s32.totalorder %v254, 0
      %v407 = vsub.s32 0, %v254
      %v408 = vsel %vm406, %v407, %v254
      %v409 = vshrl.u32 %v408, 4
      %v410 = vand.u32 %v408, 15
      %v411 = vsub.s32 0, %v410
      %v412 = vsel %vm406, %v411, %v410
      %vm413 = vcmp.lt.s32.totalorder %v255, 0
      %v414 = vsub.s32 0, %v255
      %v415 = vsel %vm413, %v414, %v255
      %v416 = vshrl.u32 %v415, 4
      %v417 = vand.u32 %v415, 15
      %v418 = vsub.s32 0, %v417
      %v419 = vsel %vm413, %v418, %v417
      %vm420 = vcmp.lt.s32.totalorder %v256, 0
      %v421 = vsub.s32 0, %v256
      %v422 = vsel %vm420, %v421, %v256
      %v423 = vshrl.u32 %v422, 4
      %v424 = vand.u32 %v422, 15
      %v425 = vsub.s32 0, %v424
      %v426 = vsel %vm420, %v425, %v424
      %vm427 = vcmp.lt.s32.totalorder %v257, 0
      %v428 = vsub.s32 0, %v257
      %v429 = vsel %vm427, %v428, %v257
      %v430 = vshrl.u32 %v429, 4
      %v431 = vand.u32 %v429, 15
      %v432 = vsub.s32 0, %v431
      %v433 = vsel %vm427, %v432, %v431
      %vm434 = vcmp.lt.s32.totalorder %v258, 0
      %v435 = vsub.s32 0, %v258
      %v436 = vsel %vm434, %v435, %v258
      %v437 = vshrl.u32 %v436, 4
      %v438 = vand.u32 %v436, 15
      %v439 = vsub.s32 0, %v438
      %v440 = vsel %vm434, %v439, %v438
      %vm441 = vcmp.lt.s32.totalorder %v259, 0
      %v442 = vsub.s32 0, %v259
      %v443 = vsel %vm441, %v442, %v259
      %v444 = vshrl.u32 %v443, 4
      %v445 = vand.u32 %v443, 15
      %v446 = vsub.s32 0, %v445
      %v447 = vsel %vm441, %v446, %v445
      %vm448 = vcmp.lt.s32.totalorder %v260, 0
      %v449 = vsub.s32 0, %v260
      %v450 = vsel %vm448, %v449, %v260
      %v451 = vshrl.u32 %v450, 4
      %v452 = vand.u32 %v450, 15
      %v453 = vsub.s32 0, %v452
      %v454 = vsel %vm448, %v453, %v452
      %vm455 = vcmp.lt.s32.totalorder %v261, 0
      %v456 = vsub.s32 0, %v261
      %v457 = vsel %vm455, %v456, %v261
      %v458 = vshrl.u32 %v457, 4
      %v459 = vand.u32 %v457, 15
      %v460 = vsub.s32 0, %v459
      %v461 = vsel %vm455, %v460, %v459
      %vm462 = vcmp.lt.s32.totalorder %v262, 0
      %v463 = vsub.s32 0, %v262
      %v464 = vsel %vm462, %v463, %v262
      %v465 = vshrl.u32 %v464, 4
      %v466 = vand.u32 %v464, 15
      %v467 = vsub.s32 0, %v466
      %v468 = vsel %vm462, %v467, %v466
      %vm469 = vcmp.lt.s32.totalorder %v263, 0
      %v470 = vsub.s32 0, %v263
      %v471 = vsel %vm469, %v470, %v263
      %v472 = vshrl.u32 %v471, 4
      %v473 = vand.u32 %v471, 15
      %v474 = vsub.s32 0, %v473
      %v475 = vsel %vm469, %v474, %v473
      %vm476 = vcmp.lt.s32.totalorder %v264, 0
      %v477 = vsub.s32 0, %v264
      %v478 = vsel %vm476, %v477, %v264
      %v479 = vshrl.u32 %v478, 4
      %v480 = vand.u32 %v478, 15
      %v481 = vsub.s32 0, %v480
      %v482 = vsel %vm476, %v481, %v480
      %vm483 = vcmp.lt.s32.totalorder %v265, 0
      %v484 = vsub.s32 0, %v265
      %v485 = vsel %vm483, %v484, %v265
      %v486 = vshrl.u32 %v485, 4
      %v487 = vand.u32 %v485, 15
      %v488 = vsub.s32 0, %v487
      %v489 = vsel %vm483, %v488, %v487
      %vm490 = vcmp.ne.s32.totalorder %v272, 0
      %vm491 = vcmp.ne.s32.totalorder %v279, 0
      %vm492 = vcmp.ne.s32.totalorder %v286, 0
      %vm493 = vcmp.ne.s32.totalorder %v293, 0
      %vm494 = vcmp.ne.s32.totalorder %v300, 0
      %vm495 = vcmp.ne.s32.totalorder %v307, 0
      %vm496 = vcmp.ne.s32.totalorder %v314, 0
      %vm497 = vcmp.ne.s32.totalorder %v321, 0
      %vm498 = vcmp.ne.s32.totalorder %v328, 0
      %vm499 = vcmp.ne.s32.totalorder %v335, 0
      %vm500 = vcmp.ne.s32.totalorder %v342, 0
      %vm501 = vcmp.ne.s32.totalorder %v349, 0
      %vm502 = vcmp.ne.s32.totalorder %v356, 0
      %vm503 = vcmp.ne.s32.totalorder %v363, 0
      %vm504 = vcmp.ne.s32.totalorder %v370, 0
      %vm505 = vcmp.ne.s32.totalorder %v377, 0
      %vm506 = vcmp.ne.s32.totalorder %v384, 0
      %vm507 = vcmp.ne.s32.totalorder %v391, 0
      %vm508 = vcmp.ne.s32.totalorder %v398, 0
      %vm509 = vcmp.ne.s32.totalorder %v405, 0
      %vm510 = vcmp.ne.s32.totalorder %v412, 0
      %vm511 = vcmp.ne.s32.totalorder %v419, 0
      %vm512 = vcmp.ne.s32.totalorder %v426, 0
      %vm513 = vcmp.ne.s32.totalorder %v433, 0
      %vm514 = vcmp.ne.s32.totalorder %v440, 0
      %vm515 = vcmp.ne.s32.totalorder %v447, 0
      %vm516 = vcmp.ne.s32.totalorder %v454, 0
      %vm517 = vcmp.ne.s32.totalorder %v461, 0
      %vm518 = vcmp.ne.s32.totalorder %v468, 0
      %vm519 = vcmp.ne.s32.totalorder %v475, 0
      %vm520 = vcmp.ne.s32.totalorder %v482, 0
      %vm521 = vcmp.ne.s32.totalorder %v489, 0
      %vm522 = vcmp.lt.s32.totalorder %v272, 0
      %vm523 = vcmp.lt.s32.totalorder %v279, 0
      %vm524 = vcmp.lt.s32.totalorder %v286, 0
      %vm525 = vcmp.lt.s32.totalorder %v293, 0
      %vm526 = vcmp.lt.s32.totalorder %v300, 0
      %vm527 = vcmp.lt.s32.totalorder %v307, 0
      %vm528 = vcmp.lt.s32.totalorder %v314, 0
      %vm529 = vcmp.lt.s32.totalorder %v321, 0
      %vm530 = vcmp.lt.s32.totalorder %v328, 0
      %vm531 = vcmp.lt.s32.totalorder %v335, 0
      %vm532 = vcmp.lt.s32.totalorder %v342, 0
      %vm533 = vcmp.lt.s32.totalorder %v349, 0
      %vm534 = vcmp.lt.s32.totalorder %v356, 0
      %vm535 = vcmp.lt.s32.totalorder %v363, 0
      %vm536 = vcmp.lt.s32.totalorder %v370, 0
      %vm537 = vcmp.lt.s32.totalorder %v377, 0
      %vm538 = vcmp.lt.s32.totalorder %v384, 0
      %vm539 = vcmp.lt.s32.totalorder %v391, 0
      %vm540 = vcmp.lt.s32.totalorder %v398, 0
      %vm541 = vcmp.lt.s32.totalorder %v405, 0
      %vm542 = vcmp.lt.s32.totalorder %v412, 0
      %vm543 = vcmp.lt.s32.totalorder %v419, 0
      %vm544 = vcmp.lt.s32.totalorder %v426, 0
      %vm545 = vcmp.lt.s32.totalorder %v433, 0
      %vm546 = vcmp.lt.s32.totalorder %v440, 0
      %vm547 = vcmp.lt.s32.totalorder %v447, 0
      %vm548 = vcmp.lt.s32.totalorder %v454, 0
      %vm549 = vcmp.lt.s32.totalorder %v461, 0
      %vm550 = vcmp.lt.s32.totalorder %v468, 0
      %vm551 = vcmp.lt.s32.totalorder %v475, 0
      %vm552 = vcmp.lt.s32.totalorder %v482, 0
      %vm553 = vcmp.lt.s32.totalorder %v489, 0
      %vm554 = vmand %vm522, %vm490
      %vm555 = vmand %vm523, %vm491
      %vm556 = vmand %vm524, %vm492
      %vm557 = vmand %vm525, %vm493
      %vm558 = vmand %vm526, %vm494
      %vm559 = vmand %vm527, %vm495
      %vm560 = vmand %vm528, %vm496
      %vm561 = vmand %vm529, %vm497
      %vm562 = vmand %vm530, %vm498
      %vm563 = vmand %vm531, %vm499
      %vm564 = vmand %vm532, %vm500
      %vm565 = vmand %vm533, %vm501
      %vm566 = vmand %vm534, %vm502
      %vm567 = vmand %vm535, %vm503
      %vm568 = vmand %vm536, %vm504
      %vm569 = vmand %vm537, %vm505
      %vm570 = vmand %vm538, %vm506
      %vm571 = vmand %vm539, %vm507
      %vm572 = vmand %vm540, %vm508
      %vm573 = vmand %vm541, %vm509
      %vm574 = vmand %vm542, %vm510
      %vm575 = vmand %vm543, %vm511
      %vm576 = vmand %vm544, %vm512
      %vm577 = vmand %vm545, %vm513
      %vm578 = vmand %vm546, %vm514
      %vm579 = vmand %vm547, %vm515
      %vm580 = vmand %vm548, %vm516
      %vm581 = vmand %vm549, %vm517
      %vm582 = vmand %vm550, %vm518
      %vm583 = vmand %vm551, %vm519
      %vm584 = vmand %vm552, %vm520
      %vm585 = vmand %vm553, %vm521
      %v586 = vadd.s32 %v272, 16
      %v587 = vadd.s32 %v279, 16
      %v588 = vadd.s32 %v286, 16
      %v589 = vadd.s32 %v293, 16
      %v590 = vadd.s32 %v300, 16
      %v591 = vadd.s32 %v307, 16
      %v592 = vadd.s32 %v314, 16
      %v593 = vadd.s32 %v321, 16
      %v594 = vadd.s32 %v328, 16
      %v595 = vadd.s32 %v335, 16
      %v596 = vadd.s32 %v342, 16
      %v597 = vadd.s32 %v349, 16
      %v598 = vadd.s32 %v356, 16
      %v599 = vadd.s32 %v363, 16
      %v600 = vadd.s32 %v370, 16
      %v601 = vadd.s32 %v377, 16
      %v602 = vadd.s32 %v384, 16
      %v603 = vadd.s32 %v391, 16
      %v604 = vadd.s32 %v398, 16
      %v605 = vadd.s32 %v405, 16
      %v606 = vadd.s32 %v412, 16
      %v607 = vadd.s32 %v419, 16
      %v608 = vadd.s32 %v426, 16
      %v609 = vadd.s32 %v433, 16
      %v610 = vadd.s32 %v440, 16
      %v611 = vadd.s32 %v447, 16
      %v612 = vadd.s32 %v454, 16
      %v613 = vadd.s32 %v461, 16
      %v614 = vadd.s32 %v468, 16
      %v615 = vadd.s32 %v475, 16
      %v616 = vadd.s32 %v482, 16
      %v617 = vadd.s32 %v489, 16
      %v618 = vsel %vm554, %v586, %v272
      %v619 = vsel %vm555, %v587, %v279
      %v620 = vsel %vm556, %v588, %v286
      %v621 = vsel %vm557, %v589, %v293
      %v622 = vsel %vm558, %v590, %v300
      %v623 = vsel %vm559, %v591, %v307
      %v624 = vsel %vm560, %v592, %v314
      %v625 = vsel %vm561, %v593, %v321
      %v626 = vsel %vm562, %v594, %v328
      %v627 = vsel %vm563, %v595, %v335
      %v628 = vsel %vm564, %v596, %v342
      %v629 = vsel %vm565, %v597, %v349
      %v630 = vsel %vm566, %v598, %v356
      %v631 = vsel %vm567, %v599, %v363
      %v632 = vsel %vm568, %v600, %v370
      %v633 = vsel %vm569, %v601, %v377
      %v634 = vsel %vm570, %v602, %v384
      %v635 = vsel %vm571, %v603, %v391
      %v636 = vsel %vm572, %v604, %v398
      %v637 = vsel %vm573, %v605, %v405
      %v638 = vsel %vm574, %v606, %v412
      %v639 = vsel %vm575, %v607, %v419
      %v640 = vsel %vm576, %v608, %v426
      %v641 = vsel %vm577, %v609, %v433
      %v642 = vsel %vm578, %v610, %v440
      %v643 = vsel %vm579, %v611, %v447
      %v644 = vsel %vm580, %v612, %v454
      %v645 = vsel %vm581, %v613, %v461
      %v646 = vsel %vm582, %v614, %v468
      %v647 = vsel %vm583, %v615, %v475
      %v648 = vsel %vm584, %v616, %v482
      %v649 = vsel %vm585, %v617, %v489
      %vm650 = vcmp.lt.s32.totalorder %v618, 15
      %vm651 = vcmp.lt.s32.totalorder %v619, 15
      %vm652 = vcmp.lt.s32.totalorder %v620, 15
      %vm653 = vcmp.lt.s32.totalorder %v621, 15
      %vm654 = vcmp.lt.s32.totalorder %v622, 15
      %vm655 = vcmp.lt.s32.totalorder %v623, 15
      %vm656 = vcmp.lt.s32.totalorder %v624, 15
      %vm657 = vcmp.lt.s32.totalorder %v625, 15
      %vm658 = vcmp.lt.s32.totalorder %v626, 15
      %vm659 = vcmp.lt.s32.totalorder %v627, 15
      %vm660 = vcmp.lt.s32.totalorder %v628, 15
      %vm661 = vcmp.lt.s32.totalorder %v629, 15
      %vm662 = vcmp.lt.s32.totalorder %v630, 15
      %vm663 = vcmp.lt.s32.totalorder %v631, 15
      %vm664 = vcmp.lt.s32.totalorder %v632, 15
      %vm665 = vcmp.lt.s32.totalorder %v633, 15
      %vm666 = vcmp.lt.s32.totalorder %v634, 15
      %vm667 = vcmp.lt.s32.totalorder %v635, 15
      %vm668 = vcmp.lt.s32.totalorder %v636, 15
      %vm669 = vcmp.lt.s32.totalorder %v637, 15
      %vm670 = vcmp.lt.s32.totalorder %v638, 15
      %vm671 = vcmp.lt.s32.totalorder %v639, 15
      %vm672 = vcmp.lt.s32.totalorder %v640, 15
      %vm673 = vcmp.lt.s32.totalorder %v641, 15
      %vm674 = vcmp.lt.s32.totalorder %v642, 15
      %vm675 = vcmp.lt.s32.totalorder %v643, 15
      %vm676 = vcmp.lt.s32.totalorder %v644, 15
      %vm677 = vcmp.lt.s32.totalorder %v645, 15
      %vm678 = vcmp.lt.s32.totalorder %v646, 15
      %vm679 = vcmp.lt.s32.totalorder %v647, 15
      %vm680 = vcmp.lt.s32.totalorder %v648, 15
      %vm681 = vcmp.lt.s32.totalorder %v649, 15
      %v682 = vsel %vm650, 1, 0
      %v683 = vsel %vm651, 1, 0
      %v684 = vsel %vm652, 1, 0
      %v685 = vsel %vm653, 1, 0
      %v686 = vsel %vm654, 1, 0
      %v687 = vsel %vm655, 1, 0
      %v688 = vsel %vm656, 1, 0
      %v689 = vsel %vm657, 1, 0
      %v690 = vsel %vm658, 1, 0
      %v691 = vsel %vm659, 1, 0
      %v692 = vsel %vm660, 1, 0
      %v693 = vsel %vm661, 1, 0
      %v694 = vsel %vm662, 1, 0
      %v695 = vsel %vm663, 1, 0
      %v696 = vsel %vm664, 1, 0
      %v697 = vsel %vm665, 1, 0
      %v698 = vsel %vm666, 1, 0
      %v699 = vsel %vm667, 1, 0
      %v700 = vsel %vm668, 1, 0
      %v701 = vsel %vm669, 1, 0
      %v702 = vsel %vm670, 1, 0
      %v703 = vsel %vm671, 1, 0
      %v704 = vsel %vm672, 1, 0
      %v705 = vsel %vm673, 1, 0
      %v706 = vsel %vm674, 1, 0
      %v707 = vsel %vm675, 1, 0
      %v708 = vsel %vm676, 1, 0
      %v709 = vsel %vm677, 1, 0
      %v710 = vsel %vm678, 1, 0
      %v711 = vsel %vm679, 1, 0
      %v712 = vsel %vm680, 1, 0
      %v713 = vsel %vm681, 1, 0
      %vm714 = vcmp.eq.s32.totalorder %v682, 1
      %vm715 = vcmp.eq.s32.totalorder %v683, 1
      %vm716 = vcmp.eq.s32.totalorder %v684, 1
      %vm717 = vcmp.eq.s32.totalorder %v685, 1
      %vm718 = vcmp.eq.s32.totalorder %v686, 1
      %vm719 = vcmp.eq.s32.totalorder %v687, 1
      %vm720 = vcmp.eq.s32.totalorder %v688, 1
      %vm721 = vcmp.eq.s32.totalorder %v689, 1
      %vm722 = vcmp.eq.s32.totalorder %v690, 1
      %vm723 = vcmp.eq.s32.totalorder %v691, 1
      %vm724 = vcmp.eq.s32.totalorder %v692, 1
      %vm725 = vcmp.eq.s32.totalorder %v693, 1
      %vm726 = vcmp.eq.s32.totalorder %v694, 1
      %vm727 = vcmp.eq.s32.totalorder %v695, 1
      %vm728 = vcmp.eq.s32.totalorder %v696, 1
      %vm729 = vcmp.eq.s32.totalorder %v697, 1
      %vm730 = vcmp.eq.s32.totalorder %v698, 1
      %vm731 = vcmp.eq.s32.totalorder %v699, 1
      %vm732 = vcmp.eq.s32.totalorder %v700, 1
      %vm733 = vcmp.eq.s32.totalorder %v701, 1
      %vm734 = vcmp.eq.s32.totalorder %v702, 1
      %vm735 = vcmp.eq.s32.totalorder %v703, 1
      %vm736 = vcmp.eq.s32.totalorder %v704, 1
      %vm737 = vcmp.eq.s32.totalorder %v705, 1
      %vm738 = vcmp.eq.s32.totalorder %v706, 1
      %vm739 = vcmp.eq.s32.totalorder %v707, 1
      %vm740 = vcmp.eq.s32.totalorder %v708, 1
      %vm741 = vcmp.eq.s32.totalorder %v709, 1
      %vm742 = vcmp.eq.s32.totalorder %v710, 1
      %vm743 = vcmp.eq.s32.totalorder %v711, 1
      %vm744 = vcmp.eq.s32.totalorder %v712, 1
      %vm745 = vcmp.eq.s32.totalorder %v713, 1
      %vm746 = vmpackc.low %vm714, %vm714
      %vm747 = vmpackc.low %vm715, %vm715
      %vm748 = vmpackc.low %vm716, %vm716
      %vm749 = vmpackc.low %vm717, %vm717
      %vm750 = vmpackc.low %vm718, %vm718
      %vm751 = vmpackc.low %vm719, %vm719
      %vm752 = vmpackc.low %vm720, %vm720
      %vm753 = vmpackc.low %vm721, %vm721
      %vm754 = vmpackc.low %vm722, %vm722
      %vm755 = vmpackc.low %vm723, %vm723
      %vm756 = vmpackc.low %vm724, %vm724
      %vm757 = vmpackc.low %vm725, %vm725
      %vm758 = vmpackc.low %vm726, %vm726
      %vm759 = vmpackc.low %vm727, %vm727
      %vm760 = vmpackc.low %vm728, %vm728
      %vm761 = vmpackc.low %vm729, %vm729
      %vm762 = vmpackc.low %vm730, %vm730
      %vm763 = vmpackc.low %vm731, %vm731
      %vm764 = vmpackc.low %vm732, %vm732
      %vm765 = vmpackc.low %vm733, %vm733
      %vm766 = vmpackc.low %vm734, %vm734
      %vm767 = vmpackc.low %vm735, %vm735
      %vm768 = vmpackc.low %vm736, %vm736
      %vm769 = vmpackc.low %vm737, %vm737
      %vm770 = vmpackc.low %vm738, %vm738
      %vm771 = vmpackc.low %vm739, %vm739
      %vm772 = vmpackc.low %vm740, %vm740
      %vm773 = vmpackc.low %vm741, %vm741
      %vm774 = vmpackc.low %vm742, %vm742
      %vm775 = vmpackc.low %vm743, %vm743
      %vm776 = vmpackc.low %vm744, %vm744
      %vm777 = vmpackc.low %vm745, %vm745
      %v778 = vsel %vm746, 65537, 0
      %v779 = vsel %vm747, 65537, 0
      %v780 = vsel %vm748, 65537, 0
      %v781 = vsel %vm749, 65537, 0
      %v782 = vsel %vm750, 65537, 0
      %v783 = vsel %vm751, 65537, 0
      %v784 = vsel %vm752, 65537, 0
      %v785 = vsel %vm753, 65537, 0
      %v786 = vsel %vm754, 65537, 0
      %v787 = vsel %vm755, 65537, 0
      %v788 = vsel %vm756, 65537, 0
      %v789 = vsel %vm757, 65537, 0
      %v790 = vsel %vm758, 65537, 0
      %v791 = vsel %vm759, 65537, 0
      %v792 = vsel %vm760, 65537, 0
      %v793 = vsel %vm761, 65537, 0
      %v794 = vsel %vm762, 65537, 0
      %v795 = vsel %vm763, 65537, 0
      %v796 = vsel %vm764, 65537, 0
      %v797 = vsel %vm765, 65537, 0
      %v798 = vsel %vm766, 65537, 0
      %v799 = vsel %vm767, 65537, 0
      %v800 = vsel %vm768, 65537, 0
      %v801 = vsel %vm769, 65537, 0
      %v802 = vsel %vm770, 65537, 0
      %v803 = vsel %vm771, 65537, 0
      %v804 = vsel %vm772, 65537, 0
      %v805 = vsel %vm773, 65537, 0
      %v806 = vsel %vm774, 65537, 0
      %v807 = vsel %vm775, 65537, 0
      %v808 = vsel %vm776, 65537, 0
      %v809 = vsel %vm777, 65537, 0
      %v810 = vunpack.c.l.b16 %v778
      %v811 = vunpack.c.l.b16 %v779
      %v812 = vunpack.c.l.b16 %v780
      %v813 = vunpack.c.l.b16 %v781
      %v814 = vunpack.c.l.b16 %v782
      %v815 = vunpack.c.l.b16 %v783
      %v816 = vunpack.c.l.b16 %v784
      %v817 = vunpack.c.l.b16 %v785
      %v818 = vunpack.c.l.b16 %v786
      %v819 = vunpack.c.l.b16 %v787
      %v820 = vunpack.c.l.b16 %v788
      %v821 = vunpack.c.l.b16 %v789
      %v822 = vunpack.c.l.b16 %v790
      %v823 = vunpack.c.l.b16 %v791
      %v824 = vunpack.c.l.b16 %v792
      %v825 = vunpack.c.l.b16 %v793
      %v826 = vunpack.c.l.b16 %v794
      %v827 = vunpack.c.l.b16 %v795
      %v828 = vunpack.c.l.b16 %v796
      %v829 = vunpack.c.l.b16 %v797
      %v830 = vunpack.c.l.b16 %v798
      %v831 = vunpack.c.l.b16 %v799
      %v832 = vunpack.c.l.b16 %v800
      %v833 = vunpack.c.l.b16 %v801
      %v834 = vunpack.c.l.b16 %v802
      %v835 = vunpack.c.l.b16 %v803
      %v836 = vunpack.c.l.b16 %v804
      %v837 = vunpack.c.l.b16 %v805
      %v838 = vunpack.c.l.b16 %v806
      %v839 = vunpack.c.l.b16 %v807
      %v840 = vunpack.c.l.b16 %v808
      %v841 = vunpack.c.l.b16 %v809
      %v842 = vpack.c.b16 %v811, %v810
      %v843 = vpack.c.b16 %v813, %v812
      %v844 = vpack.c.b16 %v815, %v814
      %v845 = vpack.c.b16 %v817, %v816
      %v846 = vpack.c.b16 %v819, %v818
      %v847 = vpack.c.b16 %v821, %v820
      %v848 = vpack.c.b16 %v823, %v822
      %v849 = vpack.c.b16 %v825, %v824
      %v850 = vpack.c.b16 %v827, %v826
      %v851 = vpack.c.b16 %v829, %v828
      %v852 = vpack.c.b16 %v831, %v830
      %v853 = vpack.c.b16 %v833, %v832
      %v854 = vpack.c.b16 %v835, %v834
      %v855 = vpack.c.b16 %v837, %v836
      %v856 = vpack.c.b16 %v839, %v838
      %v857 = vpack.c.b16 %v841, %v840
      %vm858 = vcmp.ne.s16.totalorder %v842, 0
      %vm859 = vcmp.ne.s16.totalorder %v843, 0
      %vm860 = vcmp.ne.s16.totalorder %v844, 0
      %vm861 = vcmp.ne.s16.totalorder %v845, 0
      %vm862 = vcmp.ne.s16.totalorder %v846, 0
      %vm863 = vcmp.ne.s16.totalorder %v847, 0
      %vm864 = vcmp.ne.s16.totalorder %v848, 0
      %vm865 = vcmp.ne.s16.totalorder %v849, 0
      %vm866 = vcmp.ne.s16.totalorder %v850, 0
      %vm867 = vcmp.ne.s16.totalorder %v851, 0
      %vm868 = vcmp.ne.s16.totalorder %v852, 0
      %vm869 = vcmp.ne.s16.totalorder %v853, 0
      %vm870 = vcmp.ne.s16.totalorder %v854, 0
      %vm871 = vcmp.ne.s16.totalorder %v855, 0
      %vm872 = vcmp.ne.s16.totalorder %v856, 0
      %vm873 = vcmp.ne.s16.totalorder %v857, 0
      %v874 = vsel %vm858, %v217, 0
      %v875 = vsel %vm859, %v218, 0
      %v876 = vsel %vm860, %v219, 0
      %v877 = vsel %vm861, %v220, 0
      %v878 = vsel %vm862, %v221, 0
      %v879 = vsel %vm863, %v222, 0
      %v880 = vsel %vm864, %v223, 0
      %v881 = vsel %vm865, %v224, 0
      %v882 = vsel %vm866, %v225, 0
      %v883 = vsel %vm867, %v226, 0
      %v884 = vsel %vm868, %v227, 0
      %v885 = vsel %vm869, %v228, 0
      %v886 = vsel %vm870, %v229, 0
      %v887 = vsel %vm871, %v230, 0
      %v888 = vsel %vm872, %v231, 0
      %v889 = vsel %vm873, %v232, 0
      %vm890 = vcmp.gt.s32.totalorder %v618, 0
      %vm891 = vcmp.gt.s32.totalorder %v619, 0
      %vm892 = vcmp.gt.s32.totalorder %v620, 0
      %vm893 = vcmp.gt.s32.totalorder %v621, 0
      %vm894 = vcmp.gt.s32.totalorder %v622, 0
      %vm895 = vcmp.gt.s32.totalorder %v623, 0
      %vm896 = vcmp.gt.s32.totalorder %v624, 0
      %vm897 = vcmp.gt.s32.totalorder %v625, 0
      %vm898 = vcmp.gt.s32.totalorder %v626, 0
      %vm899 = vcmp.gt.s32.totalorder %v627, 0
      %vm900 = vcmp.gt.s32.totalorder %v628, 0
      %vm901 = vcmp.gt.s32.totalorder %v629, 0
      %vm902 = vcmp.gt.s32.totalorder %v630, 0
      %vm903 = vcmp.gt.s32.totalorder %v631, 0
      %vm904 = vcmp.gt.s32.totalorder %v632, 0
      %vm905 = vcmp.gt.s32.totalorder %v633, 0
      %vm906 = vcmp.gt.s32.totalorder %v634, 0
      %vm907 = vcmp.gt.s32.totalorder %v635, 0
      %vm908 = vcmp.gt.s32.totalorder %v636, 0
      %vm909 = vcmp.gt.s32.totalorder %v637, 0
      %vm910 = vcmp.gt.s32.totalorder %v638, 0
      %vm911 = vcmp.gt.s32.totalorder %v639, 0
      %vm912 = vcmp.gt.s32.totalorder %v640, 0
      %vm913 = vcmp.gt.s32.totalorder %v641, 0
      %vm914 = vcmp.gt.s32.totalorder %v642, 0
      %vm915 = vcmp.gt.s32.totalorder %v643, 0
      %vm916 = vcmp.gt.s32.totalorder %v644, 0
      %vm917 = vcmp.gt.s32.totalorder %v645, 0
      %vm918 = vcmp.gt.s32.totalorder %v646, 0
      %vm919 = vcmp.gt.s32.totalorder %v647, 0
      %vm920 = vcmp.gt.s32.totalorder %v648, 0
      %vm921 = vcmp.gt.s32.totalorder %v649, 0
      %v922 = vsel %vm890, 1, 0
      %v923 = vsel %vm891, 1, 0
      %v924 = vsel %vm892, 1, 0
      %v925 = vsel %vm893, 1, 0
      %v926 = vsel %vm894, 1, 0
      %v927 = vsel %vm895, 1, 0
      %v928 = vsel %vm896, 1, 0
      %v929 = vsel %vm897, 1, 0
      %v930 = vsel %vm898, 1, 0
      %v931 = vsel %vm899, 1, 0
      %v932 = vsel %vm900, 1, 0
      %v933 = vsel %vm901, 1, 0
      %v934 = vsel %vm902, 1, 0
      %v935 = vsel %vm903, 1, 0
      %v936 = vsel %vm904, 1, 0
      %v937 = vsel %vm905, 1, 0
      %v938 = vsel %vm906, 1, 0
      %v939 = vsel %vm907, 1, 0
      %v940 = vsel %vm908, 1, 0
      %v941 = vsel %vm909, 1, 0
      %v942 = vsel %vm910, 1, 0
      %v943 = vsel %vm911, 1, 0
      %v944 = vsel %vm912, 1, 0
      %v945 = vsel %vm913, 1, 0
      %v946 = vsel %vm914, 1, 0
      %v947 = vsel %vm915, 1, 0
      %v948 = vsel %vm916, 1, 0
      %v949 = vsel %vm917, 1, 0
      %v950 = vsel %vm918, 1, 0
      %v951 = vsel %vm919, 1, 0
      %v952 = vsel %vm920, 1, 0
      %v953 = vsel %vm921, 1, 0
      %vm954 = vcmp.eq.s32.totalorder %v922, 1
      %vm955 = vcmp.eq.s32.totalorder %v923, 1
      %vm956 = vcmp.eq.s32.totalorder %v924, 1
      %vm957 = vcmp.eq.s32.totalorder %v925, 1
      %vm958 = vcmp.eq.s32.totalorder %v926, 1
      %vm959 = vcmp.eq.s32.totalorder %v927, 1
      %vm960 = vcmp.eq.s32.totalorder %v928, 1
      %vm961 = vcmp.eq.s32.totalorder %v929, 1
      %vm962 = vcmp.eq.s32.totalorder %v930, 1
      %vm963 = vcmp.eq.s32.totalorder %v931, 1
      %vm964 = vcmp.eq.s32.totalorder %v932, 1
      %vm965 = vcmp.eq.s32.totalorder %v933, 1
      %vm966 = vcmp.eq.s32.totalorder %v934, 1
      %vm967 = vcmp.eq.s32.totalorder %v935, 1
      %vm968 = vcmp.eq.s32.totalorder %v936, 1
      %vm969 = vcmp.eq.s32.totalorder %v937, 1
      %vm970 = vcmp.eq.s32.totalorder %v938, 1
      %vm971 = vcmp.eq.s32.totalorder %v939, 1
      %vm972 = vcmp.eq.s32.totalorder %v940, 1
      %vm973 = vcmp.eq.s32.totalorder %v941, 1
      %vm974 = vcmp.eq.s32.totalorder %v942, 1
      %vm975 = vcmp.eq.s32.totalorder %v943, 1
      %vm976 = vcmp.eq.s32.totalorder %v944, 1
      %vm977 = vcmp.eq.s32.totalorder %v945, 1
      %vm978 = vcmp.eq.s32.totalorder %v946, 1
      %vm979 = vcmp.eq.s32.totalorder %v947, 1
      %vm980 = vcmp.eq.s32.totalorder %v948, 1
      %vm981 = vcmp.eq.s32.totalorder %v949, 1
      %vm982 = vcmp.eq.s32.totalorder %v950, 1
      %vm983 = vcmp.eq.s32.totalorder %v951, 1
      %vm984 = vcmp.eq.s32.totalorder %v952, 1
      %vm985 = vcmp.eq.s32.totalorder %v953, 1
      %vm986 = vmpackc.low %vm954, %vm954
      %vm987 = vmpackc.low %vm955, %vm955
      %vm988 = vmpackc.low %vm956, %vm956
      %vm989 = vmpackc.low %vm957, %vm957
      %vm990 = vmpackc.low %vm958, %vm958
      %vm991 = vmpackc.low %vm959, %vm959
      %vm992 = vmpackc.low %vm960, %vm960
      %vm993 = vmpackc.low %vm961, %vm961
      %vm994 = vmpackc.low %vm962, %vm962
      %vm995 = vmpackc.low %vm963, %vm963
      %vm996 = vmpackc.low %vm964, %vm964
      %vm997 = vmpackc.low %vm965, %vm965
      %vm998 = vmpackc.low %vm966, %vm966
      %vm999 = vmpackc.low %vm967, %vm967
      %vm1000 = vmpackc.low %vm968, %vm968
      %vm1001 = vmpackc.low %vm969, %vm969
      %vm1002 = vmpackc.low %vm970, %vm970
      %vm1003 = vmpackc.low %vm971, %vm971
      %vm1004 = vmpackc.low %vm972, %vm972
      %vm1005 = vmpackc.low %vm973, %vm973
      %vm1006 = vmpackc.low %vm974, %vm974
      %vm1007 = vmpackc.low %vm975, %vm975
      %vm1008 = vmpackc.low %vm976, %vm976
      %vm1009 = vmpackc.low %vm977, %vm977
      %vm1010 = vmpackc.low %vm978, %vm978
      %vm1011 = vmpackc.low %vm979, %vm979
      %vm1012 = vmpackc.low %vm980, %vm980
      %vm1013 = vmpackc.low %vm981, %vm981
      %vm1014 = vmpackc.low %vm982, %vm982
      %vm1015 = vmpackc.low %vm983, %vm983
      %vm1016 = vmpackc.low %vm984, %vm984
      %vm1017 = vmpackc.low %vm985, %vm985
      %v1018 = vsel %vm986, 65537, 0
      %v1019 = vsel %vm987, 65537, 0
      %v1020 = vsel %vm988, 65537, 0
      %v1021 = vsel %vm989, 65537, 0
      %v1022 = vsel %vm990, 65537, 0
      %v1023 = vsel %vm991, 65537, 0
      %v1024 = vsel %vm992, 65537, 0
      %v1025 = vsel %vm993, 65537, 0
      %v1026 = vsel %vm994, 65537, 0
      %v1027 = vsel %vm995, 65537, 0
      %v1028 = vsel %vm996, 65537, 0
      %v1029 = vsel %vm997, 65537, 0
      %v1030 = vsel %vm998, 65537, 0
      %v1031 = vsel %vm999, 65537, 0
      %v1032 = vsel %vm1000, 65537, 0
      %v1033 = vsel %vm1001, 65537, 0
      %v1034 = vsel %vm1002, 65537, 0
      %v1035 = vsel %vm1003, 65537, 0
      %v1036 = vsel %vm1004, 65537, 0
      %v1037 = vsel %vm1005, 65537, 0
      %v1038 = vsel %vm1006, 65537, 0
      %v1039 = vsel %vm1007, 65537, 0
      %v1040 = vsel %vm1008, 65537, 0
      %v1041 = vsel %vm1009, 65537, 0
      %v1042 = vsel %vm1010, 65537, 0
      %v1043 = vsel %vm1011, 65537, 0
      %v1044 = vsel %vm1012, 65537, 0
      %v1045 = vsel %vm1013, 65537, 0
      %v1046 = vsel %vm1014, 65537, 0
      %v1047 = vsel %vm1015, 65537, 0
      %v1048 = vsel %vm1016, 65537, 0
      %v1049 = vsel %vm1017, 65537, 0
      %v1050 = vunpack.c.l.b16 %v1018
      %v1051 = vunpack.c.l.b16 %v1019
      %v1052 = vunpack.c.l.b16 %v1020
      %v1053 = vunpack.c.l.b16 %v1021
      %v1054 = vunpack.c.l.b16 %v1022
      %v1055 = vunpack.c.l.b16 %v1023
      %v1056 = vunpack.c.l.b16 %v1024
      %v1057 = vunpack.c.l.b16 %v1025
      %v1058 = vunpack.c.l.b16 %v1026
      %v1059 = vunpack.c.l.b16 %v1027
      %v1060 = vunpack.c.l.b16 %v1028
      %v1061 = vunpack.c.l.b16 %v1029
      %v1062 = vunpack.c.l.b16 %v1030
      %v1063 = vunpack.c.l.b16 %v1031
      %v1064 = vunpack.c.l.b16 %v1032
      %v1065 = vunpack.c.l.b16 %v1033
      %v1066 = vunpack.c.l.b16 %v1034
      %v1067 = vunpack.c.l.b16 %v1035
      %v1068 = vunpack.c.l.b16 %v1036
      %v1069 = vunpack.c.l.b16 %v1037
      %v1070 = vunpack.c.l.b16 %v1038
      %v1071 = vunpack.c.l.b16 %v1039
      %v1072 = vunpack.c.l.b16 %v1040
      %v1073 = vunpack.c.l.b16 %v1041
      %v1074 = vunpack.c.l.b16 %v1042
      %v1075 = vunpack.c.l.b16 %v1043
      %v1076 = vunpack.c.l.b16 %v1044
      %v1077 = vunpack.c.l.b16 %v1045
      %v1078 = vunpack.c.l.b16 %v1046
      %v1079 = vunpack.c.l.b16 %v1047
      %v1080 = vunpack.c.l.b16 %v1048
      %v1081 = vunpack.c.l.b16 %v1049
      %v1082 = vpack.c.b16 %v1051, %v1050
      %v1083 = vpack.c.b16 %v1053, %v1052
      %v1084 = vpack.c.b16 %v1055, %v1054
      %v1085 = vpack.c.b16 %v1057, %v1056
      %v1086 = vpack.c.b16 %v1059, %v1058
      %v1087 = vpack.c.b16 %v1061, %v1060
      %v1088 = vpack.c.b16 %v1063, %v1062
      %v1089 = vpack.c.b16 %v1065, %v1064
      %v1090 = vpack.c.b16 %v1067, %v1066
      %v1091 = vpack.c.b16 %v1069, %v1068
      %v1092 = vpack.c.b16 %v1071, %v1070
      %v1093 = vpack.c.b16 %v1073, %v1072
      %v1094 = vpack.c.b16 %v1075, %v1074
      %v1095 = vpack.c.b16 %v1077, %v1076
      %v1096 = vpack.c.b16 %v1079, %v1078
      %v1097 = vpack.c.b16 %v1081, %v1080
      %vm1098 = vcmp.ne.s16.totalorder %v1082, 0
      %vm1099 = vcmp.ne.s16.totalorder %v1083, 0
      %vm1100 = vcmp.ne.s16.totalorder %v1084, 0
      %vm1101 = vcmp.ne.s16.totalorder %v1085, 0
      %vm1102 = vcmp.ne.s16.totalorder %v1086, 0
      %vm1103 = vcmp.ne.s16.totalorder %v1087, 0
      %vm1104 = vcmp.ne.s16.totalorder %v1088, 0
      %vm1105 = vcmp.ne.s16.totalorder %v1089, 0
      %vm1106 = vcmp.ne.s16.totalorder %v1090, 0
      %vm1107 = vcmp.ne.s16.totalorder %v1091, 0
      %vm1108 = vcmp.ne.s16.totalorder %v1092, 0
      %vm1109 = vcmp.ne.s16.totalorder %v1093, 0
      %vm1110 = vcmp.ne.s16.totalorder %v1094, 0
      %vm1111 = vcmp.ne.s16.totalorder %v1095, 0
      %vm1112 = vcmp.ne.s16.totalorder %v1096, 0
      %vm1113 = vcmp.ne.s16.totalorder %v1097, 0
      %v1114 = vsel %vm1098, %v217, 0
      %v1115 = vsel %vm1099, %v218, 0
      %v1116 = vsel %vm1100, %v219, 0
      %v1117 = vsel %vm1101, %v220, 0
      %v1118 = vsel %vm1102, %v221, 0
      %v1119 = vsel %vm1103, %v222, 0
      %v1120 = vsel %vm1104, %v223, 0
      %v1121 = vsel %vm1105, %v224, 0
      %v1122 = vsel %vm1106, %v225, 0
      %v1123 = vsel %vm1107, %v226, 0
      %v1124 = vsel %vm1108, %v227, 0
      %v1125 = vsel %vm1109, %v228, 0
      %v1126 = vsel %vm1110, %v229, 0
      %v1127 = vsel %vm1111, %v230, 0
      %v1128 = vsel %vm1112, %v231, 0
      %v1129 = vsel %vm1113, %v232, 0
      %vm1130 = vsmask.f32 256
      %v1132 = vshrl.u32 %v874, 16
      %v1134 = vrot.slane %v1132, 7
      %v1135 = vshll.u32 %v874, 16
      %v1137 = vor.u32 %v1134, %v1135
      %v1139 = vshrl.u32 %v875, 16
      %v1141 = vrot.slane %v1139, 7
      %v1142 = vshll.u32 %v875, 16
      %v1144 = vor.u32 %v1141, %v1142
      %v1145 = vsel %vm1130, %v1134, %v1144
      %v1147 = vshrl.u32 %v876, 16
      %v1149 = vrot.slane %v1147, 7
      %v1150 = vshll.u32 %v876, 16
      %v1152 = vor.u32 %v1149, %v1150
      %v1153 = vsel %vm1130, %v1141, %v1152
      %v1155 = vshrl.u32 %v877, 16
      %v1157 = vrot.slane %v1155, 7
      %v1158 = vshll.u32 %v877, 16
      %v1160 = vor.u32 %v1157, %v1158
      %v1161 = vsel %vm1130, %v1149, %v1160
      %v1163 = vshrl.u32 %v878, 16
      %v1165 = vrot.slane %v1163, 7
      %v1166 = vshll.u32 %v878, 16
      %v1168 = vor.u32 %v1165, %v1166
      %v1169 = vsel %vm1130, %v1157, %v1168
      %v1171 = vshrl.u32 %v879, 16
      %v1173 = vrot.slane %v1171, 7
      %v1174 = vshll.u32 %v879, 16
      %v1176 = vor.u32 %v1173, %v1174
      %v1177 = vsel %vm1130, %v1165, %v1176
      %v1179 = vshrl.u32 %v880, 16
      %v1181 = vrot.slane %v1179, 7
      %v1182 = vshll.u32 %v880, 16
      %v1184 = vor.u32 %v1181, %v1182
      %v1185 = vsel %vm1130, %v1173, %v1184
      %v1187 = vshrl.u32 %v881, 16
      %v1189 = vrot.slane %v1187, 7
      %v1190 = vshll.u32 %v881, 16
      %v1192 = vor.u32 %v1189, %v1190
      %v1193 = vsel %vm1130, %v1181, %v1192
      %v1195 = vshrl.u32 %v882, 16
      %v1197 = vrot.slane %v1195, 7
      %v1198 = vshll.u32 %v882, 16
      %v1200 = vor.u32 %v1197, %v1198
      %v1201 = vsel %vm1130, %v1189, %v1200
      %v1203 = vshrl.u32 %v883, 16
      %v1205 = vrot.slane %v1203, 7
      %v1206 = vshll.u32 %v883, 16
      %v1208 = vor.u32 %v1205, %v1206
      %v1209 = vsel %vm1130, %v1197, %v1208
      %v1211 = vshrl.u32 %v884, 16
      %v1213 = vrot.slane %v1211, 7
      %v1214 = vshll.u32 %v884, 16
      %v1216 = vor.u32 %v1213, %v1214
      %v1217 = vsel %vm1130, %v1205, %v1216
      %v1219 = vshrl.u32 %v885, 16
      %v1221 = vrot.slane %v1219, 7
      %v1222 = vshll.u32 %v885, 16
      %v1224 = vor.u32 %v1221, %v1222
      %v1225 = vsel %vm1130, %v1213, %v1224
      %v1227 = vshrl.u32 %v886, 16
      %v1229 = vrot.slane %v1227, 7
      %v1230 = vshll.u32 %v886, 16
      %v1232 = vor.u32 %v1229, %v1230
      %v1233 = vsel %vm1130, %v1221, %v1232
      %v1235 = vshrl.u32 %v887, 16
      %v1237 = vrot.slane %v1235, 7
      %v1238 = vshll.u32 %v887, 16
      %v1240 = vor.u32 %v1237, %v1238
      %v1241 = vsel %vm1130, %v1229, %v1240
      %v1243 = vshrl.u32 %v888, 16
      %v1245 = vrot.slane %v1243, 7
      %v1246 = vshll.u32 %v888, 16
      %v1248 = vor.u32 %v1245, %v1246
      %v1249 = vsel %vm1130, %v1237, %v1248
      %vm1251 = vcmask 1040384
      %vm1252 = vmand %vm1251, %vm1130
      %v1253 = vsel %vm1252, 0, %v1137
      %v1254 = vld [vmem:[%s1] sm:$0xf]
      %s1255 = scalar_lea.vmem %s1, 4
      %v1256 = vld [vmem:[%s1255] sm:$0xf]
      %vm1257 = vcmask 64512
      %v1259 = vsel %vm1257, 0, 0
      %v1262 = vsel %vm1257, %v217, 0
      %v1265 = vsel %vm1257, %v218, 0
      %v1268 = vsel %vm1257, %v219, 0
      %v1271 = vsel %vm1257, %v220, 0
      %v1274 = vsel %vm1257, %v221, 0
      %v1277 = vsel %vm1257, %v222, 0
      %v1280 = vsel %vm1257, %v223, 0
      %v1283 = vsel %vm1257, %v224, 0
      %v1286 = vsel %vm1257, %v225, 0
      %v1289 = vsel %vm1257, %v226, 0
      %v1292 = vsel %vm1257, %v227, 0
      %v1295 = vsel %vm1257, %v228, 0
      %v1298 = vsel %vm1257, %v229, 0
      %v1301 = vsel %vm1257, %v230, 0
      %v1304 = vsel %vm1257, %v231, 0
      %vm1306 = vcmask 1043456
      %v1308 = vsel %vm1306, %v1256, 0
      %1310 = vmatprep.subr.bf16.mxu0 0
      %1311 = vmatpush1.bf16.msra.mxu0 %v1308
      %1312 = vmatprep.subr.bf16.mxu0 0
      %1313 = vmatpush1.bf16.msra.mxu0 0
      %1314 = vmatprep.subr.bf16.mxu0 0
      %1315 = vmatpush1.bf16.msra.mxu0 0
      %1316 = vmatprep.subr.bf16.mxu0 0
      %1317 = vmatpush1.bf16.msra.mxu0 0
      %1318 = vmatprep.subr.bf16.mxu0 0
      %1319 = vmatpush1.bf16.msra.mxu0 0
      %1320 = vmatprep.subr.bf16.mxu0 0
      %1321 = vmatpush1.bf16.msra.mxu0 0
      %1322 = vmatprep.subr.bf16.mxu0 0
      %1323 = vmatpush1.bf16.msra.mxu0 0
      %1324 = vmatprep.subr.bf16.mxu0 0
      %1325 = vmatpush1.bf16.msra.mxu0 0
      %1326 = vmatprep.subr.bf16.mxu0 0
      %1327 = vmatpush1.bf16.msra.mxu0 0
      %1328 = vmatprep.subr.bf16.mxu0 0
      %1329 = vmatpush1.bf16.msra.mxu0 0
      %1330 = vmatprep.subr.bf16.mxu0 0
      %1331 = vmatpush1.bf16.msra.mxu0 0
      %1332 = vmatprep.subr.bf16.mxu0 0
      %1333 = vmatpush1.bf16.msra.mxu0 0
      %1334 = vmatprep.subr.bf16.mxu0 0
      %1335 = vmatpush1.bf16.msra.mxu0 0
      %1336 = vmatprep.subr.bf16.mxu0 0
      %1337 = vmatpush1.bf16.msra.mxu0 0
      %1338 = vmatprep.subr.bf16.mxu0 0
      %1339 = vmatpush1.bf16.msra.mxu0 0
      %1340 = vmatprep.subr.bf16.mxu0 0
      %1341 = vmatpush1.bf16.msra.mxu0 0
      %1342 = vmatprep.mubr.bf16.mxu0 0
      %1343 = vmatmul.mubr.bf16.gmra.mrb[0].mxu0 %v1259
      %v1344 = vpop.f32.mrb[0].mxu0
      %v1345 = vadd.f32 0.0, %v1344
      %v1346 = vpop.f32.mrb[0].mxu0
      %v1347 = vpop.f32.mrb[0].mxu0
      %v1348 = vadd.f32 0.0, %v1347
      %v1349 = vpop.f32.mrb[0].mxu0
      %1350 = vmatprep.mubr.bf16.mxu0 0
      %1351 = vmatmul.mubr.bf16.gmra.mrb[0].mxu0 %v1262
      %v1352 = vpop.f32.mrb[0].mxu0
      %v1353 = vadd.f32 0.0, %v1352
      %v1354 = vpop.f32.mrb[0].mxu0
      %v1355 = vpop.f32.mrb[0].mxu0
      %v1356 = vadd.f32 0.0, %v1355
      %v1357 = vpop.f32.mrb[0].mxu0
      %1358 = vmatprep.mubr.bf16.mxu0 0
      %1359 = vmatmul.mubr.bf16.gmra.mrb[0].mxu0 %v1265
      %v1360 = vpop.f32.mrb[0].mxu0
      %v1361 = vadd.f32 0.0, %v1360
      %v1362 = vpop.f32.mrb[0].mxu0
      %v1363 = vpop.f32.mrb[0].mxu0
      %v1364 = vadd.f32 0.0, %v1363
      %v1365 = vpop.f32.mrb[0].mxu0
      %1366 = vmatprep.mubr.bf16.mxu0 0
      %1367 = vmatmul.mubr.bf16.gmra.mrb[0].mxu0 %v1268
      %v1368 = vpop.f32.mrb[0].mxu0
      %v1369 = vadd.f32 0.0, %v1368
      %v1370 = vpop.f32.mrb[0].mxu0
      %v1371 = vpop.f32.mrb[0].mxu0
      %v1372 = vadd.f32 0.0, %v1371
      %v1373 = vpop.f32.mrb[0].mxu0
      %1374 = vmatprep.mubr.bf16.mxu0 0
      %1375 = vmatmul.mubr.bf16.gmra.mrb[0].mxu0 %v1271
      %v1376 = vpop.f32.mrb[0].mxu0
      %v1377 = vadd.f32 0.0, %v1376
      %v1378 = vpop.f32.mrb[0].mxu0
      %v1379 = vpop.f32.mrb[0].mxu0
      %v1380 = vadd.f32 0.0, %v1379
      %v1381 = vpop.f32.mrb[0].mxu0
      %1382 = vmatprep.mubr.bf16.mxu0 0
      %1383 = vmatmul.mubr.bf16.gmra.mrb[0].mxu0 %v1274
      %v1384 = vpop.f32.mrb[0].mxu0
      %v1385 = vadd.f32 0.0, %v1384
      %v1386 = vpop.f32.mrb[0].mxu0
      %v1387 = vpop.f32.mrb[0].mxu0
      %v1388 = vadd.f32 0.0, %v1387
      %v1389 = vpop.f32.mrb[0].mxu0
      %1390 = vmatprep.mubr.bf16.mxu0 0
      %1391 = vmatmul.mubr.bf16.gmra.mrb[0].mxu0 %v1277
      %v1392 = vpop.f32.mrb[0].mxu0
      %v1393 = vadd.f32 0.0, %v1392
      %v1394 = vpop.f32.mrb[0].mxu0
      %v1395 = vpop.f32.mrb[0].mxu0
      %v1396 = vadd.f32 0.0, %v1395
      %v1397 = vpop.f32.mrb[0].mxu0
      %1398 = vmatprep.mubr.bf16.mxu0 0
      %1399 = vmatmul.mubr.bf16.gmra.mrb[0].mxu0 %v1280
      %v1400 = vpop.f32.mrb[0].mxu0
      %v1401 = vadd.f32 0.0, %v1400
      %v1402 = vpop.f32.mrb[0].mxu0
      %v1403 = vpop.f32.mrb[0].mxu0
      %v1404 = vadd.f32 0.0, %v1403
      %v1405 = vpop.f32.mrb[0].mxu0
      %1406 = vmatprep.mubr.bf16.mxu0 0
      %1407 = vmatmul.mubr.bf16.gmra.mrb[0].mxu0 %v1283
      %v1408 = vpop.f32.mrb[0].mxu0
      %v1409 = vadd.f32 0.0, %v1408
      %v1410 = vpop.f32.mrb[0].mxu0
      %v1411 = vpop.f32.mrb[0].mxu0
      %v1412 = vadd.f32 0.0, %v1411
      %v1413 = vpop.f32.mrb[0].mxu0
      %1414 = vmatprep.mubr.bf16.mxu0 0
      %1415 = vmatmul.mubr.bf16.gmra.mrb[0].mxu0 %v1286
      %v1416 = vpop.f32.mrb[0].mxu0
      %v1417 = vadd.f32 0.0, %v1416
      %v1418 = vpop.f32.mrb[0].mxu0
      %v1419 = vpop.f32.mrb[0].mxu0
      %v1420 = vadd.f32 0.0, %v1419
      %v1421 = vpop.f32.mrb[0].mxu0
      %1422 = vmatprep.mubr.bf16.mxu0 0
      %1423 = vmatmul.mubr.bf16.gmra.mrb[0].mxu0 %v1289
      %v1424 = vpop.f32.mrb[0].mxu0
      %v1425 = vadd.f32 0.0, %v1424
      %v1426 = vpop.f32.mrb[0].mxu0
      %v1427 = vpop.f32.mrb[0].mxu0
      %v1428 = vadd.f32 0.0, %v1427
      %v1429 = vpop.f32.mrb[0].mxu0
      %1430 = vmatprep.mubr.bf16.mxu0 0
      %1431 = vmatmul.mubr.bf16.gmra.mrb[0].mxu0 %v1292
      %v1432 = vpop.f32.mrb[0].mxu0
      %v1433 = vadd.f32 0.0, %v1432
      %v1434 = vpop.f32.mrb[0].mxu0
      %v1435 = vpop.f32.mrb[0].mxu0
      %v1436 = vadd.f32 0.0, %v1435
      %v1437 = vpop.f32.mrb[0].mxu0
      %1438 = vmatprep.mubr.bf16.mxu0 0
      %1439 = vmatmul.mubr.bf16.gmra.mrb[0].mxu0 %v1295
      %v1440 = vpop.f32.mrb[0].mxu0
      %v1441 = vadd.f32 0.0, %v1440
      %v1442 = vpop.f32.mrb[0].mxu0
      %v1443 = vpop.f32.mrb[0].mxu0
      %v1444 = vadd.f32 0.0, %v1443
      %v1445 = vpop.f32.mrb[0].mxu0
      %1446 = vmatprep.mubr.bf16.mxu0 0
      %1447 = vmatmul.mubr.bf16.gmra.mrb[0].mxu0 %v1298
      %v1448 = vpop.f32.mrb[0].mxu0
      %v1449 = vadd.f32 0.0, %v1448
      %v1450 = vpop.f32.mrb[0].mxu0
      %v1451 = vpop.f32.mrb[0].mxu0
      %v1452 = vadd.f32 0.0, %v1451
      %v1453 = vpop.f32.mrb[0].mxu0
      %1454 = vmatprep.mubr.bf16.mxu0 0
      %1455 = vmatmul.mubr.bf16.gmra.mrb[0].mxu0 %v1301
      %v1456 = vpop.f32.mrb[0].mxu0
      %v1457 = vadd.f32 0.0, %v1456
      %v1458 = vpop.f32.mrb[0].mxu0
      %v1459 = vpop.f32.mrb[0].mxu0
      %v1460 = vadd.f32 0.0, %v1459
      %v1461 = vpop.f32.mrb[0].mxu0
      %1462 = vmatprep.mubr.bf16.mxu0 0
      %1463 = vmatmul.mubr.bf16.gmra.mrb[0].mxu0 %v1304
      %v1464 = vpop.f32.mrb[0].mxu0
      %v1465 = vadd.f32 0.0, %v1464
      %v1466 = vpop.f32.mrb[0].mxu0
      %v1467 = vpop.f32.mrb[0].mxu0
      %v1468 = vadd.f32 0.0, %v1467
      %v1469 = vpop.f32.mrb[0].mxu0
      %1470 = vdwg.mxu0
      %v1472 = vsel %vm1257, %v1253, 0
      %v1475 = vsel %vm1257, %v1145, 0
      %v1478 = vsel %vm1257, %v1153, 0
      %v1481 = vsel %vm1257, %v1161, 0
      %v1484 = vsel %vm1257, %v1169, 0
      %v1487 = vsel %vm1257, %v1177, 0
      %v1490 = vsel %vm1257, %v1185, 0
      %v1493 = vsel %vm1257, %v1193, 0
      %v1496 = vsel %vm1257, %v1201, 0
      %v1499 = vsel %vm1257, %v1209, 0
      %v1502 = vsel %vm1257, %v1217, 0
      %v1505 = vsel %vm1257, %v1225, 0
      %v1508 = vsel %vm1257, %v1233, 0
      %v1511 = vsel %vm1257, %v1241, 0
      %v1514 = vsel %vm1257, %v1249, 0
      %v1517 = vsel %vm1306, %v1254, 0
      %1519 = vmatprep.subr.bf16.mxu0 0
      %1520 = vmatpush1.bf16.msra.mxu0 %v1517
      %1521 = vmatprep.subr.bf16.mxu0 0
      %1522 = vmatpush1.bf16.msra.mxu0 0
      %1523 = vmatprep.subr.bf16.mxu0 0
      %1524 = vmatpush1.bf16.msra.mxu0 0
      %1525 = vmatprep.subr.bf16.mxu0 0
      %1526 = vmatpush1.bf16.msra.mxu0 0
      %1527 = vmatprep.subr.bf16.mxu0 0
      %1528 = vmatpush1.bf16.msra.mxu0 0
      %1529 = vmatprep.subr.bf16.mxu0 0
      %1530 = vmatpush1.bf16.msra.mxu0 0
      %1531 = vmatprep.subr.bf16.mxu0 0
      %1532 = vmatpush1.bf16.msra.mxu0 0
      %1533 = vmatprep.subr.bf16.mxu0 0
      %1534 = vmatpush1.bf16.msra.mxu0 0
      %1535 = vmatprep.subr.bf16.mxu0 0
      %1536 = vmatpush1.bf16.msra.mxu0 0
      %1537 = vmatprep.subr.bf16.mxu0 0
      %1538 = vmatpush1.bf16.msra.mxu0 0
      %1539 = vmatprep.subr.bf16.mxu0 0
      %1540 = vmatpush1.bf16.msra.mxu0 0
      %1541 = vmatprep.subr.bf16.mxu0 0
      %1542 = vmatpush1.bf16.msra.mxu0 0
      %1543 = vmatprep.subr.bf16.mxu0 0
      %1544 = vmatpush1.bf16.msra.mxu0 0
      %1545 = vmatprep.subr.bf16.mxu0 0
      %1546 = vmatpush1.bf16.msra.mxu0 0
      %1547 = vmatprep.subr.bf16.mxu0 0
      %1548 = vmatpush1.bf16.msra.mxu0 0
      %1549 = vmatprep.subr.bf16.mxu0 0
      %1550 = vmatpush1.bf16.msra.mxu0 0
      %1551 = vmatprep.mubr.bf16.mxu0 0
      %1552 = vmatmul.mubr.bf16.gmra.mrb[0].mxu0 %v1259
      %v1553 = vpop.f32.mrb[0].mxu0
      %v1554 = vadd.f32 %v1345, %v1553
      %v1555 = vpop.f32.mrb[0].mxu0
      %v1556 = vpop.f32.mrb[0].mxu0
      %v1557 = vadd.f32 %v1348, %v1556
      %v1558 = vpop.f32.mrb[0].mxu0
      %1559 = vmatprep.mubr.bf16.mxu0 0
      %1560 = vmatmul.mubr.bf16.gmra.mrb[0].mxu0 %v1472
      %v1561 = vpop.f32.mrb[0].mxu0
      %v1562 = vadd.f32 %v1353, %v1561
      %v1563 = vpop.f32.mrb[0].mxu0
      %v1564 = vpop.f32.mrb[0].mxu0
      %v1565 = vadd.f32 %v1356, %v1564
      %v1566 = vpop.f32.mrb[0].mxu0
      %1567 = vmatprep.mubr.bf16.mxu0 0
      %1568 = vmatmul.mubr.bf16.gmra.mrb[0].mxu0 %v1475
      %v1569 = vpop.f32.mrb[0].mxu0
      %v1570 = vadd.f32 %v1361, %v1569
      %v1571 = vpop.f32.mrb[0].mxu0
      %v1572 = vpop.f32.mrb[0].mxu0
      %v1573 = vadd.f32 %v1364, %v1572
      %v1574 = vpop.f32.mrb[0].mxu0
      %1575 = vmatprep.mubr.bf16.mxu0 0
      %1576 = vmatmul.mubr.bf16.gmra.mrb[0].mxu0 %v1478
      %v1577 = vpop.f32.mrb[0].mxu0
      %v1578 = vadd.f32 %v1369, %v1577
      %v1579 = vpop.f32.mrb[0].mxu0
      %v1580 = vpop.f32.mrb[0].mxu0
      %v1581 = vadd.f32 %v1372, %v1580
      %v1582 = vpop.f32.mrb[0].mxu0
      %1583 = vmatprep.mubr.bf16.mxu0 0
      %1584 = vmatmul.mubr.bf16.gmra.mrb[0].mxu0 %v1481
      %v1585 = vpop.f32.mrb[0].mxu0
      %v1586 = vadd.f32 %v1377, %v1585
      %v1587 = vpop.f32.mrb[0].mxu0
      %v1588 = vpop.f32.mrb[0].mxu0
      %v1589 = vadd.f32 %v1380, %v1588
      %v1590 = vpop.f32.mrb[0].mxu0
      %1591 = vmatprep.mubr.bf16.mxu0 0
      %1592 = vmatmul.mubr.bf16.gmra.mrb[0].mxu0 %v1484
      %v1593 = vpop.f32.mrb[0].mxu0
      %v1594 = vadd.f32 %v1385, %v1593
      %v1595 = vpop.f32.mrb[0].mxu0
      %v1596 = vpop.f32.mrb[0].mxu0
      %v1597 = vadd.f32 %v1388, %v1596
      %v1598 = vpop.f32.mrb[0].mxu0
      %1599 = vmatprep.mubr.bf16.mxu0 0
      %1600 = vmatmul.mubr.bf16.gmra.mrb[0].mxu0 %v1487
      %v1601 = vpop.f32.mrb[0].mxu0
      %v1602 = vadd.f32 %v1393, %v1601
      %v1603 = vpop.f32.mrb[0].mxu0
      %v1604 = vpop.f32.mrb[0].mxu0
      %v1605 = vadd.f32 %v1396, %v1604
      %v1606 = vpop.f32.mrb[0].mxu0
      %1607 = vmatprep.mubr.bf16.mxu0 0
      %1608 = vmatmul.mubr.bf16.gmra.mrb[0].mxu0 %v1490
      %v1609 = vpop.f32.mrb[0].mxu0
      %v1610 = vadd.f32 %v1401, %v1609
      %v1611 = vpop.f32.mrb[0].mxu0
      %v1612 = vpop.f32.mrb[0].mxu0
      %v1613 = vadd.f32 %v1404, %v1612
      %v1614 = vpop.f32.mrb[0].mxu0
      %1615 = vmatprep.mubr.bf16.mxu0 0
      %1616 = vmatmul.mubr.bf16.gmra.mrb[0].mxu0 %v1493
      %v1617 = vpop.f32.mrb[0].mxu0
      %v1618 = vadd.f32 %v1409, %v1617
      %v1619 = vpop.f32.mrb[0].mxu0
      %v1620 = vpop.f32.mrb[0].mxu0
      %v1621 = vadd.f32 %v1412, %v1620
      %v1622 = vpop.f32.mrb[0].mxu0
      %1623 = vmatprep.mubr.bf16.mxu0 0
      %1624 = vmatmul.mubr.bf16.gmra.mrb[0].mxu0 %v1496
      %v1625 = vpop.f32.mrb[0].mxu0
      %v1626 = vadd.f32 %v1417, %v1625
      %v1627 = vpop.f32.mrb[0].mxu0
      %v1628 = vpop.f32.mrb[0].mxu0
      %v1629 = vadd.f32 %v1420, %v1628
      %v1630 = vpop.f32.mrb[0].mxu0
      %1631 = vmatprep.mubr.bf16.mxu0 0
      %1632 = vmatmul.mubr.bf16.gmra.mrb[0].mxu0 %v1499
      %v1633 = vpop.f32.mrb[0].mxu0
      %v1634 = vadd.f32 %v1425, %v1633
      %v1635 = vpop.f32.mrb[0].mxu0
      %v1636 = vpop.f32.mrb[0].mxu0
      %v1637 = vadd.f32 %v1428, %v1636
      %v1638 = vpop.f32.mrb[0].mxu0
      %1639 = vmatprep.mubr.bf16.mxu0 0
      %1640 = vmatmul.mubr.bf16.gmra.mrb[0].mxu0 %v1502
      %v1641 = vpop.f32.mrb[0].mxu0
      %v1642 = vadd.f32 %v1433, %v1641
      %v1643 = vpop.f32.mrb[0].mxu0
      %v1644 = vpop.f32.mrb[0].mxu0
      %v1645 = vadd.f32 %v1436, %v1644
      %v1646 = vpop.f32.mrb[0].mxu0
      %1647 = vmatprep.mubr.bf16.mxu0 0
      %1648 = vmatmul.mubr.bf16.gmra.mrb[0].mxu0 %v1505
      %v1649 = vpop.f32.mrb[0].mxu0
      %v1650 = vadd.f32 %v1441, %v1649
      %v1651 = vpop.f32.mrb[0].mxu0
      %v1652 = vpop.f32.mrb[0].mxu0
      %v1653 = vadd.f32 %v1444, %v1652
      %v1654 = vpop.f32.mrb[0].mxu0
      %1655 = vmatprep.mubr.bf16.mxu0 0
      %1656 = vmatmul.mubr.bf16.gmra.mrb[0].mxu0 %v1508
      %v1657 = vpop.f32.mrb[0].mxu0
      %v1658 = vadd.f32 %v1449, %v1657
      %v1659 = vpop.f32.mrb[0].mxu0
      %v1660 = vpop.f32.mrb[0].mxu0
      %v1661 = vadd.f32 %v1452, %v1660
      %v1662 = vpop.f32.mrb[0].mxu0
      %1663 = vmatprep.mubr.bf16.mxu0 0
      %1664 = vmatmul.mubr.bf16.gmra.mrb[0].mxu0 %v1511
      %v1665 = vpop.f32.mrb[0].mxu0
      %v1666 = vadd.f32 %v1457, %v1665
      %v1667 = vpop.f32.mrb[0].mxu0
      %v1668 = vpop.f32.mrb[0].mxu0
      %v1669 = vadd.f32 %v1460, %v1668
      %v1670 = vpop.f32.mrb[0].mxu0
      %1671 = vmatprep.mubr.bf16.mxu0 0
      %1672 = vmatmul.mubr.bf16.gmra.mrb[0].mxu0 %v1514
      %v1673 = vpop.f32.mrb[0].mxu0
      %v1674 = vadd.f32 %v1465, %v1673
      %v1675 = vpop.f32.mrb[0].mxu0
      %v1676 = vpop.f32.mrb[0].mxu0
      %v1677 = vadd.f32 %v1468, %v1676
      %v1678 = vpop.f32.mrb[0].mxu0
      %1679 = vdwg.mxu0
      %vm1680 = vsmask.f32 7424
      %v1682 = vshll.u32 %v1114, 16
      %v1684 = vrot.slane %v1682, 1
      %v1685 = vshrl.u32 %v1114, 16
      %v1687 = vor.u32 %v1685, %v1684
      %v1689 = vshll.u32 %v1115, 16
      %v1691 = vrot.slane %v1689, 1
      %v1692 = vsel %vm1680, %v1687, %v1691
      %v1693 = vshrl.u32 %v1115, 16
      %v1695 = vor.u32 %v1693, %v1691
      %v1697 = vshll.u32 %v1116, 16
      %v1699 = vrot.slane %v1697, 1
      %v1700 = vsel %vm1680, %v1695, %v1699
      %v1701 = vshrl.u32 %v1116, 16
      %v1703 = vor.u32 %v1701, %v1699
      %v1705 = vshll.u32 %v1117, 16
      %v1707 = vrot.slane %v1705, 1
      %v1708 = vsel %vm1680, %v1703, %v1707
      %v1709 = vshrl.u32 %v1117, 16
      %v1711 = vor.u32 %v1709, %v1707
      %v1713 = vshll.u32 %v1118, 16
      %v1715 = vrot.slane %v1713, 1
      %v1716 = vsel %vm1680, %v1711, %v1715
      %v1717 = vshrl.u32 %v1118, 16
      %v1719 = vor.u32 %v1717, %v1715
      %v1721 = vshll.u32 %v1119, 16
      %v1723 = vrot.slane %v1721, 1
      %v1724 = vsel %vm1680, %v1719, %v1723
      %v1725 = vshrl.u32 %v1119, 16
      %v1727 = vor.u32 %v1725, %v1723
      %v1729 = vshll.u32 %v1120, 16
      %v1731 = vrot.slane %v1729, 1
      %v1732 = vsel %vm1680, %v1727, %v1731
      %v1733 = vshrl.u32 %v1120, 16
      %v1735 = vor.u32 %v1733, %v1731
      %v1737 = vshll.u32 %v1121, 16
      %v1739 = vrot.slane %v1737, 1
      %v1740 = vsel %vm1680, %v1735, %v1739
      %v1741 = vshrl.u32 %v1121, 16
      %v1743 = vor.u32 %v1741, %v1739
      %v1745 = vshll.u32 %v1122, 16
      %v1747 = vrot.slane %v1745, 1
      %v1748 = vsel %vm1680, %v1743, %v1747
      %v1749 = vshrl.u32 %v1122, 16
      %v1751 = vor.u32 %v1749, %v1747
      %v1753 = vshll.u32 %v1123, 16
      %v1755 = vrot.slane %v1753, 1
      %v1756 = vsel %vm1680, %v1751, %v1755
      %v1757 = vshrl.u32 %v1123, 16
      %v1759 = vor.u32 %v1757, %v1755
      %v1761 = vshll.u32 %v1124, 16
      %v1763 = vrot.slane %v1761, 1
      %v1764 = vsel %vm1680, %v1759, %v1763
      %v1765 = vshrl.u32 %v1124, 16
      %v1767 = vor.u32 %v1765, %v1763
      %v1769 = vshll.u32 %v1125, 16
      %v1771 = vrot.slane %v1769, 1
      %v1772 = vsel %vm1680, %v1767, %v1771
      %v1773 = vshrl.u32 %v1125, 16
      %v1775 = vor.u32 %v1773, %v1771
      %v1777 = vshll.u32 %v1126, 16
      %v1779 = vrot.slane %v1777, 1
      %v1780 = vsel %vm1680, %v1775, %v1779
      %v1781 = vshrl.u32 %v1126, 16
      %v1783 = vor.u32 %v1781, %v1779
      %v1785 = vshll.u32 %v1127, 16
      %v1787 = vrot.slane %v1785, 1
      %v1788 = vsel %vm1680, %v1783, %v1787
      %v1789 = vshrl.u32 %v1127, 16
      %v1791 = vor.u32 %v1789, %v1787
      %v1793 = vshll.u32 %v1128, 16
      %v1795 = vrot.slane %v1793, 1
      %v1796 = vsel %vm1680, %v1791, %v1795
      %v1797 = vshrl.u32 %v1128, 16
      %v1799 = vor.u32 %v1797, %v1795
      %v1801 = vshll.u32 %v1129, 16
      %v1803 = vrot.slane %v1801, 1
      %v1804 = vsel %vm1680, %v1799, %v1803
      %vm1806 = vcmask 1047552
      %vm1807 = vmand %vm1806, %vm1680
      %v1808 = vsel %vm1807, 0, %v1684
      %s1809 = scalar_lea.vmem %s1, 8
      %v1810 = vld [vmem:[%s1809] sm:$0xf]
      %v1812 = vsel %vm1257, %v1808, 0
      %v1815 = vsel %vm1257, %v1692, 0
      %v1818 = vsel %vm1257, %v1700, 0
      %v1821 = vsel %vm1257, %v1708, 0
      %v1824 = vsel %vm1257, %v1716, 0
      %v1827 = vsel %vm1257, %v1724, 0
      %v1830 = vsel %vm1257, %v1732, 0
      %v1833 = vsel %vm1257, %v1740, 0
      %v1836 = vsel %vm1257, %v1748, 0
      %v1839 = vsel %vm1257, %v1756, 0
      %v1842 = vsel %vm1257, %v1764, 0
      %v1845 = vsel %vm1257, %v1772, 0
      %v1848 = vsel %vm1257, %v1780, 0
      %v1851 = vsel %vm1257, %v1788, 0
      %v1854 = vsel %vm1257, %v1796, 0
      %v1857 = vsel %vm1257, %v1804, 0
      %v1860 = vsel %vm1306, %v1810, 0
      %1862 = vmatprep.subr.bf16.mxu0 0
      %1863 = vmatpush1.bf16.msra.mxu0 %v1860
      %1864 = vmatprep.subr.bf16.mxu0 0
      %1865 = vmatpush1.bf16.msra.mxu0 0
      %1866 = vmatprep.subr.bf16.mxu0 0
      %1867 = vmatpush1.bf16.msra.mxu0 0
      %1868 = vmatprep.subr.bf16.mxu0 0
      %1869 = vmatpush1.bf16.msra.mxu0 0
      %1870 = vmatprep.subr.bf16.mxu0 0
      %1871 = vmatpush1.bf16.msra.mxu0 0
      %1872 = vmatprep.subr.bf16.mxu0 0
      %1873 = vmatpush1.bf16.msra.mxu0 0
      %1874 = vmatprep.subr.bf16.mxu0 0
      %1875 = vmatpush1.bf16.msra.mxu0 0
      %1876 = vmatprep.subr.bf16.mxu0 0
      %1877 = vmatpush1.bf16.msra.mxu0 0
      %1878 = vmatprep.subr.bf16.mxu0 0
      %1879 = vmatpush1.bf16.msra.mxu0 0
      %1880 = vmatprep.subr.bf16.mxu0 0
      %1881 = vmatpush1.bf16.msra.mxu0 0
      %1882 = vmatprep.subr.bf16.mxu0 0
      %1883 = vmatpush1.bf16.msra.mxu0 0
      %1884 = vmatprep.subr.bf16.mxu0 0
      %1885 = vmatpush1.bf16.msra.mxu0 0
      %1886 = vmatprep.subr.bf16.mxu0 0
      %1887 = vmatpush1.bf16.msra.mxu0 0
      %1888 = vmatprep.subr.bf16.mxu0 0
      %1889 = vmatpush1.bf16.msra.mxu0 0
      %1890 = vmatprep.subr.bf16.mxu0 0
      %1891 = vmatpush1.bf16.msra.mxu0 0
      %1892 = vmatprep.subr.bf16.mxu0 0
      %1893 = vmatpush1.bf16.msra.mxu0 0
      %1894 = vmatprep.mubr.bf16.mxu0 0
      %1895 = vmatmul.mubr.bf16.gmra.mrb[0].mxu0 %v1812
      %v1896 = vpop.f32.mrb[0].mxu0
      %v1897 = vadd.f32 0.0, %v1896
      %v1898 = vpop.f32.mrb[0].mxu0
      %v1899 = vpop.f32.mrb[0].mxu0
      %v1900 = vadd.f32 0.0, %v1899
      %v1901 = vpop.f32.mrb[0].mxu0
      %1902 = vmatprep.mubr.bf16.mxu0 0
      %1903 = vmatmul.mubr.bf16.gmra.mrb[0].mxu0 %v1815
      %v1904 = vpop.f32.mrb[0].mxu0
      %v1905 = vadd.f32 0.0, %v1904
      %v1906 = vpop.f32.mrb[0].mxu0
      %v1907 = vpop.f32.mrb[0].mxu0
      %v1908 = vadd.f32 0.0, %v1907
      %v1909 = vpop.f32.mrb[0].mxu0
      %1910 = vmatprep.mubr.bf16.mxu0 0
      %1911 = vmatmul.mubr.bf16.gmra.mrb[0].mxu0 %v1818
      %v1912 = vpop.f32.mrb[0].mxu0
      %v1913 = vadd.f32 0.0, %v1912
      %v1914 = vpop.f32.mrb[0].mxu0
      %v1915 = vpop.f32.mrb[0].mxu0
      %v1916 = vadd.f32 0.0, %v1915
      %v1917 = vpop.f32.mrb[0].mxu0
      %1918 = vmatprep.mubr.bf16.mxu0 0
      %1919 = vmatmul.mubr.bf16.gmra.mrb[0].mxu0 %v1821
      %v1920 = vpop.f32.mrb[0].mxu0
      %v1921 = vadd.f32 0.0, %v1920
      %v1922 = vpop.f32.mrb[0].mxu0
      %v1923 = vpop.f32.mrb[0].mxu0
      %v1924 = vadd.f32 0.0, %v1923
      %v1925 = vpop.f32.mrb[0].mxu0
      %1926 = vmatprep.mubr.bf16.mxu0 0
      %1927 = vmatmul.mubr.bf16.gmra.mrb[0].mxu0 %v1824
      %v1928 = vpop.f32.mrb[0].mxu0
      %v1929 = vadd.f32 0.0, %v1928
      %v1930 = vpop.f32.mrb[0].mxu0
      %v1931 = vpop.f32.mrb[0].mxu0
      %v1932 = vadd.f32 0.0, %v1931
      %v1933 = vpop.f32.mrb[0].mxu0
      %1934 = vmatprep.mubr.bf16.mxu0 0
      %1935 = vmatmul.mubr.bf16.gmra.mrb[0].mxu0 %v1827
      %v1936 = vpop.f32.mrb[0].mxu0
      %v1937 = vadd.f32 0.0, %v1936
      %v1938 = vpop.f32.mrb[0].mxu0
      %v1939 = vpop.f32.mrb[0].mxu0
      %v1940 = vadd.f32 0.0, %v1939
      %v1941 = vpop.f32.mrb[0].mxu0
      %1942 = vmatprep.mubr.bf16.mxu0 0
      %1943 = vmatmul.mubr.bf16.gmra.mrb[0].mxu0 %v1830
      %v1944 = vpop.f32.mrb[0].mxu0
      %v1945 = vadd.f32 0.0, %v1944
      %v1946 = vpop.f32.mrb[0].mxu0
      %v1947 = vpop.f32.mrb[0].mxu0
      %v1948 = vadd.f32 0.0, %v1947
      %v1949 = vpop.f32.mrb[0].mxu0
      %1950 = vmatprep.mubr.bf16.mxu0 0
      %1951 = vmatmul.mubr.bf16.gmra.mrb[0].mxu0 %v1833
      %v1952 = vpop.f32.mrb[0].mxu0
      %v1953 = vadd.f32 0.0, %v1952
      %v1954 = vpop.f32.mrb[0].mxu0
      %v1955 = vpop.f32.mrb[0].mxu0
      %v1956 = vadd.f32 0.0, %v1955
      %v1957 = vpop.f32.mrb[0].mxu0
      %1958 = vmatprep.mubr.bf16.mxu0 0
      %1959 = vmatmul.mubr.bf16.gmra.mrb[0].mxu0 %v1836
      %v1960 = vpop.f32.mrb[0].mxu0
      %v1961 = vadd.f32 0.0, %v1960
      %v1962 = vpop.f32.mrb[0].mxu0
      %v1963 = vpop.f32.mrb[0].mxu0
      %v1964 = vadd.f32 0.0, %v1963
      %v1965 = vpop.f32.mrb[0].mxu0
      %1966 = vmatprep.mubr.bf16.mxu0 0
      %1967 = vmatmul.mubr.bf16.gmra.mrb[0].mxu0 %v1839
      %v1968 = vpop.f32.mrb[0].mxu0
      %v1969 = vadd.f32 0.0, %v1968
      %v1970 = vpop.f32.mrb[0].mxu0
      %v1971 = vpop.f32.mrb[0].mxu0
      %v1972 = vadd.f32 0.0, %v1971
      %v1973 = vpop.f32.mrb[0].mxu0
      %1974 = vmatprep.mubr.bf16.mxu0 0
      %1975 = vmatmul.mubr.bf16.gmra.mrb[0].mxu0 %v1842
      %v1976 = vpop.f32.mrb[0].mxu0
      %v1977 = vadd.f32 0.0, %v1976
      %v1978 = vpop.f32.mrb[0].mxu0
      %v1979 = vpop.f32.mrb[0].mxu0
      %v1980 = vadd.f32 0.0, %v1979
      %v1981 = vpop.f32.mrb[0].mxu0
      %1982 = vmatprep.mubr.bf16.mxu0 0
      %1983 = vmatmul.mubr.bf16.gmra.mrb[0].mxu0 %v1845
      %v1984 = vpop.f32.mrb[0].mxu0
      %v1985 = vadd.f32 0.0, %v1984
      %v1986 = vpop.f32.mrb[0].mxu0
      %v1987 = vpop.f32.mrb[0].mxu0
      %v1988 = vadd.f32 0.0, %v1987
      %v1989 = vpop.f32.mrb[0].mxu0
      %1990 = vmatprep.mubr.bf16.mxu0 0
      %1991 = vmatmul.mubr.bf16.gmra.mrb[0].mxu0 %v1848
      %v1992 = vpop.f32.mrb[0].mxu0
      %v1993 = vadd.f32 0.0, %v1992
      %v1994 = vpop.f32.mrb[0].mxu0
      %v1995 = vpop.f32.mrb[0].mxu0
      %v1996 = vadd.f32 0.0, %v1995
      %v1997 = vpop.f32.mrb[0].mxu0
      %1998 = vmatprep.mubr.bf16.mxu0 0
      %1999 = vmatmul.mubr.bf16.gmra.mrb[0].mxu0 %v1851
      %v2000 = vpop.f32.mrb[0].mxu0
      %v2001 = vadd.f32 0.0, %v2000
      %v2002 = vpop.f32.mrb[0].mxu0
      %v2003 = vpop.f32.mrb[0].mxu0
      %v2004 = vadd.f32 0.0, %v2003
      %v2005 = vpop.f32.mrb[0].mxu0
      %2006 = vmatprep.mubr.bf16.mxu0 0
      %2007 = vmatmul.mubr.bf16.gmra.mrb[0].mxu0 %v1854
      %v2008 = vpop.f32.mrb[0].mxu0
      %v2009 = vadd.f32 0.0, %v2008
      %v2010 = vpop.f32.mrb[0].mxu0
      %v2011 = vpop.f32.mrb[0].mxu0
      %v2012 = vadd.f32 0.0, %v2011
      %v2013 = vpop.f32.mrb[0].mxu0
      %2014 = vmatprep.mubr.bf16.mxu0 0
      %2015 = vmatmul.mubr.bf16.gmra.mrb[0].mxu0 %v1857
      %v2016 = vpop.f32.mrb[0].mxu0
      %v2017 = vadd.f32 0.0, %v2016
      %v2018 = vpop.f32.mrb[0].mxu0
      %v2019 = vpop.f32.mrb[0].mxu0
      %v2020 = vadd.f32 0.0, %v2019
      %v2021 = vpop.f32.mrb[0].mxu0
      %2022 = vdwg.mxu0
      %v2023 = vadd.f32 %v1554, %v1897
      %v2024 = vadd.f32 %v1557, %v1900
      %v2025 = vadd.f32 %v1562, %v1905
      %v2026 = vadd.f32 %v1565, %v1908
      %v2027 = vadd.f32 %v1570, %v1913
      %v2028 = vadd.f32 %v1573, %v1916
      %v2029 = vadd.f32 %v1578, %v1921
      %v2030 = vadd.f32 %v1581, %v1924
      %v2031 = vadd.f32 %v1586, %v1929
      %v2032 = vadd.f32 %v1589, %v1932
      %v2033 = vadd.f32 %v1594, %v1937
      %v2034 = vadd.f32 %v1597, %v1940
      %v2035 = vadd.f32 %v1602, %v1945
      %v2036 = vadd.f32 %v1605, %v1948
      %v2037 = vadd.f32 %v1610, %v1953
      %v2038 = vadd.f32 %v1613, %v1956
      %v2039 = vadd.f32 %v1618, %v1961
      %v2040 = vadd.f32 %v1621, %v1964
      %v2041 = vadd.f32 %v1626, %v1969
      %v2042 = vadd.f32 %v1629, %v1972
      %v2043 = vadd.f32 %v1634, %v1977
      %v2044 = vadd.f32 %v1637, %v1980
      %v2045 = vadd.f32 %v1642, %v1985
      %v2046 = vadd.f32 %v1645, %v1988
      %v2047 = vadd.f32 %v1650, %v1993
      %v2048 = vadd.f32 %v1653, %v1996
      %v2049 = vadd.f32 %v1658, %v2001
      %v2050 = vadd.f32 %v1661, %v2004
      %v2051 = vadd.f32 %v1666, %v2009
      %v2052 = vadd.f32 %v1669, %v2012
      %v2053 = vadd.f32 %v1674, %v2017
      %v2054 = vadd.f32 %v1677, %v2020
      %v2056 = vshrl.u32 %v889, 16
      %v2058 = vrot.slane %v2056, 7
      %v2059 = vshll.u32 %v889, 16
      %v2061 = vor.u32 %v2058, %v2059
      %v2062 = vsel %vm1130, %v1245, %v2061
      %s2063 = scalar_lea.vmem %s1, 12
      %v2064 = vld [vmem:[%s2063] sm:$0xf]
      %v2066 = vsel %vm1257, %v2062, 0
      %v2069 = vsel %vm1306, %v2064, 0
      %2071 = vmatprep.subr.bf16.mxu0 0
      %2072 = vmatpush1.bf16.msra.mxu0 %v2069
      %2073 = vmatprep.subr.bf16.mxu0 0
      %2074 = vmatpush1.bf16.msra.mxu0 0
      %2075 = vmatprep.subr.bf16.mxu0 0
      %2076 = vmatpush1.bf16.msra.mxu0 0
      %2077 = vmatprep.subr.bf16.mxu0 0
      %2078 = vmatpush1.bf16.msra.mxu0 0
      %2079 = vmatprep.subr.bf16.mxu0 0
      %2080 = vmatpush1.bf16.msra.mxu0 0
      %2081 = vmatprep.subr.bf16.mxu0 0
      %2082 = vmatpush1.bf16.msra.mxu0 0
      %2083 = vmatprep.subr.bf16.mxu0 0
      %2084 = vmatpush1.bf16.msra.mxu0 0
      %2085 = vmatprep.subr.bf16.mxu0 0
      %2086 = vmatpush1.bf16.msra.mxu0 0
      %2087 = vmatprep.subr.bf16.mxu0 0
      %2088 = vmatpush1.bf16.msra.mxu0 0
      %2089 = vmatprep.subr.bf16.mxu0 0
      %2090 = vmatpush1.bf16.msra.mxu0 0
      %2091 = vmatprep.subr.bf16.mxu0 0
      %2092 = vmatpush1.bf16.msra.mxu0 0
      %2093 = vmatprep.subr.bf16.mxu0 0
      %2094 = vmatpush1.bf16.msra.mxu0 0
      %2095 = vmatprep.subr.bf16.mxu0 0
      %2096 = vmatpush1.bf16.msra.mxu0 0
      %2097 = vmatprep.subr.bf16.mxu0 0
      %2098 = vmatpush1.bf16.msra.mxu0 0
      %2099 = vmatprep.subr.bf16.mxu0 0
      %2100 = vmatpush1.bf16.msra.mxu0 0
      %2101 = vmatprep.subr.bf16.mxu0 0
      %2102 = vmatpush1.bf16.msra.mxu0 0
      %2103 = vmatprep.mubr.bf16.mxu0 0
      %2104 = vmatmul.mubr.bf16.gmra.mrb[0].mxu0 %v1472
      %v2105 = vpop.f32.mrb[0].mxu0
      %v2106 = vadd.f32 0.0, %v2105
      %v2107 = vpop.f32.mrb[0].mxu0
      %v2108 = vpop.f32.mrb[0].mxu0
      %v2109 = vadd.f32 0.0, %v2108
      %v2110 = vpop.f32.mrb[0].mxu0
      %2111 = vmatprep.mubr.bf16.mxu0 0
      %2112 = vmatmul.mubr.bf16.gmra.mrb[0].mxu0 %v1475
      %v2113 = vpop.f32.mrb[0].mxu0
      %v2114 = vadd.f32 0.0, %v2113
      %v2115 = vpop.f32.mrb[0].mxu0
      %v2116 = vpop.f32.mrb[0].mxu0
      %v2117 = vadd.f32 0.0, %v2116
      %v2118 = vpop.f32.mrb[0].mxu0
      %2119 = vmatprep.mubr.bf16.mxu0 0
      %2120 = vmatmul.mubr.bf16.gmra.mrb[0].mxu0 %v1478
      %v2121 = vpop.f32.mrb[0].mxu0
      %v2122 = vadd.f32 0.0, %v2121
      %v2123 = vpop.f32.mrb[0].mxu0
      %v2124 = vpop.f32.mrb[0].mxu0
      %v2125 = vadd.f32 0.0, %v2124
      %v2126 = vpop.f32.mrb[0].mxu0
      %2127 = vmatprep.mubr.bf16.mxu0 0
      %2128 = vmatmul.mubr.bf16.gmra.mrb[0].mxu0 %v1481
      %v2129 = vpop.f32.mrb[0].mxu0
      %v2130 = vadd.f32 0.0, %v2129
      %v2131 = vpop.f32.mrb[0].mxu0
      %v2132 = vpop.f32.mrb[0].mxu0
      %v2133 = vadd.f32 0.0, %v2132
      %v2134 = vpop.f32.mrb[0].mxu0
      %2135 = vmatprep.mubr.bf16.mxu0 0
      %2136 = vmatmul.mubr.bf16.gmra.mrb[0].mxu0 %v1484
      %v2137 = vpop.f32.mrb[0].mxu0
      %v2138 = vadd.f32 0.0, %v2137
      %v2139 = vpop.f32.mrb[0].mxu0
      %v2140 = vpop.f32.mrb[0].mxu0
      %v2141 = vadd.f32 0.0, %v2140
      %v2142 = vpop.f32.mrb[0].mxu0
      %2143 = vmatprep.mubr.bf16.mxu0 0
      %2144 = vmatmul.mubr.bf16.gmra.mrb[0].mxu0 %v1487
      %v2145 = vpop.f32.mrb[0].mxu0
      %v2146 = vadd.f32 0.0, %v2145
      %v2147 = vpop.f32.mrb[0].mxu0
      %v2148 = vpop.f32.mrb[0].mxu0
      %v2149 = vadd.f32 0.0, %v2148
      %v2150 = vpop.f32.mrb[0].mxu0
      %2151 = vmatprep.mubr.bf16.mxu0 0
      %2152 = vmatmul.mubr.bf16.gmra.mrb[0].mxu0 %v1490
      %v2153 = vpop.f32.mrb[0].mxu0
      %v2154 = vadd.f32 0.0, %v2153
      %v2155 = vpop.f32.mrb[0].mxu0
      %v2156 = vpop.f32.mrb[0].mxu0
      %v2157 = vadd.f32 0.0, %v2156
      %v2158 = vpop.f32.mrb[0].mxu0
      %2159 = vmatprep.mubr.bf16.mxu0 0
      %2160 = vmatmul.mubr.bf16.gmra.mrb[0].mxu0 %v1493
      %v2161 = vpop.f32.mrb[0].mxu0
      %v2162 = vadd.f32 0.0, %v2161
      %v2163 = vpop.f32.mrb[0].mxu0
      %v2164 = vpop.f32.mrb[0].mxu0
      %v2165 = vadd.f32 0.0, %v2164
      %v2166 = vpop.f32.mrb[0].mxu0
      %2167 = vmatprep.mubr.bf16.mxu0 0
      %2168 = vmatmul.mubr.bf16.gmra.mrb[0].mxu0 %v1496
      %v2169 = vpop.f32.mrb[0].mxu0
      %v2170 = vadd.f32 0.0, %v2169
      %v2171 = vpop.f32.mrb[0].mxu0
      %v2172 = vpop.f32.mrb[0].mxu0
      %v2173 = vadd.f32 0.0, %v2172
      %v2174 = vpop.f32.mrb[0].mxu0
      %2175 = vmatprep.mubr.bf16.mxu0 0
      %2176 = vmatmul.mubr.bf16.gmra.mrb[0].mxu0 %v1499
      %v2177 = vpop.f32.mrb[0].mxu0
      %v2178 = vadd.f32 0.0, %v2177
      %v2179 = vpop.f32.mrb[0].mxu0
      %v2180 = vpop.f32.mrb[0].mxu0
      %v2181 = vadd.f32 0.0, %v2180
      %v2182 = vpop.f32.mrb[0].mxu0
      %2183 = vmatprep.mubr.bf16.mxu0 0
      %2184 = vmatmul.mubr.bf16.gmra.mrb[0].mxu0 %v1502
      %v2185 = vpop.f32.mrb[0].mxu0
      %v2186 = vadd.f32 0.0, %v2185
      %v2187 = vpop.f32.mrb[0].mxu0
      %v2188 = vpop.f32.mrb[0].mxu0
      %v2189 = vadd.f32 0.0, %v2188
      %v2190 = vpop.f32.mrb[0].mxu0
      %2191 = vmatprep.mubr.bf16.mxu0 0
      %2192 = vmatmul.mubr.bf16.gmra.mrb[0].mxu0 %v1505
      %v2193 = vpop.f32.mrb[0].mxu0
      %v2194 = vadd.f32 0.0, %v2193
      %v2195 = vpop.f32.mrb[0].mxu0
      %v2196 = vpop.f32.mrb[0].mxu0
      %v2197 = vadd.f32 0.0, %v2196
      %v2198 = vpop.f32.mrb[0].mxu0
      %2199 = vmatprep.mubr.bf16.mxu0 0
      %2200 = vmatmul.mubr.bf16.gmra.mrb[0].mxu0 %v1508
      %v2201 = vpop.f32.mrb[0].mxu0
      %v2202 = vadd.f32 0.0, %v2201
      %v2203 = vpop.f32.mrb[0].mxu0
      %v2204 = vpop.f32.mrb[0].mxu0
      %v2205 = vadd.f32 0.0, %v2204
      %v2206 = vpop.f32.mrb[0].mxu0
      %2207 = vmatprep.mubr.bf16.mxu0 0
      %2208 = vmatmul.mubr.bf16.gmra.mrb[0].mxu0 %v1511
      %v2209 = vpop.f32.mrb[0].mxu0
      %v2210 = vadd.f32 0.0, %v2209
      %v2211 = vpop.f32.mrb[0].mxu0
      %v2212 = vpop.f32.mrb[0].mxu0
      %v2213 = vadd.f32 0.0, %v2212
      %v2214 = vpop.f32.mrb[0].mxu0
      %2215 = vmatprep.mubr.bf16.mxu0 0
      %2216 = vmatmul.mubr.bf16.gmra.mrb[0].mxu0 %v1514
      %v2217 = vpop.f32.mrb[0].mxu0
      %v2218 = vadd.f32 0.0, %v2217
      %v2219 = vpop.f32.mrb[0].mxu0
      %v2220 = vpop.f32.mrb[0].mxu0
      %v2221 = vadd.f32 0.0, %v2220
      %v2222 = vpop.f32.mrb[0].mxu0
      %2223 = vmatprep.mubr.bf16.mxu0 0
      %2224 = vmatmul.mubr.bf16.gmra.mrb[0].mxu0 %v2066
      %v2225 = vpop.f32.mrb[0].mxu0
      %v2226 = vadd.f32 0.0, %v2225
      %v2227 = vpop.f32.mrb[0].mxu0
      %v2228 = vpop.f32.mrb[0].mxu0
      %v2229 = vadd.f32 0.0, %v2228
      %v2230 = vpop.f32.mrb[0].mxu0
      %2231 = vdwg.mxu0
      %v2232 = vadd.f32 %v2023, %v2106
      %v2233 = vadd.f32 %v2024, %v2109
      %v2234 = vadd.f32 %v2025, %v2114
      %v2235 = vadd.f32 %v2026, %v2117
      %v2236 = vadd.f32 %v2027, %v2122
      %v2237 = vadd.f32 %v2028, %v2125
      %v2238 = vadd.f32 %v2029, %v2130
      %v2239 = vadd.f32 %v2030, %v2133
      %v2240 = vadd.f32 %v2031, %v2138
      %v2241 = vadd.f32 %v2032, %v2141
      %v2242 = vadd.f32 %v2033, %v2146
      %v2243 = vadd.f32 %v2034, %v2149
      %v2244 = vadd.f32 %v2035, %v2154
      %v2245 = vadd.f32 %v2036, %v2157
      %v2246 = vadd.f32 %v2037, %v2162
      %v2247 = vadd.f32 %v2038, %v2165
      %v2248 = vadd.f32 %v2039, %v2170
      %v2249 = vadd.f32 %v2040, %v2173
      %v2250 = vadd.f32 %v2041, %v2178
      %v2251 = vadd.f32 %v2042, %v2181
      %v2252 = vadd.f32 %v2043, %v2186
      %v2253 = vadd.f32 %v2044, %v2189
      %v2254 = vadd.f32 %v2045, %v2194
      %v2255 = vadd.f32 %v2046, %v2197
      %v2256 = vadd.f32 %v2047, %v2202
      %v2257 = vadd.f32 %v2048, %v2205
      %v2258 = vadd.f32 %v2049, %v2210
      %v2259 = vadd.f32 %v2050, %v2213
      %v2260 = vadd.f32 %v2051, %v2218
      %v2261 = vadd.f32 %v2052, %v2221
      %v2262 = vadd.f32 %v2053, %v2226
      %v2263 = vadd.f32 %v2054, %v2229
      %s2264 = scalar_lea.vmem %s1, 16
      %v2265 = vld [vmem:[%s2264] sm:$0xf]
      %v2267 = vsel %vm1257, %v232, 0
      %v2270 = vsel %vm1306, %v2265, 0
      %2272 = vmatprep.subr.bf16.mxu0 0
      %2273 = vmatpush1.bf16.msra.mxu0 %v2270
      %2274 = vmatprep.subr.bf16.mxu0 0
      %2275 = vmatpush1.bf16.msra.mxu0 0
      %2276 = vmatprep.subr.bf16.mxu0 0
      %2277 = vmatpush1.bf16.msra.mxu0 0
      %2278 = vmatprep.subr.bf16.mxu0 0
      %2279 = vmatpush1.bf16.msra.mxu0 0
      %2280 = vmatprep.subr.bf16.mxu0 0
      %2281 = vmatpush1.bf16.msra.mxu0 0
      %2282 = vmatprep.subr.bf16.mxu0 0
      %2283 = vmatpush1.bf16.msra.mxu0 0
      %2284 = vmatprep.subr.bf16.mxu0 0
      %2285 = vmatpush1.bf16.msra.mxu0 0
      %2286 = vmatprep.subr.bf16.mxu0 0
      %2287 = vmatpush1.bf16.msra.mxu0 0
      %2288 = vmatprep.subr.bf16.mxu0 0
      %2289 = vmatpush1.bf16.msra.mxu0 0
      %2290 = vmatprep.subr.bf16.mxu0 0
      %2291 = vmatpush1.bf16.msra.mxu0 0
      %2292 = vmatprep.subr.bf16.mxu0 0
      %2293 = vmatpush1.bf16.msra.mxu0 0
      %2294 = vmatprep.subr.bf16.mxu0 0
      %2295 = vmatpush1.bf16.msra.mxu0 0
      %2296 = vmatprep.subr.bf16.mxu0 0
      %2297 = vmatpush1.bf16.msra.mxu0 0
      %2298 = vmatprep.subr.bf16.mxu0 0
      %2299 = vmatpush1.bf16.msra.mxu0 0
      %2300 = vmatprep.subr.bf16.mxu0 0
      %2301 = vmatpush1.bf16.msra.mxu0 0
      %2302 = vmatprep.subr.bf16.mxu0 0
      %2303 = vmatpush1.bf16.msra.mxu0 0
      %2304 = vmatprep.mubr.bf16.mxu0 0
      %2305 = vmatmul.mubr.bf16.gmra.mrb[0].mxu0 %v1262
      %v2306 = vpop.f32.mrb[0].mxu0
      %v2307 = vadd.f32 0.0, %v2306
      %v2308 = vpop.f32.mrb[0].mxu0
      %v2309 = vpop.f32.mrb[0].mxu0
      %v2310 = vadd.f32 0.0, %v2309
      %v2311 = vpop.f32.mrb[0].mxu0
      %2312 = vmatprep.mubr.bf16.mxu0 0
      %2313 = vmatmul.mubr.bf16.gmra.mrb[0].mxu0 %v1265
      %v2314 = vpop.f32.mrb[0].mxu0
      %v2315 = vadd.f32 0.0, %v2314
      %v2316 = vpop.f32.mrb[0].mxu0
      %v2317 = vpop.f32.mrb[0].mxu0
      %v2318 = vadd.f32 0.0, %v2317
      %v2319 = vpop.f32.mrb[0].mxu0
      %2320 = vmatprep.mubr.bf16.mxu0 0
      %2321 = vmatmul.mubr.bf16.gmra.mrb[0].mxu0 %v1268
      %v2322 = vpop.f32.mrb[0].mxu0
      %v2323 = vadd.f32 0.0, %v2322
      %v2324 = vpop.f32.mrb[0].mxu0
      %v2325 = vpop.f32.mrb[0].mxu0
      %v2326 = vadd.f32 0.0, %v2325
      %v2327 = vpop.f32.mrb[0].mxu0
      %2328 = vmatprep.mubr.bf16.mxu0 0
      %2329 = vmatmul.mubr.bf16.gmra.mrb[0].mxu0 %v1271
      %v2330 = vpop.f32.mrb[0].mxu0
      %v2331 = vadd.f32 0.0, %v2330
      %v2332 = vpop.f32.mrb[0].mxu0
      %v2333 = vpop.f32.mrb[0].mxu0
      %v2334 = vadd.f32 0.0, %v2333
      %v2335 = vpop.f32.mrb[0].mxu0
      %2336 = vmatprep.mubr.bf16.mxu0 0
      %2337 = vmatmul.mubr.bf16.gmra.mrb[0].mxu0 %v1274
      %v2338 = vpop.f32.mrb[0].mxu0
      %v2339 = vadd.f32 0.0, %v2338
      %v2340 = vpop.f32.mrb[0].mxu0
      %v2341 = vpop.f32.mrb[0].mxu0
      %v2342 = vadd.f32 0.0, %v2341
      %v2343 = vpop.f32.mrb[0].mxu0
      %2344 = vmatprep.mubr.bf16.mxu0 0
      %2345 = vmatmul.mubr.bf16.gmra.mrb[0].mxu0 %v1277
      %v2346 = vpop.f32.mrb[0].mxu0
      %v2347 = vadd.f32 0.0, %v2346
      %v2348 = vpop.f32.mrb[0].mxu0
      %v2349 = vpop.f32.mrb[0].mxu0
      %v2350 = vadd.f32 0.0, %v2349
      %v2351 = vpop.f32.mrb[0].mxu0
      %2352 = vmatprep.mubr.bf16.mxu0 0
      %2353 = vmatmul.mubr.bf16.gmra.mrb[0].mxu0 %v1280
      %v2354 = vpop.f32.mrb[0].mxu0
      %v2355 = vadd.f32 0.0, %v2354
      %v2356 = vpop.f32.mrb[0].mxu0
      %v2357 = vpop.f32.mrb[0].mxu0
      %v2358 = vadd.f32 0.0, %v2357
      %v2359 = vpop.f32.mrb[0].mxu0
      %2360 = vmatprep.mubr.bf16.mxu0 0
      %2361 = vmatmul.mubr.bf16.gmra.mrb[0].mxu0 %v1283
      %v2362 = vpop.f32.mrb[0].mxu0
      %v2363 = vadd.f32 0.0, %v2362
      %v2364 = vpop.f32.mrb[0].mxu0
      %v2365 = vpop.f32.mrb[0].mxu0
      %v2366 = vadd.f32 0.0, %v2365
      %v2367 = vpop.f32.mrb[0].mxu0
      %2368 = vmatprep.mubr.bf16.mxu0 0
      %2369 = vmatmul.mubr.bf16.gmra.mrb[0].mxu0 %v1286
      %v2370 = vpop.f32.mrb[0].mxu0
      %v2371 = vadd.f32 0.0, %v2370
      %v2372 = vpop.f32.mrb[0].mxu0
      %v2373 = vpop.f32.mrb[0].mxu0
      %v2374 = vadd.f32 0.0, %v2373
      %v2375 = vpop.f32.mrb[0].mxu0
      %2376 = vmatprep.mubr.bf16.mxu0 0
      %2377 = vmatmul.mubr.bf16.gmra.mrb[0].mxu0 %v1289
      %v2378 = vpop.f32.mrb[0].mxu0
      %v2379 = vadd.f32 0.0, %v2378
      %v2380 = vpop.f32.mrb[0].mxu0
      %v2381 = vpop.f32.mrb[0].mxu0
      %v2382 = vadd.f32 0.0, %v2381
      %v2383 = vpop.f32.mrb[0].mxu0
      %2384 = vmatprep.mubr.bf16.mxu0 0
      %2385 = vmatmul.mubr.bf16.gmra.mrb[0].mxu0 %v1292
      %v2386 = vpop.f32.mrb[0].mxu0
      %v2387 = vadd.f32 0.0, %v2386
      %v2388 = vpop.f32.mrb[0].mxu0
      %v2389 = vpop.f32.mrb[0].mxu0
      %v2390 = vadd.f32 0.0, %v2389
      %v2391 = vpop.f32.mrb[0].mxu0
      %2392 = vmatprep.mubr.bf16.mxu0 0
      %2393 = vmatmul.mubr.bf16.gmra.mrb[0].mxu0 %v1295
      %v2394 = vpop.f32.mrb[0].mxu0
      %v2395 = vadd.f32 0.0, %v2394
      %v2396 = vpop.f32.mrb[0].mxu0
      %v2397 = vpop.f32.mrb[0].mxu0
      %v2398 = vadd.f32 0.0, %v2397
      %v2399 = vpop.f32.mrb[0].mxu0
      %2400 = vmatprep.mubr.bf16.mxu0 0
      %2401 = vmatmul.mubr.bf16.gmra.mrb[0].mxu0 %v1298
      %v2402 = vpop.f32.mrb[0].mxu0
      %v2403 = vadd.f32 0.0, %v2402
      %v2404 = vpop.f32.mrb[0].mxu0
      %v2405 = vpop.f32.mrb[0].mxu0
      %v2406 = vadd.f32 0.0, %v2405
      %v2407 = vpop.f32.mrb[0].mxu0
      %2408 = vmatprep.mubr.bf16.mxu0 0
      %2409 = vmatmul.mubr.bf16.gmra.mrb[0].mxu0 %v1301
      %v2410 = vpop.f32.mrb[0].mxu0
      %v2411 = vadd.f32 0.0, %v2410
      %v2412 = vpop.f32.mrb[0].mxu0
      %v2413 = vpop.f32.mrb[0].mxu0
      %v2414 = vadd.f32 0.0, %v2413
      %v2415 = vpop.f32.mrb[0].mxu0
      %2416 = vmatprep.mubr.bf16.mxu0 0
      %2417 = vmatmul.mubr.bf16.gmra.mrb[0].mxu0 %v1304
      %v2418 = vpop.f32.mrb[0].mxu0
      %v2419 = vadd.f32 0.0, %v2418
      %v2420 = vpop.f32.mrb[0].mxu0
      %v2421 = vpop.f32.mrb[0].mxu0
      %v2422 = vadd.f32 0.0, %v2421
      %v2423 = vpop.f32.mrb[0].mxu0
      %2424 = vmatprep.mubr.bf16.mxu0 0
      %2425 = vmatmul.mubr.bf16.gmra.mrb[0].mxu0 %v2267
      %v2426 = vpop.f32.mrb[0].mxu0
      %v2427 = vadd.f32 0.0, %v2426
      %v2428 = vpop.f32.mrb[0].mxu0
      %v2429 = vpop.f32.mrb[0].mxu0
      %v2430 = vadd.f32 0.0, %v2429
      %v2431 = vpop.f32.mrb[0].mxu0
      %2432 = vdwg.mxu0
      %v2433 = vadd.f32 %v2232, %v2307
      %v2434 = vadd.f32 %v2233, %v2310
      %v2435 = vadd.f32 %v2234, %v2315
      %v2436 = vadd.f32 %v2235, %v2318
      %v2437 = vadd.f32 %v2236, %v2323
      %v2438 = vadd.f32 %v2237, %v2326
      %v2439 = vadd.f32 %v2238, %v2331
      %v2440 = vadd.f32 %v2239, %v2334
      %v2441 = vadd.f32 %v2240, %v2339
      %v2442 = vadd.f32 %v2241, %v2342
      %v2443 = vadd.f32 %v2242, %v2347
      %v2444 = vadd.f32 %v2243, %v2350
      %v2445 = vadd.f32 %v2244, %v2355
      %v2446 = vadd.f32 %v2245, %v2358
      %v2447 = vadd.f32 %v2246, %v2363
      %v2448 = vadd.f32 %v2247, %v2366
      %v2449 = vadd.f32 %v2248, %v2371
      %v2450 = vadd.f32 %v2249, %v2374
      %v2451 = vadd.f32 %v2250, %v2379
      %v2452 = vadd.f32 %v2251, %v2382
      %v2453 = vadd.f32 %v2252, %v2387
      %v2454 = vadd.f32 %v2253, %v2390
      %v2455 = vadd.f32 %v2254, %v2395
      %v2456 = vadd.f32 %v2255, %v2398
      %v2457 = vadd.f32 %v2256, %v2403
      %v2458 = vadd.f32 %v2257, %v2406
      %v2459 = vadd.f32 %v2258, %v2411
      %v2460 = vadd.f32 %v2259, %v2414
      %v2461 = vadd.f32 %v2260, %v2419
      %v2462 = vadd.f32 %v2261, %v2422
      %v2463 = vadd.f32 %v2262, %v2427
      %v2464 = vadd.f32 %v2263, %v2430
      %v2465 = vshrl.u32 %v1129, 16
      %v2467 = vor.u32 %v2465, %v1803
      %v2469 = vsel %vm1807, %v2467, 0
      %s2470 = scalar_lea.vmem %s1, 20
      %v2471 = vld [vmem:[%s2470] sm:$0xf]
      %v2473 = vsel %vm1257, %v2469, 0
      %v2476 = vsel %vm1306, %v2471, 0
      %2478 = vmatprep.subr.bf16.mxu0 0
      %2479 = vmatpush1.bf16.msra.mxu0 %v2476
      %2480 = vmatprep.subr.bf16.mxu0 0
      %2481 = vmatpush1.bf16.msra.mxu0 0
      %2482 = vmatprep.subr.bf16.mxu0 0
      %2483 = vmatpush1.bf16.msra.mxu0 0
      %2484 = vmatprep.subr.bf16.mxu0 0
      %2485 = vmatpush1.bf16.msra.mxu0 0
      %2486 = vmatprep.subr.bf16.mxu0 0
      %2487 = vmatpush1.bf16.msra.mxu0 0
      %2488 = vmatprep.subr.bf16.mxu0 0
      %2489 = vmatpush1.bf16.msra.mxu0 0
      %2490 = vmatprep.subr.bf16.mxu0 0
      %2491 = vmatpush1.bf16.msra.mxu0 0
      %2492 = vmatprep.subr.bf16.mxu0 0
      %2493 = vmatpush1.bf16.msra.mxu0 0
      %2494 = vmatprep.subr.bf16.mxu0 0
      %2495 = vmatpush1.bf16.msra.mxu0 0
      %2496 = vmatprep.subr.bf16.mxu0 0
      %2497 = vmatpush1.bf16.msra.mxu0 0
      %2498 = vmatprep.subr.bf16.mxu0 0
      %2499 = vmatpush1.bf16.msra.mxu0 0
      %2500 = vmatprep.subr.bf16.mxu0 0
      %2501 = vmatpush1.bf16.msra.mxu0 0
      %2502 = vmatprep.subr.bf16.mxu0 0
      %2503 = vmatpush1.bf16.msra.mxu0 0
      %2504 = vmatprep.subr.bf16.mxu0 0
      %2505 = vmatpush1.bf16.msra.mxu0 0
      %2506 = vmatprep.subr.bf16.mxu0 0
      %2507 = vmatpush1.bf16.msra.mxu0 0
      %2508 = vmatprep.subr.bf16.mxu0 0
      %2509 = vmatpush1.bf16.msra.mxu0 0
      %2510 = vmatprep.mubr.bf16.mxu0 0
      %2511 = vmatmul.mubr.bf16.gmra.mrb[0].mxu0 %v1815
      %v2512 = vpop.f32.mrb[0].mxu0
      %v2513 = vadd.f32 0.0, %v2512
      %v2514 = vpop.f32.mrb[0].mxu0
      %v2515 = vpop.f32.mrb[0].mxu0
      %v2516 = vadd.f32 0.0, %v2515
      %v2517 = vpop.f32.mrb[0].mxu0
      %2518 = vmatprep.mubr.bf16.mxu0 0
      %2519 = vmatmul.mubr.bf16.gmra.mrb[0].mxu0 %v1818
      %v2520 = vpop.f32.mrb[0].mxu0
      %v2521 = vadd.f32 0.0, %v2520
      %v2522 = vpop.f32.mrb[0].mxu0
      %v2523 = vpop.f32.mrb[0].mxu0
      %v2524 = vadd.f32 0.0, %v2523
      %v2525 = vpop.f32.mrb[0].mxu0
      %2526 = vmatprep.mubr.bf16.mxu0 0
      %2527 = vmatmul.mubr.bf16.gmra.mrb[0].mxu0 %v1821
      %v2528 = vpop.f32.mrb[0].mxu0
      %v2529 = vadd.f32 0.0, %v2528
      %v2530 = vpop.f32.mrb[0].mxu0
      %v2531 = vpop.f32.mrb[0].mxu0
      %v2532 = vadd.f32 0.0, %v2531
      %v2533 = vpop.f32.mrb[0].mxu0
      %2534 = vmatprep.mubr.bf16.mxu0 0
      %2535 = vmatmul.mubr.bf16.gmra.mrb[0].mxu0 %v1824
      %v2536 = vpop.f32.mrb[0].mxu0
      %v2537 = vadd.f32 0.0, %v2536
      %v2538 = vpop.f32.mrb[0].mxu0
      %v2539 = vpop.f32.mrb[0].mxu0
      %v2540 = vadd.f32 0.0, %v2539
      %v2541 = vpop.f32.mrb[0].mxu0
      %2542 = vmatprep.mubr.bf16.mxu0 0
      %2543 = vmatmul.mubr.bf16.gmra.mrb[0].mxu0 %v1827
      %v2544 = vpop.f32.mrb[0].mxu0
      %v2545 = vadd.f32 0.0, %v2544
      %v2546 = vpop.f32.mrb[0].mxu0
      %v2547 = vpop.f32.mrb[0].mxu0
      %v2548 = vadd.f32 0.0, %v2547
      %v2549 = vpop.f32.mrb[0].mxu0
      %2550 = vmatprep.mubr.bf16.mxu0 0
      %2551 = vmatmul.mubr.bf16.gmra.mrb[0].mxu0 %v1830
      %v2552 = vpop.f32.mrb[0].mxu0
      %v2553 = vadd.f32 0.0, %v2552
      %v2554 = vpop.f32.mrb[0].mxu0
      %v2555 = vpop.f32.mrb[0].mxu0
      %v2556 = vadd.f32 0.0, %v2555
      %v2557 = vpop.f32.mrb[0].mxu0
      %2558 = vmatprep.mubr.bf16.mxu0 0
      %2559 = vmatmul.mubr.bf16.gmra.mrb[0].mxu0 %v1833
      %v2560 = vpop.f32.mrb[0].mxu0
      %v2561 = vadd.f32 0.0, %v2560
      %v2562 = vpop.f32.mrb[0].mxu0
      %v2563 = vpop.f32.mrb[0].mxu0
      %v2564 = vadd.f32 0.0, %v2563
      %v2565 = vpop.f32.mrb[0].mxu0
      %2566 = vmatprep.mubr.bf16.mxu0 0
      %2567 = vmatmul.mubr.bf16.gmra.mrb[0].mxu0 %v1836
      %v2568 = vpop.f32.mrb[0].mxu0
      %v2569 = vadd.f32 0.0, %v2568
      %v2570 = vpop.f32.mrb[0].mxu0
      %v2571 = vpop.f32.mrb[0].mxu0
      %v2572 = vadd.f32 0.0, %v2571
      %v2573 = vpop.f32.mrb[0].mxu0
      %2574 = vmatprep.mubr.bf16.mxu0 0
      %2575 = vmatmul.mubr.bf16.gmra.mrb[0].mxu0 %v1839
      %v2576 = vpop.f32.mrb[0].mxu0
      %v2577 = vadd.f32 0.0, %v2576
      %v2578 = vpop.f32.mrb[0].mxu0
      %v2579 = vpop.f32.mrb[0].mxu0
      %v2580 = vadd.f32 0.0, %v2579
      %v2581 = vpop.f32.mrb[0].mxu0
      %2582 = vmatprep.mubr.bf16.mxu0 0
      %2583 = vmatmul.mubr.bf16.gmra.mrb[0].mxu0 %v1842
      %v2584 = vpop.f32.mrb[0].mxu0
      %v2585 = vadd.f32 0.0, %v2584
      %v2586 = vpop.f32.mrb[0].mxu0
      %v2587 = vpop.f32.mrb[0].mxu0
      %v2588 = vadd.f32 0.0, %v2587
      %v2589 = vpop.f32.mrb[0].mxu0
      %2590 = vmatprep.mubr.bf16.mxu0 0
      %2591 = vmatmul.mubr.bf16.gmra.mrb[0].mxu0 %v1845
      %v2592 = vpop.f32.mrb[0].mxu0
      %v2593 = vadd.f32 0.0, %v2592
      %v2594 = vpop.f32.mrb[0].mxu0
      %v2595 = vpop.f32.mrb[0].mxu0
      %v2596 = vadd.f32 0.0, %v2595
      %v2597 = vpop.f32.mrb[0].mxu0
      %2598 = vmatprep.mubr.bf16.mxu0 0
      %2599 = vmatmul.mubr.bf16.gmra.mrb[0].mxu0 %v1848
      %v2600 = vpop.f32.mrb[0].mxu0
      %v2601 = vadd.f32 0.0, %v2600
      %v2602 = vpop.f32.mrb[0].mxu0
      %v2603 = vpop.f32.mrb[0].mxu0
      %v2604 = vadd.f32 0.0, %v2603
      %v2605 = vpop.f32.mrb[0].mxu0
      %2606 = vmatprep.mubr.bf16.mxu0 0
      %2607 = vmatmul.mubr.bf16.gmra.mrb[0].mxu0 %v1851
      %v2608 = vpop.f32.mrb[0].mxu0
      %v2609 = vadd.f32 0.0, %v2608
      %v2610 = vpop.f32.mrb[0].mxu0
      %v2611 = vpop.f32.mrb[0].mxu0
      %v2612 = vadd.f32 0.0, %v2611
      %v2613 = vpop.f32.mrb[0].mxu0
      %2614 = vmatprep.mubr.bf16.mxu0 0
      %2615 = vmatmul.mubr.bf16.gmra.mrb[0].mxu0 %v1854
      %v2616 = vpop.f32.mrb[0].mxu0
      %v2617 = vadd.f32 0.0, %v2616
      %v2618 = vpop.f32.mrb[0].mxu0
      %v2619 = vpop.f32.mrb[0].mxu0
      %v2620 = vadd.f32 0.0, %v2619
      %v2621 = vpop.f32.mrb[0].mxu0
      %2622 = vmatprep.mubr.bf16.mxu0 0
      %2623 = vmatmul.mubr.bf16.gmra.mrb[0].mxu0 %v1857
      %v2624 = vpop.f32.mrb[0].mxu0
      %v2625 = vadd.f32 0.0, %v2624
      %v2626 = vpop.f32.mrb[0].mxu0
      %v2627 = vpop.f32.mrb[0].mxu0
      %v2628 = vadd.f32 0.0, %v2627
      %v2629 = vpop.f32.mrb[0].mxu0
      %2630 = vmatprep.mubr.bf16.mxu0 0
      %2631 = vmatmul.mubr.bf16.gmra.mrb[0].mxu0 %v2473
      %v2632 = vpop.f32.mrb[0].mxu0
      %v2633 = vadd.f32 0.0, %v2632
      %v2634 = vpop.f32.mrb[0].mxu0
      %v2635 = vpop.f32.mrb[0].mxu0
      %v2636 = vadd.f32 0.0, %v2635
      %v2637 = vpop.f32.mrb[0].mxu0
      %2638 = vdwg.mxu0
      %v2639 = vadd.f32 %v2433, %v2513
      %v2640 = vadd.f32 %v2434, %v2516
      %v2641 = vadd.f32 %v2435, %v2521
      %v2642 = vadd.f32 %v2436, %v2524
      %v2643 = vadd.f32 %v2437, %v2529
      %v2644 = vadd.f32 %v2438, %v2532
      %v2645 = vadd.f32 %v2439, %v2537
      %v2646 = vadd.f32 %v2440, %v2540
      %v2647 = vadd.f32 %v2441, %v2545
      %v2648 = vadd.f32 %v2442, %v2548
      %v2649 = vadd.f32 %v2443, %v2553
      %v2650 = vadd.f32 %v2444, %v2556
      %v2651 = vadd.f32 %v2445, %v2561
      %v2652 = vadd.f32 %v2446, %v2564
      %v2653 = vadd.f32 %v2447, %v2569
      %v2654 = vadd.f32 %v2448, %v2572
      %v2655 = vadd.f32 %v2449, %v2577
      %v2656 = vadd.f32 %v2450, %v2580
      %v2657 = vadd.f32 %v2451, %v2585
      %v2658 = vadd.f32 %v2452, %v2588
      %v2659 = vadd.f32 %v2453, %v2593
      %v2660 = vadd.f32 %v2454, %v2596
      %v2661 = vadd.f32 %v2455, %v2601
      %v2662 = vadd.f32 %v2456, %v2604
      %v2663 = vadd.f32 %v2457, %v2609
      %v2664 = vadd.f32 %v2458, %v2612
      %v2665 = vadd.f32 %v2459, %v2617
      %v2666 = vadd.f32 %v2460, %v2620
      %v2667 = vadd.f32 %v2461, %v2625
      %v2668 = vadd.f32 %v2462, %v2628
      %v2669 = vadd.f32 %v2463, %v2633
      %v2670 = vadd.f32 %v2464, %v2636
      %v2672 = vsel %vm1252, %v2058, 0
      %s2673 = scalar_lea.vmem %s1, 24
      %v2674 = vld [vmem:[%s2673] sm:$0xf]
      %v2676 = vsel %vm1257, %v2672, 0
      %v2679 = vsel %vm1306, %v2674, 0
      %2681 = vmatprep.subr.bf16.mxu0 0
      %2682 = vmatpush1.bf16.msra.mxu0 %v2679
      %2683 = vmatprep.subr.bf16.mxu0 0
      %2684 = vmatpush1.bf16.msra.mxu0 0
      %2685 = vmatprep.subr.bf16.mxu0 0
      %2686 = vmatpush1.bf16.msra.mxu0 0
      %2687 = vmatprep.subr.bf16.mxu0 0
      %2688 = vmatpush1.bf16.msra.mxu0 0
      %2689 = vmatprep.subr.bf16.mxu0 0
      %2690 = vmatpush1.bf16.msra.mxu0 0
      %2691 = vmatprep.subr.bf16.mxu0 0
      %2692 = vmatpush1.bf16.msra.mxu0 0
      %2693 = vmatprep.subr.bf16.mxu0 0
      %2694 = vmatpush1.bf16.msra.mxu0 0
      %2695 = vmatprep.subr.bf16.mxu0 0
      %2696 = vmatpush1.bf16.msra.mxu0 0
      %2697 = vmatprep.subr.bf16.mxu0 0
      %2698 = vmatpush1.bf16.msra.mxu0 0
      %2699 = vmatprep.subr.bf16.mxu0 0
      %2700 = vmatpush1.bf16.msra.mxu0 0
      %2701 = vmatprep.subr.bf16.mxu0 0
      %2702 = vmatpush1.bf16.msra.mxu0 0
      %2703 = vmatprep.subr.bf16.mxu0 0
      %2704 = vmatpush1.bf16.msra.mxu0 0
      %2705 = vmatprep.subr.bf16.mxu0 0
      %2706 = vmatpush1.bf16.msra.mxu0 0
      %2707 = vmatprep.subr.bf16.mxu0 0
      %2708 = vmatpush1.bf16.msra.mxu0 0
      %2709 = vmatprep.subr.bf16.mxu0 0
      %2710 = vmatpush1.bf16.msra.mxu0 0
      %2711 = vmatprep.subr.bf16.mxu0 0
      %2712 = vmatpush1.bf16.msra.mxu0 0
      %2713 = vmatprep.mubr.bf16.mxu0 0
      %2714 = vmatmul.mubr.bf16.gmra.mrb[0].mxu0 %v1475
      %v2715 = vpop.f32.mrb[0].mxu0
      %v2716 = vadd.f32 0.0, %v2715
      %v2717 = vpop.f32.mrb[0].mxu0
      %v2718 = vpop.f32.mrb[0].mxu0
      %v2719 = vadd.f32 0.0, %v2718
      %v2720 = vpop.f32.mrb[0].mxu0
      %2721 = vmatprep.mubr.bf16.mxu0 0
      %2722 = vmatmul.mubr.bf16.gmra.mrb[0].mxu0 %v1478
      %v2723 = vpop.f32.mrb[0].mxu0
      %v2724 = vadd.f32 0.0, %v2723
      %v2725 = vpop.f32.mrb[0].mxu0
      %v2726 = vpop.f32.mrb[0].mxu0
      %v2727 = vadd.f32 0.0, %v2726
      %v2728 = vpop.f32.mrb[0].mxu0
      %2729 = vmatprep.mubr.bf16.mxu0 0
      %2730 = vmatmul.mubr.bf16.gmra.mrb[0].mxu0 %v1481
      %v2731 = vpop.f32.mrb[0].mxu0
      %v2732 = vadd.f32 0.0, %v2731
      %v2733 = vpop.f32.mrb[0].mxu0
      %v2734 = vpop.f32.mrb[0].mxu0
      %v2735 = vadd.f32 0.0, %v2734
      %v2736 = vpop.f32.mrb[0].mxu0
      %2737 = vmatprep.mubr.bf16.mxu0 0
      %2738 = vmatmul.mubr.bf16.gmra.mrb[0].mxu0 %v1484
      %v2739 = vpop.f32.mrb[0].mxu0
      %v2740 = vadd.f32 0.0, %v2739
      %v2741 = vpop.f32.mrb[0].mxu0
      %v2742 = vpop.f32.mrb[0].mxu0
      %v2743 = vadd.f32 0.0, %v2742
      %v2744 = vpop.f32.mrb[0].mxu0
      %2745 = vmatprep.mubr.bf16.mxu0 0
      %2746 = vmatmul.mubr.bf16.gmra.mrb[0].mxu0 %v1487
      %v2747 = vpop.f32.mrb[0].mxu0
      %v2748 = vadd.f32 0.0, %v2747
      %v2749 = vpop.f32.mrb[0].mxu0
      %v2750 = vpop.f32.mrb[0].mxu0
      %v2751 = vadd.f32 0.0, %v2750
      %v2752 = vpop.f32.mrb[0].mxu0
      %2753 = vmatprep.mubr.bf16.mxu0 0
      %2754 = vmatmul.mubr.bf16.gmra.mrb[0].mxu0 %v1490
      %v2755 = vpop.f32.mrb[0].mxu0
      %v2756 = vadd.f32 0.0, %v2755
      %v2757 = vpop.f32.mrb[0].mxu0
      %v2758 = vpop.f32.mrb[0].mxu0
      %v2759 = vadd.f32 0.0, %v2758
      %v2760 = vpop.f32.mrb[0].mxu0
      %2761 = vmatprep.mubr.bf16.mxu0 0
      %2762 = vmatmul.mubr.bf16.gmra.mrb[0].mxu0 %v1493
      %v2763 = vpop.f32.mrb[0].mxu0
      %v2764 = vadd.f32 0.0, %v2763
      %v2765 = vpop.f32.mrb[0].mxu0
      %v2766 = vpop.f32.mrb[0].mxu0
      %v2767 = vadd.f32 0.0, %v2766
      %v2768 = vpop.f32.mrb[0].mxu0
      %2769 = vmatprep.mubr.bf16.mxu0 0
      %2770 = vmatmul.mubr.bf16.gmra.mrb[0].mxu0 %v1496
      %v2771 = vpop.f32.mrb[0].mxu0
      %v2772 = vadd.f32 0.0, %v2771
      %v2773 = vpop.f32.mrb[0].mxu0
      %v2774 = vpop.f32.mrb[0].mxu0
      %v2775 = vadd.f32 0.0, %v2774
      %v2776 = vpop.f32.mrb[0].mxu0
      %2777 = vmatprep.mubr.bf16.mxu0 0
      %2778 = vmatmul.mubr.bf16.gmra.mrb[0].mxu0 %v1499
      %v2779 = vpop.f32.mrb[0].mxu0
      %v2780 = vadd.f32 0.0, %v2779
      %v2781 = vpop.f32.mrb[0].mxu0
      %v2782 = vpop.f32.mrb[0].mxu0
      %v2783 = vadd.f32 0.0, %v2782
      %v2784 = vpop.f32.mrb[0].mxu0
      %2785 = vmatprep.mubr.bf16.mxu0 0
      %2786 = vmatmul.mubr.bf16.gmra.mrb[0].mxu0 %v1502
      %v2787 = vpop.f32.mrb[0].mxu0
      %v2788 = vadd.f32 0.0, %v2787
      %v2789 = vpop.f32.mrb[0].mxu0
      %v2790 = vpop.f32.mrb[0].mxu0
      %v2791 = vadd.f32 0.0, %v2790
      %v2792 = vpop.f32.mrb[0].mxu0
      %2793 = vmatprep.mubr.bf16.mxu0 0
      %2794 = vmatmul.mubr.bf16.gmra.mrb[0].mxu0 %v1505
      %v2795 = vpop.f32.mrb[0].mxu0
      %v2796 = vadd.f32 0.0, %v2795
      %v2797 = vpop.f32.mrb[0].mxu0
      %v2798 = vpop.f32.mrb[0].mxu0
      %v2799 = vadd.f32 0.0, %v2798
      %v2800 = vpop.f32.mrb[0].mxu0
      %2801 = vmatprep.mubr.bf16.mxu0 0
      %2802 = vmatmul.mubr.bf16.gmra.mrb[0].mxu0 %v1508
      %v2803 = vpop.f32.mrb[0].mxu0
      %v2804 = vadd.f32 0.0, %v2803
      %v2805 = vpop.f32.mrb[0].mxu0
      %v2806 = vpop.f32.mrb[0].mxu0
      %v2807 = vadd.f32 0.0, %v2806
      %v2808 = vpop.f32.mrb[0].mxu0
      %2809 = vmatprep.mubr.bf16.mxu0 0
      %2810 = vmatmul.mubr.bf16.gmra.mrb[0].mxu0 %v1511
      %v2811 = vpop.f32.mrb[0].mxu0
      %v2812 = vadd.f32 0.0, %v2811
      %v2813 = vpop.f32.mrb[0].mxu0
      %v2814 = vpop.f32.mrb[0].mxu0
      %v2815 = vadd.f32 0.0, %v2814
      %v2816 = vpop.f32.mrb[0].mxu0
      %2817 = vmatprep.mubr.bf16.mxu0 0
      %2818 = vmatmul.mubr.bf16.gmra.mrb[0].mxu0 %v1514
      %v2819 = vpop.f32.mrb[0].mxu0
      %v2820 = vadd.f32 0.0, %v2819
      %v2821 = vpop.f32.mrb[0].mxu0
      %v2822 = vpop.f32.mrb[0].mxu0
      %v2823 = vadd.f32 0.0, %v2822
      %v2824 = vpop.f32.mrb[0].mxu0
      %2825 = vmatprep.mubr.bf16.mxu0 0
      %2826 = vmatmul.mubr.bf16.gmra.mrb[0].mxu0 %v2066
      %v2827 = vpop.f32.mrb[0].mxu0
      %v2828 = vadd.f32 0.0, %v2827
      %v2829 = vpop.f32.mrb[0].mxu0
      %v2830 = vpop.f32.mrb[0].mxu0
      %v2831 = vadd.f32 0.0, %v2830
      %v2832 = vpop.f32.mrb[0].mxu0
      %2833 = vmatprep.mubr.bf16.mxu0 0
      %2834 = vmatmul.mubr.bf16.gmra.mrb[0].mxu0 %v2676
      %v2835 = vpop.f32.mrb[0].mxu0
      %v2836 = vadd.f32 0.0, %v2835
      %v2837 = vpop.f32.mrb[0].mxu0
      %v2838 = vpop.f32.mrb[0].mxu0
      %v2839 = vadd.f32 0.0, %v2838
      %v2840 = vpop.f32.mrb[0].mxu0
      %2841 = vdwg.mxu0
      %v2842 = vadd.f32 %v2639, %v2716
      %v2843 = vadd.f32 %v2640, %v2719
      %v2844 = vadd.f32 %v2641, %v2724
      %v2845 = vadd.f32 %v2642, %v2727
      %v2846 = vadd.f32 %v2643, %v2732
      %v2847 = vadd.f32 %v2644, %v2735
      %v2848 = vadd.f32 %v2645, %v2740
      %v2849 = vadd.f32 %v2646, %v2743
      %v2850 = vadd.f32 %v2647, %v2748
      %v2851 = vadd.f32 %v2648, %v2751
      %v2852 = vadd.f32 %v2649, %v2756
      %v2853 = vadd.f32 %v2650, %v2759
      %v2854 = vadd.f32 %v2651, %v2764
      %v2855 = vadd.f32 %v2652, %v2767
      %v2856 = vadd.f32 %v2653, %v2772
      %v2857 = vadd.f32 %v2654, %v2775
      %v2858 = vadd.f32 %v2655, %v2780
      %v2859 = vadd.f32 %v2656, %v2783
      %v2860 = vadd.f32 %v2657, %v2788
      %v2861 = vadd.f32 %v2658, %v2791
      %v2862 = vadd.f32 %v2659, %v2796
      %v2863 = vadd.f32 %v2660, %v2799
      %v2864 = vadd.f32 %v2661, %v2804
      %v2865 = vadd.f32 %v2662, %v2807
      %v2866 = vadd.f32 %v2663, %v2812
      %v2867 = vadd.f32 %v2664, %v2815
      %v2868 = vadd.f32 %v2665, %v2820
      %v2869 = vadd.f32 %v2666, %v2823
      %v2870 = vadd.f32 %v2667, %v2828
      %v2871 = vadd.f32 %v2668, %v2831
      %v2872 = vadd.f32 %v2669, %v2836
      %v2873 = vadd.f32 %v2670, %v2839
      %s2874 = scalar_lea.vmem %s1, 28
      %v2875 = vld [vmem:[%s2874] sm:$0xf]
      %v2877 = vsel %vm1306, %v2875, 0
      %2879 = vmatprep.subr.bf16.mxu0 0
      %2880 = vmatpush1.bf16.msra.mxu0 %v2877
      %2881 = vmatprep.subr.bf16.mxu0 0
      %2882 = vmatpush1.bf16.msra.mxu0 0
      %2883 = vmatprep.subr.bf16.mxu0 0
      %2884 = vmatpush1.bf16.msra.mxu0 0
      %2885 = vmatprep.subr.bf16.mxu0 0
      %2886 = vmatpush1.bf16.msra.mxu0 0
      %2887 = vmatprep.subr.bf16.mxu0 0
      %2888 = vmatpush1.bf16.msra.mxu0 0
      %2889 = vmatprep.subr.bf16.mxu0 0
      %2890 = vmatpush1.bf16.msra.mxu0 0
      %2891 = vmatprep.subr.bf16.mxu0 0
      %2892 = vmatpush1.bf16.msra.mxu0 0
      %2893 = vmatprep.subr.bf16.mxu0 0
      %2894 = vmatpush1.bf16.msra.mxu0 0
      %2895 = vmatprep.subr.bf16.mxu0 0
      %2896 = vmatpush1.bf16.msra.mxu0 0
      %2897 = vmatprep.subr.bf16.mxu0 0
      %2898 = vmatpush1.bf16.msra.mxu0 0
      %2899 = vmatprep.subr.bf16.mxu0 0
      %2900 = vmatpush1.bf16.msra.mxu0 0
      %2901 = vmatprep.subr.bf16.mxu0 0
      %2902 = vmatpush1.bf16.msra.mxu0 0
      %2903 = vmatprep.subr.bf16.mxu0 0
      %2904 = vmatpush1.bf16.msra.mxu0 0
      %2905 = vmatprep.subr.bf16.mxu0 0
      %2906 = vmatpush1.bf16.msra.mxu0 0
      %2907 = vmatprep.subr.bf16.mxu0 0
      %2908 = vmatpush1.bf16.msra.mxu0 0
      %2909 = vmatprep.subr.bf16.mxu0 0
      %2910 = vmatpush1.bf16.msra.mxu0 0
      %2911 = vmatprep.mubr.bf16.mxu0 0
      %2912 = vmatmul.mubr.bf16.gmra.mrb[0].mxu0 %v1265
      %v2913 = vpop.f32.mrb[0].mxu0
      %v2914 = vadd.f32 0.0, %v2913
      %v2915 = vpop.f32.mrb[0].mxu0
      %v2916 = vpop.f32.mrb[0].mxu0
      %v2917 = vadd.f32 0.0, %v2916
      %v2918 = vpop.f32.mrb[0].mxu0
      %2919 = vmatprep.mubr.bf16.mxu0 0
      %2920 = vmatmul.mubr.bf16.gmra.mrb[0].mxu0 %v1268
      %v2921 = vpop.f32.mrb[0].mxu0
      %v2922 = vadd.f32 0.0, %v2921
      %v2923 = vpop.f32.mrb[0].mxu0
      %v2924 = vpop.f32.mrb[0].mxu0
      %v2925 = vadd.f32 0.0, %v2924
      %v2926 = vpop.f32.mrb[0].mxu0
      %2927 = vmatprep.mubr.bf16.mxu0 0
      %2928 = vmatmul.mubr.bf16.gmra.mrb[0].mxu0 %v1271
      %v2929 = vpop.f32.mrb[0].mxu0
      %v2930 = vadd.f32 0.0, %v2929
      %v2931 = vpop.f32.mrb[0].mxu0
      %v2932 = vpop.f32.mrb[0].mxu0
      %v2933 = vadd.f32 0.0, %v2932
      %v2934 = vpop.f32.mrb[0].mxu0
      %2935 = vmatprep.mubr.bf16.mxu0 0
      %2936 = vmatmul.mubr.bf16.gmra.mrb[0].mxu0 %v1274
      %v2937 = vpop.f32.mrb[0].mxu0
      %v2938 = vadd.f32 0.0, %v2937
      %v2939 = vpop.f32.mrb[0].mxu0
      %v2940 = vpop.f32.mrb[0].mxu0
      %v2941 = vadd.f32 0.0, %v2940
      %v2942 = vpop.f32.mrb[0].mxu0
      %2943 = vmatprep.mubr.bf16.mxu0 0
      %2944 = vmatmul.mubr.bf16.gmra.mrb[0].mxu0 %v1277
      %v2945 = vpop.f32.mrb[0].mxu0
      %v2946 = vadd.f32 0.0, %v2945
      %v2947 = vpop.f32.mrb[0].mxu0
      %v2948 = vpop.f32.mrb[0].mxu0
      %v2949 = vadd.f32 0.0, %v2948
      %v2950 = vpop.f32.mrb[0].mxu0
      %2951 = vmatprep.mubr.bf16.mxu0 0
      %2952 = vmatmul.mubr.bf16.gmra.mrb[0].mxu0 %v1280
      %v2953 = vpop.f32.mrb[0].mxu0
      %v2954 = vadd.f32 0.0, %v2953
      %v2955 = vpop.f32.mrb[0].mxu0
      %v2956 = vpop.f32.mrb[0].mxu0
      %v2957 = vadd.f32 0.0, %v2956
      %v2958 = vpop.f32.mrb[0].mxu0
      %2959 = vmatprep.mubr.bf16.mxu0 0
      %2960 = vmatmul.mubr.bf16.gmra.mrb[0].mxu0 %v1283
      %v2961 = vpop.f32.mrb[0].mxu0
      %v2962 = vadd.f32 0.0, %v2961
      %v2963 = vpop.f32.mrb[0].mxu0
      %v2964 = vpop.f32.mrb[0].mxu0
      %v2965 = vadd.f32 0.0, %v2964
      %v2966 = vpop.f32.mrb[0].mxu0
      %2967 = vmatprep.mubr.bf16.mxu0 0
      %2968 = vmatmul.mubr.bf16.gmra.mrb[0].mxu0 %v1286
      %v2969 = vpop.f32.mrb[0].mxu0
      %v2970 = vadd.f32 0.0, %v2969
      %v2971 = vpop.f32.mrb[0].mxu0
      %v2972 = vpop.f32.mrb[0].mxu0
      %v2973 = vadd.f32 0.0, %v2972
      %v2974 = vpop.f32.mrb[0].mxu0
      %2975 = vmatprep.mubr.bf16.mxu0 0
      %2976 = vmatmul.mubr.bf16.gmra.mrb[0].mxu0 %v1289
      %v2977 = vpop.f32.mrb[0].mxu0
      %v2978 = vadd.f32 0.0, %v2977
      %v2979 = vpop.f32.mrb[0].mxu0
      %v2980 = vpop.f32.mrb[0].mxu0
      %v2981 = vadd.f32 0.0, %v2980
      %v2982 = vpop.f32.mrb[0].mxu0
      %2983 = vmatprep.mubr.bf16.mxu0 0
      %2984 = vmatmul.mubr.bf16.gmra.mrb[0].mxu0 %v1292
      %v2985 = vpop.f32.mrb[0].mxu0
      %v2986 = vadd.f32 0.0, %v2985
      %v2987 = vpop.f32.mrb[0].mxu0
      %v2988 = vpop.f32.mrb[0].mxu0
      %v2989 = vadd.f32 0.0, %v2988
      %v2990 = vpop.f32.mrb[0].mxu0
      %2991 = vmatprep.mubr.bf16.mxu0 0
      %2992 = vmatmul.mubr.bf16.gmra.mrb[0].mxu0 %v1295
      %v2993 = vpop.f32.mrb[0].mxu0
      %v2994 = vadd.f32 0.0, %v2993
      %v2995 = vpop.f32.mrb[0].mxu0
      %v2996 = vpop.f32.mrb[0].mxu0
      %v2997 = vadd.f32 0.0, %v2996
      %v2998 = vpop.f32.mrb[0].mxu0
      %2999 = vmatprep.mubr.bf16.mxu0 0
      %3000 = vmatmul.mubr.bf16.gmra.mrb[0].mxu0 %v1298
      %v3001 = vpop.f32.mrb[0].mxu0
      %v3002 = vadd.f32 0.0, %v3001
      %v3003 = vpop.f32.mrb[0].mxu0
      %v3004 = vpop.f32.mrb[0].mxu0
      %v3005 = vadd.f32 0.0, %v3004
      %v3006 = vpop.f32.mrb[0].mxu0
      %3007 = vmatprep.mubr.bf16.mxu0 0
      %3008 = vmatmul.mubr.bf16.gmra.mrb[0].mxu0 %v1301
      %v3009 = vpop.f32.mrb[0].mxu0
      %v3010 = vadd.f32 0.0, %v3009
      %v3011 = vpop.f32.mrb[0].mxu0
      %v3012 = vpop.f32.mrb[0].mxu0
      %v3013 = vadd.f32 0.0, %v3012
      %v3014 = vpop.f32.mrb[0].mxu0
      %3015 = vmatprep.mubr.bf16.mxu0 0
      %3016 = vmatmul.mubr.bf16.gmra.mrb[0].mxu0 %v1304
      %v3017 = vpop.f32.mrb[0].mxu0
      %v3018 = vadd.f32 0.0, %v3017
      %v3019 = vpop.f32.mrb[0].mxu0
      %v3020 = vpop.f32.mrb[0].mxu0
      %v3021 = vadd.f32 0.0, %v3020
      %v3022 = vpop.f32.mrb[0].mxu0
      %3023 = vmatprep.mubr.bf16.mxu0 0
      %3024 = vmatmul.mubr.bf16.gmra.mrb[0].mxu0 %v2267
      %v3025 = vpop.f32.mrb[0].mxu0
      %v3026 = vadd.f32 0.0, %v3025
      %v3027 = vpop.f32.mrb[0].mxu0
      %v3028 = vpop.f32.mrb[0].mxu0
      %v3029 = vadd.f32 0.0, %v3028
      %v3030 = vpop.f32.mrb[0].mxu0
      %3031 = vmatprep.mubr.bf16.mxu0 0
      %3032 = vmatmul.mubr.bf16.gmra.mrb[0].mxu0 %v1259
      %v3033 = vpop.f32.mrb[0].mxu0
      %v3034 = vadd.f32 0.0, %v3033
      %v3035 = vpop.f32.mrb[0].mxu0
      %v3036 = vpop.f32.mrb[0].mxu0
      %v3037 = vadd.f32 0.0, %v3036
      %v3038 = vpop.f32.mrb[0].mxu0
      %3039 = vdwg.mxu0
      %v3040 = vadd.f32 %v2842, %v2914
      %v3041 = vadd.f32 %v2843, %v2917
      %v3042 = vadd.f32 %v2844, %v2922
      %v3043 = vadd.f32 %v2845, %v2925
      %v3044 = vadd.f32 %v2846, %v2930
      %v3045 = vadd.f32 %v2847, %v2933
      %v3046 = vadd.f32 %v2848, %v2938
      %v3047 = vadd.f32 %v2849, %v2941
      %v3048 = vadd.f32 %v2850, %v2946
      %v3049 = vadd.f32 %v2851, %v2949
      %v3050 = vadd.f32 %v2852, %v2954
      %v3051 = vadd.f32 %v2853, %v2957
      %v3052 = vadd.f32 %v2854, %v2962
      %v3053 = vadd.f32 %v2855, %v2965
      %v3054 = vadd.f32 %v2856, %v2970
      %v3055 = vadd.f32 %v2857, %v2973
      %v3056 = vadd.f32 %v2858, %v2978
      %v3057 = vadd.f32 %v2859, %v2981
      %v3058 = vadd.f32 %v2860, %v2986
      %v3059 = vadd.f32 %v2861, %v2989
      %v3060 = vadd.f32 %v2862, %v2994
      %v3061 = vadd.f32 %v2863, %v2997
      %v3062 = vadd.f32 %v2864, %v3002
      %v3063 = vadd.f32 %v2865, %v3005
      %v3064 = vadd.f32 %v2866, %v3010
      %v3065 = vadd.f32 %v2867, %v3013
      %v3066 = vadd.f32 %v2868, %v3018
      %v3067 = vadd.f32 %v2869, %v3021
      %v3068 = vadd.f32 %v2870, %v3026
      %v3069 = vadd.f32 %v2871, %v3029
      %v3070 = vadd.f32 %v2872, %v3034
      %v3071 = vadd.f32 %v2873, %v3037
      %s3072 = scalar_lea.vmem %s1, 32
      %v3073 = vld [vmem:[%s3072] sm:$0xf]
      %v3075 = vsel %vm1306, %v3073, 0
      %3077 = vmatprep.subr.bf16.mxu0 0
      %3078 = vmatpush1.bf16.msra.mxu0 %v3075
      %3079 = vmatprep.subr.bf16.mxu0 0
      %3080 = vmatpush1.bf16.msra.mxu0 0
      %3081 = vmatprep.subr.bf16.mxu0 0
      %3082 = vmatpush1.bf16.msra.mxu0 0
      %3083 = vmatprep.subr.bf16.mxu0 0
      %3084 = vmatpush1.bf16.msra.mxu0 0
      %3085 = vmatprep.subr.bf16.mxu0 0
      %3086 = vmatpush1.bf16.msra.mxu0 0
      %3087 = vmatprep.subr.bf16.mxu0 0
      %3088 = vmatpush1.bf16.msra.mxu0 0
      %3089 = vmatprep.subr.bf16.mxu0 0
      %3090 = vmatpush1.bf16.msra.mxu0 0
      %3091 = vmatprep.subr.bf16.mxu0 0
      %3092 = vmatpush1.bf16.msra.mxu0 0
      %3093 = vmatprep.subr.bf16.mxu0 0
      %3094 = vmatpush1.bf16.msra.mxu0 0
      %3095 = vmatprep.subr.bf16.mxu0 0
      %3096 = vmatpush1.bf16.msra.mxu0 0
      %3097 = vmatprep.subr.bf16.mxu0 0
      %3098 = vmatpush1.bf16.msra.mxu0 0
      %3099 = vmatprep.subr.bf16.mxu0 0
      %3100 = vmatpush1.bf16.msra.mxu0 0
      %3101 = vmatprep.subr.bf16.mxu0 0
      %3102 = vmatpush1.bf16.msra.mxu0 0
      %3103 = vmatprep.subr.bf16.mxu0 0
      %3104 = vmatpush1.bf16.msra.mxu0 0
      %3105 = vmatprep.subr.bf16.mxu0 0
      %3106 = vmatpush1.bf16.msra.mxu0 0
      %3107 = vmatprep.subr.bf16.mxu0 0
      %3108 = vmatpush1.bf16.msra.mxu0 0
      %3109 = vmatprep.mubr.bf16.mxu0 0
      %3110 = vmatmul.mubr.bf16.gmra.mrb[0].mxu0 %v1818
      %v3111 = vpop.f32.mrb[0].mxu0
      %v3112 = vadd.f32 0.0, %v3111
      %v3113 = vpop.f32.mrb[0].mxu0
      %v3114 = vpop.f32.mrb[0].mxu0
      %v3115 = vadd.f32 0.0, %v3114
      %v3116 = vpop.f32.mrb[0].mxu0
      %3117 = vmatprep.mubr.bf16.mxu0 0
      %3118 = vmatmul.mubr.bf16.gmra.mrb[0].mxu0 %v1821
      %v3119 = vpop.f32.mrb[0].mxu0
      %v3120 = vadd.f32 0.0, %v3119
      %v3121 = vpop.f32.mrb[0].mxu0
      %v3122 = vpop.f32.mrb[0].mxu0
      %v3123 = vadd.f32 0.0, %v3122
      %v3124 = vpop.f32.mrb[0].mxu0
      %3125 = vmatprep.mubr.bf16.mxu0 0
      %3126 = vmatmul.mubr.bf16.gmra.mrb[0].mxu0 %v1824
      %v3127 = vpop.f32.mrb[0].mxu0
      %v3128 = vadd.f32 0.0, %v3127
      %v3129 = vpop.f32.mrb[0].mxu0
      %v3130 = vpop.f32.mrb[0].mxu0
      %v3131 = vadd.f32 0.0, %v3130
      %v3132 = vpop.f32.mrb[0].mxu0
      %3133 = vmatprep.mubr.bf16.mxu0 0
      %3134 = vmatmul.mubr.bf16.gmra.mrb[0].mxu0 %v1827
      %v3135 = vpop.f32.mrb[0].mxu0
      %v3136 = vadd.f32 0.0, %v3135
      %v3137 = vpop.f32.mrb[0].mxu0
      %v3138 = vpop.f32.mrb[0].mxu0
      %v3139 = vadd.f32 0.0, %v3138
      %v3140 = vpop.f32.mrb[0].mxu0
      %3141 = vmatprep.mubr.bf16.mxu0 0
      %3142 = vmatmul.mubr.bf16.gmra.mrb[0].mxu0 %v1830
      %v3143 = vpop.f32.mrb[0].mxu0
      %v3144 = vadd.f32 0.0, %v3143
      %v3145 = vpop.f32.mrb[0].mxu0
      %v3146 = vpop.f32.mrb[0].mxu0
      %v3147 = vadd.f32 0.0, %v3146
      %v3148 = vpop.f32.mrb[0].mxu0
      %3149 = vmatprep.mubr.bf16.mxu0 0
      %3150 = vmatmul.mubr.bf16.gmra.mrb[0].mxu0 %v1833
      %v3151 = vpop.f32.mrb[0].mxu0
      %v3152 = vadd.f32 0.0, %v3151
      %v3153 = vpop.f32.mrb[0].mxu0
      %v3154 = vpop.f32.mrb[0].mxu0
      %v3155 = vadd.f32 0.0, %v3154
      %v3156 = vpop.f32.mrb[0].mxu0
      %3157 = vmatprep.mubr.bf16.mxu0 0
      %3158 = vmatmul.mubr.bf16.gmra.mrb[0].mxu0 %v1836
      %v3159 = vpop.f32.mrb[0].mxu0
      %v3160 = vadd.f32 0.0, %v3159
      %v3161 = vpop.f32.mrb[0].mxu0
      %v3162 = vpop.f32.mrb[0].mxu0
      %v3163 = vadd.f32 0.0, %v3162
      %v3164 = vpop.f32.mrb[0].mxu0
      %3165 = vmatprep.mubr.bf16.mxu0 0
      %3166 = vmatmul.mubr.bf16.gmra.mrb[0].mxu0 %v1839
      %v3167 = vpop.f32.mrb[0].mxu0
      %v3168 = vadd.f32 0.0, %v3167
      %v3169 = vpop.f32.mrb[0].mxu0
      %v3170 = vpop.f32.mrb[0].mxu0
      %v3171 = vadd.f32 0.0, %v3170
      %v3172 = vpop.f32.mrb[0].mxu0
      %3173 = vmatprep.mubr.bf16.mxu0 0
      %3174 = vmatmul.mubr.bf16.gmra.mrb[0].mxu0 %v1842
      %v3175 = vpop.f32.mrb[0].mxu0
      %v3176 = vadd.f32 0.0, %v3175
      %v3177 = vpop.f32.mrb[0].mxu0
      %v3178 = vpop.f32.mrb[0].mxu0
      %v3179 = vadd.f32 0.0, %v3178
      %v3180 = vpop.f32.mrb[0].mxu0
      %3181 = vmatprep.mubr.bf16.mxu0 0
      %3182 = vmatmul.mubr.bf16.gmra.mrb[0].mxu0 %v1845
      %v3183 = vpop.f32.mrb[0].mxu0
      %v3184 = vadd.f32 0.0, %v3183
      %v3185 = vpop.f32.mrb[0].mxu0
      %v3186 = vpop.f32.mrb[0].mxu0
      %v3187 = vadd.f32 0.0, %v3186
      %v3188 = vpop.f32.mrb[0].mxu0
      %3189 = vmatprep.mubr.bf16.mxu0 0
      %3190 = vmatmul.mubr.bf16.gmra.mrb[0].mxu0 %v1848
      %v3191 = vpop.f32.mrb[0].mxu0
      %v3192 = vadd.f32 0.0, %v3191
      %v3193 = vpop.f32.mrb[0].mxu0
      %v3194 = vpop.f32.mrb[0].mxu0
      %v3195 = vadd.f32 0.0, %v3194
      %v3196 = vpop.f32.mrb[0].mxu0
      %3197 = vmatprep.mubr.bf16.mxu0 0
      %3198 = vmatmul.mubr.bf16.gmra.mrb[0].mxu0 %v1851
      %v3199 = vpop.f32.mrb[0].mxu0
      %v3200 = vadd.f32 0.0, %v3199
      %v3201 = vpop.f32.mrb[0].mxu0
      %v3202 = vpop.f32.mrb[0].mxu0
      %v3203 = vadd.f32 0.0, %v3202
      %v3204 = vpop.f32.mrb[0].mxu0
      %3205 = vmatprep.mubr.bf16.mxu0 0
      %3206 = vmatmul.mubr.bf16.gmra.mrb[0].mxu0 %v1854
      %v3207 = vpop.f32.mrb[0].mxu0
      %v3208 = vadd.f32 0.0, %v3207
      %v3209 = vpop.f32.mrb[0].mxu0
      %v3210 = vpop.f32.mrb[0].mxu0
      %v3211 = vadd.f32 0.0, %v3210
      %v3212 = vpop.f32.mrb[0].mxu0
      %3213 = vmatprep.mubr.bf16.mxu0 0
      %3214 = vmatmul.mubr.bf16.gmra.mrb[0].mxu0 %v1857
      %v3215 = vpop.f32.mrb[0].mxu0
      %v3216 = vadd.f32 0.0, %v3215
      %v3217 = vpop.f32.mrb[0].mxu0
      %v3218 = vpop.f32.mrb[0].mxu0
      %v3219 = vadd.f32 0.0, %v3218
      %v3220 = vpop.f32.mrb[0].mxu0
      %3221 = vmatprep.mubr.bf16.mxu0 0
      %3222 = vmatmul.mubr.bf16.gmra.mrb[0].mxu0 %v2473
      %v3223 = vpop.f32.mrb[0].mxu0
      %v3224 = vadd.f32 0.0, %v3223
      %v3225 = vpop.f32.mrb[0].mxu0
      %v3226 = vpop.f32.mrb[0].mxu0
      %v3227 = vadd.f32 0.0, %v3226
      %v3228 = vpop.f32.mrb[0].mxu0
      %3229 = vmatprep.mubr.bf16.mxu0 0
      %3230 = vmatmul.mubr.bf16.gmra.mrb[0].mxu0 %v1259
      %v3231 = vpop.f32.mrb[0].mxu0
      %v3232 = vadd.f32 0.0, %v3231
      %v3233 = vpop.f32.mrb[0].mxu0
      %v3234 = vpop.f32.mrb[0].mxu0
      %v3235 = vadd.f32 0.0, %v3234
      %v3236 = vpop.f32.mrb[0].mxu0
      %3237 = vdwg.mxu0
      %v3238 = vadd.f32 %v3040, %v3112
      %v3239 = vadd.f32 %v3041, %v3115
      %v3240 = vadd.f32 %v3042, %v3120
      %v3241 = vadd.f32 %v3043, %v3123
      %v3242 = vadd.f32 %v3044, %v3128
      %v3243 = vadd.f32 %v3045, %v3131
      %v3244 = vadd.f32 %v3046, %v3136
      %v3245 = vadd.f32 %v3047, %v3139
      %v3246 = vadd.f32 %v3048, %v3144
      %v3247 = vadd.f32 %v3049, %v3147
      %v3248 = vadd.f32 %v3050, %v3152
      %v3249 = vadd.f32 %v3051, %v3155
      %v3250 = vadd.f32 %v3052, %v3160
      %v3251 = vadd.f32 %v3053, %v3163
      %v3252 = vadd.f32 %v3054, %v3168
      %v3253 = vadd.f32 %v3055, %v3171
      %v3254 = vadd.f32 %v3056, %v3176
      %v3255 = vadd.f32 %v3057, %v3179
      %v3256 = vadd.f32 %v3058, %v3184
      %v3257 = vadd.f32 %v3059, %v3187
      %v3258 = vadd.f32 %v3060, %v3192
      %v3259 = vadd.f32 %v3061, %v3195
      %v3260 = vadd.f32 %v3062, %v3200
      %v3261 = vadd.f32 %v3063, %v3203
      %v3262 = vadd.f32 %v3064, %v3208
      %v3263 = vadd.f32 %v3065, %v3211
      %v3264 = vadd.f32 %v3066, %v3216
      %v3265 = vadd.f32 %v3067, %v3219
      %v3266 = vadd.f32 %v3068, %v3224
      %v3267 = vadd.f32 %v3069, %v3227
      %v3268 = vadd.f32 %v3070, %v3232
      %v3269 = vadd.f32 %v3071, %v3235
      %v3270 = vpack.c.bf16 %v3239, %v3238
      %v3271 = vpack.c.bf16 %v3241, %v3240
      %v3272 = vpack.c.bf16 %v3243, %v3242
      %v3273 = vpack.c.bf16 %v3245, %v3244
      %v3274 = vpack.c.bf16 %v3247, %v3246
      %v3275 = vpack.c.bf16 %v3249, %v3248
      %v3276 = vpack.c.bf16 %v3251, %v3250
      %v3277 = vpack.c.bf16 %v3253, %v3252
      %v3278 = vpack.c.bf16 %v3255, %v3254
      %v3279 = vpack.c.bf16 %v3257, %v3256
      %v3280 = vpack.c.bf16 %v3259, %v3258
      %v3281 = vpack.c.bf16 %v3261, %v3260
      %v3282 = vpack.c.bf16 %v3263, %v3262
      %v3283 = vpack.c.bf16 %v3265, %v3264
      %v3284 = vpack.c.bf16 %v3267, %v3266
      %v3285 = vpack.c.bf16 %v3269, %v3268
      %v3302 = vunpack.c.l.b16 %v3270
      %v3303 = vunpack.c.h.b16 %v3270
      %v3304 = vunpack.c.l.b16 %v3271
      %v3305 = vunpack.c.h.b16 %v3271
      %v3306 = vunpack.c.l.b16 %v3272
      %v3307 = vunpack.c.h.b16 %v3272
      %v3308 = vunpack.c.l.b16 %v3273
      %v3309 = vunpack.c.h.b16 %v3273
      %v3310 = vunpack.c.l.b16 %v3274
      %v3311 = vunpack.c.h.b16 %v3274
      %v3312 = vunpack.c.l.b16 %v3275
      %v3313 = vunpack.c.h.b16 %v3275
      %v3314 = vunpack.c.l.b16 %v3276
      %v3315 = vunpack.c.h.b16 %v3276
      %v3316 = vunpack.c.l.b16 %v3277
      %v3317 = vunpack.c.h.b16 %v3277
      %v3318 = vunpack.c.l.b16 %v3278
      %v3319 = vunpack.c.h.b16 %v3278
      %v3320 = vunpack.c.l.b16 %v3279
      %v3321 = vunpack.c.h.b16 %v3279
      %v3322 = vunpack.c.l.b16 %v3280
      %v3323 = vunpack.c.h.b16 %v3280
      %v3324 = vunpack.c.l.b16 %v3281
      %v3325 = vunpack.c.h.b16 %v3281
      %v3326 = vunpack.c.l.b16 %v3282
      %v3327 = vunpack.c.h.b16 %v3282
      %v3328 = vunpack.c.l.b16 %v3283
      %v3329 = vunpack.c.h.b16 %v3283
      %v3330 = vunpack.c.l.b16 %v3284
      %v3331 = vunpack.c.h.b16 %v3284
      %v3332 = vunpack.c.l.b16 %v3285
      %v3333 = vunpack.c.h.b16 %v3285
      %v3334 = vpack.c.b16 %v3302, %v3302
      %v3335 = vpack.c.b16 %v3303, %v3303
      %v3336 = vpack.c.b16 %v3304, %v3304
      %v3337 = vpack.c.b16 %v3305, %v3305
      %v3338 = vpack.c.b16 %v3306, %v3306
      %v3339 = vpack.c.b16 %v3307, %v3307
      %v3340 = vpack.c.b16 %v3308, %v3308
      %v3341 = vpack.c.b16 %v3309, %v3309
      %v3342 = vpack.c.b16 %v3310, %v3310
      %v3343 = vpack.c.b16 %v3311, %v3311
      %v3344 = vpack.c.b16 %v3312, %v3312
      %v3345 = vpack.c.b16 %v3313, %v3313
      %v3346 = vpack.c.b16 %v3314, %v3314
      %v3347 = vpack.c.b16 %v3315, %v3315
      %v3348 = vpack.c.b16 %v3316, %v3316
      %v3349 = vpack.c.b16 %v3317, %v3317
      %v3350 = vpack.c.b16 %v3318, %v3318
      %v3351 = vpack.c.b16 %v3319, %v3319
      %v3352 = vpack.c.b16 %v3320, %v3320
      %v3353 = vpack.c.b16 %v3321, %v3321
      %v3354 = vpack.c.b16 %v3322, %v3322
      %v3355 = vpack.c.b16 %v3323, %v3323
      %v3356 = vpack.c.b16 %v3324, %v3324
      %v3357 = vpack.c.b16 %v3325, %v3325
      %v3358 = vpack.c.b16 %v3326, %v3326
      %v3359 = vpack.c.b16 %v3327, %v3327
      %v3360 = vpack.c.b16 %v3328, %v3328
      %v3361 = vpack.c.b16 %v3329, %v3329
      %v3362 = vpack.c.b16 %v3330, %v3330
      %v3363 = vpack.c.b16 %v3331, %v3331
      %v3364 = vpack.c.b16 %v3332, %v3332
      %v3365 = vpack.c.b16 %v3333, %v3333
      %vm3398 = vcmask 60416
      %3399 = vst.msk [vmem:[%s177] sm:$0xf] %vm3398, %v3334
      %3400 = vst.msk [vmem:[%s177 + $0x4] sm:$0xf] %vm3398, %v3335
      %3401 = vst.msk [vmem:[%s177 + $0x8] sm:$0xf] %vm3398, %v3336
      %3402 = vst.msk [vmem:[%s177 + $0xc] sm:$0xf] %vm3398, %v3337
      %3403 = vst.msk [vmem:[%s177 + $0x10] sm:$0xf] %vm3398, %v3338
      %3404 = vst.msk [vmem:[%s177 + $0x14] sm:$0xf] %vm3398, %v3339
      %3405 = vst.msk [vmem:[%s177 + $0x18] sm:$0xf] %vm3398, %v3340
      %3406 = vst.msk [vmem:[%s177 + $0x1c] sm:$0xf] %vm3398, %v3341
      %3407 = vst.msk [vmem:[%s177 + $0x20] sm:$0xf] %vm3398, %v3342
      %3408 = vst.msk [vmem:[%s177 + $0x24] sm:$0xf] %vm3398, %v3343
      %3409 = vst.msk [vmem:[%s177 + $0x28] sm:$0xf] %vm3398, %v3344
      %3410 = vst.msk [vmem:[%s177 + $0x2c] sm:$0xf] %vm3398, %v3345
      %3411 = vst.msk [vmem:[%s177 + $0x30] sm:$0xf] %vm3398, %v3346
      %3412 = vst.msk [vmem:[%s177 + $0x34] sm:$0xf] %vm3398, %v3347
      %3413 = vst.msk [vmem:[%s177 + $0x38] sm:$0xf] %vm3398, %v3348
      %3414 = vst.msk [vmem:[%s177 + $0x3c] sm:$0xf] %vm3398, %v3349
      %3415 = vst.msk [vmem:[%s177 + $0x40] sm:$0xf] %vm3398, %v3350
      %3416 = vst.msk [vmem:[%s177 + $0x44] sm:$0xf] %vm3398, %v3351
      %3417 = vst.msk [vmem:[%s177 + $0x48] sm:$0xf] %vm3398, %v3352
      %3418 = vst.msk [vmem:[%s177 + $0x4c] sm:$0xf] %vm3398, %v3353
      %3419 = vst.msk [vmem:[%s177 + $0x50] sm:$0xf] %vm3398, %v3354
      %3420 = vst.msk [vmem:[%s177 + $0x54] sm:$0xf] %vm3398, %v3355
      %3421 = vst.msk [vmem:[%s177 + $0x58] sm:$0xf] %vm3398, %v3356
      %3422 = vst.msk [vmem:[%s177 + $0x5c] sm:$0xf] %vm3398, %v3357
      %3423 = vst.msk [vmem:[%s177 + $0x60] sm:$0xf] %vm3398, %v3358
      %3424 = vst.msk [vmem:[%s177 + $0x64] sm:$0xf] %vm3398, %v3359
      %3425 = vst.msk [vmem:[%s177 + $0x68] sm:$0xf] %vm3398, %v3360
      %3426 = vst.msk [vmem:[%s177 + $0x6c] sm:$0xf] %vm3398, %v3361
      %3427 = vst.msk [vmem:[%s177 + $0x70] sm:$0xf] %vm3398, %v3362
      %3428 = vst.msk [vmem:[%s177 + $0x74] sm:$0xf] %vm3398, %v3363
      %3429 = vst.msk [vmem:[%s177 + $0x78] sm:$0xf] %vm3398, %v3364
      %3430 = vst.msk [vmem:[%s177 + $0x7c] sm:$0xf] %vm3398, %v3365
      %v3431 = vsel %vm1257, %v3238, 0.0
      %v3432 = vsel %vm1257, %v3239, 0.0
      %v3433 = vadd.f32 %v3431, %v3432
      %v3434 = vsel %vm1257, %v3240, 0.0
      %v3435 = vadd.f32 %v3433, %v3434
      %v3436 = vsel %vm1257, %v3241, 0.0
      %v3437 = vadd.f32 %v3435, %v3436
      %v3438 = vsel %vm1257, %v3242, 0.0
      %v3439 = vadd.f32 %v3437, %v3438
      %v3440 = vsel %vm1257, %v3243, 0.0
      %v3441 = vadd.f32 %v3439, %v3440
      %v3442 = vsel %vm1257, %v3244, 0.0
      %v3443 = vadd.f32 %v3441, %v3442
      %v3444 = vsel %vm1257, %v3245, 0.0
      %v3445 = vadd.f32 %v3443, %v3444
      %v3446 = vsel %vm1257, %v3246, 0.0
      %v3447 = vadd.f32 %v3445, %v3446
      %v3448 = vsel %vm1257, %v3247, 0.0
      %v3449 = vadd.f32 %v3447, %v3448
      %v3450 = vsel %vm1257, %v3248, 0.0
      %v3451 = vadd.f32 %v3449, %v3450
      %v3452 = vsel %vm1257, %v3249, 0.0
      %v3453 = vadd.f32 %v3451, %v3452
      %v3454 = vsel %vm1257, %v3250, 0.0
      %v3455 = vadd.f32 %v3453, %v3454
      %v3456 = vsel %vm1257, %v3251, 0.0
      %v3457 = vadd.f32 %v3455, %v3456
      %v3458 = vsel %vm1257, %v3252, 0.0
      %v3459 = vadd.f32 %v3457, %v3458
      %v3460 = vsel %vm1257, %v3253, 0.0
      %v3461 = vadd.f32 %v3459, %v3460
      %v3462 = vsel %vm1257, %v3254, 0.0
      %v3463 = vadd.f32 %v3461, %v3462
      %v3464 = vsel %vm1257, %v3255, 0.0
      %v3465 = vadd.f32 %v3463, %v3464
      %v3466 = vsel %vm1257, %v3256, 0.0
      %v3467 = vadd.f32 %v3465, %v3466
      %v3468 = vsel %vm1257, %v3257, 0.0
      %v3469 = vadd.f32 %v3467, %v3468
      %v3470 = vsel %vm1257, %v3258, 0.0
      %v3471 = vadd.f32 %v3469, %v3470
      %v3472 = vsel %vm1257, %v3259, 0.0
      %v3473 = vadd.f32 %v3471, %v3472
      %v3474 = vsel %vm1257, %v3260, 0.0
      %v3475 = vadd.f32 %v3473, %v3474
      %v3476 = vsel %vm1257, %v3261, 0.0
      %v3477 = vadd.f32 %v3475, %v3476
      %v3478 = vsel %vm1257, %v3262, 0.0
      %v3479 = vadd.f32 %v3477, %v3478
      %v3480 = vsel %vm1257, %v3263, 0.0
      %v3481 = vadd.f32 %v3479, %v3480
      %v3482 = vsel %vm1257, %v3264, 0.0
      %v3483 = vadd.f32 %v3481, %v3482
      %v3484 = vsel %vm1257, %v3265, 0.0
      %v3485 = vadd.f32 %v3483, %v3484
      %v3486 = vsel %vm1257, %v3266, 0.0
      %v3487 = vadd.f32 %v3485, %v3486
      %v3488 = vsel %vm1257, %v3267, 0.0
      %v3489 = vadd.f32 %v3487, %v3488
      %v3490 = vsel %vm1257, %v3268, 0.0
      %v3491 = vadd.f32 %v3489, %v3490
      %v3492 = vsel %vm1257, %v3269, 0.0
      %v3493 = vadd.f32 %v3491, %v3492
      %v3494 = vrot.slane %v3493, 4
      %v3495 = vadd.f32 %v3493, %v3494
      %v3496 = vrot.slane %v3495, 2
      %v3497 = vadd.f32 %v3495, %v3496
      %v3498 = vrot.slane %v3497, 1
      %v3499 = vadd.f32 %v3497, %v3498
      %v3500 = vmul.f32 %v3238, %v3238
      %v3501 = vmul.f32 %v3239, %v3239
      %v3502 = vmul.f32 %v3240, %v3240
      %v3503 = vmul.f32 %v3241, %v3241
      %v3504 = vmul.f32 %v3242, %v3242
      %v3505 = vmul.f32 %v3243, %v3243
      %v3506 = vmul.f32 %v3244, %v3244
      %v3507 = vmul.f32 %v3245, %v3245
      %v3508 = vmul.f32 %v3246, %v3246
      %v3509 = vmul.f32 %v3247, %v3247
      %v3510 = vmul.f32 %v3248, %v3248
      %v3511 = vmul.f32 %v3249, %v3249
      %v3512 = vmul.f32 %v3250, %v3250
      %v3513 = vmul.f32 %v3251, %v3251
      %v3514 = vmul.f32 %v3252, %v3252
      %v3515 = vmul.f32 %v3253, %v3253
      %v3516 = vmul.f32 %v3254, %v3254
      %v3517 = vmul.f32 %v3255, %v3255
      %v3518 = vmul.f32 %v3256, %v3256
      %v3519 = vmul.f32 %v3257, %v3257
      %v3520 = vmul.f32 %v3258, %v3258
      %v3521 = vmul.f32 %v3259, %v3259
      %v3522 = vmul.f32 %v3260, %v3260
      %v3523 = vmul.f32 %v3261, %v3261
      %v3524 = vmul.f32 %v3262, %v3262
      %v3525 = vmul.f32 %v3263, %v3263
      %v3526 = vmul.f32 %v3264, %v3264
      %v3527 = vmul.f32 %v3265, %v3265
      %v3528 = vmul.f32 %v3266, %v3266
      %v3529 = vmul.f32 %v3267, %v3267
      %v3530 = vmul.f32 %v3268, %v3268
      %v3531 = vmul.f32 %v3269, %v3269
      %v3532 = vsel %vm1257, %v3500, 0.0
      %v3533 = vsel %vm1257, %v3501, 0.0
      %v3534 = vadd.f32 %v3532, %v3533
      %v3535 = vsel %vm1257, %v3502, 0.0
      %v3536 = vadd.f32 %v3534, %v3535
      %v3537 = vsel %vm1257, %v3503, 0.0
      %v3538 = vadd.f32 %v3536, %v3537
      %v3539 = vsel %vm1257, %v3504, 0.0
      %v3540 = vadd.f32 %v3538, %v3539
      %v3541 = vsel %vm1257, %v3505, 0.0
      %v3542 = vadd.f32 %v3540, %v3541
      %v3543 = vsel %vm1257, %v3506, 0.0
      %v3544 = vadd.f32 %v3542, %v3543
      %v3545 = vsel %vm1257, %v3507, 0.0
      %v3546 = vadd.f32 %v3544, %v3545
      %v3547 = vsel %vm1257, %v3508, 0.0
      %v3548 = vadd.f32 %v3546, %v3547
      %v3549 = vsel %vm1257, %v3509, 0.0
      %v3550 = vadd.f32 %v3548, %v3549
      %v3551 = vsel %vm1257, %v3510, 0.0
      %v3552 = vadd.f32 %v3550, %v3551
      %v3553 = vsel %vm1257, %v3511, 0.0
      %v3554 = vadd.f32 %v3552, %v3553
      %v3555 = vsel %vm1257, %v3512, 0.0
      %v3556 = vadd.f32 %v3554, %v3555
      %v3557 = vsel %vm1257, %v3513, 0.0
      %v3558 = vadd.f32 %v3556, %v3557
      %v3559 = vsel %vm1257, %v3514, 0.0
      %v3560 = vadd.f32 %v3558, %v3559
      %v3561 = vsel %vm1257, %v3515, 0.0
      %v3562 = vadd.f32 %v3560, %v3561
      %v3563 = vsel %vm1257, %v3516, 0.0
      %v3564 = vadd.f32 %v3562, %v3563
      %v3565 = vsel %vm1257, %v3517, 0.0
      %v3566 = vadd.f32 %v3564, %v3565
      %v3567 = vsel %vm1257, %v3518, 0.0
      %v3568 = vadd.f32 %v3566, %v3567
      %v3569 = vsel %vm1257, %v3519, 0.0
      %v3570 = vadd.f32 %v3568, %v3569
      %v3571 = vsel %vm1257, %v3520, 0.0
      %v3572 = vadd.f32 %v3570, %v3571
      %v3573 = vsel %vm1257, %v3521, 0.0
      %v3574 = vadd.f32 %v3572, %v3573
      %v3575 = vsel %vm1257, %v3522, 0.0
      %v3576 = vadd.f32 %v3574, %v3575
      %v3577 = vsel %vm1257, %v3523, 0.0
      %v3578 = vadd.f32 %v3576, %v3577
      %v3579 = vsel %vm1257, %v3524, 0.0
      %v3580 = vadd.f32 %v3578, %v3579
      %v3581 = vsel %vm1257, %v3525, 0.0
      %v3582 = vadd.f32 %v3580, %v3581
      %v3583 = vsel %vm1257, %v3526, 0.0
      %v3584 = vadd.f32 %v3582, %v3583
      %v3585 = vsel %vm1257, %v3527, 0.0
      %v3586 = vadd.f32 %v3584, %v3585
      %v3587 = vsel %vm1257, %v3528, 0.0
      %v3588 = vadd.f32 %v3586, %v3587
      %v3589 = vsel %vm1257, %v3529, 0.0
      %v3590 = vadd.f32 %v3588, %v3589
      %v3591 = vsel %vm1257, %v3530, 0.0
      %v3592 = vadd.f32 %v3590, %v3591
      %v3593 = vsel %vm1257, %v3531, 0.0
      %v3594 = vadd.f32 %v3592, %v3593
      %v3595 = vrot.slane %v3594, 4
      %v3596 = vadd.f32 %v3594, %v3595
      %v3597 = vrot.slane %v3596, 2
      %v3598 = vadd.f32 %v3596, %v3597
      %v3599 = vrot.slane %v3598, 1
      %v3600 = vadd.f32 %v3598, %v3599
      %vm3601 = vcmask 1040384
      %v3602 = vsel %vm3601, %v3499, %v3600
      %vm3603 = vcmask 58368
      %3604 = vst.msk [vmem:[%s181] sm:$0x3] %vm3603, %v3602
      %p3605 = scmp.lt.s32.totalorder %s15, 1
      %s3606 = scalar_select %p3605, %s15, 1
      %s3607 = smul.addr %s3606, 32
      %s3608 = smul.addr %s3607, 4
      %s3609 = scalar_lea.vmem %s2, %s3608
      %p3610 = scmp.lt.s32.totalorder %s15, 1
      %s3611 = scalar_select %p3610, %s15, 1
      %s3612 = smul.addr %s3611, 2
      %s3613 = scalar_lea.vmem %s3, %s3612
      // Predicated region
      $region29: #{basic_block_forward.3} parent=27 // pred_check
        %p3614 = pneg %p80
      $region30: #{basic_block_forward.3} parent=27 // pred_check_branch
        %3616 = sbr.rel (%p3614) target = $region32
      $region31: #{basic_block_forward.3} parent=27 // pred_region
        _
      $region32: #{basic_block_forward.3} parent=27 // pred_fallthru
        _
      // Predicated region
      $region33: #{basic_block_forward.3} parent=27 // pred_check
        %p3617 = pneg %p106
      $region34: #{basic_block_forward.3} parent=27 // pred_check_branch
        %3619 = sbr.rel (%p3617) target = $region36
      $region35: #{basic_block_forward.3} parent=27 // pred_region
        _
      $region36: #{basic_block_forward.3} parent=27 // pred_fallthru
        _
    $region28: #{basic_block_forward.3} parent=5 // pred_fallthru
      _
    %p3620 = scmp.le.s32.totalorder 2, %s10
    // Predicated region
    $region37: #{basic_block_forward.3} parent=5 // pred_check
      %p3621 = pneg %p3620
    $region38: #{basic_block_forward.3} parent=5 // pred_check_branch
      %3623 = sbr.rel (%p3621) target = $region40
    $region39: #{basic_block_forward.3} parent=5 // pred_region
      %s3624 = ssub.s32 %s10, 2
      // Predicated region
      $region41: #{basic_block_forward.3} parent=39 // pred_check
        %p3625 = pneg %p86
      $region42: #{basic_block_forward.3} parent=39 // pred_check_branch
        %3627 = sbr.rel (%p3625) target = $region44
      $region43: #{basic_block_forward.3} parent=39 // pred_region
        %p3628 = scmp.lt.s32.totalorder %s16, 1
        %s3629 = scalar_select %p3628, %s16, 1
        %s3630 = smul.addr %s3629, 32
        %s3631 = smul.addr %s3630, 4
        %s3632 = scalar_lea.vmem %s2, %s3631
      $region44: #{basic_block_forward.3} parent=39 // pred_fallthru
        _
      // Predicated region
      $region45: #{basic_block_forward.3} parent=39 // pred_check
        %p3633 = pneg %p112
      $region46: #{basic_block_forward.3} parent=39 // pred_check_branch
        %3635 = sbr.rel (%p3633) target = $region48
      $region47: #{basic_block_forward.3} parent=39 // pred_region
        %p3636 = scmp.lt.s32.totalorder %s16, 1
        %s3637 = scalar_select %p3636, %s16, 1
        %s3638 = smul.addr %s3637, 2
        %s3639 = scalar_lea.vmem %s3, %s3638
      $region48: #{basic_block_forward.3} parent=39 // pred_fallthru
        _
    $region40: #{basic_block_forward.3} parent=5 // pred_fallthru
      _
  $region6: #{basic_block_forward.3} parent=0 // loop_footer
    %s14 = sadd.s32 1, %s10
  $region7: #{basic_block_forward.3} parent=0 // loop_footer_branch
    %9 = sbr.rel target = $region3
  $region8: #{basic_block_forward.3} parent=0 // loop_exit
    _

// kernel: basic_block_forward.4
$region0: #{basic_block_forward.4}
  #allocation0 [shape = 'u32[]', space=smem, size = 0x4, offset = 0x4, fixed_abs, tag = 'smem constant byte address 0x4 - core index']
  #allocation1 [shape = 'u32[144,128]{1,0:T(1,128)}', space=vmem, size = 0x12000, scoped, tag = 'internal scratch']
  %s0 = inlined_call_operand.vmem [shape: bf16[2,256,8], index: 0, kind: input, shape index: {}]
  %s1 = inlined_call_operand.vmem [shape: f32[1,8], index: 1, kind: input, shape index: {}]
  %s2 = inlined_call_operand.vmem [shape: f32[1,8], index: 2, kind: input, shape index: {}]
  %s3 = inlined_call_operand.vmem [shape: bf16[9,8,8], index: 3, kind: input, shape index: {}]
  %s4 = inlined_call_operand.vmem [shape: bf16[2,256,8], index: 4, kind: output, shape index: {0}]
  %s5 = inlined_call_operand.vmem [shape: f32[2,2,8], index: 5, kind: output, shape index: {1}]
  %6 = xla_tuple %s4, %s5
  %s7 = sld [smem:[#allocation0]]
  $region57: #{basic_block_forward.4} parent=0
    _
  %s9 = ssub.s32 1, %s7
  %s10 = scalar_select 0, %s9, %s7
  loop: start=0, step=1, limit=4
  $region2: #{basic_block_forward.4} parent=0 // loop_pre_header
    _
  $region3: #{basic_block_forward.4} parent=0 // loop_header
    %s12 = sphi 0, %s16
    %p13 = scmp.ge.s32.totalorder %s12, 4
    %s22 = sphi 0, %s24
    %s25 = sphi 0, %s22
    %s26 = sphi 0, %s25
    %s42 = sphi 0, %s26
    %s46 = sphi 0, %s46
    %s48 = sphi 0, %s46
    %s49 = sphi 0, %s48
    %s63 = sphi 0, %s49
    %s67 = sphi 0, %s67
    %s69 = sphi 0, %s67
    %s70 = sphi 0, %s69
    %s84 = sphi 0, %s70
    %s88 = sphi 0, %s88
    %s90 = sphi 0, %s88
    %s91 = sphi 0, %s90
    %s105 = sphi 0, %s91
    %s111 = sphi 0, %s113
    %s114 = sphi 0, %s111
    %s115 = sphi 0, %s114
    %s131 = sphi 0, %s115
    %s137 = sphi 0, %s139
    %s140 = sphi 0, %s137
    %s141 = sphi 0, %s140
    %s157 = sphi 0, %s141
  $region4: #{basic_block_forward.4} parent=0 // loop_header_branch
    %15 = sbr.rel (%p13) target = $region8
  $region5: #{basic_block_forward.4} parent=0 // loop_body
    %s17 = ssub.s32 %s12, 1
    %s18 = ssub.s32 %s12, 2
    %s19 = sadd.s32 %s12, 1
    %s20 = ssub.s32 %s12, %s19
    %p21 = scmp.eq.s32.totalorder %s20, 0
    %s23 = sadd.s32 %s22, 1
    %s24 = scalar_select %p21, %s22, %s23
    %p27 = pneg %p21
    %p28 = scmp.eq.s32.totalorder %s12, 1
    %p29 = por %p27, %p28
    %p30 = scmp.ne.s32.totalorder %s22, %s25
    %p31 = scmp.eq.s32.totalorder %s12, 0
    %p32 = por %p30, %p31
    %p33 = scmp.ne.s32.totalorder %s22, %s25
    %p34 = scmp.eq.s32.totalorder %s17, 1
    %p35 = por %p33, %p34
    %p36 = scmp.ne.s32.totalorder %s25, %s26
    %p37 = scmp.eq.s32.totalorder %s17, 0
    %p38 = por %p36, %p37
    %p39 = scmp.ne.s32.totalorder %s25, %s26
    %p40 = scmp.eq.s32.totalorder %s18, 1
    %p41 = por %p39, %p40
    %p43 = scmp.ne.s32.totalorder %s26, %s42
    %p44 = scmp.eq.s32.totalorder %s18, 0
    %p45 = por %p43, %p44
    %s47 = sadd.s32 %s46, 1
    %p50 = scmp.eq.s32.totalorder %s12, 1
    %p51 = scmp.ne.s32.totalorder %s46, %s48
    %p52 = scmp.eq.s32.totalorder %s12, 0
    %p53 = por %p51, %p52
    %p54 = scmp.ne.s32.totalorder %s46, %s48
    %p55 = scmp.eq.s32.totalorder %s17, 1
    %p56 = por %p54, %p55
    %p57 = scmp.ne.s32.totalorder %s48, %s49
    %p58 = scmp.eq.s32.totalorder %s17, 0
    %p59 = por %p57, %p58
    %p60 = scmp.ne.s32.totalorder %s48, %s49
    %p61 = scmp.eq.s32.totalorder %s18, 1
    %p62 = por %p60, %p61
    %p64 = scmp.ne.s32.totalorder %s49, %s63
    %p65 = scmp.eq.s32.totalorder %s18, 0
    %p66 = por %p64, %p65
    %s68 = sadd.s32 %s67, 1
    %p71 = scmp.eq.s32.totalorder %s12, 1
    %p72 = scmp.ne.s32.totalorder %s67, %s69
    %p73 = scmp.eq.s32.totalorder %s12, 0
    %p74 = por %p72, %p73
    %p75 = scmp.ne.s32.totalorder %s67, %s69
    %p76 = scmp.eq.s32.totalorder %s17, 1
    %p77 = por %p75, %p76
    %p78 = scmp.ne.s32.totalorder %s69, %s70
    %p79 = scmp.eq.s32.totalorder %s17, 0
    %p80 = por %p78, %p79
    %p81 = scmp.ne.s32.totalorder %s69, %s70
    %p82 = scmp.eq.s32.totalorder %s18, 1
    %p83 = por %p81, %p82
    %p85 = scmp.ne.s32.totalorder %s70, %s84
    %p86 = scmp.eq.s32.totalorder %s18, 0
    %p87 = por %p85, %p86
    %s89 = sadd.s32 %s88, 1
    %p92 = scmp.eq.s32.totalorder %s12, 1
    %p93 = scmp.ne.s32.totalorder %s88, %s90
    %p94 = scmp.eq.s32.totalorder %s12, 0
    %p95 = por %p93, %p94
    %p96 = scmp.ne.s32.totalorder %s88, %s90
    %p97 = scmp.eq.s32.totalorder %s17, 1
    %p98 = por %p96, %p97
    %p99 = scmp.ne.s32.totalorder %s90, %s91
    %p100 = scmp.eq.s32.totalorder %s17, 0
    %p101 = por %p99, %p100
    %p102 = scmp.ne.s32.totalorder %s90, %s91
    %p103 = scmp.eq.s32.totalorder %s18, 1
    %p104 = por %p102, %p103
    %p106 = scmp.ne.s32.totalorder %s91, %s105
    %p107 = scmp.eq.s32.totalorder %s18, 0
    %p108 = por %p106, %p107
    %s109 = ssub.s32 %s12, %s19
    %p110 = scmp.eq.s32.totalorder %s109, 0
    %s112 = sadd.s32 %s111, 1
    %s113 = scalar_select %p110, %s111, %s112
    %p116 = pneg %p110
    %p117 = scmp.eq.s32.totalorder %s12, 1
    %p118 = por %p116, %p117
    %p119 = scmp.ne.s32.totalorder %s111, %s114
    %p120 = scmp.eq.s32.totalorder %s12, 0
    %p121 = por %p119, %p120
    %p122 = scmp.ne.s32.totalorder %s111, %s114
    %p123 = scmp.eq.s32.totalorder %s17, 1
    %p124 = por %p122, %p123
    %p125 = scmp.ne.s32.totalorder %s114, %s115
    %p126 = scmp.eq.s32.totalorder %s17, 0
    %p127 = por %p125, %p126
    %p128 = scmp.ne.s32.totalorder %s114, %s115
    %p129 = scmp.eq.s32.totalorder %s18, 1
    %p130 = por %p128, %p129
    %p132 = scmp.ne.s32.totalorder %s115, %s131
    %p133 = scmp.eq.s32.totalorder %s18, 0
    %p134 = por %p132, %p133
    %s135 = ssub.s32 %s12, %s19
    %p136 = scmp.eq.s32.totalorder %s135, 0
    %s138 = sadd.s32 %s137, 1
    %s139 = scalar_select %p136, %s137, %s138
    %p142 = pneg %p136
    %p143 = scmp.eq.s32.totalorder %s12, 1
    %p144 = por %p142, %p143
    %p145 = scmp.ne.s32.totalorder %s137, %s140
    %p146 = scmp.eq.s32.totalorder %s12, 0
    %p147 = por %p145, %p146
    %p148 = scmp.ne.s32.totalorder %s137, %s140
    %p149 = scmp.eq.s32.totalorder %s17, 1
    %p150 = por %p148, %p149
    %p151 = scmp.ne.s32.totalorder %s140, %s141
    %p152 = scmp.eq.s32.totalorder %s17, 0
    %p153 = por %p151, %p152
    %p154 = scmp.ne.s32.totalorder %s140, %s141
    %p155 = scmp.eq.s32.totalorder %s18, 1
    %p156 = por %p154, %p155
    %p158 = scmp.ne.s32.totalorder %s141, %s157
    %p159 = scmp.eq.s32.totalorder %s18, 0
    %p160 = por %p158, %p159
    %p161 = scmp.le.s32.totalorder 1, %s12
    %p162 = scmp.lt.s32.totalorder %s12, 3
    %p163 = pnand %p161, %p162
    %p164 = pneg %p163
    // Predicated region
    $region9: #{basic_block_forward.4} parent=5 // pred_check
      _
    $region10: #{basic_block_forward.4} parent=5 // pred_check_branch
      %166 = sbr.rel (%p163) target = $region12
    $region11: #{basic_block_forward.4} parent=5 // pred_region
      %s167 = ssub.s32 %s12, 1
      // Predicated region
      $region13: #{basic_block_forward.4} parent=11 // pred_check
        %p168 = pneg %p59
      $region14: #{basic_block_forward.4} parent=11 // pred_check_branch
        %170 = sbr.rel (%p168) target = $region16
      $region15: #{basic_block_forward.4} parent=11 // pred_region
        _
      $region16: #{basic_block_forward.4} parent=11 // pred_fallthru
        _
      // Predicated region
      $region17: #{basic_block_forward.4} parent=11 // pred_check
        %p171 = pneg %p80
      $region18: #{basic_block_forward.4} parent=11 // pred_check_branch
        %173 = sbr.rel (%p171) target = $region20
      $region19: #{basic_block_forward.4} parent=11 // pred_region
        _
      $region20: #{basic_block_forward.4} parent=11 // pred_fallthru
        _
      // Predicated region
      $region21: #{basic_block_forward.4} parent=11 // pred_check
        %p174 = pneg %p101
      $region22: #{basic_block_forward.4} parent=11 // pred_check_branch
        %176 = sbr.rel (%p174) target = $region24
      $region23: #{basic_block_forward.4} parent=11 // pred_region
        _
      $region24: #{basic_block_forward.4} parent=11 // pred_fallthru
        _
    $region12: #{basic_block_forward.4} parent=5 // pred_fallthru
      _
    %p177 = scmp.lt.s32.totalorder %s12, 2
    // Predicated region
    $region25: #{basic_block_forward.4} parent=5 // pred_check
      %p178 = pneg %p177
    $region26: #{basic_block_forward.4} parent=5 // pred_check_branch
      %180 = sbr.rel (%p178) target = $region28
    $region27: #{basic_block_forward.4} parent=5 // pred_region
      // Predicated region
      $region29: #{basic_block_forward.4} parent=27 // pred_check
        %p181 = pneg %p32
      $region30: #{basic_block_forward.4} parent=27 // pred_check_branch
        %183 = sbr.rel (%p181) target = $region32
      $region31: #{basic_block_forward.4} parent=27 // pred_region
        %p184 = scmp.lt.s32.totalorder %s12, 1
        %s185 = scalar_select %p184, %s12, 1
        %s186 = smul.addr %s185, 32
        %s187 = smul.addr %s186, 4
        %s188 = scalar_lea.vmem %s0, %s187
      $region32: #{basic_block_forward.4} parent=27 // pred_fallthru
        _
    $region28: #{basic_block_forward.4} parent=5 // pred_fallthru
      _
    %p189 = scmp.le.s32.totalorder 1, %s12
    %p190 = scmp.lt.s32.totalorder %s12, 3
    %p191 = pnand %p189, %p190
    %p192 = pneg %p191
    // Predicated region
    $region33: #{basic_block_forward.4} parent=5 // pred_check
      _
    $region34: #{basic_block_forward.4} parent=5 // pred_check_branch
      %194 = sbr.rel (%p191) target = $region36
    $region35: #{basic_block_forward.4} parent=5 // pred_region
      %s195 = ssub.s32 %s12, 1
      %p196 = scmp.lt.s32.totalorder %s17, 1
      %s197 = scalar_select %p196, %s17, 1
      %s198 = smul.addr %s197, 32
      %s199 = smul.addr %s198, 4
      %s200 = scalar_lea.vmem %s0, %s199
      %p201 = pneg %p38
      %p202 = pneg %p35
      %p203 = pneg %p59
      %p204 = pneg %p56
      %p205 = pneg %p80
      %p206 = pneg %p77
      %p207 = pneg %p101
      %p208 = pneg %p98
      %p209 = pneg %p127
      %p210 = pneg %p124
      %p211 = scmp.lt.s32.totalorder %s17, 1
      %s212 = scalar_select %p211, %s17, 1
      %s213 = smul.addr %s212, 32
      %s214 = smul.addr %s213, 4
      %s215 = scalar_lea.vmem %s4, %s214
      %p216 = pneg %p153
      %p217 = pneg %p150
      %p218 = scmp.lt.s32.totalorder %s17, 1
      %s219 = scalar_select %p218, %s17, 1
      %s220 = smul.addr %s219, 2
      %s221 = scalar_lea.vmem %s5, %s220
      %p222 = scmp.lt.s32.totalorder %s17, 1
      %s223 = scalar_select %p222, %s17, 1
      %s224 = smul.addr %s223, 32
      %s225 = smul.addr %s224, 4
      %s226 = scalar_lea.vmem %s0, %s225
      %p227 = scmp.lt.s32.totalorder %s17, 1
      %s228 = scalar_select %p227, %s17, 1
      %s229 = smul.addr %s228, 32
      %s230 = smul.addr %s229, 4
      %s231 = scalar_lea.vmem %s4, %s230
      %p232 = scmp.lt.s32.totalorder %s17, 1
      %s233 = scalar_select %p232, %s17, 1
      %s234 = smul.addr %s233, 2
      %s235 = scalar_lea.vmem %s5, %s234
      %v239 = vld [vmem:[%s226] sm:$0xf]
      %v240 = vld [vmem:[%s226 + $0x4] sm:$0xf]
      %v241 = vld [vmem:[%s226 + $0x8] sm:$0xf]
      %v242 = vld [vmem:[%s226 + $0xc] sm:$0xf]
      %v243 = vld [vmem:[%s226 + $0x10] sm:$0xf]
      %v244 = vld [vmem:[%s226 + $0x14] sm:$0xf]
      %v245 = vld [vmem:[%s226 + $0x18] sm:$0xf]
      %v246 = vld [vmem:[%s226 + $0x1c] sm:$0xf]
      %v247 = vld [vmem:[%s226 + $0x20] sm:$0xf]
      %v248 = vld [vmem:[%s226 + $0x24] sm:$0xf]
      %v249 = vld [vmem:[%s226 + $0x28] sm:$0xf]
      %v250 = vld [vmem:[%s226 + $0x2c] sm:$0xf]
      %v251 = vld [vmem:[%s226 + $0x30] sm:$0xf]
      %v252 = vld [vmem:[%s226 + $0x34] sm:$0xf]
      %v253 = vld [vmem:[%s226 + $0x38] sm:$0xf]
      %v254 = vld [vmem:[%s226 + $0x3c] sm:$0xf]
      %v255 = vld [vmem:[%s226 + $0x40] sm:$0xf]
      %v256 = vld [vmem:[%s226 + $0x44] sm:$0xf]
      %v257 = vld [vmem:[%s226 + $0x48] sm:$0xf]
      %v258 = vld [vmem:[%s226 + $0x4c] sm:$0xf]
      %v259 = vld [vmem:[%s226 + $0x50] sm:$0xf]
      %v260 = vld [vmem:[%s226 + $0x54] sm:$0xf]
      %v261 = vld [vmem:[%s226 + $0x58] sm:$0xf]
      %v262 = vld [vmem:[%s226 + $0x5c] sm:$0xf]
      %v263 = vld [vmem:[%s226 + $0x60] sm:$0xf]
      %v264 = vld [vmem:[%s226 + $0x64] sm:$0xf]
      %v265 = vld [vmem:[%s226 + $0x68] sm:$0xf]
      %v266 = vld [vmem:[%s226 + $0x6c] sm:$0xf]
      %v267 = vld [vmem:[%s226 + $0x70] sm:$0xf]
      %v268 = vld [vmem:[%s226 + $0x74] sm:$0xf]
      %v269 = vld [vmem:[%s226 + $0x78] sm:$0xf]
      %v270 = vld [vmem:[%s226 + $0x7c] sm:$0xf]
      %v271 = vunpack.c.l.bf16 %v239
      %v272 = vunpack.c.l.bf16 %v240
      %v273 = vunpack.c.l.bf16 %v241
      %v274 = vunpack.c.l.bf16 %v242
      %v275 = vunpack.c.l.bf16 %v243
      %v276 = vunpack.c.l.bf16 %v244
      %v277 = vunpack.c.l.bf16 %v245
      %v278 = vunpack.c.l.bf16 %v246
      %v279 = vunpack.c.l.bf16 %v247
      %v280 = vunpack.c.l.bf16 %v248
      %v281 = vunpack.c.l.bf16 %v249
      %v282 = vunpack.c.l.bf16 %v250
      %v283 = vunpack.c.l.bf16 %v251
      %v284 = vunpack.c.l.bf16 %v252
      %v285 = vunpack.c.l.bf16 %v253
      %v286 = vunpack.c.l.bf16 %v254
      %v287 = vunpack.c.l.bf16 %v255
      %v288 = vunpack.c.l.bf16 %v256
      %v289 = vunpack.c.l.bf16 %v257
      %v290 = vunpack.c.l.bf16 %v258
      %v291 = vunpack.c.l.bf16 %v259
      %v292 = vunpack.c.l.bf16 %v260
      %v293 = vunpack.c.l.bf16 %v261
      %v294 = vunpack.c.l.bf16 %v262
      %v295 = vunpack.c.l.bf16 %v263
      %v296 = vunpack.c.l.bf16 %v264
      %v297 = vunpack.c.l.bf16 %v265
      %v298 = vunpack.c.l.bf16 %v266
      %v299 = vunpack.c.l.bf16 %v267
      %v300 = vunpack.c.l.bf16 %v268
      %v301 = vunpack.c.l.bf16 %v269
      %v302 = vunpack.c.l.bf16 %v270
      %v303 = vld [vmem:[%s1] sm:$0x1]
      %v305 = vlaneseq
      %v306 = vshrl.u32 %v305, 7
      %v307 = vsub.s32 0, %v306
      %v308 = vrot.slane %v303, %v307
      %v310 = vmul.f32 %v271, %v308
      %v311 = vmul.f32 %v272, %v308
      %v312 = vmul.f32 %v273, %v308
      %v313 = vmul.f32 %v274, %v308
      %v314 = vmul.f32 %v275, %v308
      %v315 = vmul.f32 %v276, %v308
      %v316 = vmul.f32 %v277, %v308
      %v317 = vmul.f32 %v278, %v308
      %v318 = vmul.f32 %v279, %v308
      %v319 = vmul.f32 %v280, %v308
      %v320 = vmul.f32 %v281, %v308
      %v321 = vmul.f32 %v282, %v308
      %v322 = vmul.f32 %v283, %v308
      %v323 = vmul.f32 %v284, %v308
      %v324 = vmul.f32 %v285, %v308
      %v325 = vmul.f32 %v286, %v308
      %v326 = vmul.f32 %v287, %v308
      %v327 = vmul.f32 %v288, %v308
      %v328 = vmul.f32 %v289, %v308
      %v329 = vmul.f32 %v290, %v308
      %v330 = vmul.f32 %v291, %v308
      %v331 = vmul.f32 %v292, %v308
      %v332 = vmul.f32 %v293, %v308
      %v333 = vmul.f32 %v294, %v308
      %v334 = vmul.f32 %v295, %v308
      %v335 = vmul.f32 %v296, %v308
      %v336 = vmul.f32 %v297, %v308
      %v337 = vmul.f32 %v298, %v308
      %v338 = vmul.f32 %v299, %v308
      %v339 = vmul.f32 %v300, %v308
      %v340 = vmul.f32 %v301, %v308
      %v341 = vmul.f32 %v302, %v308
      %v342 = vld [vmem:[%s2] sm:$0x1]
      %v344 = vlaneseq
      %v345 = vshrl.u32 %v344, 7
      %v346 = vsub.s32 0, %v345
      %v347 = vrot.slane %v342, %v346
      %v349 = vadd.f32 %v310, %v347
      %v350 = vadd.f32 %v311, %v347
      %v351 = vadd.f32 %v312, %v347
      %v352 = vadd.f32 %v313, %v347
      %v353 = vadd.f32 %v314, %v347
      %v354 = vadd.f32 %v315, %v347
      %v355 = vadd.f32 %v316, %v347
      %v356 = vadd.f32 %v317, %v347
      %v357 = vadd.f32 %v318, %v347
      %v358 = vadd.f32 %v319, %v347
      %v359 = vadd.f32 %v320, %v347
      %v360 = vadd.f32 %v321, %v347
      %v361 = vadd.f32 %v322, %v347
      %v362 = vadd.f32 %v323, %v347
      %v363 = vadd.f32 %v324, %v347
      %v364 = vadd.f32 %v325, %v347
      %v365 = vadd.f32 %v326, %v347
      %v366 = vadd.f32 %v327, %v347
      %v367 = vadd.f32 %v328, %v347
      %v368 = vadd.f32 %v329, %v347
      %v369 = vadd.f32 %v330, %v347
      %v370 = vadd.f32 %v331, %v347
      %v371 = vadd.f32 %v332, %v347
      %v372 = vadd.f32 %v333, %v347
      %v373 = vadd.f32 %v334, %v347
      %v374 = vadd.f32 %v335, %v347
      %v375 = vadd.f32 %v336, %v347
      %v376 = vadd.f32 %v337, %v347
      %v377 = vadd.f32 %v338, %v347
      %v378 = vadd.f32 %v339, %v347
      %v379 = vadd.f32 %v340, %v347
      %v380 = vadd.f32 %v341, %v347
      %v381 = vmax.f32 %v349, 0.0
      %v382 = vmax.f32 %v350, 0.0
      %v383 = vmax.f32 %v351, 0.0
      %v384 = vmax.f32 %v352, 0.0
      %v385 = vmax.f32 %v353, 0.0
      %v386 = vmax.f32 %v354, 0.0
      %v387 = vmax.f32 %v355, 0.0
      %v388 = vmax.f32 %v356, 0.0
      %v389 = vmax.f32 %v357, 0.0
      %v390 = vmax.f32 %v358, 0.0
      %v391 = vmax.f32 %v359, 0.0
      %v392 = vmax.f32 %v360, 0.0
      %v393 = vmax.f32 %v361, 0.0
      %v394 = vmax.f32 %v362, 0.0
      %v395 = vmax.f32 %v363, 0.0
      %v396 = vmax.f32 %v364, 0.0
      %v397 = vmax.f32 %v365, 0.0
      %v398 = vmax.f32 %v366, 0.0
      %v399 = vmax.f32 %v367, 0.0
      %v400 = vmax.f32 %v368, 0.0
      %v401 = vmax.f32 %v369, 0.0
      %v402 = vmax.f32 %v370, 0.0
      %v403 = vmax.f32 %v371, 0.0
      %v404 = vmax.f32 %v372, 0.0
      %v405 = vmax.f32 %v373, 0.0
      %v406 = vmax.f32 %v374, 0.0
      %v407 = vmax.f32 %v375, 0.0
      %v408 = vmax.f32 %v376, 0.0
      %v409 = vmax.f32 %v377, 0.0
      %v410 = vmax.f32 %v378, 0.0
      %v411 = vmax.f32 %v379, 0.0
      %v412 = vmax.f32 %v380, 0.0
      %v413 = vpack.c.bf16 %v382, %v381
      %v414 = vpack.c.bf16 %v384, %v383
      %v415 = vpack.c.bf16 %v386, %v385
      %v416 = vpack.c.bf16 %v388, %v387
      %v417 = vpack.c.bf16 %v390, %v389
      %v418 = vpack.c.bf16 %v392, %v391
      %v419 = vpack.c.bf16 %v394, %v393
      %v420 = vpack.c.bf16 %v396, %v395
      %v421 = vpack.c.bf16 %v398, %v397
      %v422 = vpack.c.bf16 %v400, %v399
      %v423 = vpack.c.bf16 %v402, %v401
      %v424 = vpack.c.bf16 %v404, %v403
      %v425 = vpack.c.bf16 %v406, %v405
      %v426 = vpack.c.bf16 %v408, %v407
      %v427 = vpack.c.bf16 %v410, %v409
      %v428 = vpack.c.bf16 %v412, %v411
      %v429 = vlaneseq
      %v430 = vshrl.u32 %v429, 7
      %v431 = vadd.s32 %v430, 8
      %v432 = vadd.s32 %v430, 16
      %v433 = vadd.s32 %v430, 24
      %v434 = vadd.s32 %v430, 32
      %v435 = vadd.s32 %v430, 40
      %v436 = vadd.s32 %v430, 48
      %v437 = vadd.s32 %v430, 56
      %v438 = vadd.s32 %v430, 64
      %v439 = vadd.s32 %v430, 72
      %v440 = vadd.s32 %v430, 80
      %v441 = vadd.s32 %v430, 88
      %v442 = vadd.s32 %v430, 96
      %v443 = vadd.s32 %v430, 104
      %v444 = vadd.s32 %v430, 112
      %v445 = vadd.s32 %v430, 120
      %v446 = vadd.s32 %v430, 128
      %v447 = vadd.s32 %v430, 136
      %v448 = vadd.s32 %v430, 144
      %v449 = vadd.s32 %v430, 152
      %v450 = vadd.s32 %v430, 160
      %v451 = vadd.s32 %v430, 168
      %v452 = vadd.s32 %v430, 176
      %v453 = vadd.s32 %v430, 184
      %v454 = vadd.s32 %v430, 192
      %v455 = vadd.s32 %v430, 200
      %v456 = vadd.s32 %v430, 208
      %v457 = vadd.s32 %v430, 216
      %v458 = vadd.s32 %v430, 224
      %v459 = vadd.s32 %v430, 232
      %v460 = vadd.s32 %v430, 240
      %v461 = vadd.s32 %v430, 248
      %vm462 = vcmp.lt.s32.totalorder %v430, 0
      %v463 = vsub.s32 0, %v430
      %v464 = vsel %vm462, %v463, %v430
      %v465 = vshrl.u32 %v464, 4
      %v466 = vand.u32 %v464, 15
      %v467 = vsub.s32 0, %v466
      %v468 = vsel %vm462, %v467, %v466
      %vm469 = vcmp.lt.s32.totalorder %v431, 0
      %v470 = vsub.s32 0, %v431
      %v471 = vsel %vm469, %v470, %v431
      %v472 = vshrl.u32 %v471, 4
      %v473 = vand.u32 %v471, 15
      %v474 = vsub.s32 0, %v473
      %v475 = vsel %vm469, %v474, %v473
      %vm476 = vcmp.lt.s32.totalorder %v432, 0
      %v477 = vsub.s32 0, %v432
      %v478 = vsel %vm476, %v477, %v432
      %v479 = vshrl.u32 %v478, 4
      %v480 = vand.u32 %v478, 15
      %v481 = vsub.s32 0, %v480
      %v482 = vsel %vm476, %v481, %v480
      %vm483 = vcmp.lt.s32.totalorder %v433, 0
      %v484 = vsub.s32 0, %v433
      %v485 = vsel %vm483, %v484, %v433
      %v486 = vshrl.u32 %v485, 4
      %v487 = vand.u32 %v485, 15
      %v488 = vsub.s32 0, %v487
      %v489 = vsel %vm483, %v488, %v487
      %vm490 = vcmp.lt.s32.totalorder %v434, 0
      %v491 = vsub.s32 0, %v434
      %v492 = vsel %vm490, %v491, %v434
      %v493 = vshrl.u32 %v492, 4
      %v494 = vand.u32 %v492, 15
      %v495 = vsub.s32 0, %v494
      %v496 = vsel %vm490, %v495, %v494
      %vm497 = vcmp.lt.s32.totalorder %v435, 0
      %v498 = vsub.s32 0, %v435
      %v499 = vsel %vm497, %v498, %v435
      %v500 = vshrl.u32 %v499, 4
      %v501 = vand.u32 %v499, 15
      %v502 = vsub.s32 0, %v501
      %v503 = vsel %vm497, %v502, %v501
      %vm504 = vcmp.lt.s32.totalorder %v436, 0
      %v505 = vsub.s32 0, %v436
      %v506 = vsel %vm504, %v505, %v436
      %v507 = vshrl.u32 %v506, 4
      %v508 = vand.u32 %v506, 15
      %v509 = vsub.s32 0, %v508
      %v510 = vsel %vm504, %v509, %v508
      %vm511 = vcmp.lt.s32.totalorder %v437, 0
      %v512 = vsub.s32 0, %v437
      %v513 = vsel %vm511, %v512, %v437
      %v514 = vshrl.u32 %v513, 4
      %v515 = vand.u32 %v513, 15
      %v516 = vsub.s32 0, %v515
      %v517 = vsel %vm511, %v516, %v515
      %vm518 = vcmp.lt.s32.totalorder %v438, 0
      %v519 = vsub.s32 0, %v438
      %v520 = vsel %vm518, %v519, %v438
      %v521 = vshrl.u32 %v520, 4
      %v522 = vand.u32 %v520, 15
      %v523 = vsub.s32 0, %v522
      %v524 = vsel %vm518, %v523, %v522
      %vm525 = vcmp.lt.s32.totalorder %v439, 0
      %v526 = vsub.s32 0, %v439
      %v527 = vsel %vm525, %v526, %v439
      %v528 = vshrl.u32 %v527, 4
      %v529 = vand.u32 %v527, 15
      %v530 = vsub.s32 0, %v529
      %v531 = vsel %vm525, %v530, %v529
      %vm532 = vcmp.lt.s32.totalorder %v440, 0
      %v533 = vsub.s32 0, %v440
      %v534 = vsel %vm532, %v533, %v440
      %v535 = vshrl.u32 %v534, 4
      %v536 = vand.u32 %v534, 15
      %v537 = vsub.s32 0, %v536
      %v538 = vsel %vm532, %v537, %v536
      %vm539 = vcmp.lt.s32.totalorder %v441, 0
      %v540 = vsub.s32 0, %v441
      %v541 = vsel %vm539, %v540, %v441
      %v542 = vshrl.u32 %v541, 4
      %v543 = vand.u32 %v541, 15
      %v544 = vsub.s32 0, %v543
      %v545 = vsel %vm539, %v544, %v543
      %vm546 = vcmp.lt.s32.totalorder %v442, 0
      %v547 = vsub.s32 0, %v442
      %v548 = vsel %vm546, %v547, %v442
      %v549 = vshrl.u32 %v548, 4
      %v550 = vand.u32 %v548, 15
      %v551 = vsub.s32 0, %v550
      %v552 = vsel %vm546, %v551, %v550
      %vm553 = vcmp.lt.s32.totalorder %v443, 0
      %v554 = vsub.s32 0, %v443
      %v555 = vsel %vm553, %v554, %v443
      %v556 = vshrl.u32 %v555, 4
      %v557 = vand.u32 %v555, 15
      %v558 = vsub.s32 0, %v557
      %v559 = vsel %vm553, %v558, %v557
      %vm560 = vcmp.lt.s32.totalorder %v444, 0
      %v561 = vsub.s32 0, %v444
      %v562 = vsel %vm560, %v561, %v444
      %v563 = vshrl.u32 %v562, 4
      %v564 = vand.u32 %v562, 15
      %v565 = vsub.s32 0, %v564
      %v566 = vsel %vm560, %v565, %v564
      %vm567 = vcmp.lt.s32.totalorder %v445, 0
      %v568 = vsub.s32 0, %v445
      %v569 = vsel %vm567, %v568, %v445
      %v570 = vshrl.u32 %v569, 4
      %v571 = vand.u32 %v569, 15
      %v572 = vsub.s32 0, %v571
      %v573 = vsel %vm567, %v572, %v571
      %vm574 = vcmp.lt.s32.totalorder %v446, 0
      %v575 = vsub.s32 0, %v446
      %v576 = vsel %vm574, %v575, %v446
      %v577 = vshrl.u32 %v576, 4
      %v578 = vand.u32 %v576, 15
      %v579 = vsub.s32 0, %v578
      %v580 = vsel %vm574, %v579, %v578
      %vm581 = vcmp.lt.s32.totalorder %v447, 0
      %v582 = vsub.s32 0, %v447
      %v583 = vsel %vm581, %v582, %v447
      %v584 = vshrl.u32 %v583, 4
      %v585 = vand.u32 %v583, 15
      %v586 = vsub.s32 0, %v585
      %v587 = vsel %vm581, %v586, %v585
      %vm588 = vcmp.lt.s32.totalorder %v448, 0
      %v589 = vsub.s32 0, %v448
      %v590 = vsel %vm588, %v589, %v448
      %v591 = vshrl.u32 %v590, 4
      %v592 = vand.u32 %v590, 15
      %v593 = vsub.s32 0, %v592
      %v594 = vsel %vm588, %v593, %v592
      %vm595 = vcmp.lt.s32.totalorder %v449, 0
      %v596 = vsub.s32 0, %v449
      %v597 = vsel %vm595, %v596, %v449
      %v598 = vshrl.u32 %v597, 4
      %v599 = vand.u32 %v597, 15
      %v600 = vsub.s32 0, %v599
      %v601 = vsel %vm595, %v600, %v599
      %vm602 = vcmp.lt.s32.totalorder %v450, 0
      %v603 = vsub.s32 0, %v450
      %v604 = vsel %vm602, %v603, %v450
      %v605 = vshrl.u32 %v604, 4
      %v606 = vand.u32 %v604, 15
      %v607 = vsub.s32 0, %v606
      %v608 = vsel %vm602, %v607, %v606
      %vm609 = vcmp.lt.s32.totalorder %v451, 0
      %v610 = vsub.s32 0, %v451
      %v611 = vsel %vm609, %v610, %v451
      %v612 = vshrl.u32 %v611, 4
      %v613 = vand.u32 %v611, 15
      %v614 = vsub.s32 0, %v613
      %v615 = vsel %vm609, %v614, %v613
      %vm616 = vcmp.lt.s32.totalorder %v452, 0
      %v617 = vsub.s32 0, %v452
      %v618 = vsel %vm616, %v617, %v452
      %v619 = vshrl.u32 %v618, 4
      %v620 = vand.u32 %v618, 15
      %v621 = vsub.s32 0, %v620
      %v622 = vsel %vm616, %v621, %v620
      %vm623 = vcmp.lt.s32.totalorder %v453, 0
      %v624 = vsub.s32 0, %v453
      %v625 = vsel %vm623, %v624, %v453
      %v626 = vshrl.u32 %v625, 4
      %v627 = vand.u32 %v625, 15
      %v628 = vsub.s32 0, %v627
      %v629 = vsel %vm623, %v628, %v627
      %vm630 = vcmp.lt.s32.totalorder %v454, 0
      %v631 = vsub.s32 0, %v454
      %v632 = vsel %vm630, %v631, %v454
      %v633 = vshrl.u32 %v632, 4
      %v634 = vand.u32 %v632, 15
      %v635 = vsub.s32 0, %v634
      %v636 = vsel %vm630, %v635, %v634
      %vm637 = vcmp.lt.s32.totalorder %v455, 0
      %v638 = vsub.s32 0, %v455
      %v639 = vsel %vm637, %v638, %v455
      %v640 = vshrl.u32 %v639, 4
      %v641 = vand.u32 %v639, 15
      %v642 = vsub.s32 0, %v641
      %v643 = vsel %vm637, %v642, %v641
      %vm644 = vcmp.lt.s32.totalorder %v456, 0
      %v645 = vsub.s32 0, %v456
      %v646 = vsel %vm644, %v645, %v456
      %v647 = vshrl.u32 %v646, 4
      %v648 = vand.u32 %v646, 15
      %v649 = vsub.s32 0, %v648
      %v650 = vsel %vm644, %v649, %v648
      %vm651 = vcmp.lt.s32.totalorder %v457, 0
      %v652 = vsub.s32 0, %v457
      %v653 = vsel %vm651, %v652, %v457
      %v654 = vshrl.u32 %v653, 4
      %v655 = vand.u32 %v653, 15
      %v656 = vsub.s32 0, %v655
      %v657 = vsel %vm651, %v656, %v655
      %vm658 = vcmp.lt.s32.totalorder %v458, 0
      %v659 = vsub.s32 0, %v458
      %v660 = vsel %vm658, %v659, %v458
      %v661 = vshrl.u32 %v660, 4
      %v662 = vand.u32 %v660, 15
      %v663 = vsub.s32 0, %v662
      %v664 = vsel %vm658, %v663, %v662
      %vm665 = vcmp.lt.s32.totalorder %v459, 0
      %v666 = vsub.s32 0, %v459
      %v667 = vsel %vm665, %v666, %v459
      %v668 = vshrl.u32 %v667, 4
      %v669 = vand.u32 %v667, 15
      %v670 = vsub.s32 0, %v669
      %v671 = vsel %vm665, %v670, %v669
      %vm672 = vcmp.lt.s32.totalorder %v460, 0
      %v673 = vsub.s32 0, %v460
      %v674 = vsel %vm672, %v673, %v460
      %v675 = vshrl.u32 %v674, 4
      %v676 = vand.u32 %v674, 15
      %v677 = vsub.s32 0, %v676
      %v678 = vsel %vm672, %v677, %v676
      %vm679 = vcmp.lt.s32.totalorder %v461, 0
      %v680 = vsub.s32 0, %v461
      %v681 = vsel %vm679, %v680, %v461
      %v682 = vshrl.u32 %v681, 4
      %v683 = vand.u32 %v681, 15
      %v684 = vsub.s32 0, %v683
      %v685 = vsel %vm679, %v684, %v683
      %vm686 = vcmp.ne.s32.totalorder %v468, 0
      %vm687 = vcmp.ne.s32.totalorder %v475, 0
      %vm688 = vcmp.ne.s32.totalorder %v482, 0
      %vm689 = vcmp.ne.s32.totalorder %v489, 0
      %vm690 = vcmp.ne.s32.totalorder %v496, 0
      %vm691 = vcmp.ne.s32.totalorder %v503, 0
      %vm692 = vcmp.ne.s32.totalorder %v510, 0
      %vm693 = vcmp.ne.s32.totalorder %v517, 0
      %vm694 = vcmp.ne.s32.totalorder %v524, 0
      %vm695 = vcmp.ne.s32.totalorder %v531, 0
      %vm696 = vcmp.ne.s32.totalorder %v538, 0
      %vm697 = vcmp.ne.s32.totalorder %v545, 0
      %vm698 = vcmp.ne.s32.totalorder %v552, 0
      %vm699 = vcmp.ne.s32.totalorder %v559, 0
      %vm700 = vcmp.ne.s32.totalorder %v566, 0
      %vm701 = vcmp.ne.s32.totalorder %v573, 0
      %vm702 = vcmp.ne.s32.totalorder %v580, 0
      %vm703 = vcmp.ne.s32.totalorder %v587, 0
      %vm704 = vcmp.ne.s32.totalorder %v594, 0
      %vm705 = vcmp.ne.s32.totalorder %v601, 0
      %vm706 = vcmp.ne.s32.totalorder %v608, 0
      %vm707 = vcmp.ne.s32.totalorder %v615, 0
      %vm708 = vcmp.ne.s32.totalorder %v622, 0
      %vm709 = vcmp.ne.s32.totalorder %v629, 0
      %vm710 = vcmp.ne.s32.totalorder %v636, 0
      %vm711 = vcmp.ne.s32.totalorder %v643, 0
      %vm712 = vcmp.ne.s32.totalorder %v650, 0
      %vm713 = vcmp.ne.s32.totalorder %v657, 0
      %vm714 = vcmp.ne.s32.totalorder %v664, 0
      %vm715 = vcmp.ne.s32.totalorder %v671, 0
      %vm716 = vcmp.ne.s32.totalorder %v678, 0
      %vm717 = vcmp.ne.s32.totalorder %v685, 0
      %vm718 = vcmp.lt.s32.totalorder %v468, 0
      %vm719 = vcmp.lt.s32.totalorder %v475, 0
      %vm720 = vcmp.lt.s32.totalorder %v482, 0
      %vm721 = vcmp.lt.s32.totalorder %v489, 0
      %vm722 = vcmp.lt.s32.totalorder %v496, 0
      %vm723 = vcmp.lt.s32.totalorder %v503, 0
      %vm724 = vcmp.lt.s32.totalorder %v510, 0
      %vm725 = vcmp.lt.s32.totalorder %v517, 0
      %vm726 = vcmp.lt.s32.totalorder %v524, 0
      %vm727 = vcmp.lt.s32.totalorder %v531, 0
      %vm728 = vcmp.lt.s32.totalorder %v538, 0
      %vm729 = vcmp.lt.s32.totalorder %v545, 0
      %vm730 = vcmp.lt.s32.totalorder %v552, 0
      %vm731 = vcmp.lt.s32.totalorder %v559, 0
      %vm732 = vcmp.lt.s32.totalorder %v566, 0
      %vm733 = vcmp.lt.s32.totalorder %v573, 0
      %vm734 = vcmp.lt.s32.totalorder %v580, 0
      %vm735 = vcmp.lt.s32.totalorder %v587, 0
      %vm736 = vcmp.lt.s32.totalorder %v594, 0
      %vm737 = vcmp.lt.s32.totalorder %v601, 0
      %vm738 = vcmp.lt.s32.totalorder %v608, 0
      %vm739 = vcmp.lt.s32.totalorder %v615, 0
      %vm740 = vcmp.lt.s32.totalorder %v622, 0
      %vm741 = vcmp.lt.s32.totalorder %v629, 0
      %vm742 = vcmp.lt.s32.totalorder %v636, 0
      %vm743 = vcmp.lt.s32.totalorder %v643, 0
      %vm744 = vcmp.lt.s32.totalorder %v650, 0
      %vm745 = vcmp.lt.s32.totalorder %v657, 0
      %vm746 = vcmp.lt.s32.totalorder %v664, 0
      %vm747 = vcmp.lt.s32.totalorder %v671, 0
      %vm748 = vcmp.lt.s32.totalorder %v678, 0
      %vm749 = vcmp.lt.s32.totalorder %v685, 0
      %vm750 = vmand %vm718, %vm686
      %vm751 = vmand %vm719, %vm687
      %vm752 = vmand %vm720, %vm688
      %vm753 = vmand %vm721, %vm689
      %vm754 = vmand %vm722, %vm690
      %vm755 = vmand %vm723, %vm691
      %vm756 = vmand %vm724, %vm692
      %vm757 = vmand %vm725, %vm693
      %vm758 = vmand %vm726, %vm694
      %vm759 = vmand %vm727, %vm695
      %vm760 = vmand %vm728, %vm696
      %vm761 = vmand %vm729, %vm697
      %vm762 = vmand %vm730, %vm698
      %vm763 = vmand %vm731, %vm699
      %vm764 = vmand %vm732, %vm700
      %vm765 = vmand %vm733, %vm701
      %vm766 = vmand %vm734, %vm702
      %vm767 = vmand %vm735, %vm703
      %vm768 = vmand %vm736, %vm704
      %vm769 = vmand %vm737, %vm705
      %vm770 = vmand %vm738, %vm706
      %vm771 = vmand %vm739, %vm707
      %vm772 = vmand %vm740, %vm708
      %vm773 = vmand %vm741, %vm709
      %vm774 = vmand %vm742, %vm710
      %vm775 = vmand %vm743, %vm711
      %vm776 = vmand %vm744, %vm712
      %vm777 = vmand %vm745, %vm713
      %vm778 = vmand %vm746, %vm714
      %vm779 = vmand %vm747, %vm715
      %vm780 = vmand %vm748, %vm716
      %vm781 = vmand %vm749, %vm717
      %v782 = vadd.s32 %v468, 16
      %v783 = vadd.s32 %v475, 16
      %v784 = vadd.s32 %v482, 16
      %v785 = vadd.s32 %v489, 16
      %v786 = vadd.s32 %v496, 16
      %v787 = vadd.s32 %v503, 16
      %v788 = vadd.s32 %v510, 16
      %v789 = vadd.s32 %v517, 16
      %v790 = vadd.s32 %v524, 16
      %v791 = vadd.s32 %v531, 16
      %v792 = vadd.s32 %v538, 16
      %v793 = vadd.s32 %v545, 16
      %v794 = vadd.s32 %v552, 16
      %v795 = vadd.s32 %v559, 16
      %v796 = vadd.s32 %v566, 16
      %v797 = vadd.s32 %v573, 16
      %v798 = vadd.s32 %v580, 16
      %v799 = vadd.s32 %v587, 16
      %v800 = vadd.s32 %v594, 16
      %v801 = vadd.s32 %v601, 16
      %v802 = vadd.s32 %v608, 16
      %v803 = vadd.s32 %v615, 16
      %v804 = vadd.s32 %v622, 16
      %v805 = vadd.s32 %v629, 16
      %v806 = vadd.s32 %v636, 16
      %v807 = vadd.s32 %v643, 16
      %v808 = vadd.s32 %v650, 16
      %v809 = vadd.s32 %v657, 16
      %v810 = vadd.s32 %v664, 16
      %v811 = vadd.s32 %v671, 16
      %v812 = vadd.s32 %v678, 16
      %v813 = vadd.s32 %v685, 16
      %v814 = vsel %vm750, %v782, %v468
      %v815 = vsel %vm751, %v783, %v475
      %v816 = vsel %vm752, %v784, %v482
      %v817 = vsel %vm753, %v785, %v489
      %v818 = vsel %vm754, %v786, %v496
      %v819 = vsel %vm755, %v787, %v503
      %v820 = vsel %vm756, %v788, %v510
      %v821 = vsel %vm757, %v789, %v517
      %v822 = vsel %vm758, %v790, %v524
      %v823 = vsel %vm759, %v791, %v531
      %v824 = vsel %vm760, %v792, %v538
      %v825 = vsel %vm761, %v793, %v545
      %v826 = vsel %vm762, %v794, %v552
      %v827 = vsel %vm763, %v795, %v559
      %v828 = vsel %vm764, %v796, %v566
      %v829 = vsel %vm765, %v797, %v573
      %v830 = vsel %vm766, %v798, %v580
      %v831 = vsel %vm767, %v799, %v587
      %v832 = vsel %vm768, %v800, %v594
      %v833 = vsel %vm769, %v801, %v601
      %v834 = vsel %vm770, %v802, %v608
      %v835 = vsel %vm771, %v803, %v615
      %v836 = vsel %vm772, %v804, %v622
      %v837 = vsel %vm773, %v805, %v629
      %v838 = vsel %vm774, %v806, %v636
      %v839 = vsel %vm775, %v807, %v643
      %v840 = vsel %vm776, %v808, %v650
      %v841 = vsel %vm777, %v809, %v657
      %v842 = vsel %vm778, %v810, %v664
      %v843 = vsel %vm779, %v811, %v671
      %v844 = vsel %vm780, %v812, %v678
      %v845 = vsel %vm781, %v813, %v685
      %vm846 = vcmp.lt.s32.totalorder %v814, 15
      %vm847 = vcmp.lt.s32.totalorder %v815, 15
      %vm848 = vcmp.lt.s32.totalorder %v816, 15
      %vm849 = vcmp.lt.s32.totalorder %v817, 15
      %vm850 = vcmp.lt.s32.totalorder %v818, 15
      %vm851 = vcmp.lt.s32.totalorder %v819, 15
      %vm852 = vcmp.lt.s32.totalorder %v820, 15
      %vm853 = vcmp.lt.s32.totalorder %v821, 15
      %vm854 = vcmp.lt.s32.totalorder %v822, 15
      %vm855 = vcmp.lt.s32.totalorder %v823, 15
      %vm856 = vcmp.lt.s32.totalorder %v824, 15
      %vm857 = vcmp.lt.s32.totalorder %v825, 15
      %vm858 = vcmp.lt.s32.totalorder %v826, 15
      %vm859 = vcmp.lt.s32.totalorder %v827, 15
      %vm860 = vcmp.lt.s32.totalorder %v828, 15
      %vm861 = vcmp.lt.s32.totalorder %v829, 15
      %vm862 = vcmp.lt.s32.totalorder %v830, 15
      %vm863 = vcmp.lt.s32.totalorder %v831, 15
      %vm864 = vcmp.lt.s32.totalorder %v832, 15
      %vm865 = vcmp.lt.s32.totalorder %v833, 15
      %vm866 = vcmp.lt.s32.totalorder %v834, 15
      %vm867 = vcmp.lt.s32.totalorder %v835, 15
      %vm868 = vcmp.lt.s32.totalorder %v836, 15
      %vm869 = vcmp.lt.s32.totalorder %v837, 15
      %vm870 = vcmp.lt.s32.totalorder %v838, 15
      %vm871 = vcmp.lt.s32.totalorder %v839, 15
      %vm872 = vcmp.lt.s32.totalorder %v840, 15
      %vm873 = vcmp.lt.s32.totalorder %v841, 15
      %vm874 = vcmp.lt.s32.totalorder %v842, 15
      %vm875 = vcmp.lt.s32.totalorder %v843, 15
      %vm876 = vcmp.lt.s32.totalorder %v844, 15
      %vm877 = vcmp.lt.s32.totalorder %v845, 15
      %v878 = vsel %vm846, 1, 0
      %v879 = vsel %vm847, 1, 0
      %v880 = vsel %vm848, 1, 0
      %v881 = vsel %vm849, 1, 0
      %v882 = vsel %vm850, 1, 0
      %v883 = vsel %vm851, 1, 0
      %v884 = vsel %vm852, 1, 0
      %v885 = vsel %vm853, 1, 0
      %v886 = vsel %vm854, 1, 0
      %v887 = vsel %vm855, 1, 0
      %v888 = vsel %vm856, 1, 0
      %v889 = vsel %vm857, 1, 0
      %v890 = vsel %vm858, 1, 0
      %v891 = vsel %vm859, 1, 0
      %v892 = vsel %vm860, 1, 0
      %v893 = vsel %vm861, 1, 0
      %v894 = vsel %vm862, 1, 0
      %v895 = vsel %vm863, 1, 0
      %v896 = vsel %vm864, 1, 0
      %v897 = vsel %vm865, 1, 0
      %v898 = vsel %vm866, 1, 0
      %v899 = vsel %vm867, 1, 0
      %v900 = vsel %vm868, 1, 0
      %v901 = vsel %vm869, 1, 0
      %v902 = vsel %vm870, 1, 0
      %v903 = vsel %vm871, 1, 0
      %v904 = vsel %vm872, 1, 0
      %v905 = vsel %vm873, 1, 0
      %v906 = vsel %vm874, 1, 0
      %v907 = vsel %vm875, 1, 0
      %v908 = vsel %vm876, 1, 0
      %v909 = vsel %vm877, 1, 0
      %vm910 = vcmp.eq.s32.totalorder %v878, 1
      %vm911 = vcmp.eq.s32.totalorder %v879, 1
      %vm912 = vcmp.eq.s32.totalorder %v880, 1
      %vm913 = vcmp.eq.s32.totalorder %v881, 1
      %vm914 = vcmp.eq.s32.totalorder %v882, 1
      %vm915 = vcmp.eq.s32.totalorder %v883, 1
      %vm916 = vcmp.eq.s32.totalorder %v884, 1
      %vm917 = vcmp.eq.s32.totalorder %v885, 1
      %vm918 = vcmp.eq.s32.totalorder %v886, 1
      %vm919 = vcmp.eq.s32.totalorder %v887, 1
      %vm920 = vcmp.eq.s32.totalorder %v888, 1
      %vm921 = vcmp.eq.s32.totalorder %v889, 1
      %vm922 = vcmp.eq.s32.totalorder %v890, 1
      %vm923 = vcmp.eq.s32.totalorder %v891, 1
      %vm924 = vcmp.eq.s32.totalorder %v892, 1
      %vm925 = vcmp.eq.s32.totalorder %v893, 1
      %vm926 = vcmp.eq.s32.totalorder %v894, 1
      %vm927 = vcmp.eq.s32.totalorder %v895, 1
      %vm928 = vcmp.eq.s32.totalorder %v896, 1
      %vm929 = vcmp.eq.s32.totalorder %v897, 1
      %vm930 = vcmp.eq.s32.totalorder %v898, 1
      %vm931 = vcmp.eq.s32.totalorder %v899, 1
      %vm932 = vcmp.eq.s32.totalorder %v900, 1
      %vm933 = vcmp.eq.s32.totalorder %v901, 1
      %vm934 = vcmp.eq.s32.totalorder %v902, 1
      %vm935 = vcmp.eq.s32.totalorder %v903, 1
      %vm936 = vcmp.eq.s32.totalorder %v904, 1
      %vm937 = vcmp.eq.s32.totalorder %v905, 1
      %vm938 = vcmp.eq.s32.totalorder %v906, 1
      %vm939 = vcmp.eq.s32.totalorder %v907, 1
      %vm940 = vcmp.eq.s32.totalorder %v908, 1
      %vm941 = vcmp.eq.s32.totalorder %v909, 1
      %vm942 = vmpackc.low %vm910, %vm910
      %vm943 = vmpackc.low %vm911, %vm911
      %vm944 = vmpackc.low %vm912, %vm912
      %vm945 = vmpackc.low %vm913, %vm913
      %vm946 = vmpackc.low %vm914, %vm914
      %vm947 = vmpackc.low %vm915, %vm915
      %vm948 = vmpackc.low %vm916, %vm916
      %vm949 = vmpackc.low %vm917, %vm917
      %vm950 = vmpackc.low %vm918, %vm918
      %vm951 = vmpackc.low %vm919, %vm919
      %vm952 = vmpackc.low %vm920, %vm920
      %vm953 = vmpackc.low %vm921, %vm921
      %vm954 = vmpackc.low %vm922, %vm922
      %vm955 = vmpackc.low %vm923, %vm923
      %vm956 = vmpackc.low %vm924, %vm924
      %vm957 = vmpackc.low %vm925, %vm925
      %vm958 = vmpackc.low %vm926, %vm926
      %vm959 = vmpackc.low %vm927, %vm927
      %vm960 = vmpackc.low %vm928, %vm928
      %vm961 = vmpackc.low %vm929, %vm929
      %vm962 = vmpackc.low %vm930, %vm930
      %vm963 = vmpackc.low %vm931, %vm931
      %vm964 = vmpackc.low %vm932, %vm932
      %vm965 = vmpackc.low %vm933, %vm933
      %vm966 = vmpackc.low %vm934, %vm934
      %vm967 = vmpackc.low %vm935, %vm935
      %vm968 = vmpackc.low %vm936, %vm936
      %vm969 = vmpackc.low %vm937, %vm937
      %vm970 = vmpackc.low %vm938, %vm938
      %vm971 = vmpackc.low %vm939, %vm939
      %vm972 = vmpackc.low %vm940, %vm940
      %vm973 = vmpackc.low %vm941, %vm941
      %v974 = vsel %vm942, 65537, 0
      %v975 = vsel %vm943, 65537, 0
      %v976 = vsel %vm944, 65537, 0
      %v977 = vsel %vm945, 65537, 0
      %v978 = vsel %vm946, 65537, 0
      %v979 = vsel %vm947, 65537, 0
      %v980 = vsel %vm948, 65537, 0
      %v981 = vsel %vm949, 65537, 0
      %v982 = vsel %vm950, 65537, 0
      %v983 = vsel %vm951, 65537, 0
      %v984 = vsel %vm952, 65537, 0
      %v985 = vsel %vm953, 65537, 0
      %v986 = vsel %vm954, 65537, 0
      %v987 = vsel %vm955, 65537, 0
      %v988 = vsel %vm956, 65537, 0
      %v989 = vsel %vm957, 65537, 0
      %v990 = vsel %vm958, 65537, 0
      %v991 = vsel %vm959, 65537, 0
      %v992 = vsel %vm960, 65537, 0
      %v993 = vsel %vm961, 65537, 0
      %v994 = vsel %vm962, 65537, 0
      %v995 = vsel %vm963, 65537, 0
      %v996 = vsel %vm964, 65537, 0
      %v997 = vsel %vm965, 65537, 0
      %v998 = vsel %vm966, 65537, 0
      %v999 = vsel %vm967, 65537, 0
      %v1000 = vsel %vm968, 65537, 0
      %v1001 = vsel %vm969, 65537, 0
      %v1002 = vsel %vm970, 65537, 0
      %v1003 = vsel %vm971, 65537, 0
      %v1004 = vsel %vm972, 65537, 0
      %v1005 = vsel %vm973, 65537, 0
      %v1006 = vunpack.c.l.b16 %v974
      %v1007 = vunpack.c.l.b16 %v975
      %v1008 = vunpack.c.l.b16 %v976
      %v1009 = vunpack.c.l.b16 %v977
      %v1010 = vunpack.c.l.b16 %v978
      %v1011 = vunpack.c.l.b16 %v979
      %v1012 = vunpack.c.l.b16 %v980
      %v1013 = vunpack.c.l.b16 %v981
      %v1014 = vunpack.c.l.b16 %v982
      %v1015 = vunpack.c.l.b16 %v983
      %v1016 = vunpack.c.l.b16 %v984
      %v1017 = vunpack.c.l.b16 %v985
      %v1018 = vunpack.c.l.b16 %v986
      %v1019 = vunpack.c.l.b16 %v987
      %v1020 = vunpack.c.l.b16 %v988
      %v1021 = vunpack.c.l.b16 %v989
      %v1022 = vunpack.c.l.b16 %v990
      %v1023 = vunpack.c.l.b16 %v991
      %v1024 = vunpack.c.l.b16 %v992
      %v1025 = vunpack.c.l.b16 %v993
      %v1026 = vunpack.c.l.b16 %v994
      %v1027 = vunpack.c.l.b16 %v995
      %v1028 = vunpack.c.l.b16 %v996
      %v1029 = vunpack.c.l.b16 %v997
      %v1030 = vunpack.c.l.b16 %v998
      %v1031 = vunpack.c.l.b16 %v999
      %v1032 = vunpack.c.l.b16 %v1000
      %v1033 = vunpack.c.l.b16 %v1001
      %v1034 = vunpack.c.l.b16 %v1002
      %v1035 = vunpack.c.l.b16 %v1003
      %v1036 = vunpack.c.l.b16 %v1004
      %v1037 = vunpack.c.l.b16 %v1005
      %v1038 = vpack.c.b16 %v1007, %v1006
      %v1039 = vpack.c.b16 %v1009, %v1008
      %v1040 = vpack.c.b16 %v1011, %v1010
      %v1041 = vpack.c.b16 %v1013, %v1012
      %v1042 = vpack.c.b16 %v1015, %v1014
      %v1043 = vpack.c.b16 %v1017, %v1016
      %v1044 = vpack.c.b16 %v1019, %v1018
      %v1045 = vpack.c.b16 %v1021, %v1020
      %v1046 = vpack.c.b16 %v1023, %v1022
      %v1047 = vpack.c.b16 %v1025, %v1024
      %v1048 = vpack.c.b16 %v1027, %v1026
      %v1049 = vpack.c.b16 %v1029, %v1028
      %v1050 = vpack.c.b16 %v1031, %v1030
      %v1051 = vpack.c.b16 %v1033, %v1032
      %v1052 = vpack.c.b16 %v1035, %v1034
      %v1053 = vpack.c.b16 %v1037, %v1036
      %vm1054 = vcmp.ne.s16.totalorder %v1038, 0
      %vm1055 = vcmp.ne.s16.totalorder %v1039, 0
      %vm1056 = vcmp.ne.s16.totalorder %v1040, 0
      %vm1057 = vcmp.ne.s16.totalorder %v1041, 0
      %vm1058 = vcmp.ne.s16.totalorder %v1042, 0
      %vm1059 = vcmp.ne.s16.totalorder %v1043, 0
      %vm1060 = vcmp.ne.s16.totalorder %v1044, 0
      %vm1061 = vcmp.ne.s16.totalorder %v1045, 0
      %vm1062 = vcmp.ne.s16.totalorder %v1046, 0
      %vm1063 = vcmp.ne.s16.totalorder %v1047, 0
      %vm1064 = vcmp.ne.s16.totalorder %v1048, 0
      %vm1065 = vcmp.ne.s16.totalorder %v1049, 0
      %vm1066 = vcmp.ne.s16.totalorder %v1050, 0
      %vm1067 = vcmp.ne.s16.totalorder %v1051, 0
      %vm1068 = vcmp.ne.s16.totalorder %v1052, 0
      %vm1069 = vcmp.ne.s16.totalorder %v1053, 0
      %v1070 = vsel %vm1054, %v413, 0
      %v1071 = vsel %vm1055, %v414, 0
      %v1072 = vsel %vm1056, %v415, 0
      %v1073 = vsel %vm1057, %v416, 0
      %v1074 = vsel %vm1058, %v417, 0
      %v1075 = vsel %vm1059, %v418, 0
      %v1076 = vsel %vm1060, %v419, 0
      %v1077 = vsel %vm1061, %v420, 0
      %v1078 = vsel %vm1062, %v421, 0
      %v1079 = vsel %vm1063, %v422, 0
      %v1080 = vsel %vm1064, %v423, 0
      %v1081 = vsel %vm1065, %v424, 0
      %v1082 = vsel %vm1066, %v425, 0
      %v1083 = vsel %vm1067, %v426, 0
      %v1084 = vsel %vm1068, %v427, 0
      %v1085 = vsel %vm1069, %v428, 0
      %vm1086 = vcmp.gt.s32.totalorder %v814, 0
      %vm1087 = vcmp.gt.s32.totalorder %v815, 0
      %vm1088 = vcmp.gt.s32.totalorder %v816, 0
      %vm1089 = vcmp.gt.s32.totalorder %v817, 0
      %vm1090 = vcmp.gt.s32.totalorder %v818, 0
      %vm1091 = vcmp.gt.s32.totalorder %v819, 0
      %vm1092 = vcmp.gt.s32.totalorder %v820, 0
      %vm1093 = vcmp.gt.s32.totalorder %v821, 0
      %vm1094 = vcmp.gt.s32.totalorder %v822, 0
      %vm1095 = vcmp.gt.s32.totalorder %v823, 0
      %vm1096 = vcmp.gt.s32.totalorder %v824, 0
      %vm1097 = vcmp.gt.s32.totalorder %v825, 0
      %vm1098 = vcmp.gt.s32.totalorder %v826, 0
      %vm1099 = vcmp.gt.s32.totalorder %v827, 0
      %vm1100 = vcmp.gt.s32.totalorder %v828, 0
      %vm1101 = vcmp.gt.s32.totalorder %v829, 0
      %vm1102 = vcmp.gt.s32.totalorder %v830, 0
      %vm1103 = vcmp.gt.s32.totalorder %v831, 0
      %vm1104 = vcmp.gt.s32.totalorder %v832, 0
      %vm1105 = vcmp.gt.s32.totalorder %v833, 0
      %vm1106 = vcmp.gt.s32.totalorder %v834, 0
      %vm1107 = vcmp.gt.s32.totalorder %v835, 0
      %vm1108 = vcmp.gt.s32.totalorder %v836, 0
      %vm1109 = vcmp.gt.s32.totalorder %v837, 0
      %vm1110 = vcmp.gt.s32.totalorder %v838, 0
      %vm1111 = vcmp.gt.s32.totalorder %v839, 0
      %vm1112 = vcmp.gt.s32.totalorder %v840, 0
      %vm1113 = vcmp.gt.s32.totalorder %v841, 0
      %vm1114 = vcmp.gt.s32.totalorder %v842, 0
      %vm1115 = vcmp.gt.s32.totalorder %v843, 0
      %vm1116 = vcmp.gt.s32.totalorder %v844, 0
      %vm1117 = vcmp.gt.s32.totalorder %v845, 0
      %v1118 = vsel %vm1086, 1, 0
      %v1119 = vsel %vm1087, 1, 0
      %v1120 = vsel %vm1088, 1, 0
      %v1121 = vsel %vm1089, 1, 0
      %v1122 = vsel %vm1090, 1, 0
      %v1123 = vsel %vm1091, 1, 0
      %v1124 = vsel %vm1092, 1, 0
      %v1125 = vsel %vm1093, 1, 0
      %v1126 = vsel %vm1094, 1, 0
      %v1127 = vsel %vm1095, 1, 0
      %v1128 = vsel %vm1096, 1, 0
      %v1129 = vsel %vm1097, 1, 0
      %v1130 = vsel %vm1098, 1, 0
      %v1131 = vsel %vm1099, 1, 0
      %v1132 = vsel %vm1100, 1, 0
      %v1133 = vsel %vm1101, 1, 0
      %v1134 = vsel %vm1102, 1, 0
      %v1135 = vsel %vm1103, 1, 0
      %v1136 = vsel %vm1104, 1, 0
      %v1137 = vsel %vm1105, 1, 0
      %v1138 = vsel %vm1106, 1, 0
      %v1139 = vsel %vm1107, 1, 0
      %v1140 = vsel %vm1108, 1, 0
      %v1141 = vsel %vm1109, 1, 0
      %v1142 = vsel %vm1110, 1, 0
      %v1143 = vsel %vm1111, 1, 0
      %v1144 = vsel %vm1112, 1, 0
      %v1145 = vsel %vm1113, 1, 0
      %v1146 = vsel %vm1114, 1, 0
      %v1147 = vsel %vm1115, 1, 0
      %v1148 = vsel %vm1116, 1, 0
      %v1149 = vsel %vm1117, 1, 0
      %vm1150 = vcmp.eq.s32.totalorder %v1118, 1
      %vm1151 = vcmp.eq.s32.totalorder %v1119, 1
      %vm1152 = vcmp.eq.s32.totalorder %v1120, 1
      %vm1153 = vcmp.eq.s32.totalorder %v1121, 1
      %vm1154 = vcmp.eq.s32.totalorder %v1122, 1
      %vm1155 = vcmp.eq.s32.totalorder %v1123, 1
      %vm1156 = vcmp.eq.s32.totalorder %v1124, 1
      %vm1157 = vcmp.eq.s32.totalorder %v1125, 1
      %vm1158 = vcmp.eq.s32.totalorder %v1126, 1
      %vm1159 = vcmp.eq.s32.totalorder %v1127, 1
      %vm1160 = vcmp.eq.s32.totalorder %v1128, 1
      %vm1161 = vcmp.eq.s32.totalorder %v1129, 1
      %vm1162 = vcmp.eq.s32.totalorder %v1130, 1
      %vm1163 = vcmp.eq.s32.totalorder %v1131, 1
      %vm1164 = vcmp.eq.s32.totalorder %v1132, 1
      %vm1165 = vcmp.eq.s32.totalorder %v1133, 1
      %vm1166 = vcmp.eq.s32.totalorder %v1134, 1
      %vm1167 = vcmp.eq.s32.totalorder %v1135, 1
      %vm1168 = vcmp.eq.s32.totalorder %v1136, 1
      %vm1169 = vcmp.eq.s32.totalorder %v1137, 1
      %vm1170 = vcmp.eq.s32.totalorder %v1138, 1
      %vm1171 = vcmp.eq.s32.totalorder %v1139, 1
      %vm1172 = vcmp.eq.s32.totalorder %v1140, 1
      %vm1173 = vcmp.eq.s32.totalorder %v1141, 1
      %vm1174 = vcmp.eq.s32.totalorder %v1142, 1
      %vm1175 = vcmp.eq.s32.totalorder %v1143, 1
      %vm1176 = vcmp.eq.s32.totalorder %v1144, 1
      %vm1177 = vcmp.eq.s32.totalorder %v1145, 1
      %vm1178 = vcmp.eq.s32.totalorder %v1146, 1
      %vm1179 = vcmp.eq.s32.totalorder %v1147, 1
      %vm1180 = vcmp.eq.s32.totalorder %v1148, 1
      %vm1181 = vcmp.eq.s32.totalorder %v1149, 1
      %vm1182 = vmpackc.low %vm1150, %vm1150
      %vm1183 = vmpackc.low %vm1151, %vm1151
      %vm1184 = vmpackc.low %vm1152, %vm1152
      %vm1185 = vmpackc.low %vm1153, %vm1153
      %vm1186 = vmpackc.low %vm1154, %vm1154
      %vm1187 = vmpackc.low %vm1155, %vm1155
      %vm1188 = vmpackc.low %vm1156, %vm1156
      %vm1189 = vmpackc.low %vm1157, %vm1157
      %vm1190 = vmpackc.low %vm1158, %vm1158
      %vm1191 = vmpackc.low %vm1159, %vm1159
      %vm1192 = vmpackc.low %vm1160, %vm1160
      %vm1193 = vmpackc.low %vm1161, %vm1161
      %vm1194 = vmpackc.low %vm1162, %vm1162
      %vm1195 = vmpackc.low %vm1163, %vm1163
      %vm1196 = vmpackc.low %vm1164, %vm1164
      %vm1197 = vmpackc.low %vm1165, %vm1165
      %vm1198 = vmpackc.low %vm1166, %vm1166
      %vm1199 = vmpackc.low %vm1167, %vm1167
      %vm1200 = vmpackc.low %vm1168, %vm1168
      %vm1201 = vmpackc.low %vm1169, %vm1169
      %vm1202 = vmpackc.low %vm1170, %vm1170
      %vm1203 = vmpackc.low %vm1171, %vm1171
      %vm1204 = vmpackc.low %vm1172, %vm1172
      %vm1205 = vmpackc.low %vm1173, %vm1173
      %vm1206 = vmpackc.low %vm1174, %vm1174
      %vm1207 = vmpackc.low %vm1175, %vm1175
      %vm1208 = vmpackc.low %vm1176, %vm1176
      %vm1209 = vmpackc.low %vm1177, %vm1177
      %vm1210 = vmpackc.low %vm1178, %vm1178
      %vm1211 = vmpackc.low %vm1179, %vm1179
      %vm1212 = vmpackc.low %vm1180, %vm1180
      %vm1213 = vmpackc.low %vm1181, %vm1181
      %v1214 = vsel %vm1182, 65537, 0
      %v1215 = vsel %vm1183, 65537, 0
      %v1216 = vsel %vm1184, 65537, 0
      %v1217 = vsel %vm1185, 65537, 0
      %v1218 = vsel %vm1186, 65537, 0
      %v1219 = vsel %vm1187, 65537, 0
      %v1220 = vsel %vm1188, 65537, 0
      %v1221 = vsel %vm1189, 65537, 0
      %v1222 = vsel %vm1190, 65537, 0
      %v1223 = vsel %vm1191, 65537, 0
      %v1224 = vsel %vm1192, 65537, 0
      %v1225 = vsel %vm1193, 65537, 0
      %v1226 = vsel %vm1194, 65537, 0
      %v1227 = vsel %vm1195, 65537, 0
      %v1228 = vsel %vm1196, 65537, 0
      %v1229 = vsel %vm1197, 65537, 0
      %v1230 = vsel %vm1198, 65537, 0
      %v1231 = vsel %vm1199, 65537, 0
      %v1232 = vsel %vm1200, 65537, 0
      %v1233 = vsel %vm1201, 65537, 0
      %v1234 = vsel %vm1202, 65537, 0
      %v1235 = vsel %vm1203, 65537, 0
      %v1236 = vsel %vm1204, 65537, 0
      %v1237 = vsel %vm1205, 65537, 0
      %v1238 = vsel %vm1206, 65537, 0
      %v1239 = vsel %vm1207, 65537, 0
      %v1240 = vsel %vm1208, 65537, 0
      %v1241 = vsel %vm1209, 65537, 0
      %v1242 = vsel %vm1210, 65537, 0
      %v1243 = vsel %vm1211, 65537, 0
      %v1244 = vsel %vm1212, 65537, 0
      %v1245 = vsel %vm1213, 65537, 0
      %v1246 = vunpack.c.l.b16 %v1214
      %v1247 = vunpack.c.l.b16 %v1215
      %v1248 = vunpack.c.l.b16 %v1216
      %v1249 = vunpack.c.l.b16 %v1217
      %v1250 = vunpack.c.l.b16 %v1218
      %v1251 = vunpack.c.l.b16 %v1219
      %v1252 = vunpack.c.l.b16 %v1220
      %v1253 = vunpack.c.l.b16 %v1221
      %v1254 = vunpack.c.l.b16 %v1222
      %v1255 = vunpack.c.l.b16 %v1223
      %v1256 = vunpack.c.l.b16 %v1224
      %v1257 = vunpack.c.l.b16 %v1225
      %v1258 = vunpack.c.l.b16 %v1226
      %v1259 = vunpack.c.l.b16 %v1227
      %v1260 = vunpack.c.l.b16 %v1228
      %v1261 = vunpack.c.l.b16 %v1229
      %v1262 = vunpack.c.l.b16 %v1230
      %v1263 = vunpack.c.l.b16 %v1231
      %v1264 = vunpack.c.l.b16 %v1232
      %v1265 = vunpack.c.l.b16 %v1233
      %v1266 = vunpack.c.l.b16 %v1234
      %v1267 = vunpack.c.l.b16 %v1235
      %v1268 = vunpack.c.l.b16 %v1236
      %v1269 = vunpack.c.l.b16 %v1237
      %v1270 = vunpack.c.l.b16 %v1238
      %v1271 = vunpack.c.l.b16 %v1239
      %v1272 = vunpack.c.l.b16 %v1240
      %v1273 = vunpack.c.l.b16 %v1241
      %v1274 = vunpack.c.l.b16 %v1242
      %v1275 = vunpack.c.l.b16 %v1243
      %v1276 = vunpack.c.l.b16 %v1244
      %v1277 = vunpack.c.l.b16 %v1245
      %v1278 = vpack.c.b16 %v1247, %v1246
      %v1279 = vpack.c.b16 %v1249, %v1248
      %v1280 = vpack.c.b16 %v1251, %v1250
      %v1281 = vpack.c.b16 %v1253, %v1252
      %v1282 = vpack.c.b16 %v1255, %v1254
      %v1283 = vpack.c.b16 %v1257, %v1256
      %v1284 = vpack.c.b16 %v1259, %v1258
      %v1285 = vpack.c.b16 %v1261, %v1260
      %v1286 = vpack.c.b16 %v1263, %v1262
      %v1287 = vpack.c.b16 %v1265, %v1264
      %v1288 = vpack.c.b16 %v1267, %v1266
      %v1289 = vpack.c.b16 %v1269, %v1268
      %v1290 = vpack.c.b16 %v1271, %v1270
      %v1291 = vpack.c.b16 %v1273, %v1272
      %v1292 = vpack.c.b16 %v1275, %v1274
      %v1293 = vpack.c.b16 %v1277, %v1276
      %vm1294 = vcmp.ne.s16.totalorder %v1278, 0
      %vm1295 = vcmp.ne.s16.totalorder %v1279, 0
      %vm1296 = vcmp.ne.s16.totalorder %v1280, 0
      %vm1297 = vcmp.ne.s16.totalorder %v1281, 0
      %vm1298 = vcmp.ne.s16.totalorder %v1282, 0
      %vm1299 = vcmp.ne.s16.totalorder %v1283, 0
      %vm1300 = vcmp.ne.s16.totalorder %v1284, 0
      %vm1301 = vcmp.ne.s16.totalorder %v1285, 0
      %vm1302 = vcmp.ne.s16.totalorder %v1286, 0
      %vm1303 = vcmp.ne.s16.totalorder %v1287, 0
      %vm1304 = vcmp.ne.s16.totalorder %v1288, 0
      %vm1305 = vcmp.ne.s16.totalorder %v1289, 0
      %vm1306 = vcmp.ne.s16.totalorder %v1290, 0
      %vm1307 = vcmp.ne.s16.totalorder %v1291, 0
      %vm1308 = vcmp.ne.s16.totalorder %v1292, 0
      %vm1309 = vcmp.ne.s16.totalorder %v1293, 0
      %v1310 = vsel %vm1294, %v413, 0
      %v1311 = vsel %vm1295, %v414, 0
      %v1312 = vsel %vm1296, %v415, 0
      %v1313 = vsel %vm1297, %v416, 0
      %v1314 = vsel %vm1298, %v417, 0
      %v1315 = vsel %vm1299, %v418, 0
      %v1316 = vsel %vm1300, %v419, 0
      %v1317 = vsel %vm1301, %v420, 0
      %v1318 = vsel %vm1302, %v421, 0
      %v1319 = vsel %vm1303, %v422, 0
      %v1320 = vsel %vm1304, %v423, 0
      %v1321 = vsel %vm1305, %v424, 0
      %v1322 = vsel %vm1306, %v425, 0
      %v1323 = vsel %vm1307, %v426, 0
      %v1324 = vsel %vm1308, %v427, 0
      %v1325 = vsel %vm1309, %v428, 0
      %vm1326 = vsmask.f32 256
      %v1328 = vshrl.u32 %v1070, 16
      %v1330 = vrot.slane %v1328, 7
      %v1331 = vshll.u32 %v1070, 16
      %v1333 = vor.u32 %v1330, %v1331
      %v1335 = vshrl.u32 %v1071, 16
      %v1337 = vrot.slane %v1335, 7
      %v1338 = vshll.u32 %v1071, 16
      %v1340 = vor.u32 %v1337, %v1338
      %v1341 = vsel %vm1326, %v1330, %v1340
      %v1343 = vshrl.u32 %v1072, 16
      %v1345 = vrot.slane %v1343, 7
      %v1346 = vshll.u32 %v1072, 16
      %v1348 = vor.u32 %v1345, %v1346
      %v1349 = vsel %vm1326, %v1337, %v1348
      %v1351 = vshrl.u32 %v1073, 16
      %v1353 = vrot.slane %v1351, 7
      %v1354 = vshll.u32 %v1073, 16
      %v1356 = vor.u32 %v1353, %v1354
      %v1357 = vsel %vm1326, %v1345, %v1356
      %v1359 = vshrl.u32 %v1074, 16
      %v1361 = vrot.slane %v1359, 7
      %v1362 = vshll.u32 %v1074, 16
      %v1364 = vor.u32 %v1361, %v1362
      %v1365 = vsel %vm1326, %v1353, %v1364
      %v1367 = vshrl.u32 %v1075, 16
      %v1369 = vrot.slane %v1367, 7
      %v1370 = vshll.u32 %v1075, 16
      %v1372 = vor.u32 %v1369, %v1370
      %v1373 = vsel %vm1326, %v1361, %v1372
      %v1375 = vshrl.u32 %v1076, 16
      %v1377 = vrot.slane %v1375, 7
      %v1378 = vshll.u32 %v1076, 16
      %v1380 = vor.u32 %v1377, %v1378
      %v1381 = vsel %vm1326, %v1369, %v1380
      %v1383 = vshrl.u32 %v1077, 16
      %v1385 = vrot.slane %v1383, 7
      %v1386 = vshll.u32 %v1077, 16
      %v1388 = vor.u32 %v1385, %v1386
      %v1389 = vsel %vm1326, %v1377, %v1388
      %v1391 = vshrl.u32 %v1078, 16
      %v1393 = vrot.slane %v1391, 7
      %v1394 = vshll.u32 %v1078, 16
      %v1396 = vor.u32 %v1393, %v1394
      %v1397 = vsel %vm1326, %v1385, %v1396
      %v1399 = vshrl.u32 %v1079, 16
      %v1401 = vrot.slane %v1399, 7
      %v1402 = vshll.u32 %v1079, 16
      %v1404 = vor.u32 %v1401, %v1402
      %v1405 = vsel %vm1326, %v1393, %v1404
      %v1407 = vshrl.u32 %v1080, 16
      %v1409 = vrot.slane %v1407, 7
      %v1410 = vshll.u32 %v1080, 16
      %v1412 = vor.u32 %v1409, %v1410
      %v1413 = vsel %vm1326, %v1401, %v1412
      %v1415 = vshrl.u32 %v1081, 16
      %v1417 = vrot.slane %v1415, 7
      %v1418 = vshll.u32 %v1081, 16
      %v1420 = vor.u32 %v1417, %v1418
      %v1421 = vsel %vm1326, %v1409, %v1420
      %v1423 = vshrl.u32 %v1082, 16
      %v1425 = vrot.slane %v1423, 7
      %v1426 = vshll.u32 %v1082, 16
      %v1428 = vor.u32 %v1425, %v1426
      %v1429 = vsel %vm1326, %v1417, %v1428
      %v1431 = vshrl.u32 %v1083, 16
      %v1433 = vrot.slane %v1431, 7
      %v1434 = vshll.u32 %v1083, 16
      %v1436 = vor.u32 %v1433, %v1434
      %v1437 = vsel %vm1326, %v1425, %v1436
      %v1439 = vshrl.u32 %v1084, 16
      %v1441 = vrot.slane %v1439, 7
      %v1442 = vshll.u32 %v1084, 16
      %v1444 = vor.u32 %v1441, %v1442
      %v1445 = vsel %vm1326, %v1433, %v1444
      %vm1447 = vcmask 1040384
      %vm1448 = vmand %vm1447, %vm1326
      %v1449 = vsel %vm1448, 0, %v1333
      %v1450 = vld [vmem:[%s3] sm:$0xf]
      %s1451 = scalar_lea.vmem %s3, 4
      %v1452 = vld [vmem:[%s1451] sm:$0xf]
      %vm1453 = vcmask 64512
      %v1455 = vsel %vm1453, 0, 0
      %v1458 = vsel %vm1453, %v413, 0
      %v1461 = vsel %vm1453, %v414, 0
      %v1464 = vsel %vm1453, %v415, 0
      %v1467 = vsel %vm1453, %v416, 0
      %v1470 = vsel %vm1453, %v417, 0
      %v1473 = vsel %vm1453, %v418, 0
      %v1476 = vsel %vm1453, %v419, 0
      %v1479 = vsel %vm1453, %v420, 0
      %v1482 = vsel %vm1453, %v421, 0
      %v1485 = vsel %vm1453, %v422, 0
      %v1488 = vsel %vm1453, %v423, 0
      %v1491 = vsel %vm1453, %v424, 0
      %v1494 = vsel %vm1453, %v425, 0
      %v1497 = vsel %vm1453, %v426, 0
      %v1500 = vsel %vm1453, %v427, 0
      %vm1502 = vcmask 1043456
      %v1504 = vsel %vm1502, %v1452, 0
      %1506 = vmatprep.subr.bf16.mxu0 0
      %1507 = vmatpush1.bf16.msra.mxu0 %v1504
      %1508 = vmatprep.subr.bf16.mxu0 0
      %1509 = vmatpush1.bf16.msra.mxu0 0
      %1510 = vmatprep.subr.bf16.mxu0 0
      %1511 = vmatpush1.bf16.msra.mxu0 0
      %1512 = vmatprep.subr.bf16.mxu0 0
      %1513 = vmatpush1.bf16.msra.mxu0 0
      %1514 = vmatprep.subr.bf16.mxu0 0
      %1515 = vmatpush1.bf16.msra.mxu0 0
      %1516 = vmatprep.subr.bf16.mxu0 0
      %1517 = vmatpush1.bf16.msra.mxu0 0
      %1518 = vmatprep.subr.bf16.mxu0 0
      %1519 = vmatpush1.bf16.msra.mxu0 0
      %1520 = vmatprep.subr.bf16.mxu0 0
      %1521 = vmatpush1.bf16.msra.mxu0 0
      %1522 = vmatprep.subr.bf16.mxu0 0
      %1523 = vmatpush1.bf16.msra.mxu0 0
      %1524 = vmatprep.subr.bf16.mxu0 0
      %1525 = vmatpush1.bf16.msra.mxu0 0
      %1526 = vmatprep.subr.bf16.mxu0 0
      %1527 = vmatpush1.bf16.msra.mxu0 0
      %1528 = vmatprep.subr.bf16.mxu0 0
      %1529 = vmatpush1.bf16.msra.mxu0 0
      %1530 = vmatprep.subr.bf16.mxu0 0
      %1531 = vmatpush1.bf16.msra.mxu0 0
      %1532 = vmatprep.subr.bf16.mxu0 0
      %1533 = vmatpush1.bf16.msra.mxu0 0
      %1534 = vmatprep.subr.bf16.mxu0 0
      %1535 = vmatpush1.bf16.msra.mxu0 0
      %1536 = vmatprep.subr.bf16.mxu0 0
      %1537 = vmatpush1.bf16.msra.mxu0 0
      %1538 = vmatprep.mubr.bf16.mxu0 0
      %1539 = vmatmul.mubr.bf16.gmra.mrb[0].mxu0 %v1455
      %v1540 = vpop.f32.mrb[0].mxu0
      %v1541 = vadd.f32 0.0, %v1540
      %v1542 = vpop.f32.mrb[0].mxu0
      %v1543 = vpop.f32.mrb[0].mxu0
      %v1544 = vadd.f32 0.0, %v1543
      %v1545 = vpop.f32.mrb[0].mxu0
      %1546 = vmatprep.mubr.bf16.mxu0 0
      %1547 = vmatmul.mubr.bf16.gmra.mrb[0].mxu0 %v1458
      %v1548 = vpop.f32.mrb[0].mxu0
      %v1549 = vadd.f32 0.0, %v1548
      %v1550 = vpop.f32.mrb[0].mxu0
      %v1551 = vpop.f32.mrb[0].mxu0
      %v1552 = vadd.f32 0.0, %v1551
      %v1553 = vpop.f32.mrb[0].mxu0
      %1554 = vmatprep.mubr.bf16.mxu0 0
      %1555 = vmatmul.mubr.bf16.gmra.mrb[0].mxu0 %v1461
      %v1556 = vpop.f32.mrb[0].mxu0
      %v1557 = vadd.f32 0.0, %v1556
      %v1558 = vpop.f32.mrb[0].mxu0
      %v1559 = vpop.f32.mrb[0].mxu0
      %v1560 = vadd.f32 0.0, %v1559
      %v1561 = vpop.f32.mrb[0].mxu0
      %1562 = vmatprep.mubr.bf16.mxu0 0
      %1563 = vmatmul.mubr.bf16.gmra.mrb[0].mxu0 %v1464
      %v1564 = vpop.f32.mrb[0].mxu0
      %v1565 = vadd.f32 0.0, %v1564
      %v1566 = vpop.f32.mrb[0].mxu0
      %v1567 = vpop.f32.mrb[0].mxu0
      %v1568 = vadd.f32 0.0, %v1567
      %v1569 = vpop.f32.mrb[0].mxu0
      %1570 = vmatprep.mubr.bf16.mxu0 0
      %1571 = vmatmul.mubr.bf16.gmra.mrb[0].mxu0 %v1467
      %v1572 = vpop.f32.mrb[0].mxu0
      %v1573 = vadd.f32 0.0, %v1572
      %v1574 = vpop.f32.mrb[0].mxu0
      %v1575 = vpop.f32.mrb[0].mxu0
      %v1576 = vadd.f32 0.0, %v1575
      %v1577 = vpop.f32.mrb[0].mxu0
      %1578 = vmatprep.mubr.bf16.mxu0 0
      %1579 = vmatmul.mubr.bf16.gmra.mrb[0].mxu0 %v1470
      %v1580 = vpop.f32.mrb[0].mxu0
      %v1581 = vadd.f32 0.0, %v1580
      %v1582 = vpop.f32.mrb[0].mxu0
      %v1583 = vpop.f32.mrb[0].mxu0
      %v1584 = vadd.f32 0.0, %v1583
      %v1585 = vpop.f32.mrb[0].mxu0
      %1586 = vmatprep.mubr.bf16.mxu0 0
      %1587 = vmatmul.mubr.bf16.gmra.mrb[0].mxu0 %v1473
      %v1588 = vpop.f32.mrb[0].mxu0
      %v1589 = vadd.f32 0.0, %v1588
      %v1590 = vpop.f32.mrb[0].mxu0
      %v1591 = vpop.f32.mrb[0].mxu0
      %v1592 = vadd.f32 0.0, %v1591
      %v1593 = vpop.f32.mrb[0].mxu0
      %1594 = vmatprep.mubr.bf16.mxu0 0
      %1595 = vmatmul.mubr.bf16.gmra.mrb[0].mxu0 %v1476
      %v1596 = vpop.f32.mrb[0].mxu0
      %v1597 = vadd.f32 0.0, %v1596
      %v1598 = vpop.f32.mrb[0].mxu0
      %v1599 = vpop.f32.mrb[0].mxu0
      %v1600 = vadd.f32 0.0, %v1599
      %v1601 = vpop.f32.mrb[0].mxu0
      %1602 = vmatprep.mubr.bf16.mxu0 0
      %1603 = vmatmul.mubr.bf16.gmra.mrb[0].mxu0 %v1479
      %v1604 = vpop.f32.mrb[0].mxu0
      %v1605 = vadd.f32 0.0, %v1604
      %v1606 = vpop.f32.mrb[0].mxu0
      %v1607 = vpop.f32.mrb[0].mxu0
      %v1608 = vadd.f32 0.0, %v1607
      %v1609 = vpop.f32.mrb[0].mxu0
      %1610 = vmatprep.mubr.bf16.mxu0 0
      %1611 = vmatmul.mubr.bf16.gmra.mrb[0].mxu0 %v1482
      %v1612 = vpop.f32.mrb[0].mxu0
      %v1613 = vadd.f32 0.0, %v1612
      %v1614 = vpop.f32.mrb[0].mxu0
      %v1615 = vpop.f32.mrb[0].mxu0
      %v1616 = vadd.f32 0.0, %v1615
      %v1617 = vpop.f32.mrb[0].mxu0
      %1618 = vmatprep.mubr.bf16.mxu0 0
      %1619 = vmatmul.mubr.bf16.gmra.mrb[0].mxu0 %v1485
      %v1620 = vpop.f32.mrb[0].mxu0
      %v1621 = vadd.f32 0.0, %v1620
      %v1622 = vpop.f32.mrb[0].mxu0
      %v1623 = vpop.f32.mrb[0].mxu0
      %v1624 = vadd.f32 0.0, %v1623
      %v1625 = vpop.f32.mrb[0].mxu0
      %1626 = vmatprep.mubr.bf16.mxu0 0
      %1627 = vmatmul.mubr.bf16.gmra.mrb[0].mxu0 %v1488
      %v1628 = vpop.f32.mrb[0].mxu0
      %v1629 = vadd.f32 0.0, %v1628
      %v1630 = vpop.f32.mrb[0].mxu0
      %v1631 = vpop.f32.mrb[0].mxu0
      %v1632 = vadd.f32 0.0, %v1631
      %v1633 = vpop.f32.mrb[0].mxu0
      %1634 = vmatprep.mubr.bf16.mxu0 0
      %1635 = vmatmul.mubr.bf16.gmra.mrb[0].mxu0 %v1491
      %v1636 = vpop.f32.mrb[0].mxu0
      %v1637 = vadd.f32 0.0, %v1636
      %v1638 = vpop.f32.mrb[0].mxu0
      %v1639 = vpop.f32.mrb[0].mxu0
      %v1640 = vadd.f32 0.0, %v1639
      %v1641 = vpop.f32.mrb[0].mxu0
      %1642 = vmatprep.mubr.bf16.mxu0 0
      %1643 = vmatmul.mubr.bf16.gmra.mrb[0].mxu0 %v1494
      %v1644 = vpop.f32.mrb[0].mxu0
      %v1645 = vadd.f32 0.0, %v1644
      %v1646 = vpop.f32.mrb[0].mxu0
      %v1647 = vpop.f32.mrb[0].mxu0
      %v1648 = vadd.f32 0.0, %v1647
      %v1649 = vpop.f32.mrb[0].mxu0
      %1650 = vmatprep.mubr.bf16.mxu0 0
      %1651 = vmatmul.mubr.bf16.gmra.mrb[0].mxu0 %v1497
      %v1652 = vpop.f32.mrb[0].mxu0
      %v1653 = vadd.f32 0.0, %v1652
      %v1654 = vpop.f32.mrb[0].mxu0
      %v1655 = vpop.f32.mrb[0].mxu0
      %v1656 = vadd.f32 0.0, %v1655
      %v1657 = vpop.f32.mrb[0].mxu0
      %1658 = vmatprep.mubr.bf16.mxu0 0
      %1659 = vmatmul.mubr.bf16.gmra.mrb[0].mxu0 %v1500
      %v1660 = vpop.f32.mrb[0].mxu0
      %v1661 = vadd.f32 0.0, %v1660
      %v1662 = vpop.f32.mrb[0].mxu0
      %v1663 = vpop.f32.mrb[0].mxu0
      %v1664 = vadd.f32 0.0, %v1663
      %v1665 = vpop.f32.mrb[0].mxu0
      %1666 = vdwg.mxu0
      %v1668 = vsel %vm1453, %v1449, 0
      %v1671 = vsel %vm1453, %v1341, 0
      %v1674 = vsel %vm1453, %v1349, 0
      %v1677 = vsel %vm1453, %v1357, 0
      %v1680 = vsel %vm1453, %v1365, 0
      %v1683 = vsel %vm1453, %v1373, 0
      %v1686 = vsel %vm1453, %v1381, 0
      %v1689 = vsel %vm1453, %v1389, 0
      %v1692 = vsel %vm1453, %v1397, 0
      %v1695 = vsel %vm1453, %v1405, 0
      %v1698 = vsel %vm1453, %v1413, 0
      %v1701 = vsel %vm1453, %v1421, 0
      %v1704 = vsel %vm1453, %v1429, 0
      %v1707 = vsel %vm1453, %v1437, 0
      %v1710 = vsel %vm1453, %v1445, 0
      %v1713 = vsel %vm1502, %v1450, 0
      %1715 = vmatprep.subr.bf16.mxu0 0
      %1716 = vmatpush1.bf16.msra.mxu0 %v1713
      %1717 = vmatprep.subr.bf16.mxu0 0
      %1718 = vmatpush1.bf16.msra.mxu0 0
      %1719 = vmatprep.subr.bf16.mxu0 0
      %1720 = vmatpush1.bf16.msra.mxu0 0
      %1721 = vmatprep.subr.bf16.mxu0 0
      %1722 = vmatpush1.bf16.msra.mxu0 0
      %1723 = vmatprep.subr.bf16.mxu0 0
      %1724 = vmatpush1.bf16.msra.mxu0 0
      %1725 = vmatprep.subr.bf16.mxu0 0
      %1726 = vmatpush1.bf16.msra.mxu0 0
      %1727 = vmatprep.subr.bf16.mxu0 0
      %1728 = vmatpush1.bf16.msra.mxu0 0
      %1729 = vmatprep.subr.bf16.mxu0 0
      %1730 = vmatpush1.bf16.msra.mxu0 0
      %1731 = vmatprep.subr.bf16.mxu0 0
      %1732 = vmatpush1.bf16.msra.mxu0 0
      %1733 = vmatprep.subr.bf16.mxu0 0
      %1734 = vmatpush1.bf16.msra.mxu0 0
      %1735 = vmatprep.subr.bf16.mxu0 0
      %1736 = vmatpush1.bf16.msra.mxu0 0
      %1737 = vmatprep.subr.bf16.mxu0 0
      %1738 = vmatpush1.bf16.msra.mxu0 0
      %1739 = vmatprep.subr.bf16.mxu0 0
      %1740 = vmatpush1.bf16.msra.mxu0 0
      %1741 = vmatprep.subr.bf16.mxu0 0
      %1742 = vmatpush1.bf16.msra.mxu0 0
      %1743 = vmatprep.subr.bf16.mxu0 0
      %1744 = vmatpush1.bf16.msra.mxu0 0
      %1745 = vmatprep.subr.bf16.mxu0 0
      %1746 = vmatpush1.bf16.msra.mxu0 0
      %1747 = vmatprep.mubr.bf16.mxu0 0
      %1748 = vmatmul.mubr.bf16.gmra.mrb[0].mxu0 %v1455
      %v1749 = vpop.f32.mrb[0].mxu0
      %v1750 = vadd.f32 %v1541, %v1749
      %v1751 = vpop.f32.mrb[0].mxu0
      %v1752 = vpop.f32.mrb[0].mxu0
      %v1753 = vadd.f32 %v1544, %v1752
      %v1754 = vpop.f32.mrb[0].mxu0
      %1755 = vmatprep.mubr.bf16.mxu0 0
      %1756 = vmatmul.mubr.bf16.gmra.mrb[0].mxu0 %v1668
      %v1757 = vpop.f32.mrb[0].mxu0
      %v1758 = vadd.f32 %v1549, %v1757
      %v1759 = vpop.f32.mrb[0].mxu0
      %v1760 = vpop.f32.mrb[0].mxu0
      %v1761 = vadd.f32 %v1552, %v1760
      %v1762 = vpop.f32.mrb[0].mxu0
      %1763 = vmatprep.mubr.bf16.mxu0 0
      %1764 = vmatmul.mubr.bf16.gmra.mrb[0].mxu0 %v1671
      %v1765 = vpop.f32.mrb[0].mxu0
      %v1766 = vadd.f32 %v1557, %v1765
      %v1767 = vpop.f32.mrb[0].mxu0
      %v1768 = vpop.f32.mrb[0].mxu0
      %v1769 = vadd.f32 %v1560, %v1768
      %v1770 = vpop.f32.mrb[0].mxu0
      %1771 = vmatprep.mubr.bf16.mxu0 0
      %1772 = vmatmul.mubr.bf16.gmra.mrb[0].mxu0 %v1674
      %v1773 = vpop.f32.mrb[0].mxu0
      %v1774 = vadd.f32 %v1565, %v1773
      %v1775 = vpop.f32.mrb[0].mxu0
      %v1776 = vpop.f32.mrb[0].mxu0
      %v1777 = vadd.f32 %v1568, %v1776
      %v1778 = vpop.f32.mrb[0].mxu0
      %1779 = vmatprep.mubr.bf16.mxu0 0
      %1780 = vmatmul.mubr.bf16.gmra.mrb[0].mxu0 %v1677
      %v1781 = vpop.f32.mrb[0].mxu0
      %v1782 = vadd.f32 %v1573, %v1781
      %v1783 = vpop.f32.mrb[0].mxu0
      %v1784 = vpop.f32.mrb[0].mxu0
      %v1785 = vadd.f32 %v1576, %v1784
      %v1786 = vpop.f32.mrb[0].mxu0
      %1787 = vmatprep.mubr.bf16.mxu0 0
      %1788 = vmatmul.mubr.bf16.gmra.mrb[0].mxu0 %v1680
      %v1789 = vpop.f32.mrb[0].mxu0
      %v1790 = vadd.f32 %v1581, %v1789
      %v1791 = vpop.f32.mrb[0].mxu0
      %v1792 = vpop.f32.mrb[0].mxu0
      %v1793 = vadd.f32 %v1584, %v1792
      %v1794 = vpop.f32.mrb[0].mxu0
      %1795 = vmatprep.mubr.bf16.mxu0 0
      %1796 = vmatmul.mubr.bf16.gmra.mrb[0].mxu0 %v1683
      %v1797 = vpop.f32.mrb[0].mxu0
      %v1798 = vadd.f32 %v1589, %v1797
      %v1799 = vpop.f32.mrb[0].mxu0
      %v1800 = vpop.f32.mrb[0].mxu0
      %v1801 = vadd.f32 %v1592, %v1800
      %v1802 = vpop.f32.mrb[0].mxu0
      %1803 = vmatprep.mubr.bf16.mxu0 0
      %1804 = vmatmul.mubr.bf16.gmra.mrb[0].mxu0 %v1686
      %v1805 = vpop.f32.mrb[0].mxu0
      %v1806 = vadd.f32 %v1597, %v1805
      %v1807 = vpop.f32.mrb[0].mxu0
      %v1808 = vpop.f32.mrb[0].mxu0
      %v1809 = vadd.f32 %v1600, %v1808
      %v1810 = vpop.f32.mrb[0].mxu0
      %1811 = vmatprep.mubr.bf16.mxu0 0
      %1812 = vmatmul.mubr.bf16.gmra.mrb[0].mxu0 %v1689
      %v1813 = vpop.f32.mrb[0].mxu0
      %v1814 = vadd.f32 %v1605, %v1813
      %v1815 = vpop.f32.mrb[0].mxu0
      %v1816 = vpop.f32.mrb[0].mxu0
      %v1817 = vadd.f32 %v1608, %v1816
      %v1818 = vpop.f32.mrb[0].mxu0
      %1819 = vmatprep.mubr.bf16.mxu0 0
      %1820 = vmatmul.mubr.bf16.gmra.mrb[0].mxu0 %v1692
      %v1821 = vpop.f32.mrb[0].mxu0
      %v1822 = vadd.f32 %v1613, %v1821
      %v1823 = vpop.f32.mrb[0].mxu0
      %v1824 = vpop.f32.mrb[0].mxu0
      %v1825 = vadd.f32 %v1616, %v1824
      %v1826 = vpop.f32.mrb[0].mxu0
      %1827 = vmatprep.mubr.bf16.mxu0 0
      %1828 = vmatmul.mubr.bf16.gmra.mrb[0].mxu0 %v1695
      %v1829 = vpop.f32.mrb[0].mxu0
      %v1830 = vadd.f32 %v1621, %v1829
      %v1831 = vpop.f32.mrb[0].mxu0
      %v1832 = vpop.f32.mrb[0].mxu0
      %v1833 = vadd.f32 %v1624, %v1832
      %v1834 = vpop.f32.mrb[0].mxu0
      %1835 = vmatprep.mubr.bf16.mxu0 0
      %1836 = vmatmul.mubr.bf16.gmra.mrb[0].mxu0 %v1698
      %v1837 = vpop.f32.mrb[0].mxu0
      %v1838 = vadd.f32 %v1629, %v1837
      %v1839 = vpop.f32.mrb[0].mxu0
      %v1840 = vpop.f32.mrb[0].mxu0
      %v1841 = vadd.f32 %v1632, %v1840
      %v1842 = vpop.f32.mrb[0].mxu0
      %1843 = vmatprep.mubr.bf16.mxu0 0
      %1844 = vmatmul.mubr.bf16.gmra.mrb[0].mxu0 %v1701
      %v1845 = vpop.f32.mrb[0].mxu0
      %v1846 = vadd.f32 %v1637, %v1845
      %v1847 = vpop.f32.mrb[0].mxu0
      %v1848 = vpop.f32.mrb[0].mxu0
      %v1849 = vadd.f32 %v1640, %v1848
      %v1850 = vpop.f32.mrb[0].mxu0
      %1851 = vmatprep.mubr.bf16.mxu0 0
      %1852 = vmatmul.mubr.bf16.gmra.mrb[0].mxu0 %v1704
      %v1853 = vpop.f32.mrb[0].mxu0
      %v1854 = vadd.f32 %v1645, %v1853
      %v1855 = vpop.f32.mrb[0].mxu0
      %v1856 = vpop.f32.mrb[0].mxu0
      %v1857 = vadd.f32 %v1648, %v1856
      %v1858 = vpop.f32.mrb[0].mxu0
      %1859 = vmatprep.mubr.bf16.mxu0 0
      %1860 = vmatmul.mubr.bf16.gmra.mrb[0].mxu0 %v1707
      %v1861 = vpop.f32.mrb[0].mxu0
      %v1862 = vadd.f32 %v1653, %v1861
      %v1863 = vpop.f32.mrb[0].mxu0
      %v1864 = vpop.f32.mrb[0].mxu0
      %v1865 = vadd.f32 %v1656, %v1864
      %v1866 = vpop.f32.mrb[0].mxu0
      %1867 = vmatprep.mubr.bf16.mxu0 0
      %1868 = vmatmul.mubr.bf16.gmra.mrb[0].mxu0 %v1710
      %v1869 = vpop.f32.mrb[0].mxu0
      %v1870 = vadd.f32 %v1661, %v1869
      %v1871 = vpop.f32.mrb[0].mxu0
      %v1872 = vpop.f32.mrb[0].mxu0
      %v1873 = vadd.f32 %v1664, %v1872
      %v1874 = vpop.f32.mrb[0].mxu0
      %1875 = vdwg.mxu0
      %vm1876 = vsmask.f32 7424
      %v1878 = vshll.u32 %v1310, 16
      %v1880 = vrot.slane %v1878, 1
      %v1881 = vshrl.u32 %v1310, 16
      %v1883 = vor.u32 %v1881, %v1880
      %v1885 = vshll.u32 %v1311, 16
      %v1887 = vrot.slane %v1885, 1
      %v1888 = vsel %vm1876, %v1883, %v1887
      %v1889 = vshrl.u32 %v1311, 16
      %v1891 = vor.u32 %v1889, %v1887
      %v1893 = vshll.u32 %v1312, 16
      %v1895 = vrot.slane %v1893, 1
      %v1896 = vsel %vm1876, %v1891, %v1895
      %v1897 = vshrl.u32 %v1312, 16
      %v1899 = vor.u32 %v1897, %v1895
      %v1901 = vshll.u32 %v1313, 16
      %v1903 = vrot.slane %v1901, 1
      %v1904 = vsel %vm1876, %v1899, %v1903
      %v1905 = vshrl.u32 %v1313, 16
      %v1907 = vor.u32 %v1905, %v1903
      %v1909 = vshll.u32 %v1314, 16
      %v1911 = vrot.slane %v1909, 1
      %v1912 = vsel %vm1876, %v1907, %v1911
      %v1913 = vshrl.u32 %v1314, 16
      %v1915 = vor.u32 %v1913, %v1911
      %v1917 = vshll.u32 %v1315, 16
      %v1919 = vrot.slane %v1917, 1
      %v1920 = vsel %vm1876, %v1915, %v1919
      %v1921 = vshrl.u32 %v1315, 16
      %v1923 = vor.u32 %v1921, %v1919
      %v1925 = vshll.u32 %v1316, 16
      %v1927 = vrot.slane %v1925, 1
      %v1928 = vsel %vm1876, %v1923, %v1927
      %v1929 = vshrl.u32 %v1316, 16
      %v1931 = vor.u32 %v1929, %v1927
      %v1933 = vshll.u32 %v1317, 16
      %v1935 = vrot.slane %v1933, 1
      %v1936 = vsel %vm1876, %v1931, %v1935
      %v1937 = vshrl.u32 %v1317, 16
      %v1939 = vor.u32 %v1937, %v1935
      %v1941 = vshll.u32 %v1318, 16
      %v1943 = vrot.slane %v1941, 1
      %v1944 = vsel %vm1876, %v1939, %v1943
      %v1945 = vshrl.u32 %v1318, 16
      %v1947 = vor.u32 %v1945, %v1943
      %v1949 = vshll.u32 %v1319, 16
      %v1951 = vrot.slane %v1949, 1
      %v1952 = vsel %vm1876, %v1947, %v1951
      %v1953 = vshrl.u32 %v1319, 16
      %v1955 = vor.u32 %v1953, %v1951
      %v1957 = vshll.u32 %v1320, 16
      %v1959 = vrot.slane %v1957, 1
      %v1960 = vsel %vm1876, %v1955, %v1959
      %v1961 = vshrl.u32 %v1320, 16
      %v1963 = vor.u32 %v1961, %v1959
      %v1965 = vshll.u32 %v1321, 16
      %v1967 = vrot.slane %v1965, 1
      %v1968 = vsel %vm1876, %v1963, %v1967
      %v1969 = vshrl.u32 %v1321, 16
      %v1971 = vor.u32 %v1969, %v1967
      %v1973 = vshll.u32 %v1322, 16
      %v1975 = vrot.slane %v1973, 1
      %v1976 = vsel %vm1876, %v1971, %v1975
      %v1977 = vshrl.u32 %v1322, 16
      %v1979 = vor.u32 %v1977, %v1975
      %v1981 = vshll.u32 %v1323, 16
      %v1983 = vrot.slane %v1981, 1
      %v1984 = vsel %vm1876, %v1979, %v1983
      %v1985 = vshrl.u32 %v1323, 16
      %v1987 = vor.u32 %v1985, %v1983
      %v1989 = vshll.u32 %v1324, 16
      %v1991 = vrot.slane %v1989, 1
      %v1992 = vsel %vm1876, %v1987, %v1991
      %v1993 = vshrl.u32 %v1324, 16
      %v1995 = vor.u32 %v1993, %v1991
      %v1997 = vshll.u32 %v1325, 16
      %v1999 = vrot.slane %v1997, 1
      %v2000 = vsel %vm1876, %v1995, %v1999
      %vm2002 = vcmask 1047552
      %vm2003 = vmand %vm2002, %vm1876
      %v2004 = vsel %vm2003, 0, %v1880
      %s2005 = scalar_lea.vmem %s3, 8
      %v2006 = vld [vmem:[%s2005] sm:$0xf]
      %v2008 = vsel %vm1453, %v2004, 0
      %v2011 = vsel %vm1453, %v1888, 0
      %v2014 = vsel %vm1453, %v1896, 0
      %v2017 = vsel %vm1453, %v1904, 0
      %v2020 = vsel %vm1453, %v1912, 0
      %v2023 = vsel %vm1453, %v1920, 0
      %v2026 = vsel %vm1453, %v1928, 0
      %v2029 = vsel %vm1453, %v1936, 0
      %v2032 = vsel %vm1453, %v1944, 0
      %v2035 = vsel %vm1453, %v1952, 0
      %v2038 = vsel %vm1453, %v1960, 0
      %v2041 = vsel %vm1453, %v1968, 0
      %v2044 = vsel %vm1453, %v1976, 0
      %v2047 = vsel %vm1453, %v1984, 0
      %v2050 = vsel %vm1453, %v1992, 0
      %v2053 = vsel %vm1453, %v2000, 0
      %v2056 = vsel %vm1502, %v2006, 0
      %2058 = vmatprep.subr.bf16.mxu0 0
      %2059 = vmatpush1.bf16.msra.mxu0 %v2056
      %2060 = vmatprep.subr.bf16.mxu0 0
      %2061 = vmatpush1.bf16.msra.mxu0 0
      %2062 = vmatprep.subr.bf16.mxu0 0
      %2063 = vmatpush1.bf16.msra.mxu0 0
      %2064 = vmatprep.subr.bf16.mxu0 0
      %2065 = vmatpush1.bf16.msra.mxu0 0
      %2066 = vmatprep.subr.bf16.mxu0 0
      %2067 = vmatpush1.bf16.msra.mxu0 0
      %2068 = vmatprep.subr.bf16.mxu0 0
      %2069 = vmatpush1.bf16.msra.mxu0 0
      %2070 = vmatprep.subr.bf16.mxu0 0
      %2071 = vmatpush1.bf16.msra.mxu0 0
      %2072 = vmatprep.subr.bf16.mxu0 0
      %2073 = vmatpush1.bf16.msra.mxu0 0
      %2074 = vmatprep.subr.bf16.mxu0 0
      %2075 = vmatpush1.bf16.msra.mxu0 0
      %2076 = vmatprep.subr.bf16.mxu0 0
      %2077 = vmatpush1.bf16.msra.mxu0 0
      %2078 = vmatprep.subr.bf16.mxu0 0
      %2079 = vmatpush1.bf16.msra.mxu0 0
      %2080 = vmatprep.subr.bf16.mxu0 0
      %2081 = vmatpush1.bf16.msra.mxu0 0
      %2082 = vmatprep.subr.bf16.mxu0 0
      %2083 = vmatpush1.bf16.msra.mxu0 0
      %2084 = vmatprep.subr.bf16.mxu0 0
      %2085 = vmatpush1.bf16.msra.mxu0 0
      %2086 = vmatprep.subr.bf16.mxu0 0
      %2087 = vmatpush1.bf16.msra.mxu0 0
      %2088 = vmatprep.subr.bf16.mxu0 0
      %2089 = vmatpush1.bf16.msra.mxu0 0
      %2090 = vmatprep.mubr.bf16.mxu0 0
      %2091 = vmatmul.mubr.bf16.gmra.mrb[0].mxu0 %v2008
      %v2092 = vpop.f32.mrb[0].mxu0
      %v2093 = vadd.f32 0.0, %v2092
      %v2094 = vpop.f32.mrb[0].mxu0
      %v2095 = vpop.f32.mrb[0].mxu0
      %v2096 = vadd.f32 0.0, %v2095
      %v2097 = vpop.f32.mrb[0].mxu0
      %2098 = vmatprep.mubr.bf16.mxu0 0
      %2099 = vmatmul.mubr.bf16.gmra.mrb[0].mxu0 %v2011
      %v2100 = vpop.f32.mrb[0].mxu0
      %v2101 = vadd.f32 0.0, %v2100
      %v2102 = vpop.f32.mrb[0].mxu0
      %v2103 = vpop.f32.mrb[0].mxu0
      %v2104 = vadd.f32 0.0, %v2103
      %v2105 = vpop.f32.mrb[0].mxu0
      %2106 = vmatprep.mubr.bf16.mxu0 0
      %2107 = vmatmul.mubr.bf16.gmra.mrb[0].mxu0 %v2014
      %v2108 = vpop.f32.mrb[0].mxu0
      %v2109 = vadd.f32 0.0, %v2108
      %v2110 = vpop.f32.mrb[0].mxu0
      %v2111 = vpop.f32.mrb[0].mxu0
      %v2112 = vadd.f32 0.0, %v2111
      %v2113 = vpop.f32.mrb[0].mxu0
      %2114 = vmatprep.mubr.bf16.mxu0 0
      %2115 = vmatmul.mubr.bf16.gmra.mrb[0].mxu0 %v2017
      %v2116 = vpop.f32.mrb[0].mxu0
      %v2117 = vadd.f32 0.0, %v2116
      %v2118 = vpop.f32.mrb[0].mxu0
      %v2119 = vpop.f32.mrb[0].mxu0
      %v2120 = vadd.f32 0.0, %v2119
      %v2121 = vpop.f32.mrb[0].mxu0
      %2122 = vmatprep.mubr.bf16.mxu0 0
      %2123 = vmatmul.mubr.bf16.gmra.mrb[0].mxu0 %v2020
      %v2124 = vpop.f32.mrb[0].mxu0
      %v2125 = vadd.f32 0.0, %v2124
      %v2126 = vpop.f32.mrb[0].mxu0
      %v2127 = vpop.f32.mrb[0].mxu0
      %v2128 = vadd.f32 0.0, %v2127
      %v2129 = vpop.f32.mrb[0].mxu0
      %2130 = vmatprep.mubr.bf16.mxu0 0
      %2131 = vmatmul.mubr.bf16.gmra.mrb[0].mxu0 %v2023
      %v2132 = vpop.f32.mrb[0].mxu0
      %v2133 = vadd.f32 0.0, %v2132
      %v2134 = vpop.f32.mrb[0].mxu0
      %v2135 = vpop.f32.mrb[0].mxu0
      %v2136 = vadd.f32 0.0, %v2135
      %v2137 = vpop.f32.mrb[0].mxu0
      %2138 = vmatprep.mubr.bf16.mxu0 0
      %2139 = vmatmul.mubr.bf16.gmra.mrb[0].mxu0 %v2026
      %v2140 = vpop.f32.mrb[0].mxu0
      %v2141 = vadd.f32 0.0, %v2140
      %v2142 = vpop.f32.mrb[0].mxu0
      %v2143 = vpop.f32.mrb[0].mxu0
      %v2144 = vadd.f32 0.0, %v2143
      %v2145 = vpop.f32.mrb[0].mxu0
      %2146 = vmatprep.mubr.bf16.mxu0 0
      %2147 = vmatmul.mubr.bf16.gmra.mrb[0].mxu0 %v2029
      %v2148 = vpop.f32.mrb[0].mxu0
      %v2149 = vadd.f32 0.0, %v2148
      %v2150 = vpop.f32.mrb[0].mxu0
      %v2151 = vpop.f32.mrb[0].mxu0
      %v2152 = vadd.f32 0.0, %v2151
      %v2153 = vpop.f32.mrb[0].mxu0
      %2154 = vmatprep.mubr.bf16.mxu0 0
      %2155 = vmatmul.mubr.bf16.gmra.mrb[0].mxu0 %v2032
      %v2156 = vpop.f32.mrb[0].mxu0
      %v2157 = vadd.f32 0.0, %v2156
      %v2158 = vpop.f32.mrb[0].mxu0
      %v2159 = vpop.f32.mrb[0].mxu0
      %v2160 = vadd.f32 0.0, %v2159
      %v2161 = vpop.f32.mrb[0].mxu0
      %2162 = vmatprep.mubr.bf16.mxu0 0
      %2163 = vmatmul.mubr.bf16.gmra.mrb[0].mxu0 %v2035
      %v2164 = vpop.f32.mrb[0].mxu0
      %v2165 = vadd.f32 0.0, %v2164
      %v2166 = vpop.f32.mrb[0].mxu0
      %v2167 = vpop.f32.mrb[0].mxu0
      %v2168 = vadd.f32 0.0, %v2167
      %v2169 = vpop.f32.mrb[0].mxu0
      %2170 = vmatprep.mubr.bf16.mxu0 0
      %2171 = vmatmul.mubr.bf16.gmra.mrb[0].mxu0 %v2038
      %v2172 = vpop.f32.mrb[0].mxu0
      %v2173 = vadd.f32 0.0, %v2172
      %v2174 = vpop.f32.mrb[0].mxu0
      %v2175 = vpop.f32.mrb[0].mxu0
      %v2176 = vadd.f32 0.0, %v2175
      %v2177 = vpop.f32.mrb[0].mxu0
      %2178 = vmatprep.mubr.bf16.mxu0 0
      %2179 = vmatmul.mubr.bf16.gmra.mrb[0].mxu0 %v2041
      %v2180 = vpop.f32.mrb[0].mxu0
      %v2181 = vadd.f32 0.0, %v2180
      %v2182 = vpop.f32.mrb[0].mxu0
      %v2183 = vpop.f32.mrb[0].mxu0
      %v2184 = vadd.f32 0.0, %v2183
      %v2185 = vpop.f32.mrb[0].mxu0
      %2186 = vmatprep.mubr.bf16.mxu0 0
      %2187 = vmatmul.mubr.bf16.gmra.mrb[0].mxu0 %v2044
      %v2188 = vpop.f32.mrb[0].mxu0
      %v2189 = vadd.f32 0.0, %v2188
      %v2190 = vpop.f32.mrb[0].mxu0
      %v2191 = vpop.f32.mrb[0].mxu0
      %v2192 = vadd.f32 0.0, %v2191
      %v2193 = vpop.f32.mrb[0].mxu0
      %2194 = vmatprep.mubr.bf16.mxu0 0
      %2195 = vmatmul.mubr.bf16.gmra.mrb[0].mxu0 %v2047
      %v2196 = vpop.f32.mrb[0].mxu0
      %v2197 = vadd.f32 0.0, %v2196
      %v2198 = vpop.f32.mrb[0].mxu0
      %v2199 = vpop.f32.mrb[0].mxu0
      %v2200 = vadd.f32 0.0, %v2199
      %v2201 = vpop.f32.mrb[0].mxu0
      %2202 = vmatprep.mubr.bf16.mxu0 0
      %2203 = vmatmul.mubr.bf16.gmra.mrb[0].mxu0 %v2050
      %v2204 = vpop.f32.mrb[0].mxu0
      %v2205 = vadd.f32 0.0, %v2204
      %v2206 = vpop.f32.mrb[0].mxu0
      %v2207 = vpop.f32.mrb[0].mxu0
      %v2208 = vadd.f32 0.0, %v2207
      %v2209 = vpop.f32.mrb[0].mxu0
      %2210 = vmatprep.mubr.bf16.mxu0 0
      %2211 = vmatmul.mubr.bf16.gmra.mrb[0].mxu0 %v2053
      %v2212 = vpop.f32.mrb[0].mxu0
      %v2213 = vadd.f32 0.0, %v2212
      %v2214 = vpop.f32.mrb[0].mxu0
      %v2215 = vpop.f32.mrb[0].mxu0
      %v2216 = vadd.f32 0.0, %v2215
      %v2217 = vpop.f32.mrb[0].mxu0
      %2218 = vdwg.mxu0
      %v2219 = vadd.f32 %v1750, %v2093
      %v2220 = vadd.f32 %v1753, %v2096
      %v2221 = vadd.f32 %v1758, %v2101
      %v2222 = vadd.f32 %v1761, %v2104
      %v2223 = vadd.f32 %v1766, %v2109
      %v2224 = vadd.f32 %v1769, %v2112
      %v2225 = vadd.f32 %v1774, %v2117
      %v2226 = vadd.f32 %v1777, %v2120
      %v2227 = vadd.f32 %v1782, %v2125
      %v2228 = vadd.f32 %v1785, %v2128
      %v2229 = vadd.f32 %v1790, %v2133
      %v2230 = vadd.f32 %v1793, %v2136
      %v2231 = vadd.f32 %v1798, %v2141
      %v2232 = vadd.f32 %v1801, %v2144
      %v2233 = vadd.f32 %v1806, %v2149
      %v2234 = vadd.f32 %v1809, %v2152
      %v2235 = vadd.f32 %v1814, %v2157
      %v2236 = vadd.f32 %v1817, %v2160
      %v2237 = vadd.f32 %v1822, %v2165
      %v2238 = vadd.f32 %v1825, %v2168
      %v2239 = vadd.f32 %v1830, %v2173
      %v2240 = vadd.f32 %v1833, %v2176
      %v2241 = vadd.f32 %v1838, %v2181
      %v2242 = vadd.f32 %v1841, %v2184
      %v2243 = vadd.f32 %v1846, %v2189
      %v2244 = vadd.f32 %v1849, %v2192
      %v2245 = vadd.f32 %v1854, %v2197
      %v2246 = vadd.f32 %v1857, %v2200
      %v2247 = vadd.f32 %v1862, %v2205
      %v2248 = vadd.f32 %v1865, %v2208
      %v2249 = vadd.f32 %v1870, %v2213
      %v2250 = vadd.f32 %v1873, %v2216
      %v2252 = vshrl.u32 %v1085, 16
      %v2254 = vrot.slane %v2252, 7
      %v2255 = vshll.u32 %v1085, 16
      %v2257 = vor.u32 %v2254, %v2255
      %v2258 = vsel %vm1326, %v1441, %v2257
      %s2259 = scalar_lea.vmem %s3, 12
      %v2260 = vld [vmem:[%s2259] sm:$0xf]
      %v2262 = vsel %vm1453, %v2258, 0
      %v2265 = vsel %vm1502, %v2260, 0
      %2267 = vmatprep.subr.bf16.mxu0 0
      %2268 = vmatpush1.bf16.msra.mxu0 %v2265
      %2269 = vmatprep.subr.bf16.mxu0 0
      %2270 = vmatpush1.bf16.msra.mxu0 0
      %2271 = vmatprep.subr.bf16.mxu0 0
      %2272 = vmatpush1.bf16.msra.mxu0 0
      %2273 = vmatprep.subr.bf16.mxu0 0
      %2274 = vmatpush1.bf16.msra.mxu0 0
      %2275 = vmatprep.subr.bf16.mxu0 0
      %2276 = vmatpush1.bf16.msra.mxu0 0
      %2277 = vmatprep.subr.bf16.mxu0 0
      %2278 = vmatpush1.bf16.msra.mxu0 0
      %2279 = vmatprep.subr.bf16.mxu0 0
      %2280 = vmatpush1.bf16.msra.mxu0 0
      %2281 = vmatprep.subr.bf16.mxu0 0
      %2282 = vmatpush1.bf16.msra.mxu0 0
      %2283 = vmatprep.subr.bf16.mxu0 0
      %2284 = vmatpush1.bf16.msra.mxu0 0
      %2285 = vmatprep.subr.bf16.mxu0 0
      %2286 = vmatpush1.bf16.msra.mxu0 0
      %2287 = vmatprep.subr.bf16.mxu0 0
      %2288 = vmatpush1.bf16.msra.mxu0 0
      %2289 = vmatprep.subr.bf16.mxu0 0
      %2290 = vmatpush1.bf16.msra.mxu0 0
      %2291 = vmatprep.subr.bf16.mxu0 0
      %2292 = vmatpush1.bf16.msra.mxu0 0
      %2293 = vmatprep.subr.bf16.mxu0 0
      %2294 = vmatpush1.bf16.msra.mxu0 0
      %2295 = vmatprep.subr.bf16.mxu0 0
      %2296 = vmatpush1.bf16.msra.mxu0 0
      %2297 = vmatprep.subr.bf16.mxu0 0
      %2298 = vmatpush1.bf16.msra.mxu0 0
      %2299 = vmatprep.mubr.bf16.mxu0 0
      %2300 = vmatmul.mubr.bf16.gmra.mrb[0].mxu0 %v1668
      %v2301 = vpop.f32.mrb[0].mxu0
      %v2302 = vadd.f32 0.0, %v2301
      %v2303 = vpop.f32.mrb[0].mxu0
      %v2304 = vpop.f32.mrb[0].mxu0
      %v2305 = vadd.f32 0.0, %v2304
      %v2306 = vpop.f32.mrb[0].mxu0
      %2307 = vmatprep.mubr.bf16.mxu0 0
      %2308 = vmatmul.mubr.bf16.gmra.mrb[0].mxu0 %v1671
      %v2309 = vpop.f32.mrb[0].mxu0
      %v2310 = vadd.f32 0.0, %v2309
      %v2311 = vpop.f32.mrb[0].mxu0
      %v2312 = vpop.f32.mrb[0].mxu0
      %v2313 = vadd.f32 0.0, %v2312
      %v2314 = vpop.f32.mrb[0].mxu0
      %2315 = vmatprep.mubr.bf16.mxu0 0
      %2316 = vmatmul.mubr.bf16.gmra.mrb[0].mxu0 %v1674
      %v2317 = vpop.f32.mrb[0].mxu0
      %v2318 = vadd.f32 0.0, %v2317
      %v2319 = vpop.f32.mrb[0].mxu0
      %v2320 = vpop.f32.mrb[0].mxu0
      %v2321 = vadd.f32 0.0, %v2320
      %v2322 = vpop.f32.mrb[0].mxu0
      %2323 = vmatprep.mubr.bf16.mxu0 0
      %2324 = vmatmul.mubr.bf16.gmra.mrb[0].mxu0 %v1677
      %v2325 = vpop.f32.mrb[0].mxu0
      %v2326 = vadd.f32 0.0, %v2325
      %v2327 = vpop.f32.mrb[0].mxu0
      %v2328 = vpop.f32.mrb[0].mxu0
      %v2329 = vadd.f32 0.0, %v2328
      %v2330 = vpop.f32.mrb[0].mxu0
      %2331 = vmatprep.mubr.bf16.mxu0 0
      %2332 = vmatmul.mubr.bf16.gmra.mrb[0].mxu0 %v1680
      %v2333 = vpop.f32.mrb[0].mxu0
      %v2334 = vadd.f32 0.0, %v2333
      %v2335 = vpop.f32.mrb[0].mxu0
      %v2336 = vpop.f32.mrb[0].mxu0
      %v2337 = vadd.f32 0.0, %v2336
      %v2338 = vpop.f32.mrb[0].mxu0
      %2339 = vmatprep.mubr.bf16.mxu0 0
      %2340 = vmatmul.mubr.bf16.gmra.mrb[0].mxu0 %v1683
      %v2341 = vpop.f32.mrb[0].mxu0
      %v2342 = vadd.f32 0.0, %v2341
      %v2343 = vpop.f32.mrb[0].mxu0
      %v2344 = vpop.f32.mrb[0].mxu0
      %v2345 = vadd.f32 0.0, %v2344
      %v2346 = vpop.f32.mrb[0].mxu0
      %2347 = vmatprep.mubr.bf16.mxu0 0
      %2348 = vmatmul.mubr.bf16.gmra.mrb[0].mxu0 %v1686
      %v2349 = vpop.f32.mrb[0].mxu0
      %v2350 = vadd.f32 0.0, %v2349
      %v2351 = vpop.f32.mrb[0].mxu0
      %v2352 = vpop.f32.mrb[0].mxu0
      %v2353 = vadd.f32 0.0, %v2352
      %v2354 = vpop.f32.mrb[0].mxu0
      %2355 = vmatprep.mubr.bf16.mxu0 0
      %2356 = vmatmul.mubr.bf16.gmra.mrb[0].mxu0 %v1689
      %v2357 = vpop.f32.mrb[0].mxu0
      %v2358 = vadd.f32 0.0, %v2357
      %v2359 = vpop.f32.mrb[0].mxu0
      %v2360 = vpop.f32.mrb[0].mxu0
      %v2361 = vadd.f32 0.0, %v2360
      %v2362 = vpop.f32.mrb[0].mxu0
      %2363 = vmatprep.mubr.bf16.mxu0 0
      %2364 = vmatmul.mubr.bf16.gmra.mrb[0].mxu0 %v1692
      %v2365 = vpop.f32.mrb[0].mxu0
      %v2366 = vadd.f32 0.0, %v2365
      %v2367 = vpop.f32.mrb[0].mxu0
      %v2368 = vpop.f32.mrb[0].mxu0
      %v2369 = vadd.f32 0.0, %v2368
      %v2370 = vpop.f32.mrb[0].mxu0
      %2371 = vmatprep.mubr.bf16.mxu0 0
      %2372 = vmatmul.mubr.bf16.gmra.mrb[0].mxu0 %v1695
      %v2373 = vpop.f32.mrb[0].mxu0
      %v2374 = vadd.f32 0.0, %v2373
      %v2375 = vpop.f32.mrb[0].mxu0
      %v2376 = vpop.f32.mrb[0].mxu0
      %v2377 = vadd.f32 0.0, %v2376
      %v2378 = vpop.f32.mrb[0].mxu0
      %2379 = vmatprep.mubr.bf16.mxu0 0
      %2380 = vmatmul.mubr.bf16.gmra.mrb[0].mxu0 %v1698
      %v2381 = vpop.f32.mrb[0].mxu0
      %v2382 = vadd.f32 0.0, %v2381
      %v2383 = vpop.f32.mrb[0].mxu0
      %v2384 = vpop.f32.mrb[0].mxu0
      %v2385 = vadd.f32 0.0, %v2384
      %v2386 = vpop.f32.mrb[0].mxu0
      %2387 = vmatprep.mubr.bf16.mxu0 0
      %2388 = vmatmul.mubr.bf16.gmra.mrb[0].mxu0 %v1701
      %v2389 = vpop.f32.mrb[0].mxu0
      %v2390 = vadd.f32 0.0, %v2389
      %v2391 = vpop.f32.mrb[0].mxu0
      %v2392 = vpop.f32.mrb[0].mxu0
      %v2393 = vadd.f32 0.0, %v2392
      %v2394 = vpop.f32.mrb[0].mxu0
      %2395 = vmatprep.mubr.bf16.mxu0 0
      %2396 = vmatmul.mubr.bf16.gmra.mrb[0].mxu0 %v1704
      %v2397 = vpop.f32.mrb[0].mxu0
      %v2398 = vadd.f32 0.0, %v2397
      %v2399 = vpop.f32.mrb[0].mxu0
      %v2400 = vpop.f32.mrb[0].mxu0
      %v2401 = vadd.f32 0.0, %v2400
      %v2402 = vpop.f32.mrb[0].mxu0
      %2403 = vmatprep.mubr.bf16.mxu0 0
      %2404 = vmatmul.mubr.bf16.gmra.mrb[0].mxu0 %v1707
      %v2405 = vpop.f32.mrb[0].mxu0
      %v2406 = vadd.f32 0.0, %v2405
      %v2407 = vpop.f32.mrb[0].mxu0
      %v2408 = vpop.f32.mrb[0].mxu0
      %v2409 = vadd.f32 0.0, %v2408
      %v2410 = vpop.f32.mrb[0].mxu0
      %2411 = vmatprep.mubr.bf16.mxu0 0
      %2412 = vmatmul.mubr.bf16.gmra.mrb[0].mxu0 %v1710
      %v2413 = vpop.f32.mrb[0].mxu0
      %v2414 = vadd.f32 0.0, %v2413
      %v2415 = vpop.f32.mrb[0].mxu0
      %v2416 = vpop.f32.mrb[0].mxu0
      %v2417 = vadd.f32 0.0, %v2416
      %v2418 = vpop.f32.mrb[0].mxu0
      %2419 = vmatprep.mubr.bf16.mxu0 0
      %2420 = vmatmul.mubr.bf16.gmra.mrb[0].mxu0 %v2262
      %v2421 = vpop.f32.mrb[0].mxu0
      %v2422 = vadd.f32 0.0, %v2421
      %v2423 = vpop.f32.mrb[0].mxu0
      %v2424 = vpop.f32.mrb[0].mxu0
      %v2425 = vadd.f32 0.0, %v2424
      %v2426 = vpop.f32.mrb[0].mxu0
      %2427 = vdwg.mxu0
      %v2428 = vadd.f32 %v2219, %v2302
      %v2429 = vadd.f32 %v2220, %v2305
      %v2430 = vadd.f32 %v2221, %v2310
      %v2431 = vadd.f32 %v2222, %v2313
      %v2432 = vadd.f32 %v2223, %v2318
      %v2433 = vadd.f32 %v2224, %v2321
      %v2434 = vadd.f32 %v2225, %v2326
      %v2435 = vadd.f32 %v2226, %v2329
      %v2436 = vadd.f32 %v2227, %v2334
      %v2437 = vadd.f32 %v2228, %v2337
      %v2438 = vadd.f32 %v2229, %v2342
      %v2439 = vadd.f32 %v2230, %v2345
      %v2440 = vadd.f32 %v2231, %v2350
      %v2441 = vadd.f32 %v2232, %v2353
      %v2442 = vadd.f32 %v2233, %v2358
      %v2443 = vadd.f32 %v2234, %v2361
      %v2444 = vadd.f32 %v2235, %v2366
      %v2445 = vadd.f32 %v2236, %v2369
      %v2446 = vadd.f32 %v2237, %v2374
      %v2447 = vadd.f32 %v2238, %v2377
      %v2448 = vadd.f32 %v2239, %v2382
      %v2449 = vadd.f32 %v2240, %v2385
      %v2450 = vadd.f32 %v2241, %v2390
      %v2451 = vadd.f32 %v2242, %v2393
      %v2452 = vadd.f32 %v2243, %v2398
      %v2453 = vadd.f32 %v2244, %v2401
      %v2454 = vadd.f32 %v2245, %v2406
      %v2455 = vadd.f32 %v2246, %v2409
      %v2456 = vadd.f32 %v2247, %v2414
      %v2457 = vadd.f32 %v2248, %v2417
      %v2458 = vadd.f32 %v2249, %v2422
      %v2459 = vadd.f32 %v2250, %v2425
      %s2460 = scalar_lea.vmem %s3, 16
      %v2461 = vld [vmem:[%s2460] sm:$0xf]
      %v2463 = vsel %vm1453, %v428, 0
      %v2466 = vsel %vm1502, %v2461, 0
      %2468 = vmatprep.subr.bf16.mxu0 0
      %2469 = vmatpush1.bf16.msra.mxu0 %v2466
      %2470 = vmatprep.subr.bf16.mxu0 0
      %2471 = vmatpush1.bf16.msra.mxu0 0
      %2472 = vmatprep.subr.bf16.mxu0 0
      %2473 = vmatpush1.bf16.msra.mxu0 0
      %2474 = vmatprep.subr.bf16.mxu0 0
      %2475 = vmatpush1.bf16.msra.mxu0 0
      %2476 = vmatprep.subr.bf16.mxu0 0
      %2477 = vmatpush1.bf16.msra.mxu0 0
      %2478 = vmatprep.subr.bf16.mxu0 0
      %2479 = vmatpush1.bf16.msra.mxu0 0
      %2480 = vmatprep.subr.bf16.mxu0 0
      %2481 = vmatpush1.bf16.msra.mxu0 0
      %2482 = vmatprep.subr.bf16.mxu0 0
      %2483 = vmatpush1.bf16.msra.mxu0 0
      %2484 = vmatprep.subr.bf16.mxu0 0
      %2485 = vmatpush1.bf16.msra.mxu0 0
      %2486 = vmatprep.subr.bf16.mxu0 0
      %2487 = vmatpush1.bf16.msra.mxu0 0
      %2488 = vmatprep.subr.bf16.mxu0 0
      %2489 = vmatpush1.bf16.msra.mxu0 0
      %2490 = vmatprep.subr.bf16.mxu0 0
      %2491 = vmatpush1.bf16.msra.mxu0 0
      %2492 = vmatprep.subr.bf16.mxu0 0
      %2493 = vmatpush1.bf16.msra.mxu0 0
      %2494 = vmatprep.subr.bf16.mxu0 0
      %2495 = vmatpush1.bf16.msra.mxu0 0
      %2496 = vmatprep.subr.bf16.mxu0 0
      %2497 = vmatpush1.bf16.msra.mxu0 0
      %2498 = vmatprep.subr.bf16.mxu0 0
      %2499 = vmatpush1.bf16.msra.mxu0 0
      %2500 = vmatprep.mubr.bf16.mxu0 0
      %2501 = vmatmul.mubr.bf16.gmra.mrb[0].mxu0 %v1458
      %v2502 = vpop.f32.mrb[0].mxu0
      %v2503 = vadd.f32 0.0, %v2502
      %v2504 = vpop.f32.mrb[0].mxu0
      %v2505 = vpop.f32.mrb[0].mxu0
      %v2506 = vadd.f32 0.0, %v2505
      %v2507 = vpop.f32.mrb[0].mxu0
      %2508 = vmatprep.mubr.bf16.mxu0 0
      %2509 = vmatmul.mubr.bf16.gmra.mrb[0].mxu0 %v1461
      %v2510 = vpop.f32.mrb[0].mxu0
      %v2511 = vadd.f32 0.0, %v2510
      %v2512 = vpop.f32.mrb[0].mxu0
      %v2513 = vpop.f32.mrb[0].mxu0
      %v2514 = vadd.f32 0.0, %v2513
      %v2515 = vpop.f32.mrb[0].mxu0
      %2516 = vmatprep.mubr.bf16.mxu0 0
      %2517 = vmatmul.mubr.bf16.gmra.mrb[0].mxu0 %v1464
      %v2518 = vpop.f32.mrb[0].mxu0
      %v2519 = vadd.f32 0.0, %v2518
      %v2520 = vpop.f32.mrb[0].mxu0
      %v2521 = vpop.f32.mrb[0].mxu0
      %v2522 = vadd.f32 0.0, %v2521
      %v2523 = vpop.f32.mrb[0].mxu0
      %2524 = vmatprep.mubr.bf16.mxu0 0
      %2525 = vmatmul.mubr.bf16.gmra.mrb[0].mxu0 %v1467
      %v2526 = vpop.f32.mrb[0].mxu0
      %v2527 = vadd.f32 0.0, %v2526
      %v2528 = vpop.f32.mrb[0].mxu0
      %v2529 = vpop.f32.mrb[0].mxu0
      %v2530 = vadd.f32 0.0, %v2529
      %v2531 = vpop.f32.mrb[0].mxu0
      %2532 = vmatprep.mubr.bf16.mxu0 0
      %2533 = vmatmul.mubr.bf16.gmra.mrb[0].mxu0 %v1470
      %v2534 = vpop.f32.mrb[0].mxu0
      %v2535 = vadd.f32 0.0, %v2534
      %v2536 = vpop.f32.mrb[0].mxu0
      %v2537 = vpop.f32.mrb[0].mxu0
      %v2538 = vadd.f32 0.0, %v2537
      %v2539 = vpop.f32.mrb[0].mxu0
      %2540 = vmatprep.mubr.bf16.mxu0 0
      %2541 = vmatmul.mubr.bf16.gmra.mrb[0].mxu0 %v1473
      %v2542 = vpop.f32.mrb[0].mxu0
      %v2543 = vadd.f32 0.0, %v2542
      %v2544 = vpop.f32.mrb[0].mxu0
      %v2545 = vpop.f32.mrb[0].mxu0
      %v2546 = vadd.f32 0.0, %v2545
      %v2547 = vpop.f32.mrb[0].mxu0
      %2548 = vmatprep.mubr.bf16.mxu0 0
      %2549 = vmatmul.mubr.bf16.gmra.mrb[0].mxu0 %v1476
      %v2550 = vpop.f32.mrb[0].mxu0
      %v2551 = vadd.f32 0.0, %v2550
      %v2552 = vpop.f32.mrb[0].mxu0
      %v2553 = vpop.f32.mrb[0].mxu0
      %v2554 = vadd.f32 0.0, %v2553
      %v2555 = vpop.f32.mrb[0].mxu0
      %2556 = vmatprep.mubr.bf16.mxu0 0
      %2557 = vmatmul.mubr.bf16.gmra.mrb[0].mxu0 %v1479
      %v2558 = vpop.f32.mrb[0].mxu0
      %v2559 = vadd.f32 0.0, %v2558
      %v2560 = vpop.f32.mrb[0].mxu0
      %v2561 = vpop.f32.mrb[0].mxu0
      %v2562 = vadd.f32 0.0, %v2561
      %v2563 = vpop.f32.mrb[0].mxu0
      %2564 = vmatprep.mubr.bf16.mxu0 0
      %2565 = vmatmul.mubr.bf16.gmra.mrb[0].mxu0 %v1482
      %v2566 = vpop.f32.mrb[0].mxu0
      %v2567 = vadd.f32 0.0, %v2566
      %v2568 = vpop.f32.mrb[0].mxu0
      %v2569 = vpop.f32.mrb[0].mxu0
      %v2570 = vadd.f32 0.0, %v2569
      %v2571 = vpop.f32.mrb[0].mxu0
      %2572 = vmatprep.mubr.bf16.mxu0 0
      %2573 = vmatmul.mubr.bf16.gmra.mrb[0].mxu0 %v1485
      %v2574 = vpop.f32.mrb[0].mxu0
      %v2575 = vadd.f32 0.0, %v2574
      %v2576 = vpop.f32.mrb[0].mxu0
      %v2577 = vpop.f32.mrb[0].mxu0
      %v2578 = vadd.f32 0.0, %v2577
      %v2579 = vpop.f32.mrb[0].mxu0
      %2580 = vmatprep.mubr.bf16.mxu0 0
      %2581 = vmatmul.mubr.bf16.gmra.mrb[0].mxu0 %v1488
      %v2582 = vpop.f32.mrb[0].mxu0
      %v2583 = vadd.f32 0.0, %v2582
      %v2584 = vpop.f32.mrb[0].mxu0
      %v2585 = vpop.f32.mrb[0].mxu0
      %v2586 = vadd.f32 0.0, %v2585
      %v2587 = vpop.f32.mrb[0].mxu0
      %2588 = vmatprep.mubr.bf16.mxu0 0
      %2589 = vmatmul.mubr.bf16.gmra.mrb[0].mxu0 %v1491
      %v2590 = vpop.f32.mrb[0].mxu0
      %v2591 = vadd.f32 0.0, %v2590
      %v2592 = vpop.f32.mrb[0].mxu0
      %v2593 = vpop.f32.mrb[0].mxu0
      %v2594 = vadd.f32 0.0, %v2593
      %v2595 = vpop.f32.mrb[0].mxu0
      %2596 = vmatprep.mubr.bf16.mxu0 0
      %2597 = vmatmul.mubr.bf16.gmra.mrb[0].mxu0 %v1494
      %v2598 = vpop.f32.mrb[0].mxu0
      %v2599 = vadd.f32 0.0, %v2598
      %v2600 = vpop.f32.mrb[0].mxu0
      %v2601 = vpop.f32.mrb[0].mxu0
      %v2602 = vadd.f32 0.0, %v2601
      %v2603 = vpop.f32.mrb[0].mxu0
      %2604 = vmatprep.mubr.bf16.mxu0 0
      %2605 = vmatmul.mubr.bf16.gmra.mrb[0].mxu0 %v1497
      %v2606 = vpop.f32.mrb[0].mxu0
      %v2607 = vadd.f32 0.0, %v2606
      %v2608 = vpop.f32.mrb[0].mxu0
      %v2609 = vpop.f32.mrb[0].mxu0
      %v2610 = vadd.f32 0.0, %v2609
      %v2611 = vpop.f32.mrb[0].mxu0
      %2612 = vmatprep.mubr.bf16.mxu0 0
      %2613 = vmatmul.mubr.bf16.gmra.mrb[0].mxu0 %v1500
      %v2614 = vpop.f32.mrb[0].mxu0
      %v2615 = vadd.f32 0.0, %v2614
      %v2616 = vpop.f32.mrb[0].mxu0
      %v2617 = vpop.f32.mrb[0].mxu0
      %v2618 = vadd.f32 0.0, %v2617
      %v2619 = vpop.f32.mrb[0].mxu0
      %2620 = vmatprep.mubr.bf16.mxu0 0
      %2621 = vmatmul.mubr.bf16.gmra.mrb[0].mxu0 %v2463
      %v2622 = vpop.f32.mrb[0].mxu0
      %v2623 = vadd.f32 0.0, %v2622
      %v2624 = vpop.f32.mrb[0].mxu0
      %v2625 = vpop.f32.mrb[0].mxu0
      %v2626 = vadd.f32 0.0, %v2625
      %v2627 = vpop.f32.mrb[0].mxu0
      %2628 = vdwg.mxu0
      %v2629 = vadd.f32 %v2428, %v2503
      %v2630 = vadd.f32 %v2429, %v2506
      %v2631 = vadd.f32 %v2430, %v2511
      %v2632 = vadd.f32 %v2431, %v2514
      %v2633 = vadd.f32 %v2432, %v2519
      %v2634 = vadd.f32 %v2433, %v2522
      %v2635 = vadd.f32 %v2434, %v2527
      %v2636 = vadd.f32 %v2435, %v2530
      %v2637 = vadd.f32 %v2436, %v2535
      %v2638 = vadd.f32 %v2437, %v2538
      %v2639 = vadd.f32 %v2438, %v2543
      %v2640 = vadd.f32 %v2439, %v2546
      %v2641 = vadd.f32 %v2440, %v2551
      %v2642 = vadd.f32 %v2441, %v2554
      %v2643 = vadd.f32 %v2442, %v2559
      %v2644 = vadd.f32 %v2443, %v2562
      %v2645 = vadd.f32 %v2444, %v2567
      %v2646 = vadd.f32 %v2445, %v2570
      %v2647 = vadd.f32 %v2446, %v2575
      %v2648 = vadd.f32 %v2447, %v2578
      %v2649 = vadd.f32 %v2448, %v2583
      %v2650 = vadd.f32 %v2449, %v2586
      %v2651 = vadd.f32 %v2450, %v2591
      %v2652 = vadd.f32 %v2451, %v2594
      %v2653 = vadd.f32 %v2452, %v2599
      %v2654 = vadd.f32 %v2453, %v2602
      %v2655 = vadd.f32 %v2454, %v2607
      %v2656 = vadd.f32 %v2455, %v2610
      %v2657 = vadd.f32 %v2456, %v2615
      %v2658 = vadd.f32 %v2457, %v2618
      %v2659 = vadd.f32 %v2458, %v2623
      %v2660 = vadd.f32 %v2459, %v2626
      %v2661 = vshrl.u32 %v1325, 16
      %v2663 = vor.u32 %v2661, %v1999
      %v2665 = vsel %vm2003, %v2663, 0
      %s2666 = scalar_lea.vmem %s3, 20
      %v2667 = vld [vmem:[%s2666] sm:$0xf]
      %v2669 = vsel %vm1453, %v2665, 0
      %v2672 = vsel %vm1502, %v2667, 0
      %2674 = vmatprep.subr.bf16.mxu0 0
      %2675 = vmatpush1.bf16.msra.mxu0 %v2672
      %2676 = vmatprep.subr.bf16.mxu0 0
      %2677 = vmatpush1.bf16.msra.mxu0 0
      %2678 = vmatprep.subr.bf16.mxu0 0
      %2679 = vmatpush1.bf16.msra.mxu0 0
      %2680 = vmatprep.subr.bf16.mxu0 0
      %2681 = vmatpush1.bf16.msra.mxu0 0
      %2682 = vmatprep.subr.bf16.mxu0 0
      %2683 = vmatpush1.bf16.msra.mxu0 0
      %2684 = vmatprep.subr.bf16.mxu0 0
      %2685 = vmatpush1.bf16.msra.mxu0 0
      %2686 = vmatprep.subr.bf16.mxu0 0
      %2687 = vmatpush1.bf16.msra.mxu0 0
      %2688 = vmatprep.subr.bf16.mxu0 0
      %2689 = vmatpush1.bf16.msra.mxu0 0
      %2690 = vmatprep.subr.bf16.mxu0 0
      %2691 = vmatpush1.bf16.msra.mxu0 0
      %2692 = vmatprep.subr.bf16.mxu0 0
      %2693 = vmatpush1.bf16.msra.mxu0 0
      %2694 = vmatprep.subr.bf16.mxu0 0
      %2695 = vmatpush1.bf16.msra.mxu0 0
      %2696 = vmatprep.subr.bf16.mxu0 0
      %2697 = vmatpush1.bf16.msra.mxu0 0
      %2698 = vmatprep.subr.bf16.mxu0 0
      %2699 = vmatpush1.bf16.msra.mxu0 0
      %2700 = vmatprep.subr.bf16.mxu0 0
      %2701 = vmatpush1.bf16.msra.mxu0 0
      %2702 = vmatprep.subr.bf16.mxu0 0
      %2703 = vmatpush1.bf16.msra.mxu0 0
      %2704 = vmatprep.subr.bf16.mxu0 0
      %2705 = vmatpush1.bf16.msra.mxu0 0
      %2706 = vmatprep.mubr.bf16.mxu0 0
      %2707 = vmatmul.mubr.bf16.gmra.mrb[0].mxu0 %v2011
      %v2708 = vpop.f32.mrb[0].mxu0
      %v2709 = vadd.f32 0.0, %v2708
      %v2710 = vpop.f32.mrb[0].mxu0
      %v2711 = vpop.f32.mrb[0].mxu0
      %v2712 = vadd.f32 0.0, %v2711
      %v2713 = vpop.f32.mrb[0].mxu0
      %2714 = vmatprep.mubr.bf16.mxu0 0
      %2715 = vmatmul.mubr.bf16.gmra.mrb[0].mxu0 %v2014
      %v2716 = vpop.f32.mrb[0].mxu0
      %v2717 = vadd.f32 0.0, %v2716
      %v2718 = vpop.f32.mrb[0].mxu0
      %v2719 = vpop.f32.mrb[0].mxu0
      %v2720 = vadd.f32 0.0, %v2719
      %v2721 = vpop.f32.mrb[0].mxu0
      %2722 = vmatprep.mubr.bf16.mxu0 0
      %2723 = vmatmul.mubr.bf16.gmra.mrb[0].mxu0 %v2017
      %v2724 = vpop.f32.mrb[0].mxu0
      %v2725 = vadd.f32 0.0, %v2724
      %v2726 = vpop.f32.mrb[0].mxu0
      %v2727 = vpop.f32.mrb[0].mxu0
      %v2728 = vadd.f32 0.0, %v2727
      %v2729 = vpop.f32.mrb[0].mxu0
      %2730 = vmatprep.mubr.bf16.mxu0 0
      %2731 = vmatmul.mubr.bf16.gmra.mrb[0].mxu0 %v2020
      %v2732 = vpop.f32.mrb[0].mxu0
      %v2733 = vadd.f32 0.0, %v2732
      %v2734 = vpop.f32.mrb[0].mxu0
      %v2735 = vpop.f32.mrb[0].mxu0
      %v2736 = vadd.f32 0.0, %v2735
      %v2737 = vpop.f32.mrb[0].mxu0
      %2738 = vmatprep.mubr.bf16.mxu0 0
      %2739 = vmatmul.mubr.bf16.gmra.mrb[0].mxu0 %v2023
      %v2740 = vpop.f32.mrb[0].mxu0
      %v2741 = vadd.f32 0.0, %v2740
      %v2742 = vpop.f32.mrb[0].mxu0
      %v2743 = vpop.f32.mrb[0].mxu0
      %v2744 = vadd.f32 0.0, %v2743
      %v2745 = vpop.f32.mrb[0].mxu0
      %2746 = vmatprep.mubr.bf16.mxu0 0
      %2747 = vmatmul.mubr.bf16.gmra.mrb[0].mxu0 %v2026
      %v2748 = vpop.f32.mrb[0].mxu0
      %v2749 = vadd.f32 0.0, %v2748
      %v2750 = vpop.f32.mrb[0].mxu0
      %v2751 = vpop.f32.mrb[0].mxu0
      %v2752 = vadd.f32 0.0, %v2751
      %v2753 = vpop.f32.mrb[0].mxu0
      %2754 = vmatprep.mubr.bf16.mxu0 0
      %2755 = vmatmul.mubr.bf16.gmra.mrb[0].mxu0 %v2029
      %v2756 = vpop.f32.mrb[0].mxu0
      %v2757 = vadd.f32 0.0, %v2756
      %v2758 = vpop.f32.mrb[0].mxu0
      %v2759 = vpop.f32.mrb[0].mxu0
      %v2760 = vadd.f32 0.0, %v2759
      %v2761 = vpop.f32.mrb[0].mxu0
      %2762 = vmatprep.mubr.bf16.mxu0 0
      %2763 = vmatmul.mubr.bf16.gmra.mrb[0].mxu0 %v2032
      %v2764 = vpop.f32.mrb[0].mxu0
      %v2765 = vadd.f32 0.0, %v2764
      %v2766 = vpop.f32.mrb[0].mxu0
      %v2767 = vpop.f32.mrb[0].mxu0
      %v2768 = vadd.f32 0.0, %v2767
      %v2769 = vpop.f32.mrb[0].mxu0
      %2770 = vmatprep.mubr.bf16.mxu0 0
      %2771 = vmatmul.mubr.bf16.gmra.mrb[0].mxu0 %v2035
      %v2772 = vpop.f32.mrb[0].mxu0
      %v2773 = vadd.f32 0.0, %v2772
      %v2774 = vpop.f32.mrb[0].mxu0
      %v2775 = vpop.f32.mrb[0].mxu0
      %v2776 = vadd.f32 0.0, %v2775
      %v2777 = vpop.f32.mrb[0].mxu0
      %2778 = vmatprep.mubr.bf16.mxu0 0
      %2779 = vmatmul.mubr.bf16.gmra.mrb[0].mxu0 %v2038
      %v2780 = vpop.f32.mrb[0].mxu0
      %v2781 = vadd.f32 0.0, %v2780
      %v2782 = vpop.f32.mrb[0].mxu0
      %v2783 = vpop.f32.mrb[0].mxu0
      %v2784 = vadd.f32 0.0, %v2783
      %v2785 = vpop.f32.mrb[0].mxu0
      %2786 = vmatprep.mubr.bf16.mxu0 0
      %2787 = vmatmul.mubr.bf16.gmra.mrb[0].mxu0 %v2041
      %v2788 = vpop.f32.mrb[0].mxu0
      %v2789 = vadd.f32 0.0, %v2788
      %v2790 = vpop.f32.mrb[0].mxu0
      %v2791 = vpop.f32.mrb[0].mxu0
      %v2792 = vadd.f32 0.0, %v2791
      %v2793 = vpop.f32.mrb[0].mxu0
      %2794 = vmatprep.mubr.bf16.mxu0 0
      %2795 = vmatmul.mubr.bf16.gmra.mrb[0].mxu0 %v2044
      %v2796 = vpop.f32.mrb[0].mxu0
      %v2797 = vadd.f32 0.0, %v2796
      %v2798 = vpop.f32.mrb[0].mxu0
      %v2799 = vpop.f32.mrb[0].mxu0
      %v2800 = vadd.f32 0.0, %v2799
      %v2801 = vpop.f32.mrb[0].mxu0
      %2802 = vmatprep.mubr.bf16.mxu0 0
      %2803 = vmatmul.mubr.bf16.gmra.mrb[0].mxu0 %v2047
      %v2804 = vpop.f32.mrb[0].mxu0
      %v2805 = vadd.f32 0.0, %v2804
      %v2806 = vpop.f32.mrb[0].mxu0
      %v2807 = vpop.f32.mrb[0].mxu0
      %v2808 = vadd.f32 0.0, %v2807
      %v2809 = vpop.f32.mrb[0].mxu0
      %2810 = vmatprep.mubr.bf16.mxu0 0
      %2811 = vmatmul.mubr.bf16.gmra.mrb[0].mxu0 %v2050
      %v2812 = vpop.f32.mrb[0].mxu0
      %v2813 = vadd.f32 0.0, %v2812
      %v2814 = vpop.f32.mrb[0].mxu0
      %v2815 = vpop.f32.mrb[0].mxu0
      %v2816 = vadd.f32 0.0, %v2815
      %v2817 = vpop.f32.mrb[0].mxu0
      %2818 = vmatprep.mubr.bf16.mxu0 0
      %2819 = vmatmul.mubr.bf16.gmra.mrb[0].mxu0 %v2053
      %v2820 = vpop.f32.mrb[0].mxu0
      %v2821 = vadd.f32 0.0, %v2820
      %v2822 = vpop.f32.mrb[0].mxu0
      %v2823 = vpop.f32.mrb[0].mxu0
      %v2824 = vadd.f32 0.0, %v2823
      %v2825 = vpop.f32.mrb[0].mxu0
      %2826 = vmatprep.mubr.bf16.mxu0 0
      %2827 = vmatmul.mubr.bf16.gmra.mrb[0].mxu0 %v2669
      %v2828 = vpop.f32.mrb[0].mxu0
      %v2829 = vadd.f32 0.0, %v2828
      %v2830 = vpop.f32.mrb[0].mxu0
      %v2831 = vpop.f32.mrb[0].mxu0
      %v2832 = vadd.f32 0.0, %v2831
      %v2833 = vpop.f32.mrb[0].mxu0
      %2834 = vdwg.mxu0
      %v2835 = vadd.f32 %v2629, %v2709
      %v2836 = vadd.f32 %v2630, %v2712
      %v2837 = vadd.f32 %v2631, %v2717
      %v2838 = vadd.f32 %v2632, %v2720
      %v2839 = vadd.f32 %v2633, %v2725
      %v2840 = vadd.f32 %v2634, %v2728
      %v2841 = vadd.f32 %v2635, %v2733
      %v2842 = vadd.f32 %v2636, %v2736
      %v2843 = vadd.f32 %v2637, %v2741
      %v2844 = vadd.f32 %v2638, %v2744
      %v2845 = vadd.f32 %v2639, %v2749
      %v2846 = vadd.f32 %v2640, %v2752
      %v2847 = vadd.f32 %v2641, %v2757
      %v2848 = vadd.f32 %v2642, %v2760
      %v2849 = vadd.f32 %v2643, %v2765
      %v2850 = vadd.f32 %v2644, %v2768
      %v2851 = vadd.f32 %v2645, %v2773
      %v2852 = vadd.f32 %v2646, %v2776
      %v2853 = vadd.f32 %v2647, %v2781
      %v2854 = vadd.f32 %v2648, %v2784
      %v2855 = vadd.f32 %v2649, %v2789
      %v2856 = vadd.f32 %v2650, %v2792
      %v2857 = vadd.f32 %v2651, %v2797
      %v2858 = vadd.f32 %v2652, %v2800
      %v2859 = vadd.f32 %v2653, %v2805
      %v2860 = vadd.f32 %v2654, %v2808
      %v2861 = vadd.f32 %v2655, %v2813
      %v2862 = vadd.f32 %v2656, %v2816
      %v2863 = vadd.f32 %v2657, %v2821
      %v2864 = vadd.f32 %v2658, %v2824
      %v2865 = vadd.f32 %v2659, %v2829
      %v2866 = vadd.f32 %v2660, %v2832
      %v2868 = vsel %vm1448, %v2254, 0
      %s2869 = scalar_lea.vmem %s3, 24
      %v2870 = vld [vmem:[%s2869] sm:$0xf]
      %v2872 = vsel %vm1453, %v2868, 0
      %v2875 = vsel %vm1502, %v2870, 0
      %2877 = vmatprep.subr.bf16.mxu0 0
      %2878 = vmatpush1.bf16.msra.mxu0 %v2875
      %2879 = vmatprep.subr.bf16.mxu0 0
      %2880 = vmatpush1.bf16.msra.mxu0 0
      %2881 = vmatprep.subr.bf16.mxu0 0
      %2882 = vmatpush1.bf16.msra.mxu0 0
      %2883 = vmatprep.subr.bf16.mxu0 0
      %2884 = vmatpush1.bf16.msra.mxu0 0
      %2885 = vmatprep.subr.bf16.mxu0 0
      %2886 = vmatpush1.bf16.msra.mxu0 0
      %2887 = vmatprep.subr.bf16.mxu0 0
      %2888 = vmatpush1.bf16.msra.mxu0 0
      %2889 = vmatprep.subr.bf16.mxu0 0
      %2890 = vmatpush1.bf16.msra.mxu0 0
      %2891 = vmatprep.subr.bf16.mxu0 0
      %2892 = vmatpush1.bf16.msra.mxu0 0
      %2893 = vmatprep.subr.bf16.mxu0 0
      %2894 = vmatpush1.bf16.msra.mxu0 0
      %2895 = vmatprep.subr.bf16.mxu0 0
      %2896 = vmatpush1.bf16.msra.mxu0 0
      %2897 = vmatprep.subr.bf16.mxu0 0
      %2898 = vmatpush1.bf16.msra.mxu0 0
      %2899 = vmatprep.subr.bf16.mxu0 0
      %2900 = vmatpush1.bf16.msra.mxu0 0
      %2901 = vmatprep.subr.bf16.mxu0 0
      %2902 = vmatpush1.bf16.msra.mxu0 0
      %2903 = vmatprep.subr.bf16.mxu0 0
      %2904 = vmatpush1.bf16.msra.mxu0 0
      %2905 = vmatprep.subr.bf16.mxu0 0
      %2906 = vmatpush1.bf16.msra.mxu0 0
      %2907 = vmatprep.subr.bf16.mxu0 0
      %2908 = vmatpush1.bf16.msra.mxu0 0
      %2909 = vmatprep.mubr.bf16.mxu0 0
      %2910 = vmatmul.mubr.bf16.gmra.mrb[0].mxu0 %v1671
      %v2911 = vpop.f32.mrb[0].mxu0
      %v2912 = vadd.f32 0.0, %v2911
      %v2913 = vpop.f32.mrb[0].mxu0
      %v2914 = vpop.f32.mrb[0].mxu0
      %v2915 = vadd.f32 0.0, %v2914
      %v2916 = vpop.f32.mrb[0].mxu0
      %2917 = vmatprep.mubr.bf16.mxu0 0
      %2918 = vmatmul.mubr.bf16.gmra.mrb[0].mxu0 %v1674
      %v2919 = vpop.f32.mrb[0].mxu0
      %v2920 = vadd.f32 0.0, %v2919
      %v2921 = vpop.f32.mrb[0].mxu0
      %v2922 = vpop.f32.mrb[0].mxu0
      %v2923 = vadd.f32 0.0, %v2922
      %v2924 = vpop.f32.mrb[0].mxu0
      %2925 = vmatprep.mubr.bf16.mxu0 0
      %2926 = vmatmul.mubr.bf16.gmra.mrb[0].mxu0 %v1677
      %v2927 = vpop.f32.mrb[0].mxu0
      %v2928 = vadd.f32 0.0, %v2927
      %v2929 = vpop.f32.mrb[0].mxu0
      %v2930 = vpop.f32.mrb[0].mxu0
      %v2931 = vadd.f32 0.0, %v2930
      %v2932 = vpop.f32.mrb[0].mxu0
      %2933 = vmatprep.mubr.bf16.mxu0 0
      %2934 = vmatmul.mubr.bf16.gmra.mrb[0].mxu0 %v1680
      %v2935 = vpop.f32.mrb[0].mxu0
      %v2936 = vadd.f32 0.0, %v2935
      %v2937 = vpop.f32.mrb[0].mxu0
      %v2938 = vpop.f32.mrb[0].mxu0
      %v2939 = vadd.f32 0.0, %v2938
      %v2940 = vpop.f32.mrb[0].mxu0
      %2941 = vmatprep.mubr.bf16.mxu0 0
      %2942 = vmatmul.mubr.bf16.gmra.mrb[0].mxu0 %v1683
      %v2943 = vpop.f32.mrb[0].mxu0
      %v2944 = vadd.f32 0.0, %v2943
      %v2945 = vpop.f32.mrb[0].mxu0
      %v2946 = vpop.f32.mrb[0].mxu0
      %v2947 = vadd.f32 0.0, %v2946
      %v2948 = vpop.f32.mrb[0].mxu0
      %2949 = vmatprep.mubr.bf16.mxu0 0
      %2950 = vmatmul.mubr.bf16.gmra.mrb[0].mxu0 %v1686
      %v2951 = vpop.f32.mrb[0].mxu0
      %v2952 = vadd.f32 0.0, %v2951
      %v2953 = vpop.f32.mrb[0].mxu0
      %v2954 = vpop.f32.mrb[0].mxu0
      %v2955 = vadd.f32 0.0, %v2954
      %v2956 = vpop.f32.mrb[0].mxu0
      %2957 = vmatprep.mubr.bf16.mxu0 0
      %2958 = vmatmul.mubr.bf16.gmra.mrb[0].mxu0 %v1689
      %v2959 = vpop.f32.mrb[0].mxu0
      %v2960 = vadd.f32 0.0, %v2959
      %v2961 = vpop.f32.mrb[0].mxu0
      %v2962 = vpop.f32.mrb[0].mxu0
      %v2963 = vadd.f32 0.0, %v2962
      %v2964 = vpop.f32.mrb[0].mxu0
      %2965 = vmatprep.mubr.bf16.mxu0 0
      %2966 = vmatmul.mubr.bf16.gmra.mrb[0].mxu0 %v1692
      %v2967 = vpop.f32.mrb[0].mxu0
      %v2968 = vadd.f32 0.0, %v2967
      %v2969 = vpop.f32.mrb[0].mxu0
      %v2970 = vpop.f32.mrb[0].mxu0
      %v2971 = vadd.f32 0.0, %v2970
      %v2972 = vpop.f32.mrb[0].mxu0
      %2973 = vmatprep.mubr.bf16.mxu0 0
      %2974 = vmatmul.mubr.bf16.gmra.mrb[0].mxu0 %v1695
      %v2975 = vpop.f32.mrb[0].mxu0
      %v2976 = vadd.f32 0.0, %v2975
      %v2977 = vpop.f32.mrb[0].mxu0
      %v2978 = vpop.f32.mrb[0].mxu0
      %v2979 = vadd.f32 0.0, %v2978
      %v2980 = vpop.f32.mrb[0].mxu0
      %2981 = vmatprep.mubr.bf16.mxu0 0
      %2982 = vmatmul.mubr.bf16.gmra.mrb[0].mxu0 %v1698
      %v2983 = vpop.f32.mrb[0].mxu0
      %v2984 = vadd.f32 0.0, %v2983
      %v2985 = vpop.f32.mrb[0].mxu0
      %v2986 = vpop.f32.mrb[0].mxu0
      %v2987 = vadd.f32 0.0, %v2986
      %v2988 = vpop.f32.mrb[0].mxu0
      %2989 = vmatprep.mubr.bf16.mxu0 0
      %2990 = vmatmul.mubr.bf16.gmra.mrb[0].mxu0 %v1701
      %v2991 = vpop.f32.mrb[0].mxu0
      %v2992 = vadd.f32 0.0, %v2991
      %v2993 = vpop.f32.mrb[0].mxu0
      %v2994 = vpop.f32.mrb[0].mxu0
      %v2995 = vadd.f32 0.0, %v2994
      %v2996 = vpop.f32.mrb[0].mxu0
      %2997 = vmatprep.mubr.bf16.mxu0 0
      %2998 = vmatmul.mubr.bf16.gmra.mrb[0].mxu0 %v1704
      %v2999 = vpop.f32.mrb[0].mxu0
      %v3000 = vadd.f32 0.0, %v2999
      %v3001 = vpop.f32.mrb[0].mxu0
      %v3002 = vpop.f32.mrb[0].mxu0
      %v3003 = vadd.f32 0.0, %v3002
      %v3004 = vpop.f32.mrb[0].mxu0
      %3005 = vmatprep.mubr.bf16.mxu0 0
      %3006 = vmatmul.mubr.bf16.gmra.mrb[0].mxu0 %v1707
      %v3007 = vpop.f32.mrb[0].mxu0
      %v3008 = vadd.f32 0.0, %v3007
      %v3009 = vpop.f32.mrb[0].mxu0
      %v3010 = vpop.f32.mrb[0].mxu0
      %v3011 = vadd.f32 0.0, %v3010
      %v3012 = vpop.f32.mrb[0].mxu0
      %3013 = vmatprep.mubr.bf16.mxu0 0
      %3014 = vmatmul.mubr.bf16.gmra.mrb[0].mxu0 %v1710
      %v3015 = vpop.f32.mrb[0].mxu0
      %v3016 = vadd.f32 0.0, %v3015
      %v3017 = vpop.f32.mrb[0].mxu0
      %v3018 = vpop.f32.mrb[0].mxu0
      %v3019 = vadd.f32 0.0, %v3018
      %v3020 = vpop.f32.mrb[0].mxu0
      %3021 = vmatprep.mubr.bf16.mxu0 0
      %3022 = vmatmul.mubr.bf16.gmra.mrb[0].mxu0 %v2262
      %v3023 = vpop.f32.mrb[0].mxu0
      %v3024 = vadd.f32 0.0, %v3023
      %v3025 = vpop.f32.mrb[0].mxu0
      %v3026 = vpop.f32.mrb[0].mxu0
      %v3027 = vadd.f32 0.0, %v3026
      %v3028 = vpop.f32.mrb[0].mxu0
      %3029 = vmatprep.mubr.bf16.mxu0 0
      %3030 = vmatmul.mubr.bf16.gmra.mrb[0].mxu0 %v2872
      %v3031 = vpop.f32.mrb[0].mxu0
      %v3032 = vadd.f32 0.0, %v3031
      %v3033 = vpop.f32.mrb[0].mxu0
      %v3034 = vpop.f32.mrb[0].mxu0
      %v3035 = vadd.f32 0.0, %v3034
      %v3036 = vpop.f32.mrb[0].mxu0
      %3037 = vdwg.mxu0
      %v3038 = vadd.f32 %v2835, %v2912
      %v3039 = vadd.f32 %v2836, %v2915
      %v3040 = vadd.f32 %v2837, %v2920
      %v3041 = vadd.f32 %v2838, %v2923
      %v3042 = vadd.f32 %v2839, %v2928
      %v3043 = vadd.f32 %v2840, %v2931
      %v3044 = vadd.f32 %v2841, %v2936
      %v3045 = vadd.f32 %v2842, %v2939
      %v3046 = vadd.f32 %v2843, %v2944
      %v3047 = vadd.f32 %v2844, %v2947
      %v3048 = vadd.f32 %v2845, %v2952
      %v3049 = vadd.f32 %v2846, %v2955
      %v3050 = vadd.f32 %v2847, %v2960
      %v3051 = vadd.f32 %v2848, %v2963
      %v3052 = vadd.f32 %v2849, %v2968
      %v3053 = vadd.f32 %v2850, %v2971
      %v3054 = vadd.f32 %v2851, %v2976
      %v3055 = vadd.f32 %v2852, %v2979
      %v3056 = vadd.f32 %v2853, %v2984
      %v3057 = vadd.f32 %v2854, %v2987
      %v3058 = vadd.f32 %v2855, %v2992
      %v3059 = vadd.f32 %v2856, %v2995
      %v3060 = vadd.f32 %v2857, %v3000
      %v3061 = vadd.f32 %v2858, %v3003
      %v3062 = vadd.f32 %v2859, %v3008
      %v3063 = vadd.f32 %v2860, %v3011
      %v3064 = vadd.f32 %v2861, %v3016
      %v3065 = vadd.f32 %v2862, %v3019
      %v3066 = vadd.f32 %v2863, %v3024
      %v3067 = vadd.f32 %v2864, %v3027
      %v3068 = vadd.f32 %v2865, %v3032
      %v3069 = vadd.f32 %v2866, %v3035
      %s3070 = scalar_lea.vmem %s3, 28
      %v3071 = vld [vmem:[%s3070] sm:$0xf]
      %v3073 = vsel %vm1502, %v3071, 0
      %3075 = vmatprep.subr.bf16.mxu0 0
      %3076 = vmatpush1.bf16.msra.mxu0 %v3073
      %3077 = vmatprep.subr.bf16.mxu0 0
      %3078 = vmatpush1.bf16.msra.mxu0 0
      %3079 = vmatprep.subr.bf16.mxu0 0
      %3080 = vmatpush1.bf16.msra.mxu0 0
      %3081 = vmatprep.subr.bf16.mxu0 0
      %3082 = vmatpush1.bf16.msra.mxu0 0
      %3083 = vmatprep.subr.bf16.mxu0 0
      %3084 = vmatpush1.bf16.msra.mxu0 0
      %3085 = vmatprep.subr.bf16.mxu0 0
      %3086 = vmatpush1.bf16.msra.mxu0 0
      %3087 = vmatprep.subr.bf16.mxu0 0
      %3088 = vmatpush1.bf16.msra.mxu0 0
      %3089 = vmatprep.subr.bf16.mxu0 0
      %3090 = vmatpush1.bf16.msra.mxu0 0
      %3091 = vmatprep.subr.bf16.mxu0 0
      %3092 = vmatpush1.bf16.msra.mxu0 0
      %3093 = vmatprep.subr.bf16.mxu0 0
      %3094 = vmatpush1.bf16.msra.mxu0 0
      %3095 = vmatprep.subr.bf16.mxu0 0
      %3096 = vmatpush1.bf16.msra.mxu0 0
      %3097 = vmatprep.subr.bf16.mxu0 0
      %3098 = vmatpush1.bf16.msra.mxu0 0
      %3099 = vmatprep.subr.bf16.mxu0 0
      %3100 = vmatpush1.bf16.msra.mxu0 0
      %3101 = vmatprep.subr.bf16.mxu0 0
      %3102 = vmatpush1.bf16.msra.mxu0 0
      %3103 = vmatprep.subr.bf16.mxu0 0
      %3104 = vmatpush1.bf16.msra.mxu0 0
      %3105 = vmatprep.subr.bf16.mxu0 0
      %3106 = vmatpush1.bf16.msra.mxu0 0
      %3107 = vmatprep.mubr.bf16.mxu0 0
      %3108 = vmatmul.mubr.bf16.gmra.mrb[0].mxu0 %v1461
      %v3109 = vpop.f32.mrb[0].mxu0
      %v3110 = vadd.f32 0.0, %v3109
      %v3111 = vpop.f32.mrb[0].mxu0
      %v3112 = vpop.f32.mrb[0].mxu0
      %v3113 = vadd.f32 0.0, %v3112
      %v3114 = vpop.f32.mrb[0].mxu0
      %3115 = vmatprep.mubr.bf16.mxu0 0
      %3116 = vmatmul.mubr.bf16.gmra.mrb[0].mxu0 %v1464
      %v3117 = vpop.f32.mrb[0].mxu0
      %v3118 = vadd.f32 0.0, %v3117
      %v3119 = vpop.f32.mrb[0].mxu0
      %v3120 = vpop.f32.mrb[0].mxu0
      %v3121 = vadd.f32 0.0, %v3120
      %v3122 = vpop.f32.mrb[0].mxu0
      %3123 = vmatprep.mubr.bf16.mxu0 0
      %3124 = vmatmul.mubr.bf16.gmra.mrb[0].mxu0 %v1467
      %v3125 = vpop.f32.mrb[0].mxu0
      %v3126 = vadd.f32 0.0, %v3125
      %v3127 = vpop.f32.mrb[0].mxu0
      %v3128 = vpop.f32.mrb[0].mxu0
      %v3129 = vadd.f32 0.0, %v3128
      %v3130 = vpop.f32.mrb[0].mxu0
      %3131 = vmatprep.mubr.bf16.mxu0 0
      %3132 = vmatmul.mubr.bf16.gmra.mrb[0].mxu0 %v1470
      %v3133 = vpop.f32.mrb[0].mxu0
      %v3134 = vadd.f32 0.0, %v3133
      %v3135 = vpop.f32.mrb[0].mxu0
      %v3136 = vpop.f32.mrb[0].mxu0
      %v3137 = vadd.f32 0.0, %v3136
      %v3138 = vpop.f32.mrb[0].mxu0
      %3139 = vmatprep.mubr.bf16.mxu0 0
      %3140 = vmatmul.mubr.bf16.gmra.mrb[0].mxu0 %v1473
      %v3141 = vpop.f32.mrb[0].mxu0
      %v3142 = vadd.f32 0.0, %v3141
      %v3143 = vpop.f32.mrb[0].mxu0
      %v3144 = vpop.f32.mrb[0].mxu0
      %v3145 = vadd.f32 0.0, %v3144
      %v3146 = vpop.f32.mrb[0].mxu0
      %3147 = vmatprep.mubr.bf16.mxu0 0
      %3148 = vmatmul.mubr.bf16.gmra.mrb[0].mxu0 %v1476
      %v3149 = vpop.f32.mrb[0].mxu0
      %v3150 = vadd.f32 0.0, %v3149
      %v3151 = vpop.f32.mrb[0].mxu0
      %v3152 = vpop.f32.mrb[0].mxu0
      %v3153 = vadd.f32 0.0, %v3152
      %v3154 = vpop.f32.mrb[0].mxu0
      %3155 = vmatprep.mubr.bf16.mxu0 0
      %3156 = vmatmul.mubr.bf16.gmra.mrb[0].mxu0 %v1479
      %v3157 = vpop.f32.mrb[0].mxu0
      %v3158 = vadd.f32 0.0, %v3157
      %v3159 = vpop.f32.mrb[0].mxu0
      %v3160 = vpop.f32.mrb[0].mxu0
      %v3161 = vadd.f32 0.0, %v3160
      %v3162 = vpop.f32.mrb[0].mxu0
      %3163 = vmatprep.mubr.bf16.mxu0 0
      %3164 = vmatmul.mubr.bf16.gmra.mrb[0].mxu0 %v1482
      %v3165 = vpop.f32.mrb[0].mxu0
      %v3166 = vadd.f32 0.0, %v3165
      %v3167 = vpop.f32.mrb[0].mxu0
      %v3168 = vpop.f32.mrb[0].mxu0
      %v3169 = vadd.f32 0.0, %v3168
      %v3170 = vpop.f32.mrb[0].mxu0
      %3171 = vmatprep.mubr.bf16.mxu0 0
      %3172 = vmatmul.mubr.bf16.gmra.mrb[0].mxu0 %v1485
      %v3173 = vpop.f32.mrb[0].mxu0
      %v3174 = vadd.f32 0.0, %v3173
      %v3175 = vpop.f32.mrb[0].mxu0
      %v3176 = vpop.f32.mrb[0].mxu0
      %v3177 = vadd.f32 0.0, %v3176
      %v3178 = vpop.f32.mrb[0].mxu0
      %3179 = vmatprep.mubr.bf16.mxu0 0
      %3180 = vmatmul.mubr.bf16.gmra.mrb[0].mxu0 %v1488
      %v3181 = vpop.f32.mrb[0].mxu0
      %v3182 = vadd.f32 0.0, %v3181
      %v3183 = vpop.f32.mrb[0].mxu0
      %v3184 = vpop.f32.mrb[0].mxu0
      %v3185 = vadd.f32 0.0, %v3184
      %v3186 = vpop.f32.mrb[0].mxu0
      %3187 = vmatprep.mubr.bf16.mxu0 0
      %3188 = vmatmul.mubr.bf16.gmra.mrb[0].mxu0 %v1491
      %v3189 = vpop.f32.mrb[0].mxu0
      %v3190 = vadd.f32 0.0, %v3189
      %v3191 = vpop.f32.mrb[0].mxu0
      %v3192 = vpop.f32.mrb[0].mxu0
      %v3193 = vadd.f32 0.0, %v3192
      %v3194 = vpop.f32.mrb[0].mxu0
      %3195 = vmatprep.mubr.bf16.mxu0 0
      %3196 = vmatmul.mubr.bf16.gmra.mrb[0].mxu0 %v1494
      %v3197 = vpop.f32.mrb[0].mxu0
      %v3198 = vadd.f32 0.0, %v3197
      %v3199 = vpop.f32.mrb[0].mxu0
      %v3200 = vpop.f32.mrb[0].mxu0
      %v3201 = vadd.f32 0.0, %v3200
      %v3202 = vpop.f32.mrb[0].mxu0
      %3203 = vmatprep.mubr.bf16.mxu0 0
      %3204 = vmatmul.mubr.bf16.gmra.mrb[0].mxu0 %v1497
      %v3205 = vpop.f32.mrb[0].mxu0
      %v3206 = vadd.f32 0.0, %v3205
      %v3207 = vpop.f32.mrb[0].mxu0
      %v3208 = vpop.f32.mrb[0].mxu0
      %v3209 = vadd.f32 0.0, %v3208
      %v3210 = vpop.f32.mrb[0].mxu0
      %3211 = vmatprep.mubr.bf16.mxu0 0
      %3212 = vmatmul.mubr.bf16.gmra.mrb[0].mxu0 %v1500
      %v3213 = vpop.f32.mrb[0].mxu0
      %v3214 = vadd.f32 0.0, %v3213
      %v3215 = vpop.f32.mrb[0].mxu0
      %v3216 = vpop.f32.mrb[0].mxu0
      %v3217 = vadd.f32 0.0, %v3216
      %v3218 = vpop.f32.mrb[0].mxu0
      %3219 = vmatprep.mubr.bf16.mxu0 0
      %3220 = vmatmul.mubr.bf16.gmra.mrb[0].mxu0 %v2463
      %v3221 = vpop.f32.mrb[0].mxu0
      %v3222 = vadd.f32 0.0, %v3221
      %v3223 = vpop.f32.mrb[0].mxu0
      %v3224 = vpop.f32.mrb[0].mxu0
      %v3225 = vadd.f32 0.0, %v3224
      %v3226 = vpop.f32.mrb[0].mxu0
      %3227 = vmatprep.mubr.bf16.mxu0 0
      %3228 = vmatmul.mubr.bf16.gmra.mrb[0].mxu0 %v1455
      %v3229 = vpop.f32.mrb[0].mxu0
      %v3230 = vadd.f32 0.0, %v3229
      %v3231 = vpop.f32.mrb[0].mxu0
      %v3232 = vpop.f32.mrb[0].mxu0
      %v3233 = vadd.f32 0.0, %v3232
      %v3234 = vpop.f32.mrb[0].mxu0
      %3235 = vdwg.mxu0
      %v3236 = vadd.f32 %v3038, %v3110
      %v3237 = vadd.f32 %v3039, %v3113
      %v3238 = vadd.f32 %v3040, %v3118
      %v3239 = vadd.f32 %v3041, %v3121
      %v3240 = vadd.f32 %v3042, %v3126
      %v3241 = vadd.f32 %v3043, %v3129
      %v3242 = vadd.f32 %v3044, %v3134
      %v3243 = vadd.f32 %v3045, %v3137
      %v3244 = vadd.f32 %v3046, %v3142
      %v3245 = vadd.f32 %v3047, %v3145
      %v3246 = vadd.f32 %v3048, %v3150
      %v3247 = vadd.f32 %v3049, %v3153
      %v3248 = vadd.f32 %v3050, %v3158
      %v3249 = vadd.f32 %v3051, %v3161
      %v3250 = vadd.f32 %v3052, %v3166
      %v3251 = vadd.f32 %v3053, %v3169
      %v3252 = vadd.f32 %v3054, %v3174
      %v3253 = vadd.f32 %v3055, %v3177
      %v3254 = vadd.f32 %v3056, %v3182
      %v3255 = vadd.f32 %v3057, %v3185
      %v3256 = vadd.f32 %v3058, %v3190
      %v3257 = vadd.f32 %v3059, %v3193
      %v3258 = vadd.f32 %v3060, %v3198
      %v3259 = vadd.f32 %v3061, %v3201
      %v3260 = vadd.f32 %v3062, %v3206
      %v3261 = vadd.f32 %v3063, %v3209
      %v3262 = vadd.f32 %v3064, %v3214
      %v3263 = vadd.f32 %v3065, %v3217
      %v3264 = vadd.f32 %v3066, %v3222
      %v3265 = vadd.f32 %v3067, %v3225
      %v3266 = vadd.f32 %v3068, %v3230
      %v3267 = vadd.f32 %v3069, %v3233
      %s3268 = scalar_lea.vmem %s3, 32
      %v3269 = vld [vmem:[%s3268] sm:$0xf]
      %v3271 = vsel %vm1502, %v3269, 0
      %3273 = vmatprep.subr.bf16.mxu0 0
      %3274 = vmatpush1.bf16.msra.mxu0 %v3271
      %3275 = vmatprep.subr.bf16.mxu0 0
      %3276 = vmatpush1.bf16.msra.mxu0 0
      %3277 = vmatprep.subr.bf16.mxu0 0
      %3278 = vmatpush1.bf16.msra.mxu0 0
      %3279 = vmatprep.subr.bf16.mxu0 0
      %3280 = vmatpush1.bf16.msra.mxu0 0
      %3281 = vmatprep.subr.bf16.mxu0 0
      %3282 = vmatpush1.bf16.msra.mxu0 0
      %3283 = vmatprep.subr.bf16.mxu0 0
      %3284 = vmatpush1.bf16.msra.mxu0 0
      %3285 = vmatprep.subr.bf16.mxu0 0
      %3286 = vmatpush1.bf16.msra.mxu0 0
      %3287 = vmatprep.subr.bf16.mxu0 0
      %3288 = vmatpush1.bf16.msra.mxu0 0
      %3289 = vmatprep.subr.bf16.mxu0 0
      %3290 = vmatpush1.bf16.msra.mxu0 0
      %3291 = vmatprep.subr.bf16.mxu0 0
      %3292 = vmatpush1.bf16.msra.mxu0 0
      %3293 = vmatprep.subr.bf16.mxu0 0
      %3294 = vmatpush1.bf16.msra.mxu0 0
      %3295 = vmatprep.subr.bf16.mxu0 0
      %3296 = vmatpush1.bf16.msra.mxu0 0
      %3297 = vmatprep.subr.bf16.mxu0 0
      %3298 = vmatpush1.bf16.msra.mxu0 0
      %3299 = vmatprep.subr.bf16.mxu0 0
      %3300 = vmatpush1.bf16.msra.mxu0 0
      %3301 = vmatprep.subr.bf16.mxu0 0
      %3302 = vmatpush1.bf16.msra.mxu0 0
      %3303 = vmatprep.subr.bf16.mxu0 0
      %3304 = vmatpush1.bf16.msra.mxu0 0
      %3305 = vmatprep.mubr.bf16.mxu0 0
      %3306 = vmatmul.mubr.bf16.gmra.mrb[0].mxu0 %v2014
      %v3307 = vpop.f32.mrb[0].mxu0
      %v3308 = vadd.f32 0.0, %v3307
      %v3309 = vpop.f32.mrb[0].mxu0
      %v3310 = vpop.f32.mrb[0].mxu0
      %v3311 = vadd.f32 0.0, %v3310
      %v3312 = vpop.f32.mrb[0].mxu0
      %3313 = vmatprep.mubr.bf16.mxu0 0
      %3314 = vmatmul.mubr.bf16.gmra.mrb[0].mxu0 %v2017
      %v3315 = vpop.f32.mrb[0].mxu0
      %v3316 = vadd.f32 0.0, %v3315
      %v3317 = vpop.f32.mrb[0].mxu0
      %v3318 = vpop.f32.mrb[0].mxu0
      %v3319 = vadd.f32 0.0, %v3318
      %v3320 = vpop.f32.mrb[0].mxu0
      %3321 = vmatprep.mubr.bf16.mxu0 0
      %3322 = vmatmul.mubr.bf16.gmra.mrb[0].mxu0 %v2020
      %v3323 = vpop.f32.mrb[0].mxu0
      %v3324 = vadd.f32 0.0, %v3323
      %v3325 = vpop.f32.mrb[0].mxu0
      %v3326 = vpop.f32.mrb[0].mxu0
      %v3327 = vadd.f32 0.0, %v3326
      %v3328 = vpop.f32.mrb[0].mxu0
      %3329 = vmatprep.mubr.bf16.mxu0 0
      %3330 = vmatmul.mubr.bf16.gmra.mrb[0].mxu0 %v2023
      %v3331 = vpop.f32.mrb[0].mxu0
      %v3332 = vadd.f32 0.0, %v3331
      %v3333 = vpop.f32.mrb[0].mxu0
      %v3334 = vpop.f32.mrb[0].mxu0
      %v3335 = vadd.f32 0.0, %v3334
      %v3336 = vpop.f32.mrb[0].mxu0
      %3337 = vmatprep.mubr.bf16.mxu0 0
      %3338 = vmatmul.mubr.bf16.gmra.mrb[0].mxu0 %v2026
      %v3339 = vpop.f32.mrb[0].mxu0
      %v3340 = vadd.f32 0.0, %v3339
      %v3341 = vpop.f32.mrb[0].mxu0
      %v3342 = vpop.f32.mrb[0].mxu0
      %v3343 = vadd.f32 0.0, %v3342
      %v3344 = vpop.f32.mrb[0].mxu0
      %3345 = vmatprep.mubr.bf16.mxu0 0
      %3346 = vmatmul.mubr.bf16.gmra.mrb[0].mxu0 %v2029
      %v3347 = vpop.f32.mrb[0].mxu0
      %v3348 = vadd.f32 0.0, %v3347
      %v3349 = vpop.f32.mrb[0].mxu0
      %v3350 = vpop.f32.mrb[0].mxu0
      %v3351 = vadd.f32 0.0, %v3350
      %v3352 = vpop.f32.mrb[0].mxu0
      %3353 = vmatprep.mubr.bf16.mxu0 0
      %3354 = vmatmul.mubr.bf16.gmra.mrb[0].mxu0 %v2032
      %v3355 = vpop.f32.mrb[0].mxu0
      %v3356 = vadd.f32 0.0, %v3355
      %v3357 = vpop.f32.mrb[0].mxu0
      %v3358 = vpop.f32.mrb[0].mxu0
      %v3359 = vadd.f32 0.0, %v3358
      %v3360 = vpop.f32.mrb[0].mxu0
      %3361 = vmatprep.mubr.bf16.mxu0 0
      %3362 = vmatmul.mubr.bf16.gmra.mrb[0].mxu0 %v2035
      %v3363 = vpop.f32.mrb[0].mxu0
      %v3364 = vadd.f32 0.0, %v3363
      %v3365 = vpop.f32.mrb[0].mxu0
      %v3366 = vpop.f32.mrb[0].mxu0
      %v3367 = vadd.f32 0.0, %v3366
      %v3368 = vpop.f32.mrb[0].mxu0
      %3369 = vmatprep.mubr.bf16.mxu0 0
      %3370 = vmatmul.mubr.bf16.gmra.mrb[0].mxu0 %v2038
      %v3371 = vpop.f32.mrb[0].mxu0
      %v3372 = vadd.f32 0.0, %v3371
      %v3373 = vpop.f32.mrb[0].mxu0
      %v3374 = vpop.f32.mrb[0].mxu0
      %v3375 = vadd.f32 0.0, %v3374
      %v3376 = vpop.f32.mrb[0].mxu0
      %3377 = vmatprep.mubr.bf16.mxu0 0
      %3378 = vmatmul.mubr.bf16.gmra.mrb[0].mxu0 %v2041
      %v3379 = vpop.f32.mrb[0].mxu0
      %v3380 = vadd.f32 0.0, %v3379
      %v3381 = vpop.f32.mrb[0].mxu0
      %v3382 = vpop.f32.mrb[0].mxu0
      %v3383 = vadd.f32 0.0, %v3382
      %v3384 = vpop.f32.mrb[0].mxu0
      %3385 = vmatprep.mubr.bf16.mxu0 0
      %3386 = vmatmul.mubr.bf16.gmra.mrb[0].mxu0 %v2044
      %v3387 = vpop.f32.mrb[0].mxu0
      %v3388 = vadd.f32 0.0, %v3387
      %v3389 = vpop.f32.mrb[0].mxu0
      %v3390 = vpop.f32.mrb[0].mxu0
      %v3391 = vadd.f32 0.0, %v3390
      %v3392 = vpop.f32.mrb[0].mxu0
      %3393 = vmatprep.mubr.bf16.mxu0 0
      %3394 = vmatmul.mubr.bf16.gmra.mrb[0].mxu0 %v2047
      %v3395 = vpop.f32.mrb[0].mxu0
      %v3396 = vadd.f32 0.0, %v3395
      %v3397 = vpop.f32.mrb[0].mxu0
      %v3398 = vpop.f32.mrb[0].mxu0
      %v3399 = vadd.f32 0.0, %v3398
      %v3400 = vpop.f32.mrb[0].mxu0
      %3401 = vmatprep.mubr.bf16.mxu0 0
      %3402 = vmatmul.mubr.bf16.gmra.mrb[0].mxu0 %v2050
      %v3403 = vpop.f32.mrb[0].mxu0
      %v3404 = vadd.f32 0.0, %v3403
      %v3405 = vpop.f32.mrb[0].mxu0
      %v3406 = vpop.f32.mrb[0].mxu0
      %v3407 = vadd.f32 0.0, %v3406
      %v3408 = vpop.f32.mrb[0].mxu0
      %3409 = vmatprep.mubr.bf16.mxu0 0
      %3410 = vmatmul.mubr.bf16.gmra.mrb[0].mxu0 %v2053
      %v3411 = vpop.f32.mrb[0].mxu0
      %v3412 = vadd.f32 0.0, %v3411
      %v3413 = vpop.f32.mrb[0].mxu0
      %v3414 = vpop.f32.mrb[0].mxu0
      %v3415 = vadd.f32 0.0, %v3414
      %v3416 = vpop.f32.mrb[0].mxu0
      %3417 = vmatprep.mubr.bf16.mxu0 0
      %3418 = vmatmul.mubr.bf16.gmra.mrb[0].mxu0 %v2669
      %v3419 = vpop.f32.mrb[0].mxu0
      %v3420 = vadd.f32 0.0, %v3419
      %v3421 = vpop.f32.mrb[0].mxu0
      %v3422 = vpop.f32.mrb[0].mxu0
      %v3423 = vadd.f32 0.0, %v3422
      %v3424 = vpop.f32.mrb[0].mxu0
      %3425 = vmatprep.mubr.bf16.mxu0 0
      %3426 = vmatmul.mubr.bf16.gmra.mrb[0].mxu0 %v1455
      %v3427 = vpop.f32.mrb[0].mxu0
      %v3428 = vadd.f32 0.0, %v3427
      %v3429 = vpop.f32.mrb[0].mxu0
      %v3430 = vpop.f32.mrb[0].mxu0
      %v3431 = vadd.f32 0.0, %v3430
      %v3432 = vpop.f32.mrb[0].mxu0
      %3433 = vdwg.mxu0
      %v3434 = vadd.f32 %v3236, %v3308
      %v3435 = vadd.f32 %v3237, %v3311
      %v3436 = vadd.f32 %v3238, %v3316
      %v3437 = vadd.f32 %v3239, %v3319
      %v3438 = vadd.f32 %v3240, %v3324
      %v3439 = vadd.f32 %v3241, %v3327
      %v3440 = vadd.f32 %v3242, %v3332
      %v3441 = vadd.f32 %v3243, %v3335
      %v3442 = vadd.f32 %v3244, %v3340
      %v3443 = vadd.f32 %v3245, %v3343
      %v3444 = vadd.f32 %v3246, %v3348
      %v3445 = vadd.f32 %v3247, %v3351
      %v3446 = vadd.f32 %v3248, %v3356
      %v3447 = vadd.f32 %v3249, %v3359
      %v3448 = vadd.f32 %v3250, %v3364
      %v3449 = vadd.f32 %v3251, %v3367
      %v3450 = vadd.f32 %v3252, %v3372
      %v3451 = vadd.f32 %v3253, %v3375
      %v3452 = vadd.f32 %v3254, %v3380
      %v3453 = vadd.f32 %v3255, %v3383
      %v3454 = vadd.f32 %v3256, %v3388
      %v3455 = vadd.f32 %v3257, %v3391
      %v3456 = vadd.f32 %v3258, %v3396
      %v3457 = vadd.f32 %v3259, %v3399
      %v3458 = vadd.f32 %v3260, %v3404
      %v3459 = vadd.f32 %v3261, %v3407
      %v3460 = vadd.f32 %v3262, %v3412
      %v3461 = vadd.f32 %v3263, %v3415
      %v3462 = vadd.f32 %v3264, %v3420
      %v3463 = vadd.f32 %v3265, %v3423
      %v3464 = vadd.f32 %v3266, %v3428
      %v3465 = vadd.f32 %v3267, %v3431
      %v3466 = vpack.c.bf16 %v3435, %v3434
      %v3467 = vpack.c.bf16 %v3437, %v3436
      %v3468 = vpack.c.bf16 %v3439, %v3438
      %v3469 = vpack.c.bf16 %v3441, %v3440
      %v3470 = vpack.c.bf16 %v3443, %v3442
      %v3471 = vpack.c.bf16 %v3445, %v3444
      %v3472 = vpack.c.bf16 %v3447, %v3446
      %v3473 = vpack.c.bf16 %v3449, %v3448
      %v3474 = vpack.c.bf16 %v3451, %v3450
      %v3475 = vpack.c.bf16 %v3453, %v3452
      %v3476 = vpack.c.bf16 %v3455, %v3454
      %v3477 = vpack.c.bf16 %v3457, %v3456
      %v3478 = vpack.c.bf16 %v3459, %v3458
      %v3479 = vpack.c.bf16 %v3461, %v3460
      %v3480 = vpack.c.bf16 %v3463, %v3462
      %v3481 = vpack.c.bf16 %v3465, %v3464
      %v3498 = vunpack.c.l.b16 %v3466
      %v3499 = vunpack.c.h.b16 %v3466
      %v3500 = vunpack.c.l.b16 %v3467
      %v3501 = vunpack.c.h.b16 %v3467
      %v3502 = vunpack.c.l.b16 %v3468
      %v3503 = vunpack.c.h.b16 %v3468
      %v3504 = vunpack.c.l.b16 %v3469
      %v3505 = vunpack.c.h.b16 %v3469
      %v3506 = vunpack.c.l.b16 %v3470
      %v3507 = vunpack.c.h.b16 %v3470
      %v3508 = vunpack.c.l.b16 %v3471
      %v3509 = vunpack.c.h.b16 %v3471
      %v3510 = vunpack.c.l.b16 %v3472
      %v3511 = vunpack.c.h.b16 %v3472
      %v3512 = vunpack.c.l.b16 %v3473
      %v3513 = vunpack.c.h.b16 %v3473
      %v3514 = vunpack.c.l.b16 %v3474
      %v3515 = vunpack.c.h.b16 %v3474
      %v3516 = vunpack.c.l.b16 %v3475
      %v3517 = vunpack.c.h.b16 %v3475
      %v3518 = vunpack.c.l.b16 %v3476
      %v3519 = vunpack.c.h.b16 %v3476
      %v3520 = vunpack.c.l.b16 %v3477
      %v3521 = vunpack.c.h.b16 %v3477
      %v3522 = vunpack.c.l.b16 %v3478
      %v3523 = vunpack.c.h.b16 %v3478
      %v3524 = vunpack.c.l.b16 %v3479
      %v3525 = vunpack.c.h.b16 %v3479
      %v3526 = vunpack.c.l.b16 %v3480
      %v3527 = vunpack.c.h.b16 %v3480
      %v3528 = vunpack.c.l.b16 %v3481
      %v3529 = vunpack.c.h.b16 %v3481
      %v3530 = vpack.c.b16 %v3498, %v3498
      %v3531 = vpack.c.b16 %v3499, %v3499
      %v3532 = vpack.c.b16 %v3500, %v3500
      %v3533 = vpack.c.b16 %v3501, %v3501
      %v3534 = vpack.c.b16 %v3502, %v3502
      %v3535 = vpack.c.b16 %v3503, %v3503
      %v3536 = vpack.c.b16 %v3504, %v3504
      %v3537 = vpack.c.b16 %v3505, %v3505
      %v3538 = vpack.c.b16 %v3506, %v3506
      %v3539 = vpack.c.b16 %v3507, %v3507
      %v3540 = vpack.c.b16 %v3508, %v3508
      %v3541 = vpack.c.b16 %v3509, %v3509
      %v3542 = vpack.c.b16 %v3510, %v3510
      %v3543 = vpack.c.b16 %v3511, %v3511
      %v3544 = vpack.c.b16 %v3512, %v3512
      %v3545 = vpack.c.b16 %v3513, %v3513
      %v3546 = vpack.c.b16 %v3514, %v3514
      %v3547 = vpack.c.b16 %v3515, %v3515
      %v3548 = vpack.c.b16 %v3516, %v3516
      %v3549 = vpack.c.b16 %v3517, %v3517
      %v3550 = vpack.c.b16 %v3518, %v3518
      %v3551 = vpack.c.b16 %v3519, %v3519
      %v3552 = vpack.c.b16 %v3520, %v3520
      %v3553 = vpack.c.b16 %v3521, %v3521
      %v3554 = vpack.c.b16 %v3522, %v3522
      %v3555 = vpack.c.b16 %v3523, %v3523
      %v3556 = vpack.c.b16 %v3524, %v3524
      %v3557 = vpack.c.b16 %v3525, %v3525
      %v3558 = vpack.c.b16 %v3526, %v3526
      %v3559 = vpack.c.b16 %v3527, %v3527
      %v3560 = vpack.c.b16 %v3528, %v3528
      %v3561 = vpack.c.b16 %v3529, %v3529
      %vm3594 = vcmask 60416
      %3595 = vst.msk [vmem:[%s231] sm:$0xf] %vm3594, %v3530
      %3596 = vst.msk [vmem:[%s231 + $0x4] sm:$0xf] %vm3594, %v3531
      %3597 = vst.msk [vmem:[%s231 + $0x8] sm:$0xf] %vm3594, %v3532
      %3598 = vst.msk [vmem:[%s231 + $0xc] sm:$0xf] %vm3594, %v3533
      %3599 = vst.msk [vmem:[%s231 + $0x10] sm:$0xf] %vm3594, %v3534
      %3600 = vst.msk [vmem:[%s231 + $0x14] sm:$0xf] %vm3594, %v3535
      %3601 = vst.msk [vmem:[%s231 + $0x18] sm:$0xf] %vm3594, %v3536
      %3602 = vst.msk [vmem:[%s231 + $0x1c] sm:$0xf] %vm3594, %v3537
      %3603 = vst.msk [vmem:[%s231 + $0x20] sm:$0xf] %vm3594, %v3538
      %3604 = vst.msk [vmem:[%s231 + $0x24] sm:$0xf] %vm3594, %v3539
      %3605 = vst.msk [vmem:[%s231 + $0x28] sm:$0xf] %vm3594, %v3540
      %3606 = vst.msk [vmem:[%s231 + $0x2c] sm:$0xf] %vm3594, %v3541
      %3607 = vst.msk [vmem:[%s231 + $0x30] sm:$0xf] %vm3594, %v3542
      %3608 = vst.msk [vmem:[%s231 + $0x34] sm:$0xf] %vm3594, %v3543
      %3609 = vst.msk [vmem:[%s231 + $0x38] sm:$0xf] %vm3594, %v3544
      %3610 = vst.msk [vmem:[%s231 + $0x3c] sm:$0xf] %vm3594, %v3545
      %3611 = vst.msk [vmem:[%s231 + $0x40] sm:$0xf] %vm3594, %v3546
      %3612 = vst.msk [vmem:[%s231 + $0x44] sm:$0xf] %vm3594, %v3547
      %3613 = vst.msk [vmem:[%s231 + $0x48] sm:$0xf] %vm3594, %v3548
      %3614 = vst.msk [vmem:[%s231 + $0x4c] sm:$0xf] %vm3594, %v3549
      %3615 = vst.msk [vmem:[%s231 + $0x50] sm:$0xf] %vm3594, %v3550
      %3616 = vst.msk [vmem:[%s231 + $0x54] sm:$0xf] %vm3594, %v3551
      %3617 = vst.msk [vmem:[%s231 + $0x58] sm:$0xf] %vm3594, %v3552
      %3618 = vst.msk [vmem:[%s231 + $0x5c] sm:$0xf] %vm3594, %v3553
      %3619 = vst.msk [vmem:[%s231 + $0x60] sm:$0xf] %vm3594, %v3554
      %3620 = vst.msk [vmem:[%s231 + $0x64] sm:$0xf] %vm3594, %v3555
      %3621 = vst.msk [vmem:[%s231 + $0x68] sm:$0xf] %vm3594, %v3556
      %3622 = vst.msk [vmem:[%s231 + $0x6c] sm:$0xf] %vm3594, %v3557
      %3623 = vst.msk [vmem:[%s231 + $0x70] sm:$0xf] %vm3594, %v3558
      %3624 = vst.msk [vmem:[%s231 + $0x74] sm:$0xf] %vm3594, %v3559
      %3625 = vst.msk [vmem:[%s231 + $0x78] sm:$0xf] %vm3594, %v3560
      %3626 = vst.msk [vmem:[%s231 + $0x7c] sm:$0xf] %vm3594, %v3561
      %v3627 = vsel %vm1453, %v3434, 0.0
      %v3628 = vsel %vm1453, %v3435, 0.0
      %v3629 = vadd.f32 %v3627, %v3628
      %v3630 = vsel %vm1453, %v3436, 0.0
      %v3631 = vadd.f32 %v3629, %v3630
      %v3632 = vsel %vm1453, %v3437, 0.0
      %v3633 = vadd.f32 %v3631, %v3632
      %v3634 = vsel %vm1453, %v3438, 0.0
      %v3635 = vadd.f32 %v3633, %v3634
      %v3636 = vsel %vm1453, %v3439, 0.0
      %v3637 = vadd.f32 %v3635, %v3636
      %v3638 = vsel %vm1453, %v3440, 0.0
      %v3639 = vadd.f32 %v3637, %v3638
      %v3640 = vsel %vm1453, %v3441, 0.0
      %v3641 = vadd.f32 %v3639, %v3640
      %v3642 = vsel %vm1453, %v3442, 0.0
      %v3643 = vadd.f32 %v3641, %v3642
      %v3644 = vsel %vm1453, %v3443, 0.0
      %v3645 = vadd.f32 %v3643, %v3644
      %v3646 = vsel %vm1453, %v3444, 0.0
      %v3647 = vadd.f32 %v3645, %v3646
      %v3648 = vsel %vm1453, %v3445, 0.0
      %v3649 = vadd.f32 %v3647, %v3648
      %v3650 = vsel %vm1453, %v3446, 0.0
      %v3651 = vadd.f32 %v3649, %v3650
      %v3652 = vsel %vm1453, %v3447, 0.0
      %v3653 = vadd.f32 %v3651, %v3652
      %v3654 = vsel %vm1453, %v3448, 0.0
      %v3655 = vadd.f32 %v3653, %v3654
      %v3656 = vsel %vm1453, %v3449, 0.0
      %v3657 = vadd.f32 %v3655, %v3656
      %v3658 = vsel %vm1453, %v3450, 0.0
      %v3659 = vadd.f32 %v3657, %v3658
      %v3660 = vsel %vm1453, %v3451, 0.0
      %v3661 = vadd.f32 %v3659, %v3660
      %v3662 = vsel %vm1453, %v3452, 0.0
      %v3663 = vadd.f32 %v3661, %v3662
      %v3664 = vsel %vm1453, %v3453, 0.0
      %v3665 = vadd.f32 %v3663, %v3664
      %v3666 = vsel %vm1453, %v3454, 0.0
      %v3667 = vadd.f32 %v3665, %v3666
      %v3668 = vsel %vm1453, %v3455, 0.0
      %v3669 = vadd.f32 %v3667, %v3668
      %v3670 = vsel %vm1453, %v3456, 0.0
      %v3671 = vadd.f32 %v3669, %v3670
      %v3672 = vsel %vm1453, %v3457, 0.0
      %v3673 = vadd.f32 %v3671, %v3672
      %v3674 = vsel %vm1453, %v3458, 0.0
      %v3675 = vadd.f32 %v3673, %v3674
      %v3676 = vsel %vm1453, %v3459, 0.0
      %v3677 = vadd.f32 %v3675, %v3676
      %v3678 = vsel %vm1453, %v3460, 0.0
      %v3679 = vadd.f32 %v3677, %v3678
      %v3680 = vsel %vm1453, %v3461, 0.0
      %v3681 = vadd.f32 %v3679, %v3680
      %v3682 = vsel %vm1453, %v3462, 0.0
      %v3683 = vadd.f32 %v3681, %v3682
      %v3684 = vsel %vm1453, %v3463, 0.0
      %v3685 = vadd.f32 %v3683, %v3684
      %v3686 = vsel %vm1453, %v3464, 0.0
      %v3687 = vadd.f32 %v3685, %v3686
      %v3688 = vsel %vm1453, %v3465, 0.0
      %v3689 = vadd.f32 %v3687, %v3688
      %v3690 = vrot.slane %v3689, 4
      %v3691 = vadd.f32 %v3689, %v3690
      %v3692 = vrot.slane %v3691, 2
      %v3693 = vadd.f32 %v3691, %v3692
      %v3694 = vrot.slane %v3693, 1
      %v3695 = vadd.f32 %v3693, %v3694
      %v3696 = vmul.f32 %v3434, %v3434
      %v3697 = vmul.f32 %v3435, %v3435
      %v3698 = vmul.f32 %v3436, %v3436
      %v3699 = vmul.f32 %v3437, %v3437
      %v3700 = vmul.f32 %v3438, %v3438
      %v3701 = vmul.f32 %v3439, %v3439
      %v3702 = vmul.f32 %v3440, %v3440
      %v3703 = vmul.f32 %v3441, %v3441
      %v3704 = vmul.f32 %v3442, %v3442
      %v3705 = vmul.f32 %v3443, %v3443
      %v3706 = vmul.f32 %v3444, %v3444
      %v3707 = vmul.f32 %v3445, %v3445
      %v3708 = vmul.f32 %v3446, %v3446
      %v3709 = vmul.f32 %v3447, %v3447
      %v3710 = vmul.f32 %v3448, %v3448
      %v3711 = vmul.f32 %v3449, %v3449
      %v3712 = vmul.f32 %v3450, %v3450
      %v3713 = vmul.f32 %v3451, %v3451
      %v3714 = vmul.f32 %v3452, %v3452
      %v3715 = vmul.f32 %v3453, %v3453
      %v3716 = vmul.f32 %v3454, %v3454
      %v3717 = vmul.f32 %v3455, %v3455
      %v3718 = vmul.f32 %v3456, %v3456
      %v3719 = vmul.f32 %v3457, %v3457
      %v3720 = vmul.f32 %v3458, %v3458
      %v3721 = vmul.f32 %v3459, %v3459
      %v3722 = vmul.f32 %v3460, %v3460
      %v3723 = vmul.f32 %v3461, %v3461
      %v3724 = vmul.f32 %v3462, %v3462
      %v3725 = vmul.f32 %v3463, %v3463
      %v3726 = vmul.f32 %v3464, %v3464
      %v3727 = vmul.f32 %v3465, %v3465
      %v3728 = vsel %vm1453, %v3696, 0.0
      %v3729 = vsel %vm1453, %v3697, 0.0
      %v3730 = vadd.f32 %v3728, %v3729
      %v3731 = vsel %vm1453, %v3698, 0.0
      %v3732 = vadd.f32 %v3730, %v3731
      %v3733 = vsel %vm1453, %v3699, 0.0
      %v3734 = vadd.f32 %v3732, %v3733
      %v3735 = vsel %vm1453, %v3700, 0.0
      %v3736 = vadd.f32 %v3734, %v3735
      %v3737 = vsel %vm1453, %v3701, 0.0
      %v3738 = vadd.f32 %v3736, %v3737
      %v3739 = vsel %vm1453, %v3702, 0.0
      %v3740 = vadd.f32 %v3738, %v3739
      %v3741 = vsel %vm1453, %v3703, 0.0
      %v3742 = vadd.f32 %v3740, %v3741
      %v3743 = vsel %vm1453, %v3704, 0.0
      %v3744 = vadd.f32 %v3742, %v3743
      %v3745 = vsel %vm1453, %v3705, 0.0
      %v3746 = vadd.f32 %v3744, %v3745
      %v3747 = vsel %vm1453, %v3706, 0.0
      %v3748 = vadd.f32 %v3746, %v3747
      %v3749 = vsel %vm1453, %v3707, 0.0
      %v3750 = vadd.f32 %v3748, %v3749
      %v3751 = vsel %vm1453, %v3708, 0.0
      %v3752 = vadd.f32 %v3750, %v3751
      %v3753 = vsel %vm1453, %v3709, 0.0
      %v3754 = vadd.f32 %v3752, %v3753
      %v3755 = vsel %vm1453, %v3710, 0.0
      %v3756 = vadd.f32 %v3754, %v3755
      %v3757 = vsel %vm1453, %v3711, 0.0
      %v3758 = vadd.f32 %v3756, %v3757
      %v3759 = vsel %vm1453, %v3712, 0.0
      %v3760 = vadd.f32 %v3758, %v3759
      %v3761 = vsel %vm1453, %v3713, 0.0
      %v3762 = vadd.f32 %v3760, %v3761
      %v3763 = vsel %vm1453, %v3714, 0.0
      %v3764 = vadd.f32 %v3762, %v3763
      %v3765 = vsel %vm1453, %v3715, 0.0
      %v3766 = vadd.f32 %v3764, %v3765
      %v3767 = vsel %vm1453, %v3716, 0.0
      %v3768 = vadd.f32 %v3766, %v3767
      %v3769 = vsel %vm1453, %v3717, 0.0
      %v3770 = vadd.f32 %v3768, %v3769
      %v3771 = vsel %vm1453, %v3718, 0.0
      %v3772 = vadd.f32 %v3770, %v3771
      %v3773 = vsel %vm1453, %v3719, 0.0
      %v3774 = vadd.f32 %v3772, %v3773
      %v3775 = vsel %vm1453, %v3720, 0.0
      %v3776 = vadd.f32 %v3774, %v3775
      %v3777 = vsel %vm1453, %v3721, 0.0
      %v3778 = vadd.f32 %v3776, %v3777
      %v3779 = vsel %vm1453, %v3722, 0.0
      %v3780 = vadd.f32 %v3778, %v3779
      %v3781 = vsel %vm1453, %v3723, 0.0
      %v3782 = vadd.f32 %v3780, %v3781
      %v3783 = vsel %vm1453, %v3724, 0.0
      %v3784 = vadd.f32 %v3782, %v3783
      %v3785 = vsel %vm1453, %v3725, 0.0
      %v3786 = vadd.f32 %v3784, %v3785
      %v3787 = vsel %vm1453, %v3726, 0.0
      %v3788 = vadd.f32 %v3786, %v3787
      %v3789 = vsel %vm1453, %v3727, 0.0
      %v3790 = vadd.f32 %v3788, %v3789
      %v3791 = vrot.slane %v3790, 4
      %v3792 = vadd.f32 %v3790, %v3791
      %v3793 = vrot.slane %v3792, 2
      %v3794 = vadd.f32 %v3792, %v3793
      %v3795 = vrot.slane %v3794, 1
      %v3796 = vadd.f32 %v3794, %v3795
      %vm3797 = vcmask 1040384
      %v3798 = vsel %vm3797, %v3695, %v3796
      %vm3799 = vcmask 58368
      %3800 = vst.msk [vmem:[%s235] sm:$0x3] %vm3799, %v3798
      %p3801 = scmp.lt.s32.totalorder %s17, 1
      %s3802 = scalar_select %p3801, %s17, 1
      %s3803 = smul.addr %s3802, 32
      %s3804 = smul.addr %s3803, 4
      %s3805 = scalar_lea.vmem %s4, %s3804
      %p3806 = scmp.lt.s32.totalorder %s17, 1
      %s3807 = scalar_select %p3806, %s17, 1
      %s3808 = smul.addr %s3807, 2
      %s3809 = scalar_lea.vmem %s5, %s3808
      // Predicated region
      $region37: #{basic_block_forward.4} parent=35 // pred_check
        %p3810 = pneg %p124
      $region38: #{basic_block_forward.4} parent=35 // pred_check_branch
        %3812 = sbr.rel (%p3810) target = $region40
      $region39: #{basic_block_forward.4} parent=35 // pred_region
        _
      $region40: #{basic_block_forward.4} parent=35 // pred_fallthru
        _
      // Predicated region
      $region41: #{basic_block_forward.4} parent=35 // pred_check
        %p3813 = pneg %p150
      $region42: #{basic_block_forward.4} parent=35 // pred_check_branch
        %3815 = sbr.rel (%p3813) target = $region44
      $region43: #{basic_block_forward.4} parent=35 // pred_region
        _
      $region44: #{basic_block_forward.4} parent=35 // pred_fallthru
        _
    $region36: #{basic_block_forward.4} parent=5 // pred_fallthru
      _
    %p3816 = scmp.le.s32.totalorder 2, %s12
    // Predicated region
    $region45: #{basic_block_forward.4} parent=5 // pred_check
      %p3817 = pneg %p3816
    $region46: #{basic_block_forward.4} parent=5 // pred_check_branch
      %3819 = sbr.rel (%p3817) target = $region48
    $region47: #{basic_block_forward.4} parent=5 // pred_region
      %s3820 = ssub.s32 %s12, 2
      // Predicated region
      $region49: #{basic_block_forward.4} parent=47 // pred_check
        %p3821 = pneg %p130
      $region50: #{basic_block_forward.4} parent=47 // pred_check_branch
        %3823 = sbr.rel (%p3821) target = $region52
      $region51: #{basic_block_forward.4} parent=47 // pred_region
        %p3824 = scmp.lt.s32.totalorder %s18, 1
        %s3825 = scalar_select %p3824, %s18, 1
        %s3826 = smul.addr %s3825, 32
        %s3827 = smul.addr %s3826, 4
        %s3828 = scalar_lea.vmem %s4, %s3827
      $region52: #{basic_block_forward.4} parent=47 // pred_fallthru
        _
      // Predicated region
      $region53: #{basic_block_forward.4} parent=47 // pred_check
        %p3829 = pneg %p156
      $region54: #{basic_block_forward.4} parent=47 // pred_check_branch
        %3831 = sbr.rel (%p3829) target = $region56
      $region55: #{basic_block_forward.4} parent=47 // pred_region
        %p3832 = scmp.lt.s32.totalorder %s18, 1
        %s3833 = scalar_select %p3832, %s18, 1
        %s3834 = smul.addr %s3833, 2
        %s3835 = scalar_lea.vmem %s5, %s3834
      $region56: #{basic_block_forward.4} parent=47 // pred_fallthru
        _
    $region48: #{basic_block_forward.4} parent=5 // pred_fallthru
      _
  $region6: #{basic_block_forward.4} parent=0 // loop_footer
    %s16 = sadd.s32 1, %s12
  $region7: #{basic_block_forward.4} parent=0 // loop_footer_branch
    %11 = sbr.rel target = $region3
  $region8: #{basic_block_forward.4} parent=0 // loop_exit
    _

</llo_original>
